<compile_context>
chip_gen: v5e
topology: v5e:2x2
jax: 0.10.0
libtpu: 0.0.40
codegen_flags: <defaults>
</compile_context>

<pallas_src>
import functools

import jax
import jax.numpy as jnp
from jax import lax
from jax.experimental import pallas as pl
from jax.experimental.pallas import tpu as pltpu

VOCAB = 128        # scaled-down vocab_size
EMBED = 32         # embed_size  (== hidden_size, as in the module defaults)
HIDDEN = 32        # hidden_size
NUM_LAYERS = 4     # num_layers
PAD_ID = 1


def _full_spec(shape):
    nd = len(shape)
    return pl.BlockSpec(shape, lambda i, _nd=nd: (0,) * _nd)


# ------------------------- fused decoder kernel ---------------------------- #
def decoder_kernel(x_ref, emb_ref, h0_ref, c0_ref, enc_ref, pad_ref,
                   w_ih_ref, w_hh_ref, b_ref, w_att_ref, b_att_ref,
                   w_out_ref, b_out_ref,
                   logits_ref, score_ref, h_o_ref, c_o_ref,
                   xbuf_ref, gbuf_ref):
    # x (T,B,1) int32 | emb (V,E) | h0/c0 (L,B,H) | enc (B,N,H) | pad (B,N,1)
    # w_ih (L,E,4H) pre-transposed, g-cols pre-scaled by 2 | w_hh (L,H,4H) |
    # b (L,1,4H) (b_ih + b_hh, g-cols pre-scaled) | w_att (2H,H) | b_att (1,H) |
    # w_out (H,V) | b_out (1,V)
    # scratch: xbuf (T,B,H) layer I/O, gbuf (T,B,4H) batched input projection
    T, B, _ = x_ref.shape
    L, _, H = h0_ref.shape
    V, E = emb_ref.shape

    # ---- in-kernel embedding lookup: one-hot (T*B,V) @ emb (V,E) on the MXU --
    tok = x_ref[...]                                               # (T,B,1) i32
    onehot = (tok == lax.broadcasted_iota(jnp.int32, (T, B, V), 2)
              ).astype(jnp.float32)                                # (T,B,V)
    embed = jnp.dot(onehot.reshape(T * B, V), emb_ref[...],
                    preferred_element_type=jnp.float32)            # exact lookup
    xbuf_ref[...] = embed.reshape(T, B, E)                         # layer-0 in

    # ---- pack_padded lengths: lengths[b] = count_nonzero(x[:,b] != PAD) -----
    nonpad = (tok != PAD_ID).astype(jnp.int32)                     # (T,B,1)
    len_col = jnp.sum(nonpad, axis=0)                              # (B,1) i32

    # ---- multi-layer LSTM: layer-major, batched input projection ------------
    for l in range(L):                                             # static
        w_ih = w_ih_ref[l]                                         # (E,4H)
        w_hh = w_hh_ref[l]                                         # (H,4H)
        bias = b_ref[l]                                            # (1,4H)
        # input projection for ALL timesteps in one M = T*B matmul -> scratch
        xproj = (jnp.dot(xbuf_ref[...].reshape(T * B, E), w_ih,
                         preferred_element_type=jnp.float32) + bias)
        gbuf_ref[...] = xproj.reshape(T, B, 4 * H)
        h = h0_ref[l]                                              # (B,H) vregs
        c = c0_ref[l]
        last_layer = (l == L - 1)
        for t in range(T):                                         # unrolled
            gates = gbuf_ref[t] + jnp.dot(h, w_hh,
                                          preferred_element_type=jnp.float32)
            sg = jax.nn.sigmoid(gates)            # single (B,4H) EUP pass
            i_g = sg[:, 0 * H:1 * H]
            f_g = sg[:, 1 * H:2 * H]
            g_g = 2.0 * sg[:, 2 * H:3 * H] - 1.0  # tanh via pre-scaled g cols
            o_g = sg[:, 3 * H:4 * H]
            c_new = f_g * c + i_g * g_g
            h_new = o_g * jnp.tanh(c_new)
            # pack_padded semantics: padded steps leave the state unchanged
            v = len_col > t                        # (B,1) bool, t is a constant
            h = jnp.where(v, h_new, h)
            c = jnp.where(v, c_new, c)
            # next layer consumes the UNMASKED h_new (matches the module);
            # the last layer's sequence output is zero at padded steps
            # (pad_packed_sequence semantics).
            if last_layer:
                xbuf_ref[t] = jnp.where(v, h_new, 0.0)
            else:
                xbuf_ref[t] = h_new
        h_o_ref[l] = h                                             # (B,H) once
        c_o_ref[l] = c
        # TODO(synk): inter-layer dropout (p=0.1) omitted (eval-mode identity)

    lstm_seq = xbuf_ref[...]                                       # (T,B,H)

    # ---- attention (train branch) + output projection ------------------------
    enc = enc_ref[...]                                             # (B,N,H)
    pad = pad_ref[...]                                             # (B,N,1) 1=pad
    # attention_score[b,n,t] = sum_h enc[b,n,h] * lstm[t,b,h]  (tiny: VPU + XLU)
    s_cols = [jnp.sum(enc * lstm_seq[t][:, None, :], axis=-1, keepdims=True)
              for t in range(T)]                                   # T x (B,N,1)
    score = jnp.concatenate(s_cols, axis=-1)                       # (B,N,T)
    # faithful to the PyTorch source: masked-fill value is +1e-10 (not -inf)
    score = jnp.where(pad > 0.5, jnp.float32(1e-10), score)
    score_ref[...] = score                                         # returned
    weights = jax.nn.softmax(score, axis=1)                        # over enc pos

    # weighted_sum[t,b,h] = sum_n weights[b,n,t] * enc[b,n,h]   (time-major)
    w_rows = [jnp.sum(weights[:, :, t:t + 1] * enc, axis=1) for t in range(T)]
    wsum = jnp.stack(w_rows, axis=0)                               # (T,B,H)

    cat = jnp.concatenate([lstm_seq, wsum], axis=-1)               # (T,B,2H)
    # flatten so both Linear layers run as single M = T*B MXU matmuls
    att = jnp.tanh(jnp.dot(cat.reshape(T * B, 2 * H), w_att_ref[...],
                           preferred_element_type=jnp.float32) + b_att_ref[...])
    logits = (jnp.dot(att, w_out_ref[...],
                      preferred_element_type=jnp.float32) + b_out_ref[...])
    logits_ref[...] = logits.reshape(T, B, V)      # lane-dense (V=128) store


# --------------------------------- wrapper --------------------------------- #
def decoder_forward(params, x, h_i, c_i, encoder_output, attention_mask):
    T, B = x.shape
    L, _, H = h_i.shape
    N = encoder_output.shape[0]
    V = params['w_out'].shape[1]
    E = params['embedding'].shape[1]
    assert E == H, "kernel reuses the (T,B,H) scratch for all layer inputs"

    # tanh-via-sigmoid: pre-scale the g-gate columns by 2.  params are closed
    # over by jit, so this is constant-folded at compile time.
    gscale = jnp.concatenate([jnp.ones((1, 2 * H), jnp.float32),
                              jnp.full((1, H), 2.0, jnp.float32),
                              jnp.ones((1, H), jnp.float32)], axis=1)  # (1,4H)
    w_ih_s = params['w_ih'] * gscale
    w_hh_s = params['w_hh'] * gscale
    b_s = params['b_lstm'] * gscale

    # remaining (tiny) wrapper glue: trailing-axis reshape of the token ids and
    # one-time transposes of the small encoder tensors.
    x3 = x.astype(jnp.int32)[:, :, None]                           # (T,B,1)
    enc_b = jnp.transpose(encoder_output, (1, 0, 2))               # (B,N,H)
    pad_b = attention_mask.T.astype(jnp.float32)[:, :, None]       # (B,N,1)

    logits, score, h_o, c_o = pl.pallas_call(
        decoder_kernel,
        grid=(1,),
        in_specs=[_full_spec((T, B, 1)), _full_spec((V, E)),
                  _full_spec(h_i.shape), _full_spec(c_i.shape),
                  _full_spec((B, N, H)), _full_spec((B, N, 1)),
                  _full_spec(w_ih_s.shape), _full_spec(w_hh_s.shape),
                  _full_spec(b_s.shape),
                  _full_spec(params['w_att'].shape),
                  _full_spec(params['b_att'].shape),
                  _full_spec(params['w_out'].shape),
                  _full_spec(params['b_out'].shape)],
        out_specs=[_full_spec((T, B, V)),
                   _full_spec((B, N, T)),
                   _full_spec((L, B, H)),
                   _full_spec((L, B, H))],
        out_shape=[jax.ShapeDtypeStruct((T, B, V), jnp.float32),
                   jax.ShapeDtypeStruct((B, N, T), jnp.float32),
                   jax.ShapeDtypeStruct((L, B, H), jnp.float32),
                   jax.ShapeDtypeStruct((L, B, H), jnp.float32)],
        scratch_shapes=[pltpu.VMEM((T, B, H), jnp.float32),
                        pltpu.VMEM((T, B, 4 * H), jnp.float32)],
        compiler_params=pltpu.CompilerParams(dimension_semantics=("arbitrary",)),
    )(x3, params['embedding'], h_i, c_i, enc_b, pad_b,
      w_ih_s, w_hh_s, b_s,
      params['w_att'], params['b_att'], params['w_out'], params['b_out'])

    # the module's `.squeeze()` is a no-op at these shapes; omitted on purpose.
    return logits, h_o, c_o, score


# ------------------------- pure-JAX reference (check) ---------------------- #
def decoder_reference(params, x, h_i, c_i, encoder_output, attention_mask):
    T, B = x.shape
    L, _, H = h_i.shape
    embed = jnp.take(params['embedding'], x, axis=0)
    lengths = jnp.sum((x != PAD_ID).astype(jnp.int32), axis=0)
    valid = (jnp.arange(T)[:, None] < lengths[None, :]).astype(jnp.float32)  # (T,B)
    hs = [h_i[l] for l in range(L)]
    cs = [c_i[l] for l in range(L)]
    outs = []
    for t in range(T):
        xin = embed[t]
        v = valid[t][:, None]
        for l in range(L):
            g = (xin @ params['w_ih'][l] + hs[l] @ params['w_hh'][l]
                 + params['b_lstm'][l])
            i_g = jax.nn.sigmoid(g[:, 0 * H:1 * H])
            f_g = jax.nn.sigmoid(g[:, 1 * H:2 * H])
            g_g = jnp.tanh(g[:, 2 * H:3 * H])
            o_g = jax.nn.sigmoid(g[:, 3 * H:4 * H])
            c_new = f_g * cs[l] + i_g * g_g
            h_new = o_g * jnp.tanh(c_new)
            hs[l] = v * h_new + (1.0 - v) * hs[l]
            cs[l] = v * c_new + (1.0 - v) * cs[l]
            xin = h_new
        outs.append(v * xin)
    lstm = jnp.stack(outs, axis=0)                          # (T,B,H)
    h_o = jnp.stack(hs, axis=0)
    c_o = jnp.stack(cs, axis=0)
    enc = jnp.transpose(encoder_output, (1, 0, 2))          # (B,N,H)
    score = jnp.einsum('bnh,tbh->bnt', enc, lstm)
    score = jnp.where(attention_mask.T[:, :, None], jnp.float32(1e-10), score)
    w = jax.nn.softmax(score, axis=1)
    wsum = jnp.einsum('bnt,bnh->tbh', w, enc)
    cat = jnp.concatenate([lstm, wsum], axis=-1)
    att = jnp.tanh(cat @ params['w_att'] + params['b_att'])
    logits = att @ params['w_out'] + params['b_out']
    return logits, h_o, c_o, score


# ------------------------- deterministic param init ------------------------ #
def init_params(key, vocab=VOCAB, embed=EMBED, hidden=HIDDEN, layers=NUM_LAYERS):
    ks = jax.random.split(key, 8)
    s = 0.1
    emb = jax.random.normal(ks[0], (vocab, embed), jnp.float32) * s
    # PyTorch LSTM weight_ih_l{k}: (4H, in), weight_hh_l{k}: (4H, H); stored
    # pre-transposed and stacked over layers (requires embed == hidden).
    w_ih = jax.random.normal(ks[1], (layers, embed, 4 * hidden), jnp.float32) * s
    w_hh = jax.random.normal(ks[2], (layers, hidden, 4 * hidden), jnp.float32) * s
    b_ih = jax.random.normal(ks[3], (layers, 1, 4 * hidden), jnp.float32) * s
    b_hh = jax.random.normal(ks[4], (layers, 1, 4 * hidden), jnp.float32) * s
    w_att = jax.random.normal(ks[5], (2 * hidden, hidden), jnp.float32) * s  # attention_concat.weight.T
    b_att = jnp.zeros((1, hidden), jnp.float32)
    w_out = jax.random.normal(ks[6], (hidden, vocab), jnp.float32) * s       # out.weight.T
    b_out = jnp.zeros((1, vocab), jnp.float32)
    return dict(embedding=emb, w_ih=w_ih, w_hh=w_hh, b_lstm=b_ih + b_hh,
                w_att=w_att, b_att=b_att, w_out=w_out, b_out=b_out)


if __name__ == "__main__":
    key = jax.random.PRNGKey(0)
    k1, k2, k3, k4, k5 = jax.random.split(key, 5)
    T, B, N = 8, 8, 8
    params = init_params(k1)

    # decoder tokens: pad id == 1 only at sequence tails, at least one full-length seq
    x = jax.random.randint(k2, (T, B), 2, VOCAB, dtype=jnp.int32)
    dec_lens = jnp.array([8, 8, 6, 7, 5, 8, 4, 8], dtype=jnp.int32)
    x = jnp.where(jnp.arange(T)[:, None] >= dec_lens[None, :], jnp.int32(PAD_ID), x)

    h_i = jax.random.normal(k3, (NUM_LAYERS, B, HIDDEN), jnp.float32) * 0.1
    c_i = jax.random.normal(k4, (NUM_LAYERS, B, HIDDEN), jnp.float32) * 0.1
    encoder_output = jax.random.normal(k5, (N, B, HIDDEN), jnp.float32) * 0.1
    enc_lens = jnp.array([8, 7, 8, 5, 8, 6, 8, 8], dtype=jnp.int32)
    attention_mask = jnp.arange(N)[:, None] >= enc_lens[None, :]   # (N,B) True == pad

    fwd = jax.jit(functools.partial(decoder_forward, params))
    logits, h_o, c_o, score = fwd(x, h_i, c_i, encoder_output, attention_mask)
    jax.block_until_ready((logits, h_o, c_o, score))

    assert logits.shape == (T, B, VOCAB)
    assert h_o.shape == (NUM_LAYERS, B, HIDDEN)
    assert c_o.shape == (NUM_LAYERS, B, HIDDEN)
    assert score.shape == (B, N, T)
    assert bool(jnp.all(jnp.isfinite(logits)))

    # correctness check against a pure-JAX (non-Pallas) reference
    ref_logits, ref_h, ref_c, ref_score = decoder_reference(
        params, x, h_i, c_i, encoder_output, attention_mask)
    assert bool(jnp.allclose(logits, ref_logits, atol=1e-3, rtol=1e-3))
    assert bool(jnp.allclose(h_o, ref_h, atol=1e-3, rtol=1e-3))
    assert bool(jnp.allclose(c_o, ref_c, atol=1e-3, rtol=1e-3))
    assert bool(jnp.allclose(score, ref_score, atol=1e-3, rtol=1e-3))

    print("KERNEL_OK")
</pallas_src>

<mosaic_0001>
module attributes {stable_mosaic.version = 11 : i64} {
  func.func @decoder_kernel(%arg0: i32, %arg1: memref<8x8x1xi32, #tpu.memory_space<vmem>>, %arg2: memref<128x32xf32, #tpu.memory_space<vmem>>, %arg3: memref<4x8x32xf32, #tpu.memory_space<vmem>>, %arg4: memref<4x8x32xf32, #tpu.memory_space<vmem>>, %arg5: memref<8x8x32xf32, #tpu.memory_space<vmem>>, %arg6: memref<8x8x1xf32, #tpu.memory_space<vmem>>, %arg7: memref<4x32x128xf32, #tpu.memory_space<vmem>>, %arg8: memref<4x32x128xf32, #tpu.memory_space<vmem>>, %arg9: memref<4x1x128xf32, #tpu.memory_space<vmem>>, %arg10: memref<64x32xf32, #tpu.memory_space<vmem>>, %arg11: memref<1x32xf32, #tpu.memory_space<vmem>>, %arg12: memref<32x128xf32, #tpu.memory_space<vmem>>, %arg13: memref<1x128xf32, #tpu.memory_space<vmem>>, %arg14: memref<8x8x128xf32, #tpu.memory_space<vmem>>, %arg15: memref<8x8x8xf32, #tpu.memory_space<vmem>>, %arg16: memref<4x8x32xf32, #tpu.memory_space<vmem>>, %arg17: memref<4x8x32xf32, #tpu.memory_space<vmem>>, %arg18: memref<8x8x32xf32, #tpu.memory_space<vmem>>, %arg19: memref<8x8x128xf32, #tpu.memory_space<vmem>>) attributes {dimension_semantics = [#tpu.dimension_semantics<arbitrary>], iteration_bounds = array<i64: 1>, scalar_prefetch = 0 : i64, scratch_operands = 2 : i64, tpu.core_type = #tpu.core_type<tc>, window_params = [{pipeline_mode = #tpu.pipeline_mode<synchronous>, transform_indices = @transform_0, window_bounds = array<i64: 8, 8, 1>}, {pipeline_mode = #tpu.pipeline_mode<synchronous>, transform_indices = @transform_1, window_bounds = array<i64: 128, 32>}, {pipeline_mode = #tpu.pipeline_mode<synchronous>, transform_indices = @transform_2, window_bounds = array<i64: 4, 8, 32>}, {pipeline_mode = #tpu.pipeline_mode<synchronous>, transform_indices = @transform_3, window_bounds = array<i64: 4, 8, 32>}, {pipeline_mode = #tpu.pipeline_mode<synchronous>, transform_indices = @transform_4, window_bounds = array<i64: 8, 8, 32>}, {pipeline_mode = #tpu.pipeline_mode<synchronous>, transform_indices = @transform_5, window_bounds = array<i64: 8, 8, 1>}, {pipeline_mode = #tpu.pipeline_mode<synchronous>, transform_indices = @transform_6, window_bounds = array<i64: 4, 32, 128>}, {pipeline_mode = #tpu.pipeline_mode<synchronous>, transform_indices = @transform_7, window_bounds = array<i64: 4, 32, 128>}, {pipeline_mode = #tpu.pipeline_mode<synchronous>, transform_indices = @transform_8, window_bounds = array<i64: 4, 1, 128>}, {pipeline_mode = #tpu.pipeline_mode<synchronous>, transform_indices = @transform_9, window_bounds = array<i64: 64, 32>}, {pipeline_mode = #tpu.pipeline_mode<synchronous>, transform_indices = @transform_10, window_bounds = array<i64: 1, 32>}, {pipeline_mode = #tpu.pipeline_mode<synchronous>, transform_indices = @transform_11, window_bounds = array<i64: 32, 128>}, {pipeline_mode = #tpu.pipeline_mode<synchronous>, transform_indices = @transform_12, window_bounds = array<i64: 1, 128>}, {pipeline_mode = #tpu.pipeline_mode<synchronous>, transform_indices = @transform_13, window_bounds = array<i64: 8, 8, 128>}, {pipeline_mode = #tpu.pipeline_mode<synchronous>, transform_indices = @transform_14, window_bounds = array<i64: 8, 8, 8>}, {pipeline_mode = #tpu.pipeline_mode<synchronous>, transform_indices = @transform_15, window_bounds = array<i64: 4, 8, 32>}, {pipeline_mode = #tpu.pipeline_mode<synchronous>, transform_indices = @transform_16, window_bounds = array<i64: 4, 8, 32>}]} {
    %c0 = arith.constant 0 : index
    %c0_0 = arith.constant 0 : index
    %c0_1 = arith.constant 0 : index
    %0 = vector.load %arg1[%c0, %c0_0, %c0_1] : memref<8x8x1xi32, #tpu.memory_space<vmem>>, vector<8x8x1xi32>
    %1 = tpu.iota {dimensions = array<i32: 2>} : vector<8x8x128xi32>
    %2 = vector.broadcast %0 : vector<8x8x1xi32> to vector<8x8x128xi32>
    %3 = arith.cmpi eq, %2, %1 : vector<8x8x128xi32>
    %4 = arith.extui %3 : vector<8x8x128xi1> to vector<8x8x128xi32>
    %5 = arith.sitofp %4 : vector<8x8x128xi32> to vector<8x8x128xf32>
    %6 = vector.shape_cast %5 : vector<8x8x128xf32> to vector<64x128xf32>
    %c0_2 = arith.constant 0 : index
    %c0_3 = arith.constant 0 : index
    %7 = vector.load %arg2[%c0_2, %c0_3] : memref<128x32xf32, #tpu.memory_space<vmem>>, vector<128x32xf32>
    %cst = arith.constant dense<0.000000e+00> : vector<64x32xf32>
    %8 = tpu.matmul %6, %7, %cst {dimension_numbers = #tpu.dot_dimension_numbers<[1], [0], [0], [1], [0, 0, 1, 1], [], []>} : vector<64x128xf32>, vector<128x32xf32>, vector<64x32xf32> -> vector<64x32xf32>
    %9 = vector.shape_cast %8 : vector<64x32xf32> to vector<8x8x32xf32>
    %c0_4 = arith.constant 0 : index
    %c0_5 = arith.constant 0 : index
    %c0_6 = arith.constant 0 : index
    %10 = vector.load %arg18[%c0_4, %c0_5, %c0_6] : memref<8x8x32xf32, #tpu.memory_space<vmem>>, vector<8x8x32xf32>
    tpu.vector_store %arg18[%c0_4, %c0_5, %c0_6], %9 {strides = array<i32>} : memref<8x8x32xf32, #tpu.memory_space<vmem>>, vector<8x8x32xf32>,
    %c1_i32 = arith.constant 1 : i32
    %11 = vector.broadcast %c1_i32 : i32 to vector<8x8x1xi32>
    %12 = arith.cmpi ne, %0, %11 : vector<8x8x1xi32>
    %13 = arith.extui %12 : vector<8x8x1xi1> to vector<8x8x1xi32>
    %cst_7 = arith.constant dense<0> : vector<8x1xi32>
    %14 = vector.multi_reduction <add>, %13, %cst_7 [0] : vector<8x8x1xi32> to vector<8x1xi32>
    %c0_8 = arith.constant 0 : index
    %c0_9 = arith.constant 0 : index
    %c0_10 = arith.constant 0 : index
    %15 = vector.load %arg7[%c0_8, %c0_9, %c0_10] : memref<4x32x128xf32, #tpu.memory_space<vmem>>, vector<1x32x128xf32>
    %16 = vector.shape_cast %15 : vector<1x32x128xf32> to vector<32x128xf32>
    %c0_11 = arith.constant 0 : index
    %c0_12 = arith.constant 0 : index
    %c0_13 = arith.constant 0 : index
    %17 = vector.load %arg8[%c0_11, %c0_12, %c0_13] : memref<4x32x128xf32, #tpu.memory_space<vmem>>, vector<1x32x128xf32>
    %18 = vector.shape_cast %17 : vector<1x32x128xf32> to vector<32x128xf32>
    %c0_14 = arith.constant 0 : index
    %c0_15 = arith.constant 0 : index
    %c0_16 = arith.constant 0 : index
    %19 = vector.load %arg9[%c0_14, %c0_15, %c0_16] : memref<4x1x128xf32, #tpu.memory_space<vmem>>, vector<1x1x128xf32>
    %20 = vector.shape_cast %19 : vector<1x1x128xf32> to vector<1x128xf32>
    %c0_17 = arith.constant 0 : index
    %c0_18 = arith.constant 0 : index
    %c0_19 = arith.constant 0 : index
    %21 = vector.load %arg18[%c0_17, %c0_18, %c0_19] : memref<8x8x32xf32, #tpu.memory_space<vmem>>, vector<8x8x32xf32>
    %22 = vector.shape_cast %21 : vector<8x8x32xf32> to vector<64x32xf32>
    %cst_20 = arith.constant dense<0.000000e+00> : vector<64x128xf32>
    %23 = tpu.matmul %22, %16, %cst_20 {dimension_numbers = #tpu.dot_dimension_numbers<[1], [0], [0], [1], [0, 0, 1, 1], [], []>} : vector<64x32xf32>, vector<32x128xf32>, vector<64x128xf32> -> vector<64x128xf32>
    %24 = vector.broadcast %20 : vector<1x128xf32> to vector<64x128xf32>
    %25 = arith.addf %23, %24 : vector<64x128xf32>
    %26 = vector.shape_cast %25 : vector<64x128xf32> to vector<8x8x128xf32>
    %c0_21 = arith.constant 0 : index
    %c0_22 = arith.constant 0 : index
    %c0_23 = arith.constant 0 : index
    %27 = vector.load %arg19[%c0_21, %c0_22, %c0_23] : memref<8x8x128xf32, #tpu.memory_space<vmem>>, vector<8x8x128xf32>
    tpu.vector_store %arg19[%c0_21, %c0_22, %c0_23], %26 {strides = array<i32>} : memref<8x8x128xf32, #tpu.memory_space<vmem>>, vector<8x8x128xf32>,
    %c0_24 = arith.constant 0 : index
    %c0_25 = arith.constant 0 : index
    %c0_26 = arith.constant 0 : index
    %28 = vector.load %arg3[%c0_24, %c0_25, %c0_26] : memref<4x8x32xf32, #tpu.memory_space<vmem>>, vector<1x8x32xf32>
    %29 = vector.shape_cast %28 : vector<1x8x32xf32> to vector<8x32xf32>
    %c0_27 = arith.constant 0 : index
    %c0_28 = arith.constant 0 : index
    %c0_29 = arith.constant 0 : index
    %30 = vector.load %arg4[%c0_27, %c0_28, %c0_29] : memref<4x8x32xf32, #tpu.memory_space<vmem>>, vector<1x8x32xf32>
    %31 = vector.shape_cast %30 : vector<1x8x32xf32> to vector<8x32xf32>
    %c0_30 = arith.constant 0 : index
    %c0_31 = arith.constant 0 : index
    %c0_32 = arith.constant 0 : index
    %32 = vector.load %arg19[%c0_30, %c0_31, %c0_32] : memref<8x8x128xf32, #tpu.memory_space<vmem>>, vector<1x8x128xf32>
    %33 = vector.shape_cast %32 : vector<1x8x128xf32> to vector<8x128xf32>
    %cst_33 = arith.constant dense<0.000000e+00> : vector<8x128xf32>
    %34 = tpu.matmul %29, %18, %cst_33 {dimension_numbers = #tpu.dot_dimension_numbers<[1], [0], [0], [1], [0, 0, 1, 1], [], []>} : vector<8x32xf32>, vector<32x128xf32>, vector<8x128xf32> -> vector<8x128xf32>
    %35 = arith.addf %33, %34 : vector<8x128xf32>
    %36 = arith.negf %35 : vector<8x128xf32>
    %37 = math.exp %36 : vector<8x128xf32>
    %cst_34 = arith.constant 1.000000e+00 : f32
    %38 = vector.broadcast %cst_34 : f32 to vector<8x128xf32>
    %39 = arith.addf %38, %37 : vector<8x128xf32>
    %40 = arith.divf %38, %39 : vector<8x128xf32>
    %41 = vector.extract_strided_slice %40 {offsets = [0, 0], sizes = [8, 32], strides = [1, 1]} : vector<8x128xf32> to vector<8x32xf32>
    %42 = vector.extract_strided_slice %40 {offsets = [0, 32], sizes = [8, 32], strides = [1, 1]} : vector<8x128xf32> to vector<8x32xf32>
    %43 = vector.extract_strided_slice %40 {offsets = [0, 64], sizes = [8, 32], strides = [1, 1]} : vector<8x128xf32> to vector<8x32xf32>
    %cst_35 = arith.constant 2.000000e+00 : f32
    %44 = vector.broadcast %cst_35 : f32 to vector<8x32xf32>
    %45 = arith.mulf %44, %43 : vector<8x32xf32>
    %cst_36 = arith.constant 1.000000e+00 : f32
    %46 = vector.broadcast %cst_36 : f32 to vector<8x32xf32>
    %47 = arith.subf %45, %46 : vector<8x32xf32>
    %48 = vector.extract_strided_slice %40 {offsets = [0, 96], sizes = [8, 32], strides = [1, 1]} : vector<8x128xf32> to vector<8x32xf32>
    %49 = arith.mulf %42, %31 : vector<8x32xf32>
    %50 = arith.mulf %41, %47 : vector<8x32xf32>
    %51 = arith.addf %49, %50 : vector<8x32xf32>
    %52 = math.tanh %51 : vector<8x32xf32>
    %53 = arith.mulf %48, %52 : vector<8x32xf32>
    %c0_i32 = arith.constant 0 : i32
    %54 = vector.broadcast %c0_i32 : i32 to vector<8x1xi32>
    %55 = arith.cmpi sgt, %14, %54 : vector<8x1xi32>
    %56 = vector.shape_cast %55 : vector<8x1xi1> to vector<8x1xi1>
    %57 = vector.broadcast %56 : vector<8x1xi1> to vector<8x32xi1>
    %58 = arith.select %57, %53, %29 : vector<8x32xi1>, vector<8x32xf32>
    %59 = vector.shape_cast %55 : vector<8x1xi1> to vector<8x1xi1>
    %60 = vector.broadcast %59 : vector<8x1xi1> to vector<8x32xi1>
    %61 = arith.select %60, %51, %31 : vector<8x32xi1>, vector<8x32xf32>
    %c0_37 = arith.constant 0 : index
    %c0_38 = arith.constant 0 : index
    %c0_39 = arith.constant 0 : index
    %62 = vector.load %arg18[%c0_37, %c0_38, %c0_39] : memref<8x8x32xf32, #tpu.memory_space<vmem>>, vector<1x8x32xf32>
    %63 = vector.shape_cast %62 : vector<1x8x32xf32> to vector<8x32xf32>
    %64 = vector.shape_cast %53 : vector<8x32xf32> to vector<1x8x32xf32>
    tpu.vector_store %arg18[%c0_37, %c0_38, %c0_39], %64 {strides = array<i32>} : memref<8x8x32xf32, #tpu.memory_space<vmem>>, vector<1x8x32xf32>,
    %c1 = arith.constant 1 : index
    %c0_40 = arith.constant 0 : index
    %c0_41 = arith.constant 0 : index
    %65 = vector.load %arg19[%c1, %c0_40, %c0_41] : memref<8x8x128xf32, #tpu.memory_space<vmem>>, vector<1x8x128xf32>
    %66 = vector.shape_cast %65 : vector<1x8x128xf32> to vector<8x128xf32>
    %cst_42 = arith.constant dense<0.000000e+00> : vector<8x128xf32>
    %67 = tpu.matmul %58, %18, %cst_42 {dimension_numbers = #tpu.dot_dimension_numbers<[1], [0], [0], [1], [0, 0, 1, 1], [], []>} : vector<8x32xf32>, vector<32x128xf32>, vector<8x128xf32> -> vector<8x128xf32>
    %68 = arith.addf %66, %67 : vector<8x128xf32>
    %69 = arith.negf %68 : vector<8x128xf32>
    %70 = math.exp %69 : vector<8x128xf32>
    %cst_43 = arith.constant 1.000000e+00 : f32
    %71 = vector.broadcast %cst_43 : f32 to vector<8x128xf32>
    %72 = arith.addf %71, %70 : vector<8x128xf32>
    %73 = arith.divf %71, %72 : vector<8x128xf32>
    %74 = vector.extract_strided_slice %73 {offsets = [0, 0], sizes = [8, 32], strides = [1, 1]} : vector<8x128xf32> to vector<8x32xf32>
    %75 = vector.extract_strided_slice %73 {offsets = [0, 32], sizes = [8, 32], strides = [1, 1]} : vector<8x128xf32> to vector<8x32xf32>
    %76 = vector.extract_strided_slice %73 {offsets = [0, 64], sizes = [8, 32], strides = [1, 1]} : vector<8x128xf32> to vector<8x32xf32>
    %cst_44 = arith.constant 2.000000e+00 : f32
    %77 = vector.broadcast %cst_44 : f32 to vector<8x32xf32>
    %78 = arith.mulf %77, %76 : vector<8x32xf32>
    %cst_45 = arith.constant 1.000000e+00 : f32
    %79 = vector.broadcast %cst_45 : f32 to vector<8x32xf32>
    %80 = arith.subf %78, %79 : vector<8x32xf32>
    %81 = vector.extract_strided_slice %73 {offsets = [0, 96], sizes = [8, 32], strides = [1, 1]} : vector<8x128xf32> to vector<8x32xf32>
    %82 = arith.mulf %75, %61 : vector<8x32xf32>
    %83 = arith.mulf %74, %80 : vector<8x32xf32>
    %84 = arith.addf %82, %83 : vector<8x32xf32>
    %85 = math.tanh %84 : vector<8x32xf32>
    %86 = arith.mulf %81, %85 : vector<8x32xf32>
    %c1_i32_46 = arith.constant 1 : i32
    %87 = vector.broadcast %c1_i32_46 : i32 to vector<8x1xi32>
    %88 = arith.cmpi sgt, %14, %87 : vector<8x1xi32>
    %89 = vector.shape_cast %88 : vector<8x1xi1> to vector<8x1xi1>
    %90 = vector.broadcast %89 : vector<8x1xi1> to vector<8x32xi1>
    %91 = arith.select %90, %86, %58 : vector<8x32xi1>, vector<8x32xf32>
    %92 = vector.shape_cast %88 : vector<8x1xi1> to vector<8x1xi1>
    %93 = vector.broadcast %92 : vector<8x1xi1> to vector<8x32xi1>
    %94 = arith.select %93, %84, %61 : vector<8x32xi1>, vector<8x32xf32>
    %c1_47 = arith.constant 1 : index
    %c0_48 = arith.constant 0 : index
    %c0_49 = arith.constant 0 : index
    %95 = vector.load %arg18[%c1_47, %c0_48, %c0_49] : memref<8x8x32xf32, #tpu.memory_space<vmem>>, vector<1x8x32xf32>
    %96 = vector.shape_cast %95 : vector<1x8x32xf32> to vector<8x32xf32>
    %97 = vector.shape_cast %86 : vector<8x32xf32> to vector<1x8x32xf32>
    tpu.vector_store %arg18[%c1_47, %c0_48, %c0_49], %97 {strides = array<i32>} : memref<8x8x32xf32, #tpu.memory_space<vmem>>, vector<1x8x32xf32>,
    %c2 = arith.constant 2 : index
    %c0_50 = arith.constant 0 : index
    %c0_51 = arith.constant 0 : index
    %98 = vector.load %arg19[%c2, %c0_50, %c0_51] : memref<8x8x128xf32, #tpu.memory_space<vmem>>, vector<1x8x128xf32>
    %99 = vector.shape_cast %98 : vector<1x8x128xf32> to vector<8x128xf32>
    %cst_52 = arith.constant dense<0.000000e+00> : vector<8x128xf32>
    %100 = tpu.matmul %91, %18, %cst_52 {dimension_numbers = #tpu.dot_dimension_numbers<[1], [0], [0], [1], [0, 0, 1, 1], [], []>} : vector<8x32xf32>, vector<32x128xf32>, vector<8x128xf32> -> vector<8x128xf32>
    %101 = arith.addf %99, %100 : vector<8x128xf32>
    %102 = arith.negf %101 : vector<8x128xf32>
    %103 = math.exp %102 : vector<8x128xf32>
    %cst_53 = arith.constant 1.000000e+00 : f32
    %104 = vector.broadcast %cst_53 : f32 to vector<8x128xf32>
    %105 = arith.addf %104, %103 : vector<8x128xf32>
    %106 = arith.divf %104, %105 : vector<8x128xf32>
    %107 = vector.extract_strided_slice %106 {offsets = [0, 0], sizes = [8, 32], strides = [1, 1]} : vector<8x128xf32> to vector<8x32xf32>
    %108 = vector.extract_strided_slice %106 {offsets = [0, 32], sizes = [8, 32], strides = [1, 1]} : vector<8x128xf32> to vector<8x32xf32>
    %109 = vector.extract_strided_slice %106 {offsets = [0, 64], sizes = [8, 32], strides = [1, 1]} : vector<8x128xf32> to vector<8x32xf32>
    %cst_54 = arith.constant 2.000000e+00 : f32
    %110 = vector.broadcast %cst_54 : f32 to vector<8x32xf32>
    %111 = arith.mulf %110, %109 : vector<8x32xf32>
    %cst_55 = arith.constant 1.000000e+00 : f32
    %112 = vector.broadcast %cst_55 : f32 to vector<8x32xf32>
    %113 = arith.subf %111, %112 : vector<8x32xf32>
    %114 = vector.extract_strided_slice %106 {offsets = [0, 96], sizes = [8, 32], strides = [1, 1]} : vector<8x128xf32> to vector<8x32xf32>
    %115 = arith.mulf %108, %94 : vector<8x32xf32>
    %116 = arith.mulf %107, %113 : vector<8x32xf32>
    %117 = arith.addf %115, %116 : vector<8x32xf32>
    %118 = math.tanh %117 : vector<8x32xf32>
    %119 = arith.mulf %114, %118 : vector<8x32xf32>
    %c2_i32 = arith.constant 2 : i32
    %120 = vector.broadcast %c2_i32 : i32 to vector<8x1xi32>
    %121 = arith.cmpi sgt, %14, %120 : vector<8x1xi32>
    %122 = vector.shape_cast %121 : vector<8x1xi1> to vector<8x1xi1>
    %123 = vector.broadcast %122 : vector<8x1xi1> to vector<8x32xi1>
    %124 = arith.select %123, %119, %91 : vector<8x32xi1>, vector<8x32xf32>
    %125 = vector.shape_cast %121 : vector<8x1xi1> to vector<8x1xi1>
    %126 = vector.broadcast %125 : vector<8x1xi1> to vector<8x32xi1>
    %127 = arith.select %126, %117, %94 : vector<8x32xi1>, vector<8x32xf32>
    %c2_56 = arith.constant 2 : index
    %c0_57 = arith.constant 0 : index
    %c0_58 = arith.constant 0 : index
    %128 = vector.load %arg18[%c2_56, %c0_57, %c0_58] : memref<8x8x32xf32, #tpu.memory_space<vmem>>, vector<1x8x32xf32>
    %129 = vector.shape_cast %128 : vector<1x8x32xf32> to vector<8x32xf32>
    %130 = vector.shape_cast %119 : vector<8x32xf32> to vector<1x8x32xf32>
    tpu.vector_store %arg18[%c2_56, %c0_57, %c0_58], %130 {strides = array<i32>} : memref<8x8x32xf32, #tpu.memory_space<vmem>>, vector<1x8x32xf32>,
    %c3 = arith.constant 3 : index
    %c0_59 = arith.constant 0 : index
    %c0_60 = arith.constant 0 : index
    %131 = vector.load %arg19[%c3, %c0_59, %c0_60] : memref<8x8x128xf32, #tpu.memory_space<vmem>>, vector<1x8x128xf32>
    %132 = vector.shape_cast %131 : vector<1x8x128xf32> to vector<8x128xf32>
    %cst_61 = arith.constant dense<0.000000e+00> : vector<8x128xf32>
    %133 = tpu.matmul %124, %18, %cst_61 {dimension_numbers = #tpu.dot_dimension_numbers<[1], [0], [0], [1], [0, 0, 1, 1], [], []>} : vector<8x32xf32>, vector<32x128xf32>, vector<8x128xf32> -> vector<8x128xf32>
    %134 = arith.addf %132, %133 : vector<8x128xf32>
    %135 = arith.negf %134 : vector<8x128xf32>
    %136 = math.exp %135 : vector<8x128xf32>
    %cst_62 = arith.constant 1.000000e+00 : f32
    %137 = vector.broadcast %cst_62 : f32 to vector<8x128xf32>
    %138 = arith.addf %137, %136 : vector<8x128xf32>
    %139 = arith.divf %137, %138 : vector<8x128xf32>
    %140 = vector.extract_strided_slice %139 {offsets = [0, 0], sizes = [8, 32], strides = [1, 1]} : vector<8x128xf32> to vector<8x32xf32>
    %141 = vector.extract_strided_slice %139 {offsets = [0, 32], sizes = [8, 32], strides = [1, 1]} : vector<8x128xf32> to vector<8x32xf32>
    %142 = vector.extract_strided_slice %139 {offsets = [0, 64], sizes = [8, 32], strides = [1, 1]} : vector<8x128xf32> to vector<8x32xf32>
    %cst_63 = arith.constant 2.000000e+00 : f32
    %143 = vector.broadcast %cst_63 : f32 to vector<8x32xf32>
    %144 = arith.mulf %143, %142 : vector<8x32xf32>
    %cst_64 = arith.constant 1.000000e+00 : f32
    %145 = vector.broadcast %cst_64 : f32 to vector<8x32xf32>
    %146 = arith.subf %144, %145 : vector<8x32xf32>
    %147 = vector.extract_strided_slice %139 {offsets = [0, 96], sizes = [8, 32], strides = [1, 1]} : vector<8x128xf32> to vector<8x32xf32>
    %148 = arith.mulf %141, %127 : vector<8x32xf32>
    %149 = arith.mulf %140, %146 : vector<8x32xf32>
    %150 = arith.addf %148, %149 : vector<8x32xf32>
    %151 = math.tanh %150 : vector<8x32xf32>
    %152 = arith.mulf %147, %151 : vector<8x32xf32>
    %c3_i32 = arith.constant 3 : i32
    %153 = vector.broadcast %c3_i32 : i32 to vector<8x1xi32>
    %154 = arith.cmpi sgt, %14, %153 : vector<8x1xi32>
    %155 = vector.shape_cast %154 : vector<8x1xi1> to vector<8x1xi1>
    %156 = vector.broadcast %155 : vector<8x1xi1> to vector<8x32xi1>
    %157 = arith.select %156, %152, %124 : vector<8x32xi1>, vector<8x32xf32>
    %158 = vector.shape_cast %154 : vector<8x1xi1> to vector<8x1xi1>
    %159 = vector.broadcast %158 : vector<8x1xi1> to vector<8x32xi1>
    %160 = arith.select %159, %150, %127 : vector<8x32xi1>, vector<8x32xf32>
    %c3_65 = arith.constant 3 : index
    %c0_66 = arith.constant 0 : index
    %c0_67 = arith.constant 0 : index
    %161 = vector.load %arg18[%c3_65, %c0_66, %c0_67] : memref<8x8x32xf32, #tpu.memory_space<vmem>>, vector<1x8x32xf32>
    %162 = vector.shape_cast %161 : vector<1x8x32xf32> to vector<8x32xf32>
    %163 = vector.shape_cast %152 : vector<8x32xf32> to vector<1x8x32xf32>
    tpu.vector_store %arg18[%c3_65, %c0_66, %c0_67], %163 {strides = array<i32>} : memref<8x8x32xf32, #tpu.memory_space<vmem>>, vector<1x8x32xf32>,
    %c4 = arith.constant 4 : index
    %c0_68 = arith.constant 0 : index
    %c0_69 = arith.constant 0 : index
    %164 = vector.load %arg19[%c4, %c0_68, %c0_69] : memref<8x8x128xf32, #tpu.memory_space<vmem>>, vector<1x8x128xf32>
    %165 = vector.shape_cast %164 : vector<1x8x128xf32> to vector<8x128xf32>
    %cst_70 = arith.constant dense<0.000000e+00> : vector<8x128xf32>
    %166 = tpu.matmul %157, %18, %cst_70 {dimension_numbers = #tpu.dot_dimension_numbers<[1], [0], [0], [1], [0, 0, 1, 1], [], []>} : vector<8x32xf32>, vector<32x128xf32>, vector<8x128xf32> -> vector<8x128xf32>
    %167 = arith.addf %165, %166 : vector<8x128xf32>
    %168 = arith.negf %167 : vector<8x128xf32>
    %169 = math.exp %168 : vector<8x128xf32>
    %cst_71 = arith.constant 1.000000e+00 : f32
    %170 = vector.broadcast %cst_71 : f32 to vector<8x128xf32>
    %171 = arith.addf %170, %169 : vector<8x128xf32>
    %172 = arith.divf %170, %171 : vector<8x128xf32>
    %173 = vector.extract_strided_slice %172 {offsets = [0, 0], sizes = [8, 32], strides = [1, 1]} : vector<8x128xf32> to vector<8x32xf32>
    %174 = vector.extract_strided_slice %172 {offsets = [0, 32], sizes = [8, 32], strides = [1, 1]} : vector<8x128xf32> to vector<8x32xf32>
    %175 = vector.extract_strided_slice %172 {offsets = [0, 64], sizes = [8, 32], strides = [1, 1]} : vector<8x128xf32> to vector<8x32xf32>
    %cst_72 = arith.constant 2.000000e+00 : f32
    %176 = vector.broadcast %cst_72 : f32 to vector<8x32xf32>
    %177 = arith.mulf %176, %175 : vector<8x32xf32>
    %cst_73 = arith.constant 1.000000e+00 : f32
    %178 = vector.broadcast %cst_73 : f32 to vector<8x32xf32>
    %179 = arith.subf %177, %178 : vector<8x32xf32>
    %180 = vector.extract_strided_slice %172 {offsets = [0, 96], sizes = [8, 32], strides = [1, 1]} : vector<8x128xf32> to vector<8x32xf32>
    %181 = arith.mulf %174, %160 : vector<8x32xf32>
    %182 = arith.mulf %173, %179 : vector<8x32xf32>
    %183 = arith.addf %181, %182 : vector<8x32xf32>
    %184 = math.tanh %183 : vector<8x32xf32>
    %185 = arith.mulf %180, %184 : vector<8x32xf32>
    %c4_i32 = arith.constant 4 : i32
    %186 = vector.broadcast %c4_i32 : i32 to vector<8x1xi32>
    %187 = arith.cmpi sgt, %14, %186 : vector<8x1xi32>
    %188 = vector.shape_cast %187 : vector<8x1xi1> to vector<8x1xi1>
    %189 = vector.broadcast %188 : vector<8x1xi1> to vector<8x32xi1>
    %190 = arith.select %189, %185, %157 : vector<8x32xi1>, vector<8x32xf32>
    %191 = vector.shape_cast %187 : vector<8x1xi1> to vector<8x1xi1>
    %192 = vector.broadcast %191 : vector<8x1xi1> to vector<8x32xi1>
    %193 = arith.select %192, %183, %160 : vector<8x32xi1>, vector<8x32xf32>
    %c4_74 = arith.constant 4 : index
    %c0_75 = arith.constant 0 : index
    %c0_76 = arith.constant 0 : index
    %194 = vector.load %arg18[%c4_74, %c0_75, %c0_76] : memref<8x8x32xf32, #tpu.memory_space<vmem>>, vector<1x8x32xf32>
    %195 = vector.shape_cast %194 : vector<1x8x32xf32> to vector<8x32xf32>
    %196 = vector.shape_cast %185 : vector<8x32xf32> to vector<1x8x32xf32>
    tpu.vector_store %arg18[%c4_74, %c0_75, %c0_76], %196 {strides = array<i32>} : memref<8x8x32xf32, #tpu.memory_space<vmem>>, vector<1x8x32xf32>,
    %c5 = arith.constant 5 : index
    %c0_77 = arith.constant 0 : index
    %c0_78 = arith.constant 0 : index
    %197 = vector.load %arg19[%c5, %c0_77, %c0_78] : memref<8x8x128xf32, #tpu.memory_space<vmem>>, vector<1x8x128xf32>
    %198 = vector.shape_cast %197 : vector<1x8x128xf32> to vector<8x128xf32>
    %cst_79 = arith.constant dense<0.000000e+00> : vector<8x128xf32>
    %199 = tpu.matmul %190, %18, %cst_79 {dimension_numbers = #tpu.dot_dimension_numbers<[1], [0], [0], [1], [0, 0, 1, 1], [], []>} : vector<8x32xf32>, vector<32x128xf32>, vector<8x128xf32> -> vector<8x128xf32>
    %200 = arith.addf %198, %199 : vector<8x128xf32>
    %201 = arith.negf %200 : vector<8x128xf32>
    %202 = math.exp %201 : vector<8x128xf32>
    %cst_80 = arith.constant 1.000000e+00 : f32
    %203 = vector.broadcast %cst_80 : f32 to vector<8x128xf32>
    %204 = arith.addf %203, %202 : vector<8x128xf32>
    %205 = arith.divf %203, %204 : vector<8x128xf32>
    %206 = vector.extract_strided_slice %205 {offsets = [0, 0], sizes = [8, 32], strides = [1, 1]} : vector<8x128xf32> to vector<8x32xf32>
    %207 = vector.extract_strided_slice %205 {offsets = [0, 32], sizes = [8, 32], strides = [1, 1]} : vector<8x128xf32> to vector<8x32xf32>
    %208 = vector.extract_strided_slice %205 {offsets = [0, 64], sizes = [8, 32], strides = [1, 1]} : vector<8x128xf32> to vector<8x32xf32>
    %cst_81 = arith.constant 2.000000e+00 : f32
    %209 = vector.broadcast %cst_81 : f32 to vector<8x32xf32>
    %210 = arith.mulf %209, %208 : vector<8x32xf32>
    %cst_82 = arith.constant 1.000000e+00 : f32
    %211 = vector.broadcast %cst_82 : f32 to vector<8x32xf32>
    %212 = arith.subf %210, %211 : vector<8x32xf32>
    %213 = vector.extract_strided_slice %205 {offsets = [0, 96], sizes = [8, 32], strides = [1, 1]} : vector<8x128xf32> to vector<8x32xf32>
    %214 = arith.mulf %207, %193 : vector<8x32xf32>
    %215 = arith.mulf %206, %212 : vector<8x32xf32>
    %216 = arith.addf %214, %215 : vector<8x32xf32>
    %217 = math.tanh %216 : vector<8x32xf32>
    %218 = arith.mulf %213, %217 : vector<8x32xf32>
    %c5_i32 = arith.constant 5 : i32
    %219 = vector.broadcast %c5_i32 : i32 to vector<8x1xi32>
    %220 = arith.cmpi sgt, %14, %219 : vector<8x1xi32>
    %221 = vector.shape_cast %220 : vector<8x1xi1> to vector<8x1xi1>
    %222 = vector.broadcast %221 : vector<8x1xi1> to vector<8x32xi1>
    %223 = arith.select %222, %218, %190 : vector<8x32xi1>, vector<8x32xf32>
    %224 = vector.shape_cast %220 : vector<8x1xi1> to vector<8x1xi1>
    %225 = vector.broadcast %224 : vector<8x1xi1> to vector<8x32xi1>
    %226 = arith.select %225, %216, %193 : vector<8x32xi1>, vector<8x32xf32>
    %c5_83 = arith.constant 5 : index
    %c0_84 = arith.constant 0 : index
    %c0_85 = arith.constant 0 : index
    %227 = vector.load %arg18[%c5_83, %c0_84, %c0_85] : memref<8x8x32xf32, #tpu.memory_space<vmem>>, vector<1x8x32xf32>
    %228 = vector.shape_cast %227 : vector<1x8x32xf32> to vector<8x32xf32>
    %229 = vector.shape_cast %218 : vector<8x32xf32> to vector<1x8x32xf32>
    tpu.vector_store %arg18[%c5_83, %c0_84, %c0_85], %229 {strides = array<i32>} : memref<8x8x32xf32, #tpu.memory_space<vmem>>, vector<1x8x32xf32>,
    %c6 = arith.constant 6 : index
    %c0_86 = arith.constant 0 : index
    %c0_87 = arith.constant 0 : index
    %230 = vector.load %arg19[%c6, %c0_86, %c0_87] : memref<8x8x128xf32, #tpu.memory_space<vmem>>, vector<1x8x128xf32>
    %231 = vector.shape_cast %230 : vector<1x8x128xf32> to vector<8x128xf32>
    %cst_88 = arith.constant dense<0.000000e+00> : vector<8x128xf32>
    %232 = tpu.matmul %223, %18, %cst_88 {dimension_numbers = #tpu.dot_dimension_numbers<[1], [0], [0], [1], [0, 0, 1, 1], [], []>} : vector<8x32xf32>, vector<32x128xf32>, vector<8x128xf32> -> vector<8x128xf32>
    %233 = arith.addf %231, %232 : vector<8x128xf32>
    %234 = arith.negf %233 : vector<8x128xf32>
    %235 = math.exp %234 : vector<8x128xf32>
    %cst_89 = arith.constant 1.000000e+00 : f32
    %236 = vector.broadcast %cst_89 : f32 to vector<8x128xf32>
    %237 = arith.addf %236, %235 : vector<8x128xf32>
    %238 = arith.divf %236, %237 : vector<8x128xf32>
    %239 = vector.extract_strided_slice %238 {offsets = [0, 0], sizes = [8, 32], strides = [1, 1]} : vector<8x128xf32> to vector<8x32xf32>
    %240 = vector.extract_strided_slice %238 {offsets = [0, 32], sizes = [8, 32], strides = [1, 1]} : vector<8x128xf32> to vector<8x32xf32>
    %241 = vector.extract_strided_slice %238 {offsets = [0, 64], sizes = [8, 32], strides = [1, 1]} : vector<8x128xf32> to vector<8x32xf32>
    %cst_90 = arith.constant 2.000000e+00 : f32
    %242 = vector.broadcast %cst_90 : f32 to vector<8x32xf32>
    %243 = arith.mulf %242, %241 : vector<8x32xf32>
    %cst_91 = arith.constant 1.000000e+00 : f32
    %244 = vector.broadcast %cst_91 : f32 to vector<8x32xf32>
    %245 = arith.subf %243, %244 : vector<8x32xf32>
    %246 = vector.extract_strided_slice %238 {offsets = [0, 96], sizes = [8, 32], strides = [1, 1]} : vector<8x128xf32> to vector<8x32xf32>
    %247 = arith.mulf %240, %226 : vector<8x32xf32>
    %248 = arith.mulf %239, %245 : vector<8x32xf32>
    %249 = arith.addf %247, %248 : vector<8x32xf32>
    %250 = math.tanh %249 : vector<8x32xf32>
    %251 = arith.mulf %246, %250 : vector<8x32xf32>
    %c6_i32 = arith.constant 6 : i32
    %252 = vector.broadcast %c6_i32 : i32 to vector<8x1xi32>
    %253 = arith.cmpi sgt, %14, %252 : vector<8x1xi32>
    %254 = vector.shape_cast %253 : vector<8x1xi1> to vector<8x1xi1>
    %255 = vector.broadcast %254 : vector<8x1xi1> to vector<8x32xi1>
    %256 = arith.select %255, %251, %223 : vector<8x32xi1>, vector<8x32xf32>
    %257 = vector.shape_cast %253 : vector<8x1xi1> to vector<8x1xi1>
    %258 = vector.broadcast %257 : vector<8x1xi1> to vector<8x32xi1>
    %259 = arith.select %258, %249, %226 : vector<8x32xi1>, vector<8x32xf32>
    %c6_92 = arith.constant 6 : index
    %c0_93 = arith.constant 0 : index
    %c0_94 = arith.constant 0 : index
    %260 = vector.load %arg18[%c6_92, %c0_93, %c0_94] : memref<8x8x32xf32, #tpu.memory_space<vmem>>, vector<1x8x32xf32>
    %261 = vector.shape_cast %260 : vector<1x8x32xf32> to vector<8x32xf32>
    %262 = vector.shape_cast %251 : vector<8x32xf32> to vector<1x8x32xf32>
    tpu.vector_store %arg18[%c6_92, %c0_93, %c0_94], %262 {strides = array<i32>} : memref<8x8x32xf32, #tpu.memory_space<vmem>>, vector<1x8x32xf32>,
    %c7 = arith.constant 7 : index
    %c0_95 = arith.constant 0 : index
    %c0_96 = arith.constant 0 : index
    %263 = vector.load %arg19[%c7, %c0_95, %c0_96] : memref<8x8x128xf32, #tpu.memory_space<vmem>>, vector<1x8x128xf32>
    %264 = vector.shape_cast %263 : vector<1x8x128xf32> to vector<8x128xf32>
    %cst_97 = arith.constant dense<0.000000e+00> : vector<8x128xf32>
    %265 = tpu.matmul %256, %18, %cst_97 {dimension_numbers = #tpu.dot_dimension_numbers<[1], [0], [0], [1], [0, 0, 1, 1], [], []>} : vector<8x32xf32>, vector<32x128xf32>, vector<8x128xf32> -> vector<8x128xf32>
    %266 = arith.addf %264, %265 : vector<8x128xf32>
    %267 = arith.negf %266 : vector<8x128xf32>
    %268 = math.exp %267 : vector<8x128xf32>
    %cst_98 = arith.constant 1.000000e+00 : f32
    %269 = vector.broadcast %cst_98 : f32 to vector<8x128xf32>
    %270 = arith.addf %269, %268 : vector<8x128xf32>
    %271 = arith.divf %269, %270 : vector<8x128xf32>
    %272 = vector.extract_strided_slice %271 {offsets = [0, 0], sizes = [8, 32], strides = [1, 1]} : vector<8x128xf32> to vector<8x32xf32>
    %273 = vector.extract_strided_slice %271 {offsets = [0, 32], sizes = [8, 32], strides = [1, 1]} : vector<8x128xf32> to vector<8x32xf32>
    %274 = vector.extract_strided_slice %271 {offsets = [0, 64], sizes = [8, 32], strides = [1, 1]} : vector<8x128xf32> to vector<8x32xf32>
    %cst_99 = arith.constant 2.000000e+00 : f32
    %275 = vector.broadcast %cst_99 : f32 to vector<8x32xf32>
    %276 = arith.mulf %275, %274 : vector<8x32xf32>
    %cst_100 = arith.constant 1.000000e+00 : f32
    %277 = vector.broadcast %cst_100 : f32 to vector<8x32xf32>
    %278 = arith.subf %276, %277 : vector<8x32xf32>
    %279 = vector.extract_strided_slice %271 {offsets = [0, 96], sizes = [8, 32], strides = [1, 1]} : vector<8x128xf32> to vector<8x32xf32>
    %280 = arith.mulf %273, %259 : vector<8x32xf32>
    %281 = arith.mulf %272, %278 : vector<8x32xf32>
    %282 = arith.addf %280, %281 : vector<8x32xf32>
    %283 = math.tanh %282 : vector<8x32xf32>
    %284 = arith.mulf %279, %283 : vector<8x32xf32>
    %c7_i32 = arith.constant 7 : i32
    %285 = vector.broadcast %c7_i32 : i32 to vector<8x1xi32>
    %286 = arith.cmpi sgt, %14, %285 : vector<8x1xi32>
    %287 = vector.shape_cast %286 : vector<8x1xi1> to vector<8x1xi1>
    %288 = vector.broadcast %287 : vector<8x1xi1> to vector<8x32xi1>
    %289 = arith.select %288, %284, %256 : vector<8x32xi1>, vector<8x32xf32>
    %290 = vector.shape_cast %286 : vector<8x1xi1> to vector<8x1xi1>
    %291 = vector.broadcast %290 : vector<8x1xi1> to vector<8x32xi1>
    %292 = arith.select %291, %282, %259 : vector<8x32xi1>, vector<8x32xf32>
    %c7_101 = arith.constant 7 : index
    %c0_102 = arith.constant 0 : index
    %c0_103 = arith.constant 0 : index
    %293 = vector.load %arg18[%c7_101, %c0_102, %c0_103] : memref<8x8x32xf32, #tpu.memory_space<vmem>>, vector<1x8x32xf32>
    %294 = vector.shape_cast %293 : vector<1x8x32xf32> to vector<8x32xf32>
    %295 = vector.shape_cast %284 : vector<8x32xf32> to vector<1x8x32xf32>
    tpu.vector_store %arg18[%c7_101, %c0_102, %c0_103], %295 {strides = array<i32>} : memref<8x8x32xf32, #tpu.memory_space<vmem>>, vector<1x8x32xf32>,
    %c0_104 = arith.constant 0 : index
    %c0_105 = arith.constant 0 : index
    %c0_106 = arith.constant 0 : index
    %296 = vector.load %arg16[%c0_104, %c0_105, %c0_106] : memref<4x8x32xf32, #tpu.memory_space<vmem>>, vector<1x8x32xf32>
    %297 = vector.shape_cast %296 : vector<1x8x32xf32> to vector<8x32xf32>
    %298 = vector.shape_cast %289 : vector<8x32xf32> to vector<1x8x32xf32>
    tpu.vector_store %arg16[%c0_104, %c0_105, %c0_106], %298 {strides = array<i32>} : memref<4x8x32xf32, #tpu.memory_space<vmem>>, vector<1x8x32xf32>,
    %c0_107 = arith.constant 0 : index
    %c0_108 = arith.constant 0 : index
    %c0_109 = arith.constant 0 : index
    %299 = vector.load %arg17[%c0_107, %c0_108, %c0_109] : memref<4x8x32xf32, #tpu.memory_space<vmem>>, vector<1x8x32xf32>
    %300 = vector.shape_cast %299 : vector<1x8x32xf32> to vector<8x32xf32>
    %301 = vector.shape_cast %292 : vector<8x32xf32> to vector<1x8x32xf32>
    tpu.vector_store %arg17[%c0_107, %c0_108, %c0_109], %301 {strides = array<i32>} : memref<4x8x32xf32, #tpu.memory_space<vmem>>, vector<1x8x32xf32>,
    %c1_110 = arith.constant 1 : index
    %c0_111 = arith.constant 0 : index
    %c0_112 = arith.constant 0 : index
    %302 = vector.load %arg7[%c1_110, %c0_111, %c0_112] : memref<4x32x128xf32, #tpu.memory_space<vmem>>, vector<1x32x128xf32>
    %303 = vector.shape_cast %302 : vector<1x32x128xf32> to vector<32x128xf32>
    %c1_113 = arith.constant 1 : index
    %c0_114 = arith.constant 0 : index
    %c0_115 = arith.constant 0 : index
    %304 = vector.load %arg8[%c1_113, %c0_114, %c0_115] : memref<4x32x128xf32, #tpu.memory_space<vmem>>, vector<1x32x128xf32>
    %305 = vector.shape_cast %304 : vector<1x32x128xf32> to vector<32x128xf32>
    %c1_116 = arith.constant 1 : index
    %c0_117 = arith.constant 0 : index
    %c0_118 = arith.constant 0 : index
    %306 = vector.load %arg9[%c1_116, %c0_117, %c0_118] : memref<4x1x128xf32, #tpu.memory_space<vmem>>, vector<1x1x128xf32>
    %307 = vector.shape_cast %306 : vector<1x1x128xf32> to vector<1x128xf32>
    %c0_119 = arith.constant 0 : index
    %c0_120 = arith.constant 0 : index
    %c0_121 = arith.constant 0 : index
    %308 = vector.load %arg18[%c0_119, %c0_120, %c0_121] : memref<8x8x32xf32, #tpu.memory_space<vmem>>, vector<8x8x32xf32>
    %309 = vector.shape_cast %308 : vector<8x8x32xf32> to vector<64x32xf32>
    %cst_122 = arith.constant dense<0.000000e+00> : vector<64x128xf32>
    %310 = tpu.matmul %309, %303, %cst_122 {dimension_numbers = #tpu.dot_dimension_numbers<[1], [0], [0], [1], [0, 0, 1, 1], [], []>} : vector<64x32xf32>, vector<32x128xf32>, vector<64x128xf32> -> vector<64x128xf32>
    %311 = vector.broadcast %307 : vector<1x128xf32> to vector<64x128xf32>
    %312 = arith.addf %310, %311 : vector<64x128xf32>
    %313 = vector.shape_cast %312 : vector<64x128xf32> to vector<8x8x128xf32>
    %c0_123 = arith.constant 0 : index
    %c0_124 = arith.constant 0 : index
    %c0_125 = arith.constant 0 : index
    %314 = vector.load %arg19[%c0_123, %c0_124, %c0_125] : memref<8x8x128xf32, #tpu.memory_space<vmem>>, vector<8x8x128xf32>
    tpu.vector_store %arg19[%c0_123, %c0_124, %c0_125], %313 {strides = array<i32>} : memref<8x8x128xf32, #tpu.memory_space<vmem>>, vector<8x8x128xf32>,
    %c1_126 = arith.constant 1 : index
    %c0_127 = arith.constant 0 : index
    %c0_128 = arith.constant 0 : index
    %315 = vector.load %arg3[%c1_126, %c0_127, %c0_128] : memref<4x8x32xf32, #tpu.memory_space<vmem>>, vector<1x8x32xf32>
    %316 = vector.shape_cast %315 : vector<1x8x32xf32> to vector<8x32xf32>
    %c1_129 = arith.constant 1 : index
    %c0_130 = arith.constant 0 : index
    %c0_131 = arith.constant 0 : index
    %317 = vector.load %arg4[%c1_129, %c0_130, %c0_131] : memref<4x8x32xf32, #tpu.memory_space<vmem>>, vector<1x8x32xf32>
    %318 = vector.shape_cast %317 : vector<1x8x32xf32> to vector<8x32xf32>
    %c0_132 = arith.constant 0 : index
    %c0_133 = arith.constant 0 : index
    %c0_134 = arith.constant 0 : index
    %319 = vector.load %arg19[%c0_132, %c0_133, %c0_134] : memref<8x8x128xf32, #tpu.memory_space<vmem>>, vector<1x8x128xf32>
    %320 = vector.shape_cast %319 : vector<1x8x128xf32> to vector<8x128xf32>
    %cst_135 = arith.constant dense<0.000000e+00> : vector<8x128xf32>
    %321 = tpu.matmul %316, %305, %cst_135 {dimension_numbers = #tpu.dot_dimension_numbers<[1], [0], [0], [1], [0, 0, 1, 1], [], []>} : vector<8x32xf32>, vector<32x128xf32>, vector<8x128xf32> -> vector<8x128xf32>
    %322 = arith.addf %320, %321 : vector<8x128xf32>
    %323 = arith.negf %322 : vector<8x128xf32>
    %324 = math.exp %323 : vector<8x128xf32>
    %cst_136 = arith.constant 1.000000e+00 : f32
    %325 = vector.broadcast %cst_136 : f32 to vector<8x128xf32>
    %326 = arith.addf %325, %324 : vector<8x128xf32>
    %327 = arith.divf %325, %326 : vector<8x128xf32>
    %328 = vector.extract_strided_slice %327 {offsets = [0, 0], sizes = [8, 32], strides = [1, 1]} : vector<8x128xf32> to vector<8x32xf32>
    %329 = vector.extract_strided_slice %327 {offsets = [0, 32], sizes = [8, 32], strides = [1, 1]} : vector<8x128xf32> to vector<8x32xf32>
    %330 = vector.extract_strided_slice %327 {offsets = [0, 64], sizes = [8, 32], strides = [1, 1]} : vector<8x128xf32> to vector<8x32xf32>
    %cst_137 = arith.constant 2.000000e+00 : f32
    %331 = vector.broadcast %cst_137 : f32 to vector<8x32xf32>
    %332 = arith.mulf %331, %330 : vector<8x32xf32>
    %cst_138 = arith.constant 1.000000e+00 : f32
    %333 = vector.broadcast %cst_138 : f32 to vector<8x32xf32>
    %334 = arith.subf %332, %333 : vector<8x32xf32>
    %335 = vector.extract_strided_slice %327 {offsets = [0, 96], sizes = [8, 32], strides = [1, 1]} : vector<8x128xf32> to vector<8x32xf32>
    %336 = arith.mulf %329, %318 : vector<8x32xf32>
    %337 = arith.mulf %328, %334 : vector<8x32xf32>
    %338 = arith.addf %336, %337 : vector<8x32xf32>
    %339 = math.tanh %338 : vector<8x32xf32>
    %340 = arith.mulf %335, %339 : vector<8x32xf32>
    %c0_i32_139 = arith.constant 0 : i32
    %341 = vector.broadcast %c0_i32_139 : i32 to vector<8x1xi32>
    %342 = arith.cmpi sgt, %14, %341 : vector<8x1xi32>
    %343 = vector.shape_cast %342 : vector<8x1xi1> to vector<8x1xi1>
    %344 = vector.broadcast %343 : vector<8x1xi1> to vector<8x32xi1>
    %345 = arith.select %344, %340, %316 : vector<8x32xi1>, vector<8x32xf32>
    %346 = vector.shape_cast %342 : vector<8x1xi1> to vector<8x1xi1>
    %347 = vector.broadcast %346 : vector<8x1xi1> to vector<8x32xi1>
    %348 = arith.select %347, %338, %318 : vector<8x32xi1>, vector<8x32xf32>
    %c0_140 = arith.constant 0 : index
    %c0_141 = arith.constant 0 : index
    %c0_142 = arith.constant 0 : index
    %349 = vector.load %arg18[%c0_140, %c0_141, %c0_142] : memref<8x8x32xf32, #tpu.memory_space<vmem>>, vector<1x8x32xf32>
    %350 = vector.shape_cast %349 : vector<1x8x32xf32> to vector<8x32xf32>
    %351 = vector.shape_cast %340 : vector<8x32xf32> to vector<1x8x32xf32>
    tpu.vector_store %arg18[%c0_140, %c0_141, %c0_142], %351 {strides = array<i32>} : memref<8x8x32xf32, #tpu.memory_space<vmem>>, vector<1x8x32xf32>,
    %c1_143 = arith.constant 1 : index
    %c0_144 = arith.constant 0 : index
    %c0_145 = arith.constant 0 : index
    %352 = vector.load %arg19[%c1_143, %c0_144, %c0_145] : memref<8x8x128xf32, #tpu.memory_space<vmem>>, vector<1x8x128xf32>
    %353 = vector.shape_cast %352 : vector<1x8x128xf32> to vector<8x128xf32>
    %cst_146 = arith.constant dense<0.000000e+00> : vector<8x128xf32>
    %354 = tpu.matmul %345, %305, %cst_146 {dimension_numbers = #tpu.dot_dimension_numbers<[1], [0], [0], [1], [0, 0, 1, 1], [], []>} : vector<8x32xf32>, vector<32x128xf32>, vector<8x128xf32> -> vector<8x128xf32>
    %355 = arith.addf %353, %354 : vector<8x128xf32>
    %356 = arith.negf %355 : vector<8x128xf32>
    %357 = math.exp %356 : vector<8x128xf32>
    %cst_147 = arith.constant 1.000000e+00 : f32
    %358 = vector.broadcast %cst_147 : f32 to vector<8x128xf32>
    %359 = arith.addf %358, %357 : vector<8x128xf32>
    %360 = arith.divf %358, %359 : vector<8x128xf32>
    %361 = vector.extract_strided_slice %360 {offsets = [0, 0], sizes = [8, 32], strides = [1, 1]} : vector<8x128xf32> to vector<8x32xf32>
    %362 = vector.extract_strided_slice %360 {offsets = [0, 32], sizes = [8, 32], strides = [1, 1]} : vector<8x128xf32> to vector<8x32xf32>
    %363 = vector.extract_strided_slice %360 {offsets = [0, 64], sizes = [8, 32], strides = [1, 1]} : vector<8x128xf32> to vector<8x32xf32>
    %cst_148 = arith.constant 2.000000e+00 : f32
    %364 = vector.broadcast %cst_148 : f32 to vector<8x32xf32>
    %365 = arith.mulf %364, %363 : vector<8x32xf32>
    %cst_149 = arith.constant 1.000000e+00 : f32
    %366 = vector.broadcast %cst_149 : f32 to vector<8x32xf32>
    %367 = arith.subf %365, %366 : vector<8x32xf32>
    %368 = vector.extract_strided_slice %360 {offsets = [0, 96], sizes = [8, 32], strides = [1, 1]} : vector<8x128xf32> to vector<8x32xf32>
    %369 = arith.mulf %362, %348 : vector<8x32xf32>
    %370 = arith.mulf %361, %367 : vector<8x32xf32>
    %371 = arith.addf %369, %370 : vector<8x32xf32>
    %372 = math.tanh %371 : vector<8x32xf32>
    %373 = arith.mulf %368, %372 : vector<8x32xf32>
    %c1_i32_150 = arith.constant 1 : i32
    %374 = vector.broadcast %c1_i32_150 : i32 to vector<8x1xi32>
    %375 = arith.cmpi sgt, %14, %374 : vector<8x1xi32>
    %376 = vector.shape_cast %375 : vector<8x1xi1> to vector<8x1xi1>
    %377 = vector.broadcast %376 : vector<8x1xi1> to vector<8x32xi1>
    %378 = arith.select %377, %373, %345 : vector<8x32xi1>, vector<8x32xf32>
    %379 = vector.shape_cast %375 : vector<8x1xi1> to vector<8x1xi1>
    %380 = vector.broadcast %379 : vector<8x1xi1> to vector<8x32xi1>
    %381 = arith.select %380, %371, %348 : vector<8x32xi1>, vector<8x32xf32>
    %c1_151 = arith.constant 1 : index
    %c0_152 = arith.constant 0 : index
    %c0_153 = arith.constant 0 : index
    %382 = vector.load %arg18[%c1_151, %c0_152, %c0_153] : memref<8x8x32xf32, #tpu.memory_space<vmem>>, vector<1x8x32xf32>
    %383 = vector.shape_cast %382 : vector<1x8x32xf32> to vector<8x32xf32>
    %384 = vector.shape_cast %373 : vector<8x32xf32> to vector<1x8x32xf32>
    tpu.vector_store %arg18[%c1_151, %c0_152, %c0_153], %384 {strides = array<i32>} : memref<8x8x32xf32, #tpu.memory_space<vmem>>, vector<1x8x32xf32>,
    %c2_154 = arith.constant 2 : index
    %c0_155 = arith.constant 0 : index
    %c0_156 = arith.constant 0 : index
    %385 = vector.load %arg19[%c2_154, %c0_155, %c0_156] : memref<8x8x128xf32, #tpu.memory_space<vmem>>, vector<1x8x128xf32>
    %386 = vector.shape_cast %385 : vector<1x8x128xf32> to vector<8x128xf32>
    %cst_157 = arith.constant dense<0.000000e+00> : vector<8x128xf32>
    %387 = tpu.matmul %378, %305, %cst_157 {dimension_numbers = #tpu.dot_dimension_numbers<[1], [0], [0], [1], [0, 0, 1, 1], [], []>} : vector<8x32xf32>, vector<32x128xf32>, vector<8x128xf32> -> vector<8x128xf32>
    %388 = arith.addf %386, %387 : vector<8x128xf32>
    %389 = arith.negf %388 : vector<8x128xf32>
    %390 = math.exp %389 : vector<8x128xf32>
    %cst_158 = arith.constant 1.000000e+00 : f32
    %391 = vector.broadcast %cst_158 : f32 to vector<8x128xf32>
    %392 = arith.addf %391, %390 : vector<8x128xf32>
    %393 = arith.divf %391, %392 : vector<8x128xf32>
    %394 = vector.extract_strided_slice %393 {offsets = [0, 0], sizes = [8, 32], strides = [1, 1]} : vector<8x128xf32> to vector<8x32xf32>
    %395 = vector.extract_strided_slice %393 {offsets = [0, 32], sizes = [8, 32], strides = [1, 1]} : vector<8x128xf32> to vector<8x32xf32>
    %396 = vector.extract_strided_slice %393 {offsets = [0, 64], sizes = [8, 32], strides = [1, 1]} : vector<8x128xf32> to vector<8x32xf32>
    %cst_159 = arith.constant 2.000000e+00 : f32
    %397 = vector.broadcast %cst_159 : f32 to vector<8x32xf32>
    %398 = arith.mulf %397, %396 : vector<8x32xf32>
    %cst_160 = arith.constant 1.000000e+00 : f32
    %399 = vector.broadcast %cst_160 : f32 to vector<8x32xf32>
    %400 = arith.subf %398, %399 : vector<8x32xf32>
    %401 = vector.extract_strided_slice %393 {offsets = [0, 96], sizes = [8, 32], strides = [1, 1]} : vector<8x128xf32> to vector<8x32xf32>
    %402 = arith.mulf %395, %381 : vector<8x32xf32>
    %403 = arith.mulf %394, %400 : vector<8x32xf32>
    %404 = arith.addf %402, %403 : vector<8x32xf32>
    %405 = math.tanh %404 : vector<8x32xf32>
    %406 = arith.mulf %401, %405 : vector<8x32xf32>
    %c2_i32_161 = arith.constant 2 : i32
    %407 = vector.broadcast %c2_i32_161 : i32 to vector<8x1xi32>
    %408 = arith.cmpi sgt, %14, %407 : vector<8x1xi32>
    %409 = vector.shape_cast %408 : vector<8x1xi1> to vector<8x1xi1>
    %410 = vector.broadcast %409 : vector<8x1xi1> to vector<8x32xi1>
    %411 = arith.select %410, %406, %378 : vector<8x32xi1>, vector<8x32xf32>
    %412 = vector.shape_cast %408 : vector<8x1xi1> to vector<8x1xi1>
    %413 = vector.broadcast %412 : vector<8x1xi1> to vector<8x32xi1>
    %414 = arith.select %413, %404, %381 : vector<8x32xi1>, vector<8x32xf32>
    %c2_162 = arith.constant 2 : index
    %c0_163 = arith.constant 0 : index
    %c0_164 = arith.constant 0 : index
    %415 = vector.load %arg18[%c2_162, %c0_163, %c0_164] : memref<8x8x32xf32, #tpu.memory_space<vmem>>, vector<1x8x32xf32>
    %416 = vector.shape_cast %415 : vector<1x8x32xf32> to vector<8x32xf32>
    %417 = vector.shape_cast %406 : vector<8x32xf32> to vector<1x8x32xf32>
    tpu.vector_store %arg18[%c2_162, %c0_163, %c0_164], %417 {strides = array<i32>} : memref<8x8x32xf32, #tpu.memory_space<vmem>>, vector<1x8x32xf32>,
    %c3_165 = arith.constant 3 : index
    %c0_166 = arith.constant 0 : index
    %c0_167 = arith.constant 0 : index
    %418 = vector.load %arg19[%c3_165, %c0_166, %c0_167] : memref<8x8x128xf32, #tpu.memory_space<vmem>>, vector<1x8x128xf32>
    %419 = vector.shape_cast %418 : vector<1x8x128xf32> to vector<8x128xf32>
    %cst_168 = arith.constant dense<0.000000e+00> : vector<8x128xf32>
    %420 = tpu.matmul %411, %305, %cst_168 {dimension_numbers = #tpu.dot_dimension_numbers<[1], [0], [0], [1], [0, 0, 1, 1], [], []>} : vector<8x32xf32>, vector<32x128xf32>, vector<8x128xf32> -> vector<8x128xf32>
    %421 = arith.addf %419, %420 : vector<8x128xf32>
    %422 = arith.negf %421 : vector<8x128xf32>
    %423 = math.exp %422 : vector<8x128xf32>
    %cst_169 = arith.constant 1.000000e+00 : f32
    %424 = vector.broadcast %cst_169 : f32 to vector<8x128xf32>
    %425 = arith.addf %424, %423 : vector<8x128xf32>
    %426 = arith.divf %424, %425 : vector<8x128xf32>
    %427 = vector.extract_strided_slice %426 {offsets = [0, 0], sizes = [8, 32], strides = [1, 1]} : vector<8x128xf32> to vector<8x32xf32>
    %428 = vector.extract_strided_slice %426 {offsets = [0, 32], sizes = [8, 32], strides = [1, 1]} : vector<8x128xf32> to vector<8x32xf32>
    %429 = vector.extract_strided_slice %426 {offsets = [0, 64], sizes = [8, 32], strides = [1, 1]} : vector<8x128xf32> to vector<8x32xf32>
    %cst_170 = arith.constant 2.000000e+00 : f32
    %430 = vector.broadcast %cst_170 : f32 to vector<8x32xf32>
    %431 = arith.mulf %430, %429 : vector<8x32xf32>
    %cst_171 = arith.constant 1.000000e+00 : f32
    %432 = vector.broadcast %cst_171 : f32 to vector<8x32xf32>
    %433 = arith.subf %431, %432 : vector<8x32xf32>
    %434 = vector.extract_strided_slice %426 {offsets = [0, 96], sizes = [8, 32], strides = [1, 1]} : vector<8x128xf32> to vector<8x32xf32>
    %435 = arith.mulf %428, %414 : vector<8x32xf32>
    %436 = arith.mulf %427, %433 : vector<8x32xf32>
    %437 = arith.addf %435, %436 : vector<8x32xf32>
    %438 = math.tanh %437 : vector<8x32xf32>
    %439 = arith.mulf %434, %438 : vector<8x32xf32>
    %c3_i32_172 = arith.constant 3 : i32
    %440 = vector.broadcast %c3_i32_172 : i32 to vector<8x1xi32>
    %441 = arith.cmpi sgt, %14, %440 : vector<8x1xi32>
    %442 = vector.shape_cast %441 : vector<8x1xi1> to vector<8x1xi1>
    %443 = vector.broadcast %442 : vector<8x1xi1> to vector<8x32xi1>
    %444 = arith.select %443, %439, %411 : vector<8x32xi1>, vector<8x32xf32>
    %445 = vector.shape_cast %441 : vector<8x1xi1> to vector<8x1xi1>
    %446 = vector.broadcast %445 : vector<8x1xi1> to vector<8x32xi1>
    %447 = arith.select %446, %437, %414 : vector<8x32xi1>, vector<8x32xf32>
    %c3_173 = arith.constant 3 : index
    %c0_174 = arith.constant 0 : index
    %c0_175 = arith.constant 0 : index
    %448 = vector.load %arg18[%c3_173, %c0_174, %c0_175] : memref<8x8x32xf32, #tpu.memory_space<vmem>>, vector<1x8x32xf32>
    %449 = vector.shape_cast %448 : vector<1x8x32xf32> to vector<8x32xf32>
    %450 = vector.shape_cast %439 : vector<8x32xf32> to vector<1x8x32xf32>
    tpu.vector_store %arg18[%c3_173, %c0_174, %c0_175], %450 {strides = array<i32>} : memref<8x8x32xf32, #tpu.memory_space<vmem>>, vector<1x8x32xf32>,
    %c4_176 = arith.constant 4 : index
    %c0_177 = arith.constant 0 : index
    %c0_178 = arith.constant 0 : index
    %451 = vector.load %arg19[%c4_176, %c0_177, %c0_178] : memref<8x8x128xf32, #tpu.memory_space<vmem>>, vector<1x8x128xf32>
    %452 = vector.shape_cast %451 : vector<1x8x128xf32> to vector<8x128xf32>
    %cst_179 = arith.constant dense<0.000000e+00> : vector<8x128xf32>
    %453 = tpu.matmul %444, %305, %cst_179 {dimension_numbers = #tpu.dot_dimension_numbers<[1], [0], [0], [1], [0, 0, 1, 1], [], []>} : vector<8x32xf32>, vector<32x128xf32>, vector<8x128xf32> -> vector<8x128xf32>
    %454 = arith.addf %452, %453 : vector<8x128xf32>
    %455 = arith.negf %454 : vector<8x128xf32>
    %456 = math.exp %455 : vector<8x128xf32>
    %cst_180 = arith.constant 1.000000e+00 : f32
    %457 = vector.broadcast %cst_180 : f32 to vector<8x128xf32>
    %458 = arith.addf %457, %456 : vector<8x128xf32>
    %459 = arith.divf %457, %458 : vector<8x128xf32>
    %460 = vector.extract_strided_slice %459 {offsets = [0, 0], sizes = [8, 32], strides = [1, 1]} : vector<8x128xf32> to vector<8x32xf32>
    %461 = vector.extract_strided_slice %459 {offsets = [0, 32], sizes = [8, 32], strides = [1, 1]} : vector<8x128xf32> to vector<8x32xf32>
    %462 = vector.extract_strided_slice %459 {offsets = [0, 64], sizes = [8, 32], strides = [1, 1]} : vector<8x128xf32> to vector<8x32xf32>
    %cst_181 = arith.constant 2.000000e+00 : f32
    %463 = vector.broadcast %cst_181 : f32 to vector<8x32xf32>
    %464 = arith.mulf %463, %462 : vector<8x32xf32>
    %cst_182 = arith.constant 1.000000e+00 : f32
    %465 = vector.broadcast %cst_182 : f32 to vector<8x32xf32>
    %466 = arith.subf %464, %465 : vector<8x32xf32>
    %467 = vector.extract_strided_slice %459 {offsets = [0, 96], sizes = [8, 32], strides = [1, 1]} : vector<8x128xf32> to vector<8x32xf32>
    %468 = arith.mulf %461, %447 : vector<8x32xf32>
    %469 = arith.mulf %460, %466 : vector<8x32xf32>
    %470 = arith.addf %468, %469 : vector<8x32xf32>
    %471 = math.tanh %470 : vector<8x32xf32>
    %472 = arith.mulf %467, %471 : vector<8x32xf32>
    %c4_i32_183 = arith.constant 4 : i32
    %473 = vector.broadcast %c4_i32_183 : i32 to vector<8x1xi32>
    %474 = arith.cmpi sgt, %14, %473 : vector<8x1xi32>
    %475 = vector.shape_cast %474 : vector<8x1xi1> to vector<8x1xi1>
    %476 = vector.broadcast %475 : vector<8x1xi1> to vector<8x32xi1>
    %477 = arith.select %476, %472, %444 : vector<8x32xi1>, vector<8x32xf32>
    %478 = vector.shape_cast %474 : vector<8x1xi1> to vector<8x1xi1>
    %479 = vector.broadcast %478 : vector<8x1xi1> to vector<8x32xi1>
    %480 = arith.select %479, %470, %447 : vector<8x32xi1>, vector<8x32xf32>
    %c4_184 = arith.constant 4 : index
    %c0_185 = arith.constant 0 : index
    %c0_186 = arith.constant 0 : index
    %481 = vector.load %arg18[%c4_184, %c0_185, %c0_186] : memref<8x8x32xf32, #tpu.memory_space<vmem>>, vector<1x8x32xf32>
    %482 = vector.shape_cast %481 : vector<1x8x32xf32> to vector<8x32xf32>
    %483 = vector.shape_cast %472 : vector<8x32xf32> to vector<1x8x32xf32>
    tpu.vector_store %arg18[%c4_184, %c0_185, %c0_186], %483 {strides = array<i32>} : memref<8x8x32xf32, #tpu.memory_space<vmem>>, vector<1x8x32xf32>,
    %c5_187 = arith.constant 5 : index
    %c0_188 = arith.constant 0 : index
    %c0_189 = arith.constant 0 : index
    %484 = vector.load %arg19[%c5_187, %c0_188, %c0_189] : memref<8x8x128xf32, #tpu.memory_space<vmem>>, vector<1x8x128xf32>
    %485 = vector.shape_cast %484 : vector<1x8x128xf32> to vector<8x128xf32>
    %cst_190 = arith.constant dense<0.000000e+00> : vector<8x128xf32>
    %486 = tpu.matmul %477, %305, %cst_190 {dimension_numbers = #tpu.dot_dimension_numbers<[1], [0], [0], [1], [0, 0, 1, 1], [], []>} : vector<8x32xf32>, vector<32x128xf32>, vector<8x128xf32> -> vector<8x128xf32>
    %487 = arith.addf %485, %486 : vector<8x128xf32>
    %488 = arith.negf %487 : vector<8x128xf32>
    %489 = math.exp %488 : vector<8x128xf32>
    %cst_191 = arith.constant 1.000000e+00 : f32
    %490 = vector.broadcast %cst_191 : f32 to vector<8x128xf32>
    %491 = arith.addf %490, %489 : vector<8x128xf32>
    %492 = arith.divf %490, %491 : vector<8x128xf32>
    %493 = vector.extract_strided_slice %492 {offsets = [0, 0], sizes = [8, 32], strides = [1, 1]} : vector<8x128xf32> to vector<8x32xf32>
    %494 = vector.extract_strided_slice %492 {offsets = [0, 32], sizes = [8, 32], strides = [1, 1]} : vector<8x128xf32> to vector<8x32xf32>
    %495 = vector.extract_strided_slice %492 {offsets = [0, 64], sizes = [8, 32], strides = [1, 1]} : vector<8x128xf32> to vector<8x32xf32>
    %cst_192 = arith.constant 2.000000e+00 : f32
    %496 = vector.broadcast %cst_192 : f32 to vector<8x32xf32>
    %497 = arith.mulf %496, %495 : vector<8x32xf32>
    %cst_193 = arith.constant 1.000000e+00 : f32
    %498 = vector.broadcast %cst_193 : f32 to vector<8x32xf32>
    %499 = arith.subf %497, %498 : vector<8x32xf32>
    %500 = vector.extract_strided_slice %492 {offsets = [0, 96], sizes = [8, 32], strides = [1, 1]} : vector<8x128xf32> to vector<8x32xf32>
    %501 = arith.mulf %494, %480 : vector<8x32xf32>
    %502 = arith.mulf %493, %499 : vector<8x32xf32>
    %503 = arith.addf %501, %502 : vector<8x32xf32>
    %504 = math.tanh %503 : vector<8x32xf32>
    %505 = arith.mulf %500, %504 : vector<8x32xf32>
    %c5_i32_194 = arith.constant 5 : i32
    %506 = vector.broadcast %c5_i32_194 : i32 to vector<8x1xi32>
    %507 = arith.cmpi sgt, %14, %506 : vector<8x1xi32>
    %508 = vector.shape_cast %507 : vector<8x1xi1> to vector<8x1xi1>
    %509 = vector.broadcast %508 : vector<8x1xi1> to vector<8x32xi1>
    %510 = arith.select %509, %505, %477 : vector<8x32xi1>, vector<8x32xf32>
    %511 = vector.shape_cast %507 : vector<8x1xi1> to vector<8x1xi1>
    %512 = vector.broadcast %511 : vector<8x1xi1> to vector<8x32xi1>
    %513 = arith.select %512, %503, %480 : vector<8x32xi1>, vector<8x32xf32>
    %c5_195 = arith.constant 5 : index
    %c0_196 = arith.constant 0 : index
    %c0_197 = arith.constant 0 : index
    %514 = vector.load %arg18[%c5_195, %c0_196, %c0_197] : memref<8x8x32xf32, #tpu.memory_space<vmem>>, vector<1x8x32xf32>
    %515 = vector.shape_cast %514 : vector<1x8x32xf32> to vector<8x32xf32>
    %516 = vector.shape_cast %505 : vector<8x32xf32> to vector<1x8x32xf32>
    tpu.vector_store %arg18[%c5_195, %c0_196, %c0_197], %516 {strides = array<i32>} : memref<8x8x32xf32, #tpu.memory_space<vmem>>, vector<1x8x32xf32>,
    %c6_198 = arith.constant 6 : index
    %c0_199 = arith.constant 0 : index
    %c0_200 = arith.constant 0 : index
    %517 = vector.load %arg19[%c6_198, %c0_199, %c0_200] : memref<8x8x128xf32, #tpu.memory_space<vmem>>, vector<1x8x128xf32>
    %518 = vector.shape_cast %517 : vector<1x8x128xf32> to vector<8x128xf32>
    %cst_201 = arith.constant dense<0.000000e+00> : vector<8x128xf32>
    %519 = tpu.matmul %510, %305, %cst_201 {dimension_numbers = #tpu.dot_dimension_numbers<[1], [0], [0], [1], [0, 0, 1, 1], [], []>} : vector<8x32xf32>, vector<32x128xf32>, vector<8x128xf32> -> vector<8x128xf32>
    %520 = arith.addf %518, %519 : vector<8x128xf32>
    %521 = arith.negf %520 : vector<8x128xf32>
    %522 = math.exp %521 : vector<8x128xf32>
    %cst_202 = arith.constant 1.000000e+00 : f32
    %523 = vector.broadcast %cst_202 : f32 to vector<8x128xf32>
    %524 = arith.addf %523, %522 : vector<8x128xf32>
    %525 = arith.divf %523, %524 : vector<8x128xf32>
    %526 = vector.extract_strided_slice %525 {offsets = [0, 0], sizes = [8, 32], strides = [1, 1]} : vector<8x128xf32> to vector<8x32xf32>
    %527 = vector.extract_strided_slice %525 {offsets = [0, 32], sizes = [8, 32], strides = [1, 1]} : vector<8x128xf32> to vector<8x32xf32>
    %528 = vector.extract_strided_slice %525 {offsets = [0, 64], sizes = [8, 32], strides = [1, 1]} : vector<8x128xf32> to vector<8x32xf32>
    %cst_203 = arith.constant 2.000000e+00 : f32
    %529 = vector.broadcast %cst_203 : f32 to vector<8x32xf32>
    %530 = arith.mulf %529, %528 : vector<8x32xf32>
    %cst_204 = arith.constant 1.000000e+00 : f32
    %531 = vector.broadcast %cst_204 : f32 to vector<8x32xf32>
    %532 = arith.subf %530, %531 : vector<8x32xf32>
    %533 = vector.extract_strided_slice %525 {offsets = [0, 96], sizes = [8, 32], strides = [1, 1]} : vector<8x128xf32> to vector<8x32xf32>
    %534 = arith.mulf %527, %513 : vector<8x32xf32>
    %535 = arith.mulf %526, %532 : vector<8x32xf32>
    %536 = arith.addf %534, %535 : vector<8x32xf32>
    %537 = math.tanh %536 : vector<8x32xf32>
    %538 = arith.mulf %533, %537 : vector<8x32xf32>
    %c6_i32_205 = arith.constant 6 : i32
    %539 = vector.broadcast %c6_i32_205 : i32 to vector<8x1xi32>
    %540 = arith.cmpi sgt, %14, %539 : vector<8x1xi32>
    %541 = vector.shape_cast %540 : vector<8x1xi1> to vector<8x1xi1>
    %542 = vector.broadcast %541 : vector<8x1xi1> to vector<8x32xi1>
    %543 = arith.select %542, %538, %510 : vector<8x32xi1>, vector<8x32xf32>
    %544 = vector.shape_cast %540 : vector<8x1xi1> to vector<8x1xi1>
    %545 = vector.broadcast %544 : vector<8x1xi1> to vector<8x32xi1>
    %546 = arith.select %545, %536, %513 : vector<8x32xi1>, vector<8x32xf32>
    %c6_206 = arith.constant 6 : index
    %c0_207 = arith.constant 0 : index
    %c0_208 = arith.constant 0 : index
    %547 = vector.load %arg18[%c6_206, %c0_207, %c0_208] : memref<8x8x32xf32, #tpu.memory_space<vmem>>, vector<1x8x32xf32>
    %548 = vector.shape_cast %547 : vector<1x8x32xf32> to vector<8x32xf32>
    %549 = vector.shape_cast %538 : vector<8x32xf32> to vector<1x8x32xf32>
    tpu.vector_store %arg18[%c6_206, %c0_207, %c0_208], %549 {strides = array<i32>} : memref<8x8x32xf32, #tpu.memory_space<vmem>>, vector<1x8x32xf32>,
    %c7_209 = arith.constant 7 : index
    %c0_210 = arith.constant 0 : index
    %c0_211 = arith.constant 0 : index
    %550 = vector.load %arg19[%c7_209, %c0_210, %c0_211] : memref<8x8x128xf32, #tpu.memory_space<vmem>>, vector<1x8x128xf32>
    %551 = vector.shape_cast %550 : vector<1x8x128xf32> to vector<8x128xf32>
    %cst_212 = arith.constant dense<0.000000e+00> : vector<8x128xf32>
    %552 = tpu.matmul %543, %305, %cst_212 {dimension_numbers = #tpu.dot_dimension_numbers<[1], [0], [0], [1], [0, 0, 1, 1], [], []>} : vector<8x32xf32>, vector<32x128xf32>, vector<8x128xf32> -> vector<8x128xf32>
    %553 = arith.addf %551, %552 : vector<8x128xf32>
    %554 = arith.negf %553 : vector<8x128xf32>
    %555 = math.exp %554 : vector<8x128xf32>
    %cst_213 = arith.constant 1.000000e+00 : f32
    %556 = vector.broadcast %cst_213 : f32 to vector<8x128xf32>
    %557 = arith.addf %556, %555 : vector<8x128xf32>
    %558 = arith.divf %556, %557 : vector<8x128xf32>
    %559 = vector.extract_strided_slice %558 {offsets = [0, 0], sizes = [8, 32], strides = [1, 1]} : vector<8x128xf32> to vector<8x32xf32>
    %560 = vector.extract_strided_slice %558 {offsets = [0, 32], sizes = [8, 32], strides = [1, 1]} : vector<8x128xf32> to vector<8x32xf32>
    %561 = vector.extract_strided_slice %558 {offsets = [0, 64], sizes = [8, 32], strides = [1, 1]} : vector<8x128xf32> to vector<8x32xf32>
    %cst_214 = arith.constant 2.000000e+00 : f32
    %562 = vector.broadcast %cst_214 : f32 to vector<8x32xf32>
    %563 = arith.mulf %562, %561 : vector<8x32xf32>
    %cst_215 = arith.constant 1.000000e+00 : f32
    %564 = vector.broadcast %cst_215 : f32 to vector<8x32xf32>
    %565 = arith.subf %563, %564 : vector<8x32xf32>
    %566 = vector.extract_strided_slice %558 {offsets = [0, 96], sizes = [8, 32], strides = [1, 1]} : vector<8x128xf32> to vector<8x32xf32>
    %567 = arith.mulf %560, %546 : vector<8x32xf32>
    %568 = arith.mulf %559, %565 : vector<8x32xf32>
    %569 = arith.addf %567, %568 : vector<8x32xf32>
    %570 = math.tanh %569 : vector<8x32xf32>
    %571 = arith.mulf %566, %570 : vector<8x32xf32>
    %c7_i32_216 = arith.constant 7 : i32
    %572 = vector.broadcast %c7_i32_216 : i32 to vector<8x1xi32>
    %573 = arith.cmpi sgt, %14, %572 : vector<8x1xi32>
    %574 = vector.shape_cast %573 : vector<8x1xi1> to vector<8x1xi1>
    %575 = vector.broadcast %574 : vector<8x1xi1> to vector<8x32xi1>
    %576 = arith.select %575, %571, %543 : vector<8x32xi1>, vector<8x32xf32>
    %577 = vector.shape_cast %573 : vector<8x1xi1> to vector<8x1xi1>
    %578 = vector.broadcast %577 : vector<8x1xi1> to vector<8x32xi1>
    %579 = arith.select %578, %569, %546 : vector<8x32xi1>, vector<8x32xf32>
    %c7_217 = arith.constant 7 : index
    %c0_218 = arith.constant 0 : index
    %c0_219 = arith.constant 0 : index
    %580 = vector.load %arg18[%c7_217, %c0_218, %c0_219] : memref<8x8x32xf32, #tpu.memory_space<vmem>>, vector<1x8x32xf32>
    %581 = vector.shape_cast %580 : vector<1x8x32xf32> to vector<8x32xf32>
    %582 = vector.shape_cast %571 : vector<8x32xf32> to vector<1x8x32xf32>
    tpu.vector_store %arg18[%c7_217, %c0_218, %c0_219], %582 {strides = array<i32>} : memref<8x8x32xf32, #tpu.memory_space<vmem>>, vector<1x8x32xf32>,
    %c1_220 = arith.constant 1 : index
    %c0_221 = arith.constant 0 : index
    %c0_222 = arith.constant 0 : index
    %583 = vector.load %arg16[%c1_220, %c0_221, %c0_222] : memref<4x8x32xf32, #tpu.memory_space<vmem>>, vector<1x8x32xf32>
    %584 = vector.shape_cast %583 : vector<1x8x32xf32> to vector<8x32xf32>
    %585 = vector.shape_cast %576 : vector<8x32xf32> to vector<1x8x32xf32>
    tpu.vector_store %arg16[%c1_220, %c0_221, %c0_222], %585 {strides = array<i32>} : memref<4x8x32xf32, #tpu.memory_space<vmem>>, vector<1x8x32xf32>,
    %c1_223 = arith.constant 1 : index
    %c0_224 = arith.constant 0 : index
    %c0_225 = arith.constant 0 : index
    %586 = vector.load %arg17[%c1_223, %c0_224, %c0_225] : memref<4x8x32xf32, #tpu.memory_space<vmem>>, vector<1x8x32xf32>
    %587 = vector.shape_cast %586 : vector<1x8x32xf32> to vector<8x32xf32>
    %588 = vector.shape_cast %579 : vector<8x32xf32> to vector<1x8x32xf32>
    tpu.vector_store %arg17[%c1_223, %c0_224, %c0_225], %588 {strides = array<i32>} : memref<4x8x32xf32, #tpu.memory_space<vmem>>, vector<1x8x32xf32>,
    %c2_226 = arith.constant 2 : index
    %c0_227 = arith.constant 0 : index
    %c0_228 = arith.constant 0 : index
    %589 = vector.load %arg7[%c2_226, %c0_227, %c0_228] : memref<4x32x128xf32, #tpu.memory_space<vmem>>, vector<1x32x128xf32>
    %590 = vector.shape_cast %589 : vector<1x32x128xf32> to vector<32x128xf32>
    %c2_229 = arith.constant 2 : index
    %c0_230 = arith.constant 0 : index
    %c0_231 = arith.constant 0 : index
    %591 = vector.load %arg8[%c2_229, %c0_230, %c0_231] : memref<4x32x128xf32, #tpu.memory_space<vmem>>, vector<1x32x128xf32>
    %592 = vector.shape_cast %591 : vector<1x32x128xf32> to vector<32x128xf32>
    %c2_232 = arith.constant 2 : index
    %c0_233 = arith.constant 0 : index
    %c0_234 = arith.constant 0 : index
    %593 = vector.load %arg9[%c2_232, %c0_233, %c0_234] : memref<4x1x128xf32, #tpu.memory_space<vmem>>, vector<1x1x128xf32>
    %594 = vector.shape_cast %593 : vector<1x1x128xf32> to vector<1x128xf32>
    %c0_235 = arith.constant 0 : index
    %c0_236 = arith.constant 0 : index
    %c0_237 = arith.constant 0 : index
    %595 = vector.load %arg18[%c0_235, %c0_236, %c0_237] : memref<8x8x32xf32, #tpu.memory_space<vmem>>, vector<8x8x32xf32>
    %596 = vector.shape_cast %595 : vector<8x8x32xf32> to vector<64x32xf32>
    %cst_238 = arith.constant dense<0.000000e+00> : vector<64x128xf32>
    %597 = tpu.matmul %596, %590, %cst_238 {dimension_numbers = #tpu.dot_dimension_numbers<[1], [0], [0], [1], [0, 0, 1, 1], [], []>} : vector<64x32xf32>, vector<32x128xf32>, vector<64x128xf32> -> vector<64x128xf32>
    %598 = vector.broadcast %594 : vector<1x128xf32> to vector<64x128xf32>
    %599 = arith.addf %597, %598 : vector<64x128xf32>
    %600 = vector.shape_cast %599 : vector<64x128xf32> to vector<8x8x128xf32>
    %c0_239 = arith.constant 0 : index
    %c0_240 = arith.constant 0 : index
    %c0_241 = arith.constant 0 : index
    %601 = vector.load %arg19[%c0_239, %c0_240, %c0_241] : memref<8x8x128xf32, #tpu.memory_space<vmem>>, vector<8x8x128xf32>
    tpu.vector_store %arg19[%c0_239, %c0_240, %c0_241], %600 {strides = array<i32>} : memref<8x8x128xf32, #tpu.memory_space<vmem>>, vector<8x8x128xf32>,
    %c2_242 = arith.constant 2 : index
    %c0_243 = arith.constant 0 : index
    %c0_244 = arith.constant 0 : index
    %602 = vector.load %arg3[%c2_242, %c0_243, %c0_244] : memref<4x8x32xf32, #tpu.memory_space<vmem>>, vector<1x8x32xf32>
    %603 = vector.shape_cast %602 : vector<1x8x32xf32> to vector<8x32xf32>
    %c2_245 = arith.constant 2 : index
    %c0_246 = arith.constant 0 : index
    %c0_247 = arith.constant 0 : index
    %604 = vector.load %arg4[%c2_245, %c0_246, %c0_247] : memref<4x8x32xf32, #tpu.memory_space<vmem>>, vector<1x8x32xf32>
    %605 = vector.shape_cast %604 : vector<1x8x32xf32> to vector<8x32xf32>
    %c0_248 = arith.constant 0 : index
    %c0_249 = arith.constant 0 : index
    %c0_250 = arith.constant 0 : index
    %606 = vector.load %arg19[%c0_248, %c0_249, %c0_250] : memref<8x8x128xf32, #tpu.memory_space<vmem>>, vector<1x8x128xf32>
    %607 = vector.shape_cast %606 : vector<1x8x128xf32> to vector<8x128xf32>
    %cst_251 = arith.constant dense<0.000000e+00> : vector<8x128xf32>
    %608 = tpu.matmul %603, %592, %cst_251 {dimension_numbers = #tpu.dot_dimension_numbers<[1], [0], [0], [1], [0, 0, 1, 1], [], []>} : vector<8x32xf32>, vector<32x128xf32>, vector<8x128xf32> -> vector<8x128xf32>
    %609 = arith.addf %607, %608 : vector<8x128xf32>
    %610 = arith.negf %609 : vector<8x128xf32>
    %611 = math.exp %610 : vector<8x128xf32>
    %cst_252 = arith.constant 1.000000e+00 : f32
    %612 = vector.broadcast %cst_252 : f32 to vector<8x128xf32>
    %613 = arith.addf %612, %611 : vector<8x128xf32>
    %614 = arith.divf %612, %613 : vector<8x128xf32>
    %615 = vector.extract_strided_slice %614 {offsets = [0, 0], sizes = [8, 32], strides = [1, 1]} : vector<8x128xf32> to vector<8x32xf32>
    %616 = vector.extract_strided_slice %614 {offsets = [0, 32], sizes = [8, 32], strides = [1, 1]} : vector<8x128xf32> to vector<8x32xf32>
    %617 = vector.extract_strided_slice %614 {offsets = [0, 64], sizes = [8, 32], strides = [1, 1]} : vector<8x128xf32> to vector<8x32xf32>
    %cst_253 = arith.constant 2.000000e+00 : f32
    %618 = vector.broadcast %cst_253 : f32 to vector<8x32xf32>
    %619 = arith.mulf %618, %617 : vector<8x32xf32>
    %cst_254 = arith.constant 1.000000e+00 : f32
    %620 = vector.broadcast %cst_254 : f32 to vector<8x32xf32>
    %621 = arith.subf %619, %620 : vector<8x32xf32>
    %622 = vector.extract_strided_slice %614 {offsets = [0, 96], sizes = [8, 32], strides = [1, 1]} : vector<8x128xf32> to vector<8x32xf32>
    %623 = arith.mulf %616, %605 : vector<8x32xf32>
    %624 = arith.mulf %615, %621 : vector<8x32xf32>
    %625 = arith.addf %623, %624 : vector<8x32xf32>
    %626 = math.tanh %625 : vector<8x32xf32>
    %627 = arith.mulf %622, %626 : vector<8x32xf32>
    %c0_i32_255 = arith.constant 0 : i32
    %628 = vector.broadcast %c0_i32_255 : i32 to vector<8x1xi32>
    %629 = arith.cmpi sgt, %14, %628 : vector<8x1xi32>
    %630 = vector.shape_cast %629 : vector<8x1xi1> to vector<8x1xi1>
    %631 = vector.broadcast %630 : vector<8x1xi1> to vector<8x32xi1>
    %632 = arith.select %631, %627, %603 : vector<8x32xi1>, vector<8x32xf32>
    %633 = vector.shape_cast %629 : vector<8x1xi1> to vector<8x1xi1>
    %634 = vector.broadcast %633 : vector<8x1xi1> to vector<8x32xi1>
    %635 = arith.select %634, %625, %605 : vector<8x32xi1>, vector<8x32xf32>
    %c0_256 = arith.constant 0 : index
    %c0_257 = arith.constant 0 : index
    %c0_258 = arith.constant 0 : index
    %636 = vector.load %arg18[%c0_256, %c0_257, %c0_258] : memref<8x8x32xf32, #tpu.memory_space<vmem>>, vector<1x8x32xf32>
    %637 = vector.shape_cast %636 : vector<1x8x32xf32> to vector<8x32xf32>
    %638 = vector.shape_cast %627 : vector<8x32xf32> to vector<1x8x32xf32>
    tpu.vector_store %arg18[%c0_256, %c0_257, %c0_258], %638 {strides = array<i32>} : memref<8x8x32xf32, #tpu.memory_space<vmem>>, vector<1x8x32xf32>,
    %c1_259 = arith.constant 1 : index
    %c0_260 = arith.constant 0 : index
    %c0_261 = arith.constant 0 : index
    %639 = vector.load %arg19[%c1_259, %c0_260, %c0_261] : memref<8x8x128xf32, #tpu.memory_space<vmem>>, vector<1x8x128xf32>
    %640 = vector.shape_cast %639 : vector<1x8x128xf32> to vector<8x128xf32>
    %cst_262 = arith.constant dense<0.000000e+00> : vector<8x128xf32>
    %641 = tpu.matmul %632, %592, %cst_262 {dimension_numbers = #tpu.dot_dimension_numbers<[1], [0], [0], [1], [0, 0, 1, 1], [], []>} : vector<8x32xf32>, vector<32x128xf32>, vector<8x128xf32> -> vector<8x128xf32>
    %642 = arith.addf %640, %641 : vector<8x128xf32>
    %643 = arith.negf %642 : vector<8x128xf32>
    %644 = math.exp %643 : vector<8x128xf32>
    %cst_263 = arith.constant 1.000000e+00 : f32
    %645 = vector.broadcast %cst_263 : f32 to vector<8x128xf32>
    %646 = arith.addf %645, %644 : vector<8x128xf32>
    %647 = arith.divf %645, %646 : vector<8x128xf32>
    %648 = vector.extract_strided_slice %647 {offsets = [0, 0], sizes = [8, 32], strides = [1, 1]} : vector<8x128xf32> to vector<8x32xf32>
    %649 = vector.extract_strided_slice %647 {offsets = [0, 32], sizes = [8, 32], strides = [1, 1]} : vector<8x128xf32> to vector<8x32xf32>
    %650 = vector.extract_strided_slice %647 {offsets = [0, 64], sizes = [8, 32], strides = [1, 1]} : vector<8x128xf32> to vector<8x32xf32>
    %cst_264 = arith.constant 2.000000e+00 : f32
    %651 = vector.broadcast %cst_264 : f32 to vector<8x32xf32>
    %652 = arith.mulf %651, %650 : vector<8x32xf32>
    %cst_265 = arith.constant 1.000000e+00 : f32
    %653 = vector.broadcast %cst_265 : f32 to vector<8x32xf32>
    %654 = arith.subf %652, %653 : vector<8x32xf32>
    %655 = vector.extract_strided_slice %647 {offsets = [0, 96], sizes = [8, 32], strides = [1, 1]} : vector<8x128xf32> to vector<8x32xf32>
    %656 = arith.mulf %649, %635 : vector<8x32xf32>
    %657 = arith.mulf %648, %654 : vector<8x32xf32>
    %658 = arith.addf %656, %657 : vector<8x32xf32>
    %659 = math.tanh %658 : vector<8x32xf32>
    %660 = arith.mulf %655, %659 : vector<8x32xf32>
    %c1_i32_266 = arith.constant 1 : i32
    %661 = vector.broadcast %c1_i32_266 : i32 to vector<8x1xi32>
    %662 = arith.cmpi sgt, %14, %661 : vector<8x1xi32>
    %663 = vector.shape_cast %662 : vector<8x1xi1> to vector<8x1xi1>
    %664 = vector.broadcast %663 : vector<8x1xi1> to vector<8x32xi1>
    %665 = arith.select %664, %660, %632 : vector<8x32xi1>, vector<8x32xf32>
    %666 = vector.shape_cast %662 : vector<8x1xi1> to vector<8x1xi1>
    %667 = vector.broadcast %666 : vector<8x1xi1> to vector<8x32xi1>
    %668 = arith.select %667, %658, %635 : vector<8x32xi1>, vector<8x32xf32>
    %c1_267 = arith.constant 1 : index
    %c0_268 = arith.constant 0 : index
    %c0_269 = arith.constant 0 : index
    %669 = vector.load %arg18[%c1_267, %c0_268, %c0_269] : memref<8x8x32xf32, #tpu.memory_space<vmem>>, vector<1x8x32xf32>
    %670 = vector.shape_cast %669 : vector<1x8x32xf32> to vector<8x32xf32>
    %671 = vector.shape_cast %660 : vector<8x32xf32> to vector<1x8x32xf32>
    tpu.vector_store %arg18[%c1_267, %c0_268, %c0_269], %671 {strides = array<i32>} : memref<8x8x32xf32, #tpu.memory_space<vmem>>, vector<1x8x32xf32>,
    %c2_270 = arith.constant 2 : index
    %c0_271 = arith.constant 0 : index
    %c0_272 = arith.constant 0 : index
    %672 = vector.load %arg19[%c2_270, %c0_271, %c0_272] : memref<8x8x128xf32, #tpu.memory_space<vmem>>, vector<1x8x128xf32>
    %673 = vector.shape_cast %672 : vector<1x8x128xf32> to vector<8x128xf32>
    %cst_273 = arith.constant dense<0.000000e+00> : vector<8x128xf32>
    %674 = tpu.matmul %665, %592, %cst_273 {dimension_numbers = #tpu.dot_dimension_numbers<[1], [0], [0], [1], [0, 0, 1, 1], [], []>} : vector<8x32xf32>, vector<32x128xf32>, vector<8x128xf32> -> vector<8x128xf32>
    %675 = arith.addf %673, %674 : vector<8x128xf32>
    %676 = arith.negf %675 : vector<8x128xf32>
    %677 = math.exp %676 : vector<8x128xf32>
    %cst_274 = arith.constant 1.000000e+00 : f32
    %678 = vector.broadcast %cst_274 : f32 to vector<8x128xf32>
    %679 = arith.addf %678, %677 : vector<8x128xf32>
    %680 = arith.divf %678, %679 : vector<8x128xf32>
    %681 = vector.extract_strided_slice %680 {offsets = [0, 0], sizes = [8, 32], strides = [1, 1]} : vector<8x128xf32> to vector<8x32xf32>
    %682 = vector.extract_strided_slice %680 {offsets = [0, 32], sizes = [8, 32], strides = [1, 1]} : vector<8x128xf32> to vector<8x32xf32>
    %683 = vector.extract_strided_slice %680 {offsets = [0, 64], sizes = [8, 32], strides = [1, 1]} : vector<8x128xf32> to vector<8x32xf32>
    %cst_275 = arith.constant 2.000000e+00 : f32
    %684 = vector.broadcast %cst_275 : f32 to vector<8x32xf32>
    %685 = arith.mulf %684, %683 : vector<8x32xf32>
    %cst_276 = arith.constant 1.000000e+00 : f32
    %686 = vector.broadcast %cst_276 : f32 to vector<8x32xf32>
    %687 = arith.subf %685, %686 : vector<8x32xf32>
    %688 = vector.extract_strided_slice %680 {offsets = [0, 96], sizes = [8, 32], strides = [1, 1]} : vector<8x128xf32> to vector<8x32xf32>
    %689 = arith.mulf %682, %668 : vector<8x32xf32>
    %690 = arith.mulf %681, %687 : vector<8x32xf32>
    %691 = arith.addf %689, %690 : vector<8x32xf32>
    %692 = math.tanh %691 : vector<8x32xf32>
    %693 = arith.mulf %688, %692 : vector<8x32xf32>
    %c2_i32_277 = arith.constant 2 : i32
    %694 = vector.broadcast %c2_i32_277 : i32 to vector<8x1xi32>
    %695 = arith.cmpi sgt, %14, %694 : vector<8x1xi32>
    %696 = vector.shape_cast %695 : vector<8x1xi1> to vector<8x1xi1>
    %697 = vector.broadcast %696 : vector<8x1xi1> to vector<8x32xi1>
    %698 = arith.select %697, %693, %665 : vector<8x32xi1>, vector<8x32xf32>
    %699 = vector.shape_cast %695 : vector<8x1xi1> to vector<8x1xi1>
    %700 = vector.broadcast %699 : vector<8x1xi1> to vector<8x32xi1>
    %701 = arith.select %700, %691, %668 : vector<8x32xi1>, vector<8x32xf32>
    %c2_278 = arith.constant 2 : index
    %c0_279 = arith.constant 0 : index
    %c0_280 = arith.constant 0 : index
    %702 = vector.load %arg18[%c2_278, %c0_279, %c0_280] : memref<8x8x32xf32, #tpu.memory_space<vmem>>, vector<1x8x32xf32>
    %703 = vector.shape_cast %702 : vector<1x8x32xf32> to vector<8x32xf32>
    %704 = vector.shape_cast %693 : vector<8x32xf32> to vector<1x8x32xf32>
    tpu.vector_store %arg18[%c2_278, %c0_279, %c0_280], %704 {strides = array<i32>} : memref<8x8x32xf32, #tpu.memory_space<vmem>>, vector<1x8x32xf32>,
    %c3_281 = arith.constant 3 : index
    %c0_282 = arith.constant 0 : index
    %c0_283 = arith.constant 0 : index
    %705 = vector.load %arg19[%c3_281, %c0_282, %c0_283] : memref<8x8x128xf32, #tpu.memory_space<vmem>>, vector<1x8x128xf32>
    %706 = vector.shape_cast %705 : vector<1x8x128xf32> to vector<8x128xf32>
    %cst_284 = arith.constant dense<0.000000e+00> : vector<8x128xf32>
    %707 = tpu.matmul %698, %592, %cst_284 {dimension_numbers = #tpu.dot_dimension_numbers<[1], [0], [0], [1], [0, 0, 1, 1], [], []>} : vector<8x32xf32>, vector<32x128xf32>, vector<8x128xf32> -> vector<8x128xf32>
    %708 = arith.addf %706, %707 : vector<8x128xf32>
    %709 = arith.negf %708 : vector<8x128xf32>
    %710 = math.exp %709 : vector<8x128xf32>
    %cst_285 = arith.constant 1.000000e+00 : f32
    %711 = vector.broadcast %cst_285 : f32 to vector<8x128xf32>
    %712 = arith.addf %711, %710 : vector<8x128xf32>
    %713 = arith.divf %711, %712 : vector<8x128xf32>
    %714 = vector.extract_strided_slice %713 {offsets = [0, 0], sizes = [8, 32], strides = [1, 1]} : vector<8x128xf32> to vector<8x32xf32>
    %715 = vector.extract_strided_slice %713 {offsets = [0, 32], sizes = [8, 32], strides = [1, 1]} : vector<8x128xf32> to vector<8x32xf32>
    %716 = vector.extract_strided_slice %713 {offsets = [0, 64], sizes = [8, 32], strides = [1, 1]} : vector<8x128xf32> to vector<8x32xf32>
    %cst_286 = arith.constant 2.000000e+00 : f32
    %717 = vector.broadcast %cst_286 : f32 to vector<8x32xf32>
    %718 = arith.mulf %717, %716 : vector<8x32xf32>
    %cst_287 = arith.constant 1.000000e+00 : f32
    %719 = vector.broadcast %cst_287 : f32 to vector<8x32xf32>
    %720 = arith.subf %718, %719 : vector<8x32xf32>
    %721 = vector.extract_strided_slice %713 {offsets = [0, 96], sizes = [8, 32], strides = [1, 1]} : vector<8x128xf32> to vector<8x32xf32>
    %722 = arith.mulf %715, %701 : vector<8x32xf32>
    %723 = arith.mulf %714, %720 : vector<8x32xf32>
    %724 = arith.addf %722, %723 : vector<8x32xf32>
    %725 = math.tanh %724 : vector<8x32xf32>
    %726 = arith.mulf %721, %725 : vector<8x32xf32>
    %c3_i32_288 = arith.constant 3 : i32
    %727 = vector.broadcast %c3_i32_288 : i32 to vector<8x1xi32>
    %728 = arith.cmpi sgt, %14, %727 : vector<8x1xi32>
    %729 = vector.shape_cast %728 : vector<8x1xi1> to vector<8x1xi1>
    %730 = vector.broadcast %729 : vector<8x1xi1> to vector<8x32xi1>
    %731 = arith.select %730, %726, %698 : vector<8x32xi1>, vector<8x32xf32>
    %732 = vector.shape_cast %728 : vector<8x1xi1> to vector<8x1xi1>
    %733 = vector.broadcast %732 : vector<8x1xi1> to vector<8x32xi1>
    %734 = arith.select %733, %724, %701 : vector<8x32xi1>, vector<8x32xf32>
    %c3_289 = arith.constant 3 : index
    %c0_290 = arith.constant 0 : index
    %c0_291 = arith.constant 0 : index
    %735 = vector.load %arg18[%c3_289, %c0_290, %c0_291] : memref<8x8x32xf32, #tpu.memory_space<vmem>>, vector<1x8x32xf32>
    %736 = vector.shape_cast %735 : vector<1x8x32xf32> to vector<8x32xf32>
    %737 = vector.shape_cast %726 : vector<8x32xf32> to vector<1x8x32xf32>
    tpu.vector_store %arg18[%c3_289, %c0_290, %c0_291], %737 {strides = array<i32>} : memref<8x8x32xf32, #tpu.memory_space<vmem>>, vector<1x8x32xf32>,
    %c4_292 = arith.constant 4 : index
    %c0_293 = arith.constant 0 : index
    %c0_294 = arith.constant 0 : index
    %738 = vector.load %arg19[%c4_292, %c0_293, %c0_294] : memref<8x8x128xf32, #tpu.memory_space<vmem>>, vector<1x8x128xf32>
    %739 = vector.shape_cast %738 : vector<1x8x128xf32> to vector<8x128xf32>
    %cst_295 = arith.constant dense<0.000000e+00> : vector<8x128xf32>
    %740 = tpu.matmul %731, %592, %cst_295 {dimension_numbers = #tpu.dot_dimension_numbers<[1], [0], [0], [1], [0, 0, 1, 1], [], []>} : vector<8x32xf32>, vector<32x128xf32>, vector<8x128xf32> -> vector<8x128xf32>
    %741 = arith.addf %739, %740 : vector<8x128xf32>
    %742 = arith.negf %741 : vector<8x128xf32>
    %743 = math.exp %742 : vector<8x128xf32>
    %cst_296 = arith.constant 1.000000e+00 : f32
    %744 = vector.broadcast %cst_296 : f32 to vector<8x128xf32>
    %745 = arith.addf %744, %743 : vector<8x128xf32>
    %746 = arith.divf %744, %745 : vector<8x128xf32>
    %747 = vector.extract_strided_slice %746 {offsets = [0, 0], sizes = [8, 32], strides = [1, 1]} : vector<8x128xf32> to vector<8x32xf32>
    %748 = vector.extract_strided_slice %746 {offsets = [0, 32], sizes = [8, 32], strides = [1, 1]} : vector<8x128xf32> to vector<8x32xf32>
    %749 = vector.extract_strided_slice %746 {offsets = [0, 64], sizes = [8, 32], strides = [1, 1]} : vector<8x128xf32> to vector<8x32xf32>
    %cst_297 = arith.constant 2.000000e+00 : f32
    %750 = vector.broadcast %cst_297 : f32 to vector<8x32xf32>
    %751 = arith.mulf %750, %749 : vector<8x32xf32>
    %cst_298 = arith.constant 1.000000e+00 : f32
    %752 = vector.broadcast %cst_298 : f32 to vector<8x32xf32>
    %753 = arith.subf %751, %752 : vector<8x32xf32>
    %754 = vector.extract_strided_slice %746 {offsets = [0, 96], sizes = [8, 32], strides = [1, 1]} : vector<8x128xf32> to vector<8x32xf32>
    %755 = arith.mulf %748, %734 : vector<8x32xf32>
    %756 = arith.mulf %747, %753 : vector<8x32xf32>
    %757 = arith.addf %755, %756 : vector<8x32xf32>
    %758 = math.tanh %757 : vector<8x32xf32>
    %759 = arith.mulf %754, %758 : vector<8x32xf32>
    %c4_i32_299 = arith.constant 4 : i32
    %760 = vector.broadcast %c4_i32_299 : i32 to vector<8x1xi32>
    %761 = arith.cmpi sgt, %14, %760 : vector<8x1xi32>
    %762 = vector.shape_cast %761 : vector<8x1xi1> to vector<8x1xi1>
    %763 = vector.broadcast %762 : vector<8x1xi1> to vector<8x32xi1>
    %764 = arith.select %763, %759, %731 : vector<8x32xi1>, vector<8x32xf32>
    %765 = vector.shape_cast %761 : vector<8x1xi1> to vector<8x1xi1>
    %766 = vector.broadcast %765 : vector<8x1xi1> to vector<8x32xi1>
    %767 = arith.select %766, %757, %734 : vector<8x32xi1>, vector<8x32xf32>
    %c4_300 = arith.constant 4 : index
    %c0_301 = arith.constant 0 : index
    %c0_302 = arith.constant 0 : index
    %768 = vector.load %arg18[%c4_300, %c0_301, %c0_302] : memref<8x8x32xf32, #tpu.memory_space<vmem>>, vector<1x8x32xf32>
    %769 = vector.shape_cast %768 : vector<1x8x32xf32> to vector<8x32xf32>
    %770 = vector.shape_cast %759 : vector<8x32xf32> to vector<1x8x32xf32>
    tpu.vector_store %arg18[%c4_300, %c0_301, %c0_302], %770 {strides = array<i32>} : memref<8x8x32xf32, #tpu.memory_space<vmem>>, vector<1x8x32xf32>,
    %c5_303 = arith.constant 5 : index
    %c0_304 = arith.constant 0 : index
    %c0_305 = arith.constant 0 : index
    %771 = vector.load %arg19[%c5_303, %c0_304, %c0_305] : memref<8x8x128xf32, #tpu.memory_space<vmem>>, vector<1x8x128xf32>
    %772 = vector.shape_cast %771 : vector<1x8x128xf32> to vector<8x128xf32>
    %cst_306 = arith.constant dense<0.000000e+00> : vector<8x128xf32>
    %773 = tpu.matmul %764, %592, %cst_306 {dimension_numbers = #tpu.dot_dimension_numbers<[1], [0], [0], [1], [0, 0, 1, 1], [], []>} : vector<8x32xf32>, vector<32x128xf32>, vector<8x128xf32> -> vector<8x128xf32>
    %774 = arith.addf %772, %773 : vector<8x128xf32>
    %775 = arith.negf %774 : vector<8x128xf32>
    %776 = math.exp %775 : vector<8x128xf32>
    %cst_307 = arith.constant 1.000000e+00 : f32
    %777 = vector.broadcast %cst_307 : f32 to vector<8x128xf32>
    %778 = arith.addf %777, %776 : vector<8x128xf32>
    %779 = arith.divf %777, %778 : vector<8x128xf32>
    %780 = vector.extract_strided_slice %779 {offsets = [0, 0], sizes = [8, 32], strides = [1, 1]} : vector<8x128xf32> to vector<8x32xf32>
    %781 = vector.extract_strided_slice %779 {offsets = [0, 32], sizes = [8, 32], strides = [1, 1]} : vector<8x128xf32> to vector<8x32xf32>
    %782 = vector.extract_strided_slice %779 {offsets = [0, 64], sizes = [8, 32], strides = [1, 1]} : vector<8x128xf32> to vector<8x32xf32>
    %cst_308 = arith.constant 2.000000e+00 : f32
    %783 = vector.broadcast %cst_308 : f32 to vector<8x32xf32>
    %784 = arith.mulf %783, %782 : vector<8x32xf32>
    %cst_309 = arith.constant 1.000000e+00 : f32
    %785 = vector.broadcast %cst_309 : f32 to vector<8x32xf32>
    %786 = arith.subf %784, %785 : vector<8x32xf32>
    %787 = vector.extract_strided_slice %779 {offsets = [0, 96], sizes = [8, 32], strides = [1, 1]} : vector<8x128xf32> to vector<8x32xf32>
    %788 = arith.mulf %781, %767 : vector<8x32xf32>
    %789 = arith.mulf %780, %786 : vector<8x32xf32>
    %790 = arith.addf %788, %789 : vector<8x32xf32>
    %791 = math.tanh %790 : vector<8x32xf32>
    %792 = arith.mulf %787, %791 : vector<8x32xf32>
    %c5_i32_310 = arith.constant 5 : i32
    %793 = vector.broadcast %c5_i32_310 : i32 to vector<8x1xi32>
    %794 = arith.cmpi sgt, %14, %793 : vector<8x1xi32>
    %795 = vector.shape_cast %794 : vector<8x1xi1> to vector<8x1xi1>
    %796 = vector.broadcast %795 : vector<8x1xi1> to vector<8x32xi1>
    %797 = arith.select %796, %792, %764 : vector<8x32xi1>, vector<8x32xf32>
    %798 = vector.shape_cast %794 : vector<8x1xi1> to vector<8x1xi1>
    %799 = vector.broadcast %798 : vector<8x1xi1> to vector<8x32xi1>
    %800 = arith.select %799, %790, %767 : vector<8x32xi1>, vector<8x32xf32>
    %c5_311 = arith.constant 5 : index
    %c0_312 = arith.constant 0 : index
    %c0_313 = arith.constant 0 : index
    %801 = vector.load %arg18[%c5_311, %c0_312, %c0_313] : memref<8x8x32xf32, #tpu.memory_space<vmem>>, vector<1x8x32xf32>
    %802 = vector.shape_cast %801 : vector<1x8x32xf32> to vector<8x32xf32>
    %803 = vector.shape_cast %792 : vector<8x32xf32> to vector<1x8x32xf32>
    tpu.vector_store %arg18[%c5_311, %c0_312, %c0_313], %803 {strides = array<i32>} : memref<8x8x32xf32, #tpu.memory_space<vmem>>, vector<1x8x32xf32>,
    %c6_314 = arith.constant 6 : index
    %c0_315 = arith.constant 0 : index
    %c0_316 = arith.constant 0 : index
    %804 = vector.load %arg19[%c6_314, %c0_315, %c0_316] : memref<8x8x128xf32, #tpu.memory_space<vmem>>, vector<1x8x128xf32>
    %805 = vector.shape_cast %804 : vector<1x8x128xf32> to vector<8x128xf32>
    %cst_317 = arith.constant dense<0.000000e+00> : vector<8x128xf32>
    %806 = tpu.matmul %797, %592, %cst_317 {dimension_numbers = #tpu.dot_dimension_numbers<[1], [0], [0], [1], [0, 0, 1, 1], [], []>} : vector<8x32xf32>, vector<32x128xf32>, vector<8x128xf32> -> vector<8x128xf32>
    %807 = arith.addf %805, %806 : vector<8x128xf32>
    %808 = arith.negf %807 : vector<8x128xf32>
    %809 = math.exp %808 : vector<8x128xf32>
    %cst_318 = arith.constant 1.000000e+00 : f32
    %810 = vector.broadcast %cst_318 : f32 to vector<8x128xf32>
    %811 = arith.addf %810, %809 : vector<8x128xf32>
    %812 = arith.divf %810, %811 : vector<8x128xf32>
    %813 = vector.extract_strided_slice %812 {offsets = [0, 0], sizes = [8, 32], strides = [1, 1]} : vector<8x128xf32> to vector<8x32xf32>
    %814 = vector.extract_strided_slice %812 {offsets = [0, 32], sizes = [8, 32], strides = [1, 1]} : vector<8x128xf32> to vector<8x32xf32>
    %815 = vector.extract_strided_slice %812 {offsets = [0, 64], sizes = [8, 32], strides = [1, 1]} : vector<8x128xf32> to vector<8x32xf32>
    %cst_319 = arith.constant 2.000000e+00 : f32
    %816 = vector.broadcast %cst_319 : f32 to vector<8x32xf32>
    %817 = arith.mulf %816, %815 : vector<8x32xf32>
    %cst_320 = arith.constant 1.000000e+00 : f32
    %818 = vector.broadcast %cst_320 : f32 to vector<8x32xf32>
    %819 = arith.subf %817, %818 : vector<8x32xf32>
    %820 = vector.extract_strided_slice %812 {offsets = [0, 96], sizes = [8, 32], strides = [1, 1]} : vector<8x128xf32> to vector<8x32xf32>
    %821 = arith.mulf %814, %800 : vector<8x32xf32>
    %822 = arith.mulf %813, %819 : vector<8x32xf32>
    %823 = arith.addf %821, %822 : vector<8x32xf32>
    %824 = math.tanh %823 : vector<8x32xf32>
    %825 = arith.mulf %820, %824 : vector<8x32xf32>
    %c6_i32_321 = arith.constant 6 : i32
    %826 = vector.broadcast %c6_i32_321 : i32 to vector<8x1xi32>
    %827 = arith.cmpi sgt, %14, %826 : vector<8x1xi32>
    %828 = vector.shape_cast %827 : vector<8x1xi1> to vector<8x1xi1>
    %829 = vector.broadcast %828 : vector<8x1xi1> to vector<8x32xi1>
    %830 = arith.select %829, %825, %797 : vector<8x32xi1>, vector<8x32xf32>
    %831 = vector.shape_cast %827 : vector<8x1xi1> to vector<8x1xi1>
    %832 = vector.broadcast %831 : vector<8x1xi1> to vector<8x32xi1>
    %833 = arith.select %832, %823, %800 : vector<8x32xi1>, vector<8x32xf32>
    %c6_322 = arith.constant 6 : index
    %c0_323 = arith.constant 0 : index
    %c0_324 = arith.constant 0 : index
    %834 = vector.load %arg18[%c6_322, %c0_323, %c0_324] : memref<8x8x32xf32, #tpu.memory_space<vmem>>, vector<1x8x32xf32>
    %835 = vector.shape_cast %834 : vector<1x8x32xf32> to vector<8x32xf32>
    %836 = vector.shape_cast %825 : vector<8x32xf32> to vector<1x8x32xf32>
    tpu.vector_store %arg18[%c6_322, %c0_323, %c0_324], %836 {strides = array<i32>} : memref<8x8x32xf32, #tpu.memory_space<vmem>>, vector<1x8x32xf32>,
    %c7_325 = arith.constant 7 : index
    %c0_326 = arith.constant 0 : index
    %c0_327 = arith.constant 0 : index
    %837 = vector.load %arg19[%c7_325, %c0_326, %c0_327] : memref<8x8x128xf32, #tpu.memory_space<vmem>>, vector<1x8x128xf32>
    %838 = vector.shape_cast %837 : vector<1x8x128xf32> to vector<8x128xf32>
    %cst_328 = arith.constant dense<0.000000e+00> : vector<8x128xf32>
    %839 = tpu.matmul %830, %592, %cst_328 {dimension_numbers = #tpu.dot_dimension_numbers<[1], [0], [0], [1], [0, 0, 1, 1], [], []>} : vector<8x32xf32>, vector<32x128xf32>, vector<8x128xf32> -> vector<8x128xf32>
    %840 = arith.addf %838, %839 : vector<8x128xf32>
    %841 = arith.negf %840 : vector<8x128xf32>
    %842 = math.exp %841 : vector<8x128xf32>
    %cst_329 = arith.constant 1.000000e+00 : f32
    %843 = vector.broadcast %cst_329 : f32 to vector<8x128xf32>
    %844 = arith.addf %843, %842 : vector<8x128xf32>
    %845 = arith.divf %843, %844 : vector<8x128xf32>
    %846 = vector.extract_strided_slice %845 {offsets = [0, 0], sizes = [8, 32], strides = [1, 1]} : vector<8x128xf32> to vector<8x32xf32>
    %847 = vector.extract_strided_slice %845 {offsets = [0, 32], sizes = [8, 32], strides = [1, 1]} : vector<8x128xf32> to vector<8x32xf32>
    %848 = vector.extract_strided_slice %845 {offsets = [0, 64], sizes = [8, 32], strides = [1, 1]} : vector<8x128xf32> to vector<8x32xf32>
    %cst_330 = arith.constant 2.000000e+00 : f32
    %849 = vector.broadcast %cst_330 : f32 to vector<8x32xf32>
    %850 = arith.mulf %849, %848 : vector<8x32xf32>
    %cst_331 = arith.constant 1.000000e+00 : f32
    %851 = vector.broadcast %cst_331 : f32 to vector<8x32xf32>
    %852 = arith.subf %850, %851 : vector<8x32xf32>
    %853 = vector.extract_strided_slice %845 {offsets = [0, 96], sizes = [8, 32], strides = [1, 1]} : vector<8x128xf32> to vector<8x32xf32>
    %854 = arith.mulf %847, %833 : vector<8x32xf32>
    %855 = arith.mulf %846, %852 : vector<8x32xf32>
    %856 = arith.addf %854, %855 : vector<8x32xf32>
    %857 = math.tanh %856 : vector<8x32xf32>
    %858 = arith.mulf %853, %857 : vector<8x32xf32>
    %c7_i32_332 = arith.constant 7 : i32
    %859 = vector.broadcast %c7_i32_332 : i32 to vector<8x1xi32>
    %860 = arith.cmpi sgt, %14, %859 : vector<8x1xi32>
    %861 = vector.shape_cast %860 : vector<8x1xi1> to vector<8x1xi1>
    %862 = vector.broadcast %861 : vector<8x1xi1> to vector<8x32xi1>
    %863 = arith.select %862, %858, %830 : vector<8x32xi1>, vector<8x32xf32>
    %864 = vector.shape_cast %860 : vector<8x1xi1> to vector<8x1xi1>
    %865 = vector.broadcast %864 : vector<8x1xi1> to vector<8x32xi1>
    %866 = arith.select %865, %856, %833 : vector<8x32xi1>, vector<8x32xf32>
    %c7_333 = arith.constant 7 : index
    %c0_334 = arith.constant 0 : index
    %c0_335 = arith.constant 0 : index
    %867 = vector.load %arg18[%c7_333, %c0_334, %c0_335] : memref<8x8x32xf32, #tpu.memory_space<vmem>>, vector<1x8x32xf32>
    %868 = vector.shape_cast %867 : vector<1x8x32xf32> to vector<8x32xf32>
    %869 = vector.shape_cast %858 : vector<8x32xf32> to vector<1x8x32xf32>
    tpu.vector_store %arg18[%c7_333, %c0_334, %c0_335], %869 {strides = array<i32>} : memref<8x8x32xf32, #tpu.memory_space<vmem>>, vector<1x8x32xf32>,
    %c2_336 = arith.constant 2 : index
    %c0_337 = arith.constant 0 : index
    %c0_338 = arith.constant 0 : index
    %870 = vector.load %arg16[%c2_336, %c0_337, %c0_338] : memref<4x8x32xf32, #tpu.memory_space<vmem>>, vector<1x8x32xf32>
    %871 = vector.shape_cast %870 : vector<1x8x32xf32> to vector<8x32xf32>
    %872 = vector.shape_cast %863 : vector<8x32xf32> to vector<1x8x32xf32>
    tpu.vector_store %arg16[%c2_336, %c0_337, %c0_338], %872 {strides = array<i32>} : memref<4x8x32xf32, #tpu.memory_space<vmem>>, vector<1x8x32xf32>,
    %c2_339 = arith.constant 2 : index
    %c0_340 = arith.constant 0 : index
    %c0_341 = arith.constant 0 : index
    %873 = vector.load %arg17[%c2_339, %c0_340, %c0_341] : memref<4x8x32xf32, #tpu.memory_space<vmem>>, vector<1x8x32xf32>
    %874 = vector.shape_cast %873 : vector<1x8x32xf32> to vector<8x32xf32>
    %875 = vector.shape_cast %866 : vector<8x32xf32> to vector<1x8x32xf32>
    tpu.vector_store %arg17[%c2_339, %c0_340, %c0_341], %875 {strides = array<i32>} : memref<4x8x32xf32, #tpu.memory_space<vmem>>, vector<1x8x32xf32>,
    %c3_342 = arith.constant 3 : index
    %c0_343 = arith.constant 0 : index
    %c0_344 = arith.constant 0 : index
    %876 = vector.load %arg7[%c3_342, %c0_343, %c0_344] : memref<4x32x128xf32, #tpu.memory_space<vmem>>, vector<1x32x128xf32>
    %877 = vector.shape_cast %876 : vector<1x32x128xf32> to vector<32x128xf32>
    %c3_345 = arith.constant 3 : index
    %c0_346 = arith.constant 0 : index
    %c0_347 = arith.constant 0 : index
    %878 = vector.load %arg8[%c3_345, %c0_346, %c0_347] : memref<4x32x128xf32, #tpu.memory_space<vmem>>, vector<1x32x128xf32>
    %879 = vector.shape_cast %878 : vector<1x32x128xf32> to vector<32x128xf32>
    %c3_348 = arith.constant 3 : index
    %c0_349 = arith.constant 0 : index
    %c0_350 = arith.constant 0 : index
    %880 = vector.load %arg9[%c3_348, %c0_349, %c0_350] : memref<4x1x128xf32, #tpu.memory_space<vmem>>, vector<1x1x128xf32>
    %881 = vector.shape_cast %880 : vector<1x1x128xf32> to vector<1x128xf32>
    %c0_351 = arith.constant 0 : index
    %c0_352 = arith.constant 0 : index
    %c0_353 = arith.constant 0 : index
    %882 = vector.load %arg18[%c0_351, %c0_352, %c0_353] : memref<8x8x32xf32, #tpu.memory_space<vmem>>, vector<8x8x32xf32>
    %883 = vector.shape_cast %882 : vector<8x8x32xf32> to vector<64x32xf32>
    %cst_354 = arith.constant dense<0.000000e+00> : vector<64x128xf32>
    %884 = tpu.matmul %883, %877, %cst_354 {dimension_numbers = #tpu.dot_dimension_numbers<[1], [0], [0], [1], [0, 0, 1, 1], [], []>} : vector<64x32xf32>, vector<32x128xf32>, vector<64x128xf32> -> vector<64x128xf32>
    %885 = vector.broadcast %881 : vector<1x128xf32> to vector<64x128xf32>
    %886 = arith.addf %884, %885 : vector<64x128xf32>
    %887 = vector.shape_cast %886 : vector<64x128xf32> to vector<8x8x128xf32>
    %c0_355 = arith.constant 0 : index
    %c0_356 = arith.constant 0 : index
    %c0_357 = arith.constant 0 : index
    %888 = vector.load %arg19[%c0_355, %c0_356, %c0_357] : memref<8x8x128xf32, #tpu.memory_space<vmem>>, vector<8x8x128xf32>
    tpu.vector_store %arg19[%c0_355, %c0_356, %c0_357], %887 {strides = array<i32>} : memref<8x8x128xf32, #tpu.memory_space<vmem>>, vector<8x8x128xf32>,
    %c3_358 = arith.constant 3 : index
    %c0_359 = arith.constant 0 : index
    %c0_360 = arith.constant 0 : index
    %889 = vector.load %arg3[%c3_358, %c0_359, %c0_360] : memref<4x8x32xf32, #tpu.memory_space<vmem>>, vector<1x8x32xf32>
    %890 = vector.shape_cast %889 : vector<1x8x32xf32> to vector<8x32xf32>
    %c3_361 = arith.constant 3 : index
    %c0_362 = arith.constant 0 : index
    %c0_363 = arith.constant 0 : index
    %891 = vector.load %arg4[%c3_361, %c0_362, %c0_363] : memref<4x8x32xf32, #tpu.memory_space<vmem>>, vector<1x8x32xf32>
    %892 = vector.shape_cast %891 : vector<1x8x32xf32> to vector<8x32xf32>
    %c0_364 = arith.constant 0 : index
    %c0_365 = arith.constant 0 : index
    %c0_366 = arith.constant 0 : index
    %893 = vector.load %arg19[%c0_364, %c0_365, %c0_366] : memref<8x8x128xf32, #tpu.memory_space<vmem>>, vector<1x8x128xf32>
    %894 = vector.shape_cast %893 : vector<1x8x128xf32> to vector<8x128xf32>
    %cst_367 = arith.constant dense<0.000000e+00> : vector<8x128xf32>
    %895 = tpu.matmul %890, %879, %cst_367 {dimension_numbers = #tpu.dot_dimension_numbers<[1], [0], [0], [1], [0, 0, 1, 1], [], []>} : vector<8x32xf32>, vector<32x128xf32>, vector<8x128xf32> -> vector<8x128xf32>
    %896 = arith.addf %894, %895 : vector<8x128xf32>
    %897 = arith.negf %896 : vector<8x128xf32>
    %898 = math.exp %897 : vector<8x128xf32>
    %cst_368 = arith.constant 1.000000e+00 : f32
    %899 = vector.broadcast %cst_368 : f32 to vector<8x128xf32>
    %900 = arith.addf %899, %898 : vector<8x128xf32>
    %901 = arith.divf %899, %900 : vector<8x128xf32>
    %902 = vector.extract_strided_slice %901 {offsets = [0, 0], sizes = [8, 32], strides = [1, 1]} : vector<8x128xf32> to vector<8x32xf32>
    %903 = vector.extract_strided_slice %901 {offsets = [0, 32], sizes = [8, 32], strides = [1, 1]} : vector<8x128xf32> to vector<8x32xf32>
    %904 = vector.extract_strided_slice %901 {offsets = [0, 64], sizes = [8, 32], strides = [1, 1]} : vector<8x128xf32> to vector<8x32xf32>
    %cst_369 = arith.constant 2.000000e+00 : f32
    %905 = vector.broadcast %cst_369 : f32 to vector<8x32xf32>
    %906 = arith.mulf %905, %904 : vector<8x32xf32>
    %cst_370 = arith.constant 1.000000e+00 : f32
    %907 = vector.broadcast %cst_370 : f32 to vector<8x32xf32>
    %908 = arith.subf %906, %907 : vector<8x32xf32>
    %909 = vector.extract_strided_slice %901 {offsets = [0, 96], sizes = [8, 32], strides = [1, 1]} : vector<8x128xf32> to vector<8x32xf32>
    %910 = arith.mulf %903, %892 : vector<8x32xf32>
    %911 = arith.mulf %902, %908 : vector<8x32xf32>
    %912 = arith.addf %910, %911 : vector<8x32xf32>
    %913 = math.tanh %912 : vector<8x32xf32>
    %914 = arith.mulf %909, %913 : vector<8x32xf32>
    %c0_i32_371 = arith.constant 0 : i32
    %915 = vector.broadcast %c0_i32_371 : i32 to vector<8x1xi32>
    %916 = arith.cmpi sgt, %14, %915 : vector<8x1xi32>
    %917 = vector.shape_cast %916 : vector<8x1xi1> to vector<8x1xi1>
    %918 = vector.broadcast %917 : vector<8x1xi1> to vector<8x32xi1>
    %919 = arith.select %918, %914, %890 : vector<8x32xi1>, vector<8x32xf32>
    %920 = vector.shape_cast %916 : vector<8x1xi1> to vector<8x1xi1>
    %921 = vector.broadcast %920 : vector<8x1xi1> to vector<8x32xi1>
    %922 = arith.select %921, %912, %892 : vector<8x32xi1>, vector<8x32xf32>
    %cst_372 = arith.constant 0.000000e+00 : f32
    %923 = vector.shape_cast %916 : vector<8x1xi1> to vector<8x1xi1>
    %924 = vector.broadcast %923 : vector<8x1xi1> to vector<8x32xi1>
    %925 = vector.broadcast %cst_372 : f32 to vector<8x32xf32>
    %926 = arith.select %924, %914, %925 : vector<8x32xi1>, vector<8x32xf32>
    %c0_373 = arith.constant 0 : index
    %c0_374 = arith.constant 0 : index
    %c0_375 = arith.constant 0 : index
    %927 = vector.load %arg18[%c0_373, %c0_374, %c0_375] : memref<8x8x32xf32, #tpu.memory_space<vmem>>, vector<1x8x32xf32>
    %928 = vector.shape_cast %927 : vector<1x8x32xf32> to vector<8x32xf32>
    %929 = vector.shape_cast %926 : vector<8x32xf32> to vector<1x8x32xf32>
    tpu.vector_store %arg18[%c0_373, %c0_374, %c0_375], %929 {strides = array<i32>} : memref<8x8x32xf32, #tpu.memory_space<vmem>>, vector<1x8x32xf32>,
    %c1_376 = arith.constant 1 : index
    %c0_377 = arith.constant 0 : index
    %c0_378 = arith.constant 0 : index
    %930 = vector.load %arg19[%c1_376, %c0_377, %c0_378] : memref<8x8x128xf32, #tpu.memory_space<vmem>>, vector<1x8x128xf32>
    %931 = vector.shape_cast %930 : vector<1x8x128xf32> to vector<8x128xf32>
    %cst_379 = arith.constant dense<0.000000e+00> : vector<8x128xf32>
    %932 = tpu.matmul %919, %879, %cst_379 {dimension_numbers = #tpu.dot_dimension_numbers<[1], [0], [0], [1], [0, 0, 1, 1], [], []>} : vector<8x32xf32>, vector<32x128xf32>, vector<8x128xf32> -> vector<8x128xf32>
    %933 = arith.addf %931, %932 : vector<8x128xf32>
    %934 = arith.negf %933 : vector<8x128xf32>
    %935 = math.exp %934 : vector<8x128xf32>
    %cst_380 = arith.constant 1.000000e+00 : f32
    %936 = vector.broadcast %cst_380 : f32 to vector<8x128xf32>
    %937 = arith.addf %936, %935 : vector<8x128xf32>
    %938 = arith.divf %936, %937 : vector<8x128xf32>
    %939 = vector.extract_strided_slice %938 {offsets = [0, 0], sizes = [8, 32], strides = [1, 1]} : vector<8x128xf32> to vector<8x32xf32>
    %940 = vector.extract_strided_slice %938 {offsets = [0, 32], sizes = [8, 32], strides = [1, 1]} : vector<8x128xf32> to vector<8x32xf32>
    %941 = vector.extract_strided_slice %938 {offsets = [0, 64], sizes = [8, 32], strides = [1, 1]} : vector<8x128xf32> to vector<8x32xf32>
    %cst_381 = arith.constant 2.000000e+00 : f32
    %942 = vector.broadcast %cst_381 : f32 to vector<8x32xf32>
    %943 = arith.mulf %942, %941 : vector<8x32xf32>
    %cst_382 = arith.constant 1.000000e+00 : f32
    %944 = vector.broadcast %cst_382 : f32 to vector<8x32xf32>
    %945 = arith.subf %943, %944 : vector<8x32xf32>
    %946 = vector.extract_strided_slice %938 {offsets = [0, 96], sizes = [8, 32], strides = [1, 1]} : vector<8x128xf32> to vector<8x32xf32>
    %947 = arith.mulf %940, %922 : vector<8x32xf32>
    %948 = arith.mulf %939, %945 : vector<8x32xf32>
    %949 = arith.addf %947, %948 : vector<8x32xf32>
    %950 = math.tanh %949 : vector<8x32xf32>
    %951 = arith.mulf %946, %950 : vector<8x32xf32>
    %c1_i32_383 = arith.constant 1 : i32
    %952 = vector.broadcast %c1_i32_383 : i32 to vector<8x1xi32>
    %953 = arith.cmpi sgt, %14, %952 : vector<8x1xi32>
    %954 = vector.shape_cast %953 : vector<8x1xi1> to vector<8x1xi1>
    %955 = vector.broadcast %954 : vector<8x1xi1> to vector<8x32xi1>
    %956 = arith.select %955, %951, %919 : vector<8x32xi1>, vector<8x32xf32>
    %957 = vector.shape_cast %953 : vector<8x1xi1> to vector<8x1xi1>
    %958 = vector.broadcast %957 : vector<8x1xi1> to vector<8x32xi1>
    %959 = arith.select %958, %949, %922 : vector<8x32xi1>, vector<8x32xf32>
    %cst_384 = arith.constant 0.000000e+00 : f32
    %960 = vector.shape_cast %953 : vector<8x1xi1> to vector<8x1xi1>
    %961 = vector.broadcast %960 : vector<8x1xi1> to vector<8x32xi1>
    %962 = vector.broadcast %cst_384 : f32 to vector<8x32xf32>
    %963 = arith.select %961, %951, %962 : vector<8x32xi1>, vector<8x32xf32>
    %c1_385 = arith.constant 1 : index
    %c0_386 = arith.constant 0 : index
    %c0_387 = arith.constant 0 : index
    %964 = vector.load %arg18[%c1_385, %c0_386, %c0_387] : memref<8x8x32xf32, #tpu.memory_space<vmem>>, vector<1x8x32xf32>
    %965 = vector.shape_cast %964 : vector<1x8x32xf32> to vector<8x32xf32>
    %966 = vector.shape_cast %963 : vector<8x32xf32> to vector<1x8x32xf32>
    tpu.vector_store %arg18[%c1_385, %c0_386, %c0_387], %966 {strides = array<i32>} : memref<8x8x32xf32, #tpu.memory_space<vmem>>, vector<1x8x32xf32>,
    %c2_388 = arith.constant 2 : index
    %c0_389 = arith.constant 0 : index
    %c0_390 = arith.constant 0 : index
    %967 = vector.load %arg19[%c2_388, %c0_389, %c0_390] : memref<8x8x128xf32, #tpu.memory_space<vmem>>, vector<1x8x128xf32>
    %968 = vector.shape_cast %967 : vector<1x8x128xf32> to vector<8x128xf32>
    %cst_391 = arith.constant dense<0.000000e+00> : vector<8x128xf32>
    %969 = tpu.matmul %956, %879, %cst_391 {dimension_numbers = #tpu.dot_dimension_numbers<[1], [0], [0], [1], [0, 0, 1, 1], [], []>} : vector<8x32xf32>, vector<32x128xf32>, vector<8x128xf32> -> vector<8x128xf32>
    %970 = arith.addf %968, %969 : vector<8x128xf32>
    %971 = arith.negf %970 : vector<8x128xf32>
    %972 = math.exp %971 : vector<8x128xf32>
    %cst_392 = arith.constant 1.000000e+00 : f32
    %973 = vector.broadcast %cst_392 : f32 to vector<8x128xf32>
    %974 = arith.addf %973, %972 : vector<8x128xf32>
    %975 = arith.divf %973, %974 : vector<8x128xf32>
    %976 = vector.extract_strided_slice %975 {offsets = [0, 0], sizes = [8, 32], strides = [1, 1]} : vector<8x128xf32> to vector<8x32xf32>
    %977 = vector.extract_strided_slice %975 {offsets = [0, 32], sizes = [8, 32], strides = [1, 1]} : vector<8x128xf32> to vector<8x32xf32>
    %978 = vector.extract_strided_slice %975 {offsets = [0, 64], sizes = [8, 32], strides = [1, 1]} : vector<8x128xf32> to vector<8x32xf32>
    %cst_393 = arith.constant 2.000000e+00 : f32
    %979 = vector.broadcast %cst_393 : f32 to vector<8x32xf32>
    %980 = arith.mulf %979, %978 : vector<8x32xf32>
    %cst_394 = arith.constant 1.000000e+00 : f32
    %981 = vector.broadcast %cst_394 : f32 to vector<8x32xf32>
    %982 = arith.subf %980, %981 : vector<8x32xf32>
    %983 = vector.extract_strided_slice %975 {offsets = [0, 96], sizes = [8, 32], strides = [1, 1]} : vector<8x128xf32> to vector<8x32xf32>
    %984 = arith.mulf %977, %959 : vector<8x32xf32>
    %985 = arith.mulf %976, %982 : vector<8x32xf32>
    %986 = arith.addf %984, %985 : vector<8x32xf32>
    %987 = math.tanh %986 : vector<8x32xf32>
    %988 = arith.mulf %983, %987 : vector<8x32xf32>
    %c2_i32_395 = arith.constant 2 : i32
    %989 = vector.broadcast %c2_i32_395 : i32 to vector<8x1xi32>
    %990 = arith.cmpi sgt, %14, %989 : vector<8x1xi32>
    %991 = vector.shape_cast %990 : vector<8x1xi1> to vector<8x1xi1>
    %992 = vector.broadcast %991 : vector<8x1xi1> to vector<8x32xi1>
    %993 = arith.select %992, %988, %956 : vector<8x32xi1>, vector<8x32xf32>
    %994 = vector.shape_cast %990 : vector<8x1xi1> to vector<8x1xi1>
    %995 = vector.broadcast %994 : vector<8x1xi1> to vector<8x32xi1>
    %996 = arith.select %995, %986, %959 : vector<8x32xi1>, vector<8x32xf32>
    %cst_396 = arith.constant 0.000000e+00 : f32
    %997 = vector.shape_cast %990 : vector<8x1xi1> to vector<8x1xi1>
    %998 = vector.broadcast %997 : vector<8x1xi1> to vector<8x32xi1>
    %999 = vector.broadcast %cst_396 : f32 to vector<8x32xf32>
    %1000 = arith.select %998, %988, %999 : vector<8x32xi1>, vector<8x32xf32>
    %c2_397 = arith.constant 2 : index
    %c0_398 = arith.constant 0 : index
    %c0_399 = arith.constant 0 : index
    %1001 = vector.load %arg18[%c2_397, %c0_398, %c0_399] : memref<8x8x32xf32, #tpu.memory_space<vmem>>, vector<1x8x32xf32>
    %1002 = vector.shape_cast %1001 : vector<1x8x32xf32> to vector<8x32xf32>
    %1003 = vector.shape_cast %1000 : vector<8x32xf32> to vector<1x8x32xf32>
    tpu.vector_store %arg18[%c2_397, %c0_398, %c0_399], %1003 {strides = array<i32>} : memref<8x8x32xf32, #tpu.memory_space<vmem>>, vector<1x8x32xf32>,
    %c3_400 = arith.constant 3 : index
    %c0_401 = arith.constant 0 : index
    %c0_402 = arith.constant 0 : index
    %1004 = vector.load %arg19[%c3_400, %c0_401, %c0_402] : memref<8x8x128xf32, #tpu.memory_space<vmem>>, vector<1x8x128xf32>
    %1005 = vector.shape_cast %1004 : vector<1x8x128xf32> to vector<8x128xf32>
    %cst_403 = arith.constant dense<0.000000e+00> : vector<8x128xf32>
    %1006 = tpu.matmul %993, %879, %cst_403 {dimension_numbers = #tpu.dot_dimension_numbers<[1], [0], [0], [1], [0, 0, 1, 1], [], []>} : vector<8x32xf32>, vector<32x128xf32>, vector<8x128xf32> -> vector<8x128xf32>
    %1007 = arith.addf %1005, %1006 : vector<8x128xf32>
    %1008 = arith.negf %1007 : vector<8x128xf32>
    %1009 = math.exp %1008 : vector<8x128xf32>
    %cst_404 = arith.constant 1.000000e+00 : f32
    %1010 = vector.broadcast %cst_404 : f32 to vector<8x128xf32>
    %1011 = arith.addf %1010, %1009 : vector<8x128xf32>
    %1012 = arith.divf %1010, %1011 : vector<8x128xf32>
    %1013 = vector.extract_strided_slice %1012 {offsets = [0, 0], sizes = [8, 32], strides = [1, 1]} : vector<8x128xf32> to vector<8x32xf32>
    %1014 = vector.extract_strided_slice %1012 {offsets = [0, 32], sizes = [8, 32], strides = [1, 1]} : vector<8x128xf32> to vector<8x32xf32>
    %1015 = vector.extract_strided_slice %1012 {offsets = [0, 64], sizes = [8, 32], strides = [1, 1]} : vector<8x128xf32> to vector<8x32xf32>
    %cst_405 = arith.constant 2.000000e+00 : f32
    %1016 = vector.broadcast %cst_405 : f32 to vector<8x32xf32>
    %1017 = arith.mulf %1016, %1015 : vector<8x32xf32>
    %cst_406 = arith.constant 1.000000e+00 : f32
    %1018 = vector.broadcast %cst_406 : f32 to vector<8x32xf32>
    %1019 = arith.subf %1017, %1018 : vector<8x32xf32>
    %1020 = vector.extract_strided_slice %1012 {offsets = [0, 96], sizes = [8, 32], strides = [1, 1]} : vector<8x128xf32> to vector<8x32xf32>
    %1021 = arith.mulf %1014, %996 : vector<8x32xf32>
    %1022 = arith.mulf %1013, %1019 : vector<8x32xf32>
    %1023 = arith.addf %1021, %1022 : vector<8x32xf32>
    %1024 = math.tanh %1023 : vector<8x32xf32>
    %1025 = arith.mulf %1020, %1024 : vector<8x32xf32>
    %c3_i32_407 = arith.constant 3 : i32
    %1026 = vector.broadcast %c3_i32_407 : i32 to vector<8x1xi32>
    %1027 = arith.cmpi sgt, %14, %1026 : vector<8x1xi32>
    %1028 = vector.shape_cast %1027 : vector<8x1xi1> to vector<8x1xi1>
    %1029 = vector.broadcast %1028 : vector<8x1xi1> to vector<8x32xi1>
    %1030 = arith.select %1029, %1025, %993 : vector<8x32xi1>, vector<8x32xf32>
    %1031 = vector.shape_cast %1027 : vector<8x1xi1> to vector<8x1xi1>
    %1032 = vector.broadcast %1031 : vector<8x1xi1> to vector<8x32xi1>
    %1033 = arith.select %1032, %1023, %996 : vector<8x32xi1>, vector<8x32xf32>
    %cst_408 = arith.constant 0.000000e+00 : f32
    %1034 = vector.shape_cast %1027 : vector<8x1xi1> to vector<8x1xi1>
    %1035 = vector.broadcast %1034 : vector<8x1xi1> to vector<8x32xi1>
    %1036 = vector.broadcast %cst_408 : f32 to vector<8x32xf32>
    %1037 = arith.select %1035, %1025, %1036 : vector<8x32xi1>, vector<8x32xf32>
    %c3_409 = arith.constant 3 : index
    %c0_410 = arith.constant 0 : index
    %c0_411 = arith.constant 0 : index
    %1038 = vector.load %arg18[%c3_409, %c0_410, %c0_411] : memref<8x8x32xf32, #tpu.memory_space<vmem>>, vector<1x8x32xf32>
    %1039 = vector.shape_cast %1038 : vector<1x8x32xf32> to vector<8x32xf32>
    %1040 = vector.shape_cast %1037 : vector<8x32xf32> to vector<1x8x32xf32>
    tpu.vector_store %arg18[%c3_409, %c0_410, %c0_411], %1040 {strides = array<i32>} : memref<8x8x32xf32, #tpu.memory_space<vmem>>, vector<1x8x32xf32>,
    %c4_412 = arith.constant 4 : index
    %c0_413 = arith.constant 0 : index
    %c0_414 = arith.constant 0 : index
    %1041 = vector.load %arg19[%c4_412, %c0_413, %c0_414] : memref<8x8x128xf32, #tpu.memory_space<vmem>>, vector<1x8x128xf32>
    %1042 = vector.shape_cast %1041 : vector<1x8x128xf32> to vector<8x128xf32>
    %cst_415 = arith.constant dense<0.000000e+00> : vector<8x128xf32>
    %1043 = tpu.matmul %1030, %879, %cst_415 {dimension_numbers = #tpu.dot_dimension_numbers<[1], [0], [0], [1], [0, 0, 1, 1], [], []>} : vector<8x32xf32>, vector<32x128xf32>, vector<8x128xf32> -> vector<8x128xf32>
    %1044 = arith.addf %1042, %1043 : vector<8x128xf32>
    %1045 = arith.negf %1044 : vector<8x128xf32>
    %1046 = math.exp %1045 : vector<8x128xf32>
    %cst_416 = arith.constant 1.000000e+00 : f32
    %1047 = vector.broadcast %cst_416 : f32 to vector<8x128xf32>
    %1048 = arith.addf %1047, %1046 : vector<8x128xf32>
    %1049 = arith.divf %1047, %1048 : vector<8x128xf32>
    %1050 = vector.extract_strided_slice %1049 {offsets = [0, 0], sizes = [8, 32], strides = [1, 1]} : vector<8x128xf32> to vector<8x32xf32>
    %1051 = vector.extract_strided_slice %1049 {offsets = [0, 32], sizes = [8, 32], strides = [1, 1]} : vector<8x128xf32> to vector<8x32xf32>
    %1052 = vector.extract_strided_slice %1049 {offsets = [0, 64], sizes = [8, 32], strides = [1, 1]} : vector<8x128xf32> to vector<8x32xf32>
    %cst_417 = arith.constant 2.000000e+00 : f32
    %1053 = vector.broadcast %cst_417 : f32 to vector<8x32xf32>
    %1054 = arith.mulf %1053, %1052 : vector<8x32xf32>
    %cst_418 = arith.constant 1.000000e+00 : f32
    %1055 = vector.broadcast %cst_418 : f32 to vector<8x32xf32>
    %1056 = arith.subf %1054, %1055 : vector<8x32xf32>
    %1057 = vector.extract_strided_slice %1049 {offsets = [0, 96], sizes = [8, 32], strides = [1, 1]} : vector<8x128xf32> to vector<8x32xf32>
    %1058 = arith.mulf %1051, %1033 : vector<8x32xf32>
    %1059 = arith.mulf %1050, %1056 : vector<8x32xf32>
    %1060 = arith.addf %1058, %1059 : vector<8x32xf32>
    %1061 = math.tanh %1060 : vector<8x32xf32>
    %1062 = arith.mulf %1057, %1061 : vector<8x32xf32>
    %c4_i32_419 = arith.constant 4 : i32
    %1063 = vector.broadcast %c4_i32_419 : i32 to vector<8x1xi32>
    %1064 = arith.cmpi sgt, %14, %1063 : vector<8x1xi32>
    %1065 = vector.shape_cast %1064 : vector<8x1xi1> to vector<8x1xi1>
    %1066 = vector.broadcast %1065 : vector<8x1xi1> to vector<8x32xi1>
    %1067 = arith.select %1066, %1062, %1030 : vector<8x32xi1>, vector<8x32xf32>
    %1068 = vector.shape_cast %1064 : vector<8x1xi1> to vector<8x1xi1>
    %1069 = vector.broadcast %1068 : vector<8x1xi1> to vector<8x32xi1>
    %1070 = arith.select %1069, %1060, %1033 : vector<8x32xi1>, vector<8x32xf32>
    %cst_420 = arith.constant 0.000000e+00 : f32
    %1071 = vector.shape_cast %1064 : vector<8x1xi1> to vector<8x1xi1>
    %1072 = vector.broadcast %1071 : vector<8x1xi1> to vector<8x32xi1>
    %1073 = vector.broadcast %cst_420 : f32 to vector<8x32xf32>
    %1074 = arith.select %1072, %1062, %1073 : vector<8x32xi1>, vector<8x32xf32>
    %c4_421 = arith.constant 4 : index
    %c0_422 = arith.constant 0 : index
    %c0_423 = arith.constant 0 : index
    %1075 = vector.load %arg18[%c4_421, %c0_422, %c0_423] : memref<8x8x32xf32, #tpu.memory_space<vmem>>, vector<1x8x32xf32>
    %1076 = vector.shape_cast %1075 : vector<1x8x32xf32> to vector<8x32xf32>
    %1077 = vector.shape_cast %1074 : vector<8x32xf32> to vector<1x8x32xf32>
    tpu.vector_store %arg18[%c4_421, %c0_422, %c0_423], %1077 {strides = array<i32>} : memref<8x8x32xf32, #tpu.memory_space<vmem>>, vector<1x8x32xf32>,
    %c5_424 = arith.constant 5 : index
    %c0_425 = arith.constant 0 : index
    %c0_426 = arith.constant 0 : index
    %1078 = vector.load %arg19[%c5_424, %c0_425, %c0_426] : memref<8x8x128xf32, #tpu.memory_space<vmem>>, vector<1x8x128xf32>
    %1079 = vector.shape_cast %1078 : vector<1x8x128xf32> to vector<8x128xf32>
    %cst_427 = arith.constant dense<0.000000e+00> : vector<8x128xf32>
    %1080 = tpu.matmul %1067, %879, %cst_427 {dimension_numbers = #tpu.dot_dimension_numbers<[1], [0], [0], [1], [0, 0, 1, 1], [], []>} : vector<8x32xf32>, vector<32x128xf32>, vector<8x128xf32> -> vector<8x128xf32>
    %1081 = arith.addf %1079, %1080 : vector<8x128xf32>
    %1082 = arith.negf %1081 : vector<8x128xf32>
    %1083 = math.exp %1082 : vector<8x128xf32>
    %cst_428 = arith.constant 1.000000e+00 : f32
    %1084 = vector.broadcast %cst_428 : f32 to vector<8x128xf32>
    %1085 = arith.addf %1084, %1083 : vector<8x128xf32>
    %1086 = arith.divf %1084, %1085 : vector<8x128xf32>
    %1087 = vector.extract_strided_slice %1086 {offsets = [0, 0], sizes = [8, 32], strides = [1, 1]} : vector<8x128xf32> to vector<8x32xf32>
    %1088 = vector.extract_strided_slice %1086 {offsets = [0, 32], sizes = [8, 32], strides = [1, 1]} : vector<8x128xf32> to vector<8x32xf32>
    %1089 = vector.extract_strided_slice %1086 {offsets = [0, 64], sizes = [8, 32], strides = [1, 1]} : vector<8x128xf32> to vector<8x32xf32>
    %cst_429 = arith.constant 2.000000e+00 : f32
    %1090 = vector.broadcast %cst_429 : f32 to vector<8x32xf32>
    %1091 = arith.mulf %1090, %1089 : vector<8x32xf32>
    %cst_430 = arith.constant 1.000000e+00 : f32
    %1092 = vector.broadcast %cst_430 : f32 to vector<8x32xf32>
    %1093 = arith.subf %1091, %1092 : vector<8x32xf32>
    %1094 = vector.extract_strided_slice %1086 {offsets = [0, 96], sizes = [8, 32], strides = [1, 1]} : vector<8x128xf32> to vector<8x32xf32>
    %1095 = arith.mulf %1088, %1070 : vector<8x32xf32>
    %1096 = arith.mulf %1087, %1093 : vector<8x32xf32>
    %1097 = arith.addf %1095, %1096 : vector<8x32xf32>
    %1098 = math.tanh %1097 : vector<8x32xf32>
    %1099 = arith.mulf %1094, %1098 : vector<8x32xf32>
    %c5_i32_431 = arith.constant 5 : i32
    %1100 = vector.broadcast %c5_i32_431 : i32 to vector<8x1xi32>
    %1101 = arith.cmpi sgt, %14, %1100 : vector<8x1xi32>
    %1102 = vector.shape_cast %1101 : vector<8x1xi1> to vector<8x1xi1>
    %1103 = vector.broadcast %1102 : vector<8x1xi1> to vector<8x32xi1>
    %1104 = arith.select %1103, %1099, %1067 : vector<8x32xi1>, vector<8x32xf32>
    %1105 = vector.shape_cast %1101 : vector<8x1xi1> to vector<8x1xi1>
    %1106 = vector.broadcast %1105 : vector<8x1xi1> to vector<8x32xi1>
    %1107 = arith.select %1106, %1097, %1070 : vector<8x32xi1>, vector<8x32xf32>
    %cst_432 = arith.constant 0.000000e+00 : f32
    %1108 = vector.shape_cast %1101 : vector<8x1xi1> to vector<8x1xi1>
    %1109 = vector.broadcast %1108 : vector<8x1xi1> to vector<8x32xi1>
    %1110 = vector.broadcast %cst_432 : f32 to vector<8x32xf32>
    %1111 = arith.select %1109, %1099, %1110 : vector<8x32xi1>, vector<8x32xf32>
    %c5_433 = arith.constant 5 : index
    %c0_434 = arith.constant 0 : index
    %c0_435 = arith.constant 0 : index
    %1112 = vector.load %arg18[%c5_433, %c0_434, %c0_435] : memref<8x8x32xf32, #tpu.memory_space<vmem>>, vector<1x8x32xf32>
    %1113 = vector.shape_cast %1112 : vector<1x8x32xf32> to vector<8x32xf32>
    %1114 = vector.shape_cast %1111 : vector<8x32xf32> to vector<1x8x32xf32>
    tpu.vector_store %arg18[%c5_433, %c0_434, %c0_435], %1114 {strides = array<i32>} : memref<8x8x32xf32, #tpu.memory_space<vmem>>, vector<1x8x32xf32>,
    %c6_436 = arith.constant 6 : index
    %c0_437 = arith.constant 0 : index
    %c0_438 = arith.constant 0 : index
    %1115 = vector.load %arg19[%c6_436, %c0_437, %c0_438] : memref<8x8x128xf32, #tpu.memory_space<vmem>>, vector<1x8x128xf32>
    %1116 = vector.shape_cast %1115 : vector<1x8x128xf32> to vector<8x128xf32>
    %cst_439 = arith.constant dense<0.000000e+00> : vector<8x128xf32>
    %1117 = tpu.matmul %1104, %879, %cst_439 {dimension_numbers = #tpu.dot_dimension_numbers<[1], [0], [0], [1], [0, 0, 1, 1], [], []>} : vector<8x32xf32>, vector<32x128xf32>, vector<8x128xf32> -> vector<8x128xf32>
    %1118 = arith.addf %1116, %1117 : vector<8x128xf32>
    %1119 = arith.negf %1118 : vector<8x128xf32>
    %1120 = math.exp %1119 : vector<8x128xf32>
    %cst_440 = arith.constant 1.000000e+00 : f32
    %1121 = vector.broadcast %cst_440 : f32 to vector<8x128xf32>
    %1122 = arith.addf %1121, %1120 : vector<8x128xf32>
    %1123 = arith.divf %1121, %1122 : vector<8x128xf32>
    %1124 = vector.extract_strided_slice %1123 {offsets = [0, 0], sizes = [8, 32], strides = [1, 1]} : vector<8x128xf32> to vector<8x32xf32>
    %1125 = vector.extract_strided_slice %1123 {offsets = [0, 32], sizes = [8, 32], strides = [1, 1]} : vector<8x128xf32> to vector<8x32xf32>
    %1126 = vector.extract_strided_slice %1123 {offsets = [0, 64], sizes = [8, 32], strides = [1, 1]} : vector<8x128xf32> to vector<8x32xf32>
    %cst_441 = arith.constant 2.000000e+00 : f32
    %1127 = vector.broadcast %cst_441 : f32 to vector<8x32xf32>
    %1128 = arith.mulf %1127, %1126 : vector<8x32xf32>
    %cst_442 = arith.constant 1.000000e+00 : f32
    %1129 = vector.broadcast %cst_442 : f32 to vector<8x32xf32>
    %1130 = arith.subf %1128, %1129 : vector<8x32xf32>
    %1131 = vector.extract_strided_slice %1123 {offsets = [0, 96], sizes = [8, 32], strides = [1, 1]} : vector<8x128xf32> to vector<8x32xf32>
    %1132 = arith.mulf %1125, %1107 : vector<8x32xf32>
    %1133 = arith.mulf %1124, %1130 : vector<8x32xf32>
    %1134 = arith.addf %1132, %1133 : vector<8x32xf32>
    %1135 = math.tanh %1134 : vector<8x32xf32>
    %1136 = arith.mulf %1131, %1135 : vector<8x32xf32>
    %c6_i32_443 = arith.constant 6 : i32
    %1137 = vector.broadcast %c6_i32_443 : i32 to vector<8x1xi32>
    %1138 = arith.cmpi sgt, %14, %1137 : vector<8x1xi32>
    %1139 = vector.shape_cast %1138 : vector<8x1xi1> to vector<8x1xi1>
    %1140 = vector.broadcast %1139 : vector<8x1xi1> to vector<8x32xi1>
    %1141 = arith.select %1140, %1136, %1104 : vector<8x32xi1>, vector<8x32xf32>
    %1142 = vector.shape_cast %1138 : vector<8x1xi1> to vector<8x1xi1>
    %1143 = vector.broadcast %1142 : vector<8x1xi1> to vector<8x32xi1>
    %1144 = arith.select %1143, %1134, %1107 : vector<8x32xi1>, vector<8x32xf32>
    %cst_444 = arith.constant 0.000000e+00 : f32
    %1145 = vector.shape_cast %1138 : vector<8x1xi1> to vector<8x1xi1>
    %1146 = vector.broadcast %1145 : vector<8x1xi1> to vector<8x32xi1>
    %1147 = vector.broadcast %cst_444 : f32 to vector<8x32xf32>
    %1148 = arith.select %1146, %1136, %1147 : vector<8x32xi1>, vector<8x32xf32>
    %c6_445 = arith.constant 6 : index
    %c0_446 = arith.constant 0 : index
    %c0_447 = arith.constant 0 : index
    %1149 = vector.load %arg18[%c6_445, %c0_446, %c0_447] : memref<8x8x32xf32, #tpu.memory_space<vmem>>, vector<1x8x32xf32>
    %1150 = vector.shape_cast %1149 : vector<1x8x32xf32> to vector<8x32xf32>
    %1151 = vector.shape_cast %1148 : vector<8x32xf32> to vector<1x8x32xf32>
    tpu.vector_store %arg18[%c6_445, %c0_446, %c0_447], %1151 {strides = array<i32>} : memref<8x8x32xf32, #tpu.memory_space<vmem>>, vector<1x8x32xf32>,
    %c7_448 = arith.constant 7 : index
    %c0_449 = arith.constant 0 : index
    %c0_450 = arith.constant 0 : index
    %1152 = vector.load %arg19[%c7_448, %c0_449, %c0_450] : memref<8x8x128xf32, #tpu.memory_space<vmem>>, vector<1x8x128xf32>
    %1153 = vector.shape_cast %1152 : vector<1x8x128xf32> to vector<8x128xf32>
    %cst_451 = arith.constant dense<0.000000e+00> : vector<8x128xf32>
    %1154 = tpu.matmul %1141, %879, %cst_451 {dimension_numbers = #tpu.dot_dimension_numbers<[1], [0], [0], [1], [0, 0, 1, 1], [], []>} : vector<8x32xf32>, vector<32x128xf32>, vector<8x128xf32> -> vector<8x128xf32>
    %1155 = arith.addf %1153, %1154 : vector<8x128xf32>
    %1156 = arith.negf %1155 : vector<8x128xf32>
    %1157 = math.exp %1156 : vector<8x128xf32>
    %cst_452 = arith.constant 1.000000e+00 : f32
    %1158 = vector.broadcast %cst_452 : f32 to vector<8x128xf32>
    %1159 = arith.addf %1158, %1157 : vector<8x128xf32>
    %1160 = arith.divf %1158, %1159 : vector<8x128xf32>
    %1161 = vector.extract_strided_slice %1160 {offsets = [0, 0], sizes = [8, 32], strides = [1, 1]} : vector<8x128xf32> to vector<8x32xf32>
    %1162 = vector.extract_strided_slice %1160 {offsets = [0, 32], sizes = [8, 32], strides = [1, 1]} : vector<8x128xf32> to vector<8x32xf32>
    %1163 = vector.extract_strided_slice %1160 {offsets = [0, 64], sizes = [8, 32], strides = [1, 1]} : vector<8x128xf32> to vector<8x32xf32>
    %cst_453 = arith.constant 2.000000e+00 : f32
    %1164 = vector.broadcast %cst_453 : f32 to vector<8x32xf32>
    %1165 = arith.mulf %1164, %1163 : vector<8x32xf32>
    %cst_454 = arith.constant 1.000000e+00 : f32
    %1166 = vector.broadcast %cst_454 : f32 to vector<8x32xf32>
    %1167 = arith.subf %1165, %1166 : vector<8x32xf32>
    %1168 = vector.extract_strided_slice %1160 {offsets = [0, 96], sizes = [8, 32], strides = [1, 1]} : vector<8x128xf32> to vector<8x32xf32>
    %1169 = arith.mulf %1162, %1144 : vector<8x32xf32>
    %1170 = arith.mulf %1161, %1167 : vector<8x32xf32>
    %1171 = arith.addf %1169, %1170 : vector<8x32xf32>
    %1172 = math.tanh %1171 : vector<8x32xf32>
    %1173 = arith.mulf %1168, %1172 : vector<8x32xf32>
    %c7_i32_455 = arith.constant 7 : i32
    %1174 = vector.broadcast %c7_i32_455 : i32 to vector<8x1xi32>
    %1175 = arith.cmpi sgt, %14, %1174 : vector<8x1xi32>
    %1176 = vector.shape_cast %1175 : vector<8x1xi1> to vector<8x1xi1>
    %1177 = vector.broadcast %1176 : vector<8x1xi1> to vector<8x32xi1>
    %1178 = arith.select %1177, %1173, %1141 : vector<8x32xi1>, vector<8x32xf32>
    %1179 = vector.shape_cast %1175 : vector<8x1xi1> to vector<8x1xi1>
    %1180 = vector.broadcast %1179 : vector<8x1xi1> to vector<8x32xi1>
    %1181 = arith.select %1180, %1171, %1144 : vector<8x32xi1>, vector<8x32xf32>
    %cst_456 = arith.constant 0.000000e+00 : f32
    %1182 = vector.shape_cast %1175 : vector<8x1xi1> to vector<8x1xi1>
    %1183 = vector.broadcast %1182 : vector<8x1xi1> to vector<8x32xi1>
    %1184 = vector.broadcast %cst_456 : f32 to vector<8x32xf32>
    %1185 = arith.select %1183, %1173, %1184 : vector<8x32xi1>, vector<8x32xf32>
    %c7_457 = arith.constant 7 : index
    %c0_458 = arith.constant 0 : index
    %c0_459 = arith.constant 0 : index
    %1186 = vector.load %arg18[%c7_457, %c0_458, %c0_459] : memref<8x8x32xf32, #tpu.memory_space<vmem>>, vector<1x8x32xf32>
    %1187 = vector.shape_cast %1186 : vector<1x8x32xf32> to vector<8x32xf32>
    %1188 = vector.shape_cast %1185 : vector<8x32xf32> to vector<1x8x32xf32>
    tpu.vector_store %arg18[%c7_457, %c0_458, %c0_459], %1188 {strides = array<i32>} : memref<8x8x32xf32, #tpu.memory_space<vmem>>, vector<1x8x32xf32>,
    %c3_460 = arith.constant 3 : index
    %c0_461 = arith.constant 0 : index
    %c0_462 = arith.constant 0 : index
    %1189 = vector.load %arg16[%c3_460, %c0_461, %c0_462] : memref<4x8x32xf32, #tpu.memory_space<vmem>>, vector<1x8x32xf32>
    %1190 = vector.shape_cast %1189 : vector<1x8x32xf32> to vector<8x32xf32>
    %1191 = vector.shape_cast %1178 : vector<8x32xf32> to vector<1x8x32xf32>
    tpu.vector_store %arg16[%c3_460, %c0_461, %c0_462], %1191 {strides = array<i32>} : memref<4x8x32xf32, #tpu.memory_space<vmem>>, vector<1x8x32xf32>,
    %c3_463 = arith.constant 3 : index
    %c0_464 = arith.constant 0 : index
    %c0_465 = arith.constant 0 : index
    %1192 = vector.load %arg17[%c3_463, %c0_464, %c0_465] : memref<4x8x32xf32, #tpu.memory_space<vmem>>, vector<1x8x32xf32>
    %1193 = vector.shape_cast %1192 : vector<1x8x32xf32> to vector<8x32xf32>
    %1194 = vector.shape_cast %1181 : vector<8x32xf32> to vector<1x8x32xf32>
    tpu.vector_store %arg17[%c3_463, %c0_464, %c0_465], %1194 {strides = array<i32>} : memref<4x8x32xf32, #tpu.memory_space<vmem>>, vector<1x8x32xf32>,
    %c0_466 = arith.constant 0 : index
    %c0_467 = arith.constant 0 : index
    %c0_468 = arith.constant 0 : index
    %1195 = vector.load %arg18[%c0_466, %c0_467, %c0_468] : memref<8x8x32xf32, #tpu.memory_space<vmem>>, vector<8x8x32xf32>
    %c0_469 = arith.constant 0 : index
    %c0_470 = arith.constant 0 : index
    %c0_471 = arith.constant 0 : index
    %1196 = vector.load %arg5[%c0_469, %c0_470, %c0_471] : memref<8x8x32xf32, #tpu.memory_space<vmem>>, vector<8x8x32xf32>
    %c0_472 = arith.constant 0 : index
    %c0_473 = arith.constant 0 : index
    %c0_474 = arith.constant 0 : index
    %1197 = vector.load %arg6[%c0_472, %c0_473, %c0_474] : memref<8x8x1xf32, #tpu.memory_space<vmem>>, vector<8x8x1xf32>
    %1198 = vector.extract_strided_slice %1195 {offsets = [0, 0, 0], sizes = [1, 8, 32], strides = [1, 1, 1]} : vector<8x8x32xf32> to vector<1x8x32xf32>
    %1199 = vector.shape_cast %1198 : vector<1x8x32xf32> to vector<8x32xf32>
    %1200 = vector.shape_cast %1199 : vector<8x32xf32> to vector<8x1x32xf32>
    %1201 = vector.broadcast %1200 : vector<8x1x32xf32> to vector<8x8x32xf32>
    %1202 = arith.mulf %1196, %1201 : vector<8x8x32xf32>
    %cst_475 = arith.constant dense<0.000000e+00> : vector<8x8xf32>
    %1203 = vector.multi_reduction <add>, %1202, %cst_475 [2] : vector<8x8x32xf32> to vector<8x8xf32>
    %1204 = vector.shape_cast %1203 : vector<8x8xf32> to vector<8x8x1xf32>
    %1205 = vector.extract_strided_slice %1195 {offsets = [1, 0, 0], sizes = [1, 8, 32], strides = [1, 1, 1]} : vector<8x8x32xf32> to vector<1x8x32xf32>
    %1206 = vector.shape_cast %1205 : vector<1x8x32xf32> to vector<8x32xf32>
    %1207 = vector.shape_cast %1206 : vector<8x32xf32> to vector<8x1x32xf32>
    %1208 = vector.broadcast %1207 : vector<8x1x32xf32> to vector<8x8x32xf32>
    %1209 = arith.mulf %1196, %1208 : vector<8x8x32xf32>
    %cst_476 = arith.constant dense<0.000000e+00> : vector<8x8xf32>
    %1210 = vector.multi_reduction <add>, %1209, %cst_476 [2] : vector<8x8x32xf32> to vector<8x8xf32>
    %1211 = vector.shape_cast %1210 : vector<8x8xf32> to vector<8x8x1xf32>
    %1212 = vector.extract_strided_slice %1195 {offsets = [2, 0, 0], sizes = [1, 8, 32], strides = [1, 1, 1]} : vector<8x8x32xf32> to vector<1x8x32xf32>
    %1213 = vector.shape_cast %1212 : vector<1x8x32xf32> to vector<8x32xf32>
    %1214 = vector.shape_cast %1213 : vector<8x32xf32> to vector<8x1x32xf32>
    %1215 = vector.broadcast %1214 : vector<8x1x32xf32> to vector<8x8x32xf32>
    %1216 = arith.mulf %1196, %1215 : vector<8x8x32xf32>
    %cst_477 = arith.constant dense<0.000000e+00> : vector<8x8xf32>
    %1217 = vector.multi_reduction <add>, %1216, %cst_477 [2] : vector<8x8x32xf32> to vector<8x8xf32>
    %1218 = vector.shape_cast %1217 : vector<8x8xf32> to vector<8x8x1xf32>
    %1219 = vector.extract_strided_slice %1195 {offsets = [3, 0, 0], sizes = [1, 8, 32], strides = [1, 1, 1]} : vector<8x8x32xf32> to vector<1x8x32xf32>
    %1220 = vector.shape_cast %1219 : vector<1x8x32xf32> to vector<8x32xf32>
    %1221 = vector.shape_cast %1220 : vector<8x32xf32> to vector<8x1x32xf32>
    %1222 = vector.broadcast %1221 : vector<8x1x32xf32> to vector<8x8x32xf32>
    %1223 = arith.mulf %1196, %1222 : vector<8x8x32xf32>
    %cst_478 = arith.constant dense<0.000000e+00> : vector<8x8xf32>
    %1224 = vector.multi_reduction <add>, %1223, %cst_478 [2] : vector<8x8x32xf32> to vector<8x8xf32>
    %1225 = vector.shape_cast %1224 : vector<8x8xf32> to vector<8x8x1xf32>
    %1226 = vector.extract_strided_slice %1195 {offsets = [4, 0, 0], sizes = [1, 8, 32], strides = [1, 1, 1]} : vector<8x8x32xf32> to vector<1x8x32xf32>
    %1227 = vector.shape_cast %1226 : vector<1x8x32xf32> to vector<8x32xf32>
    %1228 = vector.shape_cast %1227 : vector<8x32xf32> to vector<8x1x32xf32>
    %1229 = vector.broadcast %1228 : vector<8x1x32xf32> to vector<8x8x32xf32>
    %1230 = arith.mulf %1196, %1229 : vector<8x8x32xf32>
    %cst_479 = arith.constant dense<0.000000e+00> : vector<8x8xf32>
    %1231 = vector.multi_reduction <add>, %1230, %cst_479 [2] : vector<8x8x32xf32> to vector<8x8xf32>
    %1232 = vector.shape_cast %1231 : vector<8x8xf32> to vector<8x8x1xf32>
    %1233 = vector.extract_strided_slice %1195 {offsets = [5, 0, 0], sizes = [1, 8, 32], strides = [1, 1, 1]} : vector<8x8x32xf32> to vector<1x8x32xf32>
    %1234 = vector.shape_cast %1233 : vector<1x8x32xf32> to vector<8x32xf32>
    %1235 = vector.shape_cast %1234 : vector<8x32xf32> to vector<8x1x32xf32>
    %1236 = vector.broadcast %1235 : vector<8x1x32xf32> to vector<8x8x32xf32>
    %1237 = arith.mulf %1196, %1236 : vector<8x8x32xf32>
    %cst_480 = arith.constant dense<0.000000e+00> : vector<8x8xf32>
    %1238 = vector.multi_reduction <add>, %1237, %cst_480 [2] : vector<8x8x32xf32> to vector<8x8xf32>
    %1239 = vector.shape_cast %1238 : vector<8x8xf32> to vector<8x8x1xf32>
    %1240 = vector.extract_strided_slice %1195 {offsets = [6, 0, 0], sizes = [1, 8, 32], strides = [1, 1, 1]} : vector<8x8x32xf32> to vector<1x8x32xf32>
    %1241 = vector.shape_cast %1240 : vector<1x8x32xf32> to vector<8x32xf32>
    %1242 = vector.shape_cast %1241 : vector<8x32xf32> to vector<8x1x32xf32>
    %1243 = vector.broadcast %1242 : vector<8x1x32xf32> to vector<8x8x32xf32>
    %1244 = arith.mulf %1196, %1243 : vector<8x8x32xf32>
    %cst_481 = arith.constant dense<0.000000e+00> : vector<8x8xf32>
    %1245 = vector.multi_reduction <add>, %1244, %cst_481 [2] : vector<8x8x32xf32> to vector<8x8xf32>
    %1246 = vector.shape_cast %1245 : vector<8x8xf32> to vector<8x8x1xf32>
    %1247 = vector.extract_strided_slice %1195 {offsets = [7, 0, 0], sizes = [1, 8, 32], strides = [1, 1, 1]} : vector<8x8x32xf32> to vector<1x8x32xf32>
    %1248 = vector.shape_cast %1247 : vector<1x8x32xf32> to vector<8x32xf32>
    %1249 = vector.shape_cast %1248 : vector<8x32xf32> to vector<8x1x32xf32>
    %1250 = vector.broadcast %1249 : vector<8x1x32xf32> to vector<8x8x32xf32>
    %1251 = arith.mulf %1196, %1250 : vector<8x8x32xf32>
    %cst_482 = arith.constant dense<0.000000e+00> : vector<8x8xf32>
    %1252 = vector.multi_reduction <add>, %1251, %cst_482 [2] : vector<8x8x32xf32> to vector<8x8xf32>
    %1253 = vector.shape_cast %1252 : vector<8x8xf32> to vector<8x8x1xf32>
    %1254 = tpu.concatenate %1204, %1211, %1218, %1225, %1232, %1239, %1246, %1253 in 2 : vector<8x8x1xf32>, vector<8x8x1xf32>, vector<8x8x1xf32>, vector<8x8x1xf32>, vector<8x8x1xf32>, vector<8x8x1xf32>, vector<8x8x1xf32>, vector<8x8x1xf32> -> vector<8x8x8xf32>
    %cst_483 = arith.constant 5.000000e-01 : f32
    %1255 = vector.broadcast %cst_483 : f32 to vector<8x8x1xf32>
    %1256 = arith.cmpf ogt, %1197, %1255 : vector<8x8x1xf32>
    %cst_484 = arith.constant 1.000000e-10 : f32
    %1257 = vector.shape_cast %1256 : vector<8x8x1xi1> to vector<8x8x1xi1>
    %1258 = vector.broadcast %1257 : vector<8x8x1xi1> to vector<8x8x8xi1>
    %1259 = vector.broadcast %cst_484 : f32 to vector<8x8x8xf32>
    %1260 = arith.select %1258, %1259, %1254 : vector<8x8x8xi1>, vector<8x8x8xf32>
    %c0_485 = arith.constant 0 : index
    %c0_486 = arith.constant 0 : index
    %c0_487 = arith.constant 0 : index
    %1261 = vector.load %arg15[%c0_485, %c0_486, %c0_487] : memref<8x8x8xf32, #tpu.memory_space<vmem>>, vector<8x8x8xf32>
    tpu.vector_store %arg15[%c0_485, %c0_486, %c0_487], %1260 {strides = array<i32>} : memref<8x8x8xf32, #tpu.memory_space<vmem>>, vector<8x8x8xf32>,
    %cst_488 = arith.constant dense<0xFF800000> : vector<8x8xf32>
    %1262 = vector.multi_reduction <maximumf>, %1260, %cst_488 [1] : vector<8x8x8xf32> to vector<8x8xf32>
    %cst_489 = arith.constant 0xFF800000 : f32
    %1263 = vector.broadcast %cst_489 : f32 to vector<8x8xf32>
    %1264 = arith.maximumf %1263, %1262 : vector<8x8xf32>
    %1265 = vector.shape_cast %1264 : vector<8x8xf32> to vector<8x1x8xf32>
    %1266 = vector.broadcast %1265 : vector<8x1x8xf32> to vector<8x8x8xf32>
    %1267 = arith.subf %1260, %1266 : vector<8x8x8xf32>
    %1268 = math.exp %1267 : vector<8x8x8xf32>
    %cst_490 = arith.constant dense<0.000000e+00> : vector<8x8xf32>
    %1269 = vector.multi_reduction <add>, %1268, %cst_490 [1] : vector<8x8x8xf32> to vector<8x8xf32>
    %1270 = vector.shape_cast %1269 : vector<8x8xf32> to vector<8x1x8xf32>
    %1271 = vector.broadcast %1270 : vector<8x1x8xf32> to vector<8x8x8xf32>
    %1272 = arith.divf %1268, %1271 : vector<8x8x8xf32>
    %1273 = vector.extract_strided_slice %1272 {offsets = [0, 0, 0], sizes = [8, 8, 1], strides = [1, 1, 1]} : vector<8x8x8xf32> to vector<8x8x1xf32>
    %1274 = vector.broadcast %1273 : vector<8x8x1xf32> to vector<8x8x32xf32>
    %1275 = arith.mulf %1274, %1196 : vector<8x8x32xf32>
    %cst_491 = arith.constant dense<0.000000e+00> : vector<8x32xf32>
    %1276 = vector.multi_reduction <add>, %1275, %cst_491 [1] : vector<8x8x32xf32> to vector<8x32xf32>
    %1277 = vector.extract_strided_slice %1272 {offsets = [0, 0, 1], sizes = [8, 8, 1], strides = [1, 1, 1]} : vector<8x8x8xf32> to vector<8x8x1xf32>
    %1278 = vector.broadcast %1277 : vector<8x8x1xf32> to vector<8x8x32xf32>
    %1279 = arith.mulf %1278, %1196 : vector<8x8x32xf32>
    %cst_492 = arith.constant dense<0.000000e+00> : vector<8x32xf32>
    %1280 = vector.multi_reduction <add>, %1279, %cst_492 [1] : vector<8x8x32xf32> to vector<8x32xf32>
    %1281 = vector.extract_strided_slice %1272 {offsets = [0, 0, 2], sizes = [8, 8, 1], strides = [1, 1, 1]} : vector<8x8x8xf32> to vector<8x8x1xf32>
    %1282 = vector.broadcast %1281 : vector<8x8x1xf32> to vector<8x8x32xf32>
    %1283 = arith.mulf %1282, %1196 : vector<8x8x32xf32>
    %cst_493 = arith.constant dense<0.000000e+00> : vector<8x32xf32>
    %1284 = vector.multi_reduction <add>, %1283, %cst_493 [1] : vector<8x8x32xf32> to vector<8x32xf32>
    %1285 = vector.extract_strided_slice %1272 {offsets = [0, 0, 3], sizes = [8, 8, 1], strides = [1, 1, 1]} : vector<8x8x8xf32> to vector<8x8x1xf32>
    %1286 = vector.broadcast %1285 : vector<8x8x1xf32> to vector<8x8x32xf32>
    %1287 = arith.mulf %1286, %1196 : vector<8x8x32xf32>
    %cst_494 = arith.constant dense<0.000000e+00> : vector<8x32xf32>
    %1288 = vector.multi_reduction <add>, %1287, %cst_494 [1] : vector<8x8x32xf32> to vector<8x32xf32>
    %1289 = vector.extract_strided_slice %1272 {offsets = [0, 0, 4], sizes = [8, 8, 1], strides = [1, 1, 1]} : vector<8x8x8xf32> to vector<8x8x1xf32>
    %1290 = vector.broadcast %1289 : vector<8x8x1xf32> to vector<8x8x32xf32>
    %1291 = arith.mulf %1290, %1196 : vector<8x8x32xf32>
    %cst_495 = arith.constant dense<0.000000e+00> : vector<8x32xf32>
    %1292 = vector.multi_reduction <add>, %1291, %cst_495 [1] : vector<8x8x32xf32> to vector<8x32xf32>
    %1293 = vector.extract_strided_slice %1272 {offsets = [0, 0, 5], sizes = [8, 8, 1], strides = [1, 1, 1]} : vector<8x8x8xf32> to vector<8x8x1xf32>
    %1294 = vector.broadcast %1293 : vector<8x8x1xf32> to vector<8x8x32xf32>
    %1295 = arith.mulf %1294, %1196 : vector<8x8x32xf32>
    %cst_496 = arith.constant dense<0.000000e+00> : vector<8x32xf32>
    %1296 = vector.multi_reduction <add>, %1295, %cst_496 [1] : vector<8x8x32xf32> to vector<8x32xf32>
    %1297 = vector.extract_strided_slice %1272 {offsets = [0, 0, 6], sizes = [8, 8, 1], strides = [1, 1, 1]} : vector<8x8x8xf32> to vector<8x8x1xf32>
    %1298 = vector.broadcast %1297 : vector<8x8x1xf32> to vector<8x8x32xf32>
    %1299 = arith.mulf %1298, %1196 : vector<8x8x32xf32>
    %cst_497 = arith.constant dense<0.000000e+00> : vector<8x32xf32>
    %1300 = vector.multi_reduction <add>, %1299, %cst_497 [1] : vector<8x8x32xf32> to vector<8x32xf32>
    %1301 = vector.extract_strided_slice %1272 {offsets = [0, 0, 7], sizes = [8, 8, 1], strides = [1, 1, 1]} : vector<8x8x8xf32> to vector<8x8x1xf32>
    %1302 = vector.broadcast %1301 : vector<8x8x1xf32> to vector<8x8x32xf32>
    %1303 = arith.mulf %1302, %1196 : vector<8x8x32xf32>
    %cst_498 = arith.constant dense<0.000000e+00> : vector<8x32xf32>
    %1304 = vector.multi_reduction <add>, %1303, %cst_498 [1] : vector<8x8x32xf32> to vector<8x32xf32>
    %1305 = vector.shape_cast %1276 : vector<8x32xf32> to vector<1x8x32xf32>
    %1306 = vector.shape_cast %1280 : vector<8x32xf32> to vector<1x8x32xf32>
    %1307 = vector.shape_cast %1284 : vector<8x32xf32> to vector<1x8x32xf32>
    %1308 = vector.shape_cast %1288 : vector<8x32xf32> to vector<1x8x32xf32>
    %1309 = vector.shape_cast %1292 : vector<8x32xf32> to vector<1x8x32xf32>
    %1310 = vector.shape_cast %1296 : vector<8x32xf32> to vector<1x8x32xf32>
    %1311 = vector.shape_cast %1300 : vector<8x32xf32> to vector<1x8x32xf32>
    %1312 = vector.shape_cast %1304 : vector<8x32xf32> to vector<1x8x32xf32>
    %1313 = tpu.concatenate %1305, %1306, %1307, %1308, %1309, %1310, %1311, %1312 in 0 : vector<1x8x32xf32>, vector<1x8x32xf32>, vector<1x8x32xf32>, vector<1x8x32xf32>, vector<1x8x32xf32>, vector<1x8x32xf32>, vector<1x8x32xf32>, vector<1x8x32xf32> -> vector<8x8x32xf32>
    %1314 = tpu.concatenate %1195, %1313 in 2 : vector<8x8x32xf32>, vector<8x8x32xf32> -> vector<8x8x64xf32>
    %1315 = vector.shape_cast %1314 : vector<8x8x64xf32> to vector<64x64xf32>
    %c0_499 = arith.constant 0 : index
    %c0_500 = arith.constant 0 : index
    %1316 = vector.load %arg10[%c0_499, %c0_500] : memref<64x32xf32, #tpu.memory_space<vmem>>, vector<64x32xf32>
    %cst_501 = arith.constant dense<0.000000e+00> : vector<64x32xf32>
    %1317 = tpu.matmul %1315, %1316, %cst_501 {dimension_numbers = #tpu.dot_dimension_numbers<[1], [0], [0], [1], [0, 0, 1, 1], [], []>} : vector<64x64xf32>, vector<64x32xf32>, vector<64x32xf32> -> vector<64x32xf32>
    %c0_502 = arith.constant 0 : index
    %c0_503 = arith.constant 0 : index
    %1318 = vector.load %arg11[%c0_502, %c0_503] : memref<1x32xf32, #tpu.memory_space<vmem>>, vector<1x32xf32>
    %1319 = vector.broadcast %1318 : vector<1x32xf32> to vector<64x32xf32>
    %1320 = arith.addf %1317, %1319 : vector<64x32xf32>
    %1321 = math.tanh %1320 : vector<64x32xf32>
    %c0_504 = arith.constant 0 : index
    %c0_505 = arith.constant 0 : index
    %1322 = vector.load %arg12[%c0_504, %c0_505] : memref<32x128xf32, #tpu.memory_space<vmem>>, vector<32x128xf32>
    %cst_506 = arith.constant dense<0.000000e+00> : vector<64x128xf32>
    %1323 = tpu.matmul %1321, %1322, %cst_506 {dimension_numbers = #tpu.dot_dimension_numbers<[1], [0], [0], [1], [0, 0, 1, 1], [], []>} : vector<64x32xf32>, vector<32x128xf32>, vector<64x128xf32> -> vector<64x128xf32>
    %c0_507 = arith.constant 0 : index
    %c0_508 = arith.constant 0 : index
    %1324 = vector.load %arg13[%c0_507, %c0_508] : memref<1x128xf32, #tpu.memory_space<vmem>>, vector<1x128xf32>
    %1325 = vector.broadcast %1324 : vector<1x128xf32> to vector<64x128xf32>
    %1326 = arith.addf %1323, %1325 : vector<64x128xf32>
    %1327 = vector.shape_cast %1326 : vector<64x128xf32> to vector<8x8x128xf32>
    %c0_509 = arith.constant 0 : index
    %c0_510 = arith.constant 0 : index
    %c0_511 = arith.constant 0 : index
    %1328 = vector.load %arg14[%c0_509, %c0_510, %c0_511] : memref<8x8x128xf32, #tpu.memory_space<vmem>>, vector<8x8x128xf32>
    tpu.vector_store %arg14[%c0_509, %c0_510, %c0_511], %1327 {strides = array<i32>} : memref<8x8x128xf32, #tpu.memory_space<vmem>>, vector<8x8x128xf32>,
    return
  }
  func.func @transform_0(%arg0: i32) -> (i32, i32, i32) {
    %c0_i32 = arith.constant 0 : i32
    %c0_i32_0 = arith.constant 0 : i32
    %c0_i32_1 = arith.constant 0 : i32
    %c0_i32_2 = arith.constant 0 : i32
    return %c0_i32, %c0_i32_0, %c0_i32_1 : i32, i32, i32
  }
  func.func @transform_1(%arg0: i32) -> (i32, i32) {
    %c0_i32 = arith.constant 0 : i32
    %c0_i32_0 = arith.constant 0 : i32
    %c0_i32_1 = arith.constant 0 : i32
    return %c0_i32, %c0_i32_0 : i32, i32
  }
  func.func @transform_2(%arg0: i32) -> (i32, i32, i32) {
    %c0_i32 = arith.constant 0 : i32
    %c0_i32_0 = arith.constant 0 : i32
    %c0_i32_1 = arith.constant 0 : i32
    %c0_i32_2 = arith.constant 0 : i32
    return %c0_i32, %c0_i32_0, %c0_i32_1 : i32, i32, i32
  }
  func.func @transform_3(%arg0: i32) -> (i32, i32, i32) {
    %c0_i32 = arith.constant 0 : i32
    %c0_i32_0 = arith.constant 0 : i32
    %c0_i32_1 = arith.constant 0 : i32
    %c0_i32_2 = arith.constant 0 : i32
    return %c0_i32, %c0_i32_0, %c0_i32_1 : i32, i32, i32
  }
  func.func @transform_4(%arg0: i32) -> (i32, i32, i32) {
    %c0_i32 = arith.constant 0 : i32
    %c0_i32_0 = arith.constant 0 : i32
    %c0_i32_1 = arith.constant 0 : i32
    %c0_i32_2 = arith.constant 0 : i32
    return %c0_i32, %c0_i32_0, %c0_i32_1 : i32, i32, i32
  }
  func.func @transform_5(%arg0: i32) -> (i32, i32, i32) {
    %c0_i32 = arith.constant 0 : i32
    %c0_i32_0 = arith.constant 0 : i32
    %c0_i32_1 = arith.constant 0 : i32
    %c0_i32_2 = arith.constant 0 : i32
    return %c0_i32, %c0_i32_0, %c0_i32_1 : i32, i32, i32
  }
  func.func @transform_6(%arg0: i32) -> (i32, i32, i32) {
    %c0_i32 = arith.constant 0 : i32
    %c0_i32_0 = arith.constant 0 : i32
    %c0_i32_1 = arith.constant 0 : i32
    %c0_i32_2 = arith.constant 0 : i32
    return %c0_i32, %c0_i32_0, %c0_i32_1 : i32, i32, i32
  }
  func.func @transform_7(%arg0: i32) -> (i32, i32, i32) {
    %c0_i32 = arith.constant 0 : i32
    %c0_i32_0 = arith.constant 0 : i32
    %c0_i32_1 = arith.constant 0 : i32
    %c0_i32_2 = arith.constant 0 : i32
    return %c0_i32, %c0_i32_0, %c0_i32_1 : i32, i32, i32
  }
  func.func @transform_8(%arg0: i32) -> (i32, i32, i32) {
    %c0_i32 = arith.constant 0 : i32
    %c0_i32_0 = arith.constant 0 : i32
    %c0_i32_1 = arith.constant 0 : i32
    %c0_i32_2 = arith.constant 0 : i32
    return %c0_i32, %c0_i32_0, %c0_i32_1 : i32, i32, i32
  }
  func.func @transform_9(%arg0: i32) -> (i32, i32) {
    %c0_i32 = arith.constant 0 : i32
    %c0_i32_0 = arith.constant 0 : i32
    %c0_i32_1 = arith.constant 0 : i32
    return %c0_i32, %c0_i32_0 : i32, i32
  }
  func.func @transform_10(%arg0: i32) -> (i32, i32) {
    %c0_i32 = arith.constant 0 : i32
    %c0_i32_0 = arith.constant 0 : i32
    %c0_i32_1 = arith.constant 0 : i32
    return %c0_i32, %c0_i32_0 : i32, i32
  }
  func.func @transform_11(%arg0: i32) -> (i32, i32) {
    %c0_i32 = arith.constant 0 : i32
    %c0_i32_0 = arith.constant 0 : i32
    %c0_i32_1 = arith.constant 0 : i32
    return %c0_i32, %c0_i32_0 : i32, i32
  }
  func.func @transform_12(%arg0: i32) -> (i32, i32) {
    %c0_i32 = arith.constant 0 : i32
    %c0_i32_0 = arith.constant 0 : i32
    %c0_i32_1 = arith.constant 0 : i32
    return %c0_i32, %c0_i32_0 : i32, i32
  }
  func.func @transform_13(%arg0: i32) -> (i32, i32, i32) {
    %c0_i32 = arith.constant 0 : i32
    %c0_i32_0 = arith.constant 0 : i32
    %c0_i32_1 = arith.constant 0 : i32
    %c0_i32_2 = arith.constant 0 : i32
    return %c0_i32, %c0_i32_0, %c0_i32_1 : i32, i32, i32
  }
  func.func @transform_14(%arg0: i32) -> (i32, i32, i32) {
    %c0_i32 = arith.constant 0 : i32
    %c0_i32_0 = arith.constant 0 : i32
    %c0_i32_1 = arith.constant 0 : i32
    %c0_i32_2 = arith.constant 0 : i32
    return %c0_i32, %c0_i32_0, %c0_i32_1 : i32, i32, i32
  }
  func.func @transform_15(%arg0: i32) -> (i32, i32, i32) {
    %c0_i32 = arith.constant 0 : i32
    %c0_i32_0 = arith.constant 0 : i32
    %c0_i32_1 = arith.constant 0 : i32
    %c0_i32_2 = arith.constant 0 : i32
    return %c0_i32, %c0_i32_0, %c0_i32_1 : i32, i32, i32
  }
  func.func @transform_16(%arg0: i32) -> (i32, i32, i32) {
    %c0_i32 = arith.constant 0 : i32
    %c0_i32_0 = arith.constant 0 : i32
    %c0_i32_1 = arith.constant 0 : i32
    %c0_i32_2 = arith.constant 0 : i32
    return %c0_i32, %c0_i32_0, %c0_i32_1 : i32, i32, i32
  }
}

</mosaic_0001>

<llo_original>
// kernel: decoder_forward.1
$region0: #{decoder_forward.1}
  #allocation0 [shape = 'u32[]', space=smem, size = 0x4, offset = 0x4, fixed_abs, tag = 'smem constant byte address 0x4 - core index']
  #allocation1 [shape = 'u32[72,128]{1,0:T(1,128)}', space=vmem, size = 0x9000, scoped, tag = 'internal scratch']
  #allocation2 [shape = 'f32[8,8,32]{2,1,0:T(8,128)}', space=vmem, size = 0x8000, scoped, tag = 'scratch operand']
  #allocation3 [shape = 'f32[8,8,128]{2,1,0:T(8,128)}', space=vmem, size = 0x8000, scoped, tag = 'scratch operand']
  %s0 = inlined_call_operand.vmem [shape: s32[8,8,1], index: 0, kind: input, shape index: {}]
  %s1 = inlined_call_operand.hbm [shape: f32[128,32], index: 1, kind: input, shape index: {}]
  %s2 = inlined_call_operand.hbm [shape: f32[4,8,32], index: 2, kind: input, shape index: {}]
  %s3 = inlined_call_operand.hbm [shape: f32[4,8,32], index: 3, kind: input, shape index: {}]
  %s4 = inlined_call_operand.vmem [shape: f32[8,8,32], index: 4, kind: input, shape index: {}]
  %s5 = inlined_call_operand.vmem [shape: f32[8,8,1], index: 5, kind: input, shape index: {}]
  %s6 = inlined_call_operand.hbm [shape: f32[4,32,128], index: 6, kind: input, shape index: {}]
  %s7 = inlined_call_operand.vmem [shape: f32[4,32,128], index: 7, kind: input, shape index: {}]
  %s8 = inlined_call_operand.vmem [shape: f32[4,1,128], index: 8, kind: input, shape index: {}]
  %s9 = inlined_call_operand.vmem [shape: f32[64,32], index: 9, kind: input, shape index: {}]
  %s10 = inlined_call_operand.vmem [shape: f32[1,32], index: 10, kind: input, shape index: {}]
  %s11 = inlined_call_operand.hbm [shape: f32[32,128], index: 11, kind: input, shape index: {}]
  %s12 = inlined_call_operand.vmem [shape: f32[1,128], index: 12, kind: input, shape index: {}]
  %s13 = inlined_call_operand.hbm [shape: f32[8,8,128], index: 13, kind: output, shape index: {0}]
  %s14 = inlined_call_operand.hbm [shape: f32[8,8,8], index: 14, kind: output, shape index: {1}]
  %s15 = inlined_call_operand.hbm [shape: f32[4,8,32], index: 15, kind: output, shape index: {2}]
  %s16 = inlined_call_operand.hbm [shape: f32[4,8,32], index: 16, kind: output, shape index: {3}]
  %17 = xla_tuple %s13, %s14, %s15, %s16
  %s18 = sld [smem:[#allocation0]]
  $region106: #{decoder_forward.1} parent=0
    _
  %s20 = ssub.s32 1, %s18
  %s21 = scalar_select 0, %s20, %s18
  $region1: #{decoder_forward.1} parent=0
    #allocation4 [shape = 'u8[65536]{0}', space=vmem, size = 0x10000, scoped, tag = 'input window, operand 1, single buffered']
    #allocation5 [shape = 's32[1]{0}', space=sflag, size = 0x4, scoped, tag = 'scoped memory for decoder_forward.1']
    #allocation6 [shape = 's32[1]{0}', space=sflag, size = 0x4, scoped, tag = 'scoped memory for decoder_forward.1']
    #allocation7 [shape = 'u8[16384]{0}', space=vmem, size = 0x4000, scoped, tag = 'input window, operand 2, single buffered']
    #allocation8 [shape = 's32[1]{0}', space=sflag, size = 0x4, scoped, tag = 'scoped memory for decoder_forward.1']
    #allocation9 [shape = 'u8[16384]{0}', space=vmem, size = 0x4000, scoped, tag = 'input window, operand 3, single buffered']
    #allocation10 [shape = 'u8[65536]{0}', space=vmem, size = 0x10000, scoped, tag = 'input window, operand 6, single buffered']
    #allocation11 [shape = 's32[1]{0}', space=sflag, size = 0x4, scoped, tag = 'scoped memory for decoder_forward.1']
    #allocation12 [shape = 'u8[16384]{0}', space=vmem, size = 0x4000, scoped, tag = 'input window, operand 11, single buffered']
    #allocation13 [shape = 'u8[32768]{0}', space=vmem, size = 0x8000, scoped, tag = 'output window, operand 0, single buffered']
    #allocation14 [shape = 'u8[32768]{0}', space=vmem, size = 0x8000, scoped, tag = 'output window, operand 1, single buffered']
    #allocation15 [shape = 's32[1]{0}', space=sflag, size = 0x4, scoped, tag = 'scoped memory for decoder_forward.1']
    #allocation16 [shape = 'u8[16384]{0}', space=vmem, size = 0x4000, scoped, tag = 'output window, operand 2, single buffered']
    #allocation17 [shape = 'u8[16384]{0}', space=vmem, size = 0x4000, scoped, tag = 'output window, operand 3, single buffered']
    #allocation18 [shape = 's32[1]{0}', space=sflag, size = 0x4, scoped, tag = 'scoped memory for decoder_forward.1']
    %22 = vsyncpa [#allocation5], 0
    %23 = vsyncpa [#allocation8], 0
    %24 = vsyncpa [#allocation11], 0
    %25 = vsyncpa [#allocation6], 0
    %26 = vsyncpa [#allocation15], 0
    %27 = vsyncpa [#allocation18], 0
    // Predicated region
    $region2: #{decoder_forward.1} parent=1 // pred_check
      _
    $region3: #{decoder_forward.1} parent=1 // pred_check_branch
      %29 = sbr.rel (0) target = $region5
    $region4: #{decoder_forward.1} parent=1 // pred_region
      _
    $region5: #{decoder_forward.1} parent=1 // pred_fallthru
      _
    // Predicated region
    $region6: #{decoder_forward.1} parent=1 // pred_check
      _
    $region7: #{decoder_forward.1} parent=1 // pred_check_branch
      %31 = sbr.rel (0) target = $region9
    $region8: #{decoder_forward.1} parent=1 // pred_region
      %33 = vsyncadd [#allocation5], 0
      %s34 = sshll.u32 %s1, 4
      %s35 = int_to_ptr.hbm [resolvable:$true] %s34
      %s36 = sshll.u32 [#allocation4], 4
      %s37 = int_to_ptr.vmem [resolvable:$true] %s36
      %42 = dma.hbm_to_vmem [thread:$0]  %s35, 2048, %s37, [#allocation5], 128, 128, 8
    $region9: #{decoder_forward.1} parent=1 // pred_fallthru
      _
    // Predicated region
    $region10: #{decoder_forward.1} parent=1 // pred_check
      _
    $region11: #{decoder_forward.1} parent=1 // pred_check_branch
      %44 = sbr.rel (0) target = $region13
    $region12: #{decoder_forward.1} parent=1 // pred_region
      %46 = vsyncadd [#allocation8], 0
      %s47 = sshll.u32 %s2, 4
      %s48 = int_to_ptr.hbm [resolvable:$true] %s47
      %s49 = sshll.u32 [#allocation7], 4
      %s50 = int_to_ptr.vmem [resolvable:$true] %s49
      %55 = dma.hbm_to_vmem [thread:$0]  %s48, 512, %s50, [#allocation8], 128, 128, 8
    $region13: #{decoder_forward.1} parent=1 // pred_fallthru
      _
    // Predicated region
    $region14: #{decoder_forward.1} parent=1 // pred_check
      _
    $region15: #{decoder_forward.1} parent=1 // pred_check_branch
      %57 = sbr.rel (0) target = $region17
    $region16: #{decoder_forward.1} parent=1 // pred_region
      %59 = vsyncadd [#allocation8], 0
      %s60 = sshll.u32 %s3, 4
      %s61 = int_to_ptr.hbm [resolvable:$true] %s60
      %s62 = sshll.u32 [#allocation9], 4
      %s63 = int_to_ptr.vmem [resolvable:$true] %s62
      %68 = dma.hbm_to_vmem [thread:$0]  %s61, 512, %s63, [#allocation8], 128, 128, 8
    $region17: #{decoder_forward.1} parent=1 // pred_fallthru
      _
    // Predicated region
    $region18: #{decoder_forward.1} parent=1 // pred_check
      _
    $region19: #{decoder_forward.1} parent=1 // pred_check_branch
      %70 = sbr.rel (0) target = $region21
    $region20: #{decoder_forward.1} parent=1 // pred_region
      _
    $region21: #{decoder_forward.1} parent=1 // pred_fallthru
      _
    // Predicated region
    $region22: #{decoder_forward.1} parent=1 // pred_check
      _
    $region23: #{decoder_forward.1} parent=1 // pred_check_branch
      %72 = sbr.rel (0) target = $region25
    $region24: #{decoder_forward.1} parent=1 // pred_region
      _
    $region25: #{decoder_forward.1} parent=1 // pred_fallthru
      _
    // Predicated region
    $region26: #{decoder_forward.1} parent=1 // pred_check
      _
    $region27: #{decoder_forward.1} parent=1 // pred_check_branch
      %74 = sbr.rel (0) target = $region29
    $region28: #{decoder_forward.1} parent=1 // pred_region
      %76 = vsyncadd [#allocation11], 0
      %s77 = sshll.u32 %s6, 4
      %s78 = int_to_ptr.hbm [resolvable:$true] %s77
      %s79 = sshll.u32 [#allocation10], 4
      %s80 = int_to_ptr.vmem [resolvable:$true] %s79
      %85 = dma.hbm_to_vmem [thread:$0]  %s78, 2048, %s80, [#allocation11], 128, 128, 8
    $region29: #{decoder_forward.1} parent=1 // pred_fallthru
      _
    // Predicated region
    $region30: #{decoder_forward.1} parent=1 // pred_check
      _
    $region31: #{decoder_forward.1} parent=1 // pred_check_branch
      %87 = sbr.rel (0) target = $region33
    $region32: #{decoder_forward.1} parent=1 // pred_region
      _
    $region33: #{decoder_forward.1} parent=1 // pred_fallthru
      _
    // Predicated region
    $region34: #{decoder_forward.1} parent=1 // pred_check
      _
    $region35: #{decoder_forward.1} parent=1 // pred_check_branch
      %89 = sbr.rel (0) target = $region37
    $region36: #{decoder_forward.1} parent=1 // pred_region
      _
    $region37: #{decoder_forward.1} parent=1 // pred_fallthru
      _
    // Predicated region
    $region38: #{decoder_forward.1} parent=1 // pred_check
      _
    $region39: #{decoder_forward.1} parent=1 // pred_check_branch
      %91 = sbr.rel (0) target = $region41
    $region40: #{decoder_forward.1} parent=1 // pred_region
      _
    $region41: #{decoder_forward.1} parent=1 // pred_fallthru
      _
    // Predicated region
    $region42: #{decoder_forward.1} parent=1 // pred_check
      _
    $region43: #{decoder_forward.1} parent=1 // pred_check_branch
      %93 = sbr.rel (0) target = $region45
    $region44: #{decoder_forward.1} parent=1 // pred_region
      _
    $region45: #{decoder_forward.1} parent=1 // pred_fallthru
      _
    // Predicated region
    $region46: #{decoder_forward.1} parent=1 // pred_check
      _
    $region47: #{decoder_forward.1} parent=1 // pred_check_branch
      %95 = sbr.rel (0) target = $region49
    $region48: #{decoder_forward.1} parent=1 // pred_region
      %97 = vsyncadd [#allocation11], 0
      %s98 = sshll.u32 %s11, 4
      %s99 = int_to_ptr.hbm [resolvable:$true] %s98
      %s100 = sshll.u32 [#allocation12], 4
      %s101 = int_to_ptr.vmem [resolvable:$true] %s100
      %106 = dma.hbm_to_vmem [thread:$0]  %s99, 512, %s101, [#allocation11], 128, 128, 8
    $region49: #{decoder_forward.1} parent=1 // pred_fallthru
      _
    // Predicated region
    $region50: #{decoder_forward.1} parent=1 // pred_check
      _
    $region51: #{decoder_forward.1} parent=1 // pred_check_branch
      %108 = sbr.rel (0) target = $region53
    $region52: #{decoder_forward.1} parent=1 // pred_region
      _
    $region53: #{decoder_forward.1} parent=1 // pred_fallthru
      _
    // Predicated region
    $region54: #{decoder_forward.1} parent=1 // pred_check
      _
    $region55: #{decoder_forward.1} parent=1 // pred_check_branch
      %110 = sbr.rel (0) target = $region57
    $region56: #{decoder_forward.1} parent=1 // pred_region
      %112 = dma.done [#allocation5], 2048
    $region57: #{decoder_forward.1} parent=1 // pred_fallthru
      _
    // Predicated region
    $region58: #{decoder_forward.1} parent=1 // pred_check
      _
    $region59: #{decoder_forward.1} parent=1 // pred_check_branch
      %114 = sbr.rel (0) target = $region61
    $region60: #{decoder_forward.1} parent=1 // pred_region
      %116 = dma.done [#allocation8], 512
    $region61: #{decoder_forward.1} parent=1 // pred_fallthru
      _
    // Predicated region
    $region62: #{decoder_forward.1} parent=1 // pred_check
      _
    $region63: #{decoder_forward.1} parent=1 // pred_check_branch
      %118 = sbr.rel (0) target = $region65
    $region64: #{decoder_forward.1} parent=1 // pred_region
      %120 = dma.done [#allocation8], 512
    $region65: #{decoder_forward.1} parent=1 // pred_fallthru
      _
    // Predicated region
    $region66: #{decoder_forward.1} parent=1 // pred_check
      _
    $region67: #{decoder_forward.1} parent=1 // pred_check_branch
      %122 = sbr.rel (0) target = $region69
    $region68: #{decoder_forward.1} parent=1 // pred_region
      %124 = dma.done [#allocation11], 2048
    $region69: #{decoder_forward.1} parent=1 // pred_fallthru
      _
    // Predicated region
    $region70: #{decoder_forward.1} parent=1 // pred_check
      _
    $region71: #{decoder_forward.1} parent=1 // pred_check_branch
      %126 = sbr.rel (0) target = $region73
    $region72: #{decoder_forward.1} parent=1 // pred_region
      %128 = dma.done [#allocation11], 512
    $region73: #{decoder_forward.1} parent=1 // pred_fallthru
      _
    %v129 = vld [vmem:[%s0] sm:$0xff]
    %v130 = vld [vmem:[%s0 + $0x8] sm:$0xff]
    %v131 = vld [vmem:[%s0 + $0x10] sm:$0xff]
    %v132 = vld [vmem:[%s0 + $0x18] sm:$0xff]
    %v133 = vld [vmem:[%s0 + $0x20] sm:$0xff]
    %v134 = vld [vmem:[%s0 + $0x28] sm:$0xff]
    %v135 = vld [vmem:[%s0 + $0x30] sm:$0xff]
    %v136 = vld [vmem:[%s0 + $0x38] sm:$0xff]
    %v137 = vlaneseq
    %v138 = vand.u32 %v137, 127
    %139 = vset.pattern.permute.xlu0 0
    %140 = vperm.xlu0 %139, %v129
    %v141 = vpop.permute.xlu0 %140
    %142 = vset.pattern.permute.xlu0 0
    %143 = vperm.xlu0 %142, %v130
    %v144 = vpop.permute.xlu0 %143
    %145 = vset.pattern.permute.xlu0 0
    %146 = vperm.xlu0 %145, %v131
    %v147 = vpop.permute.xlu0 %146
    %148 = vset.pattern.permute.xlu0 0
    %149 = vperm.xlu0 %148, %v132
    %v150 = vpop.permute.xlu0 %149
    %151 = vset.pattern.permute.xlu0 0
    %152 = vperm.xlu0 %151, %v133
    %v153 = vpop.permute.xlu0 %152
    %154 = vset.pattern.permute.xlu0 0
    %155 = vperm.xlu0 %154, %v134
    %v156 = vpop.permute.xlu0 %155
    %157 = vset.pattern.permute.xlu0 0
    %158 = vperm.xlu0 %157, %v135
    %v159 = vpop.permute.xlu0 %158
    %160 = vset.pattern.permute.xlu0 0
    %161 = vperm.xlu0 %160, %v136
    %v162 = vpop.permute.xlu0 %161
    %vm163 = vcmp.eq.s32.totalorder %v141, %v138
    %vm164 = vcmp.eq.s32.totalorder %v144, %v138
    %vm165 = vcmp.eq.s32.totalorder %v147, %v138
    %vm166 = vcmp.eq.s32.totalorder %v150, %v138
    %vm167 = vcmp.eq.s32.totalorder %v153, %v138
    %vm168 = vcmp.eq.s32.totalorder %v156, %v138
    %vm169 = vcmp.eq.s32.totalorder %v159, %v138
    %vm170 = vcmp.eq.s32.totalorder %v162, %v138
    %v171 = vsel %vm163, 1, 0
    %v172 = vsel %vm164, 1, 0
    %v173 = vsel %vm165, 1, 0
    %v174 = vsel %vm166, 1, 0
    %v175 = vsel %vm167, 1, 0
    %v176 = vsel %vm168, 1, 0
    %v177 = vsel %vm169, 1, 0
    %v178 = vsel %vm170, 1, 0
    %v179 = vcvt.s32.f32 %v171
    %v180 = vcvt.s32.f32 %v172
    %v181 = vcvt.s32.f32 %v173
    %v182 = vcvt.s32.f32 %v174
    %v183 = vcvt.s32.f32 %v175
    %v184 = vcvt.s32.f32 %v176
    %v185 = vcvt.s32.f32 %v177
    %v186 = vcvt.s32.f32 %v178
    %v187 = vld [vmem:[#allocation4] sm:$0xff]
    %v188 = vld [vmem:[#allocation4 + $0x8] sm:$0xff]
    %v189 = vld [vmem:[#allocation4 + $0x10] sm:$0xff]
    %v190 = vld [vmem:[#allocation4 + $0x18] sm:$0xff]
    %v191 = vld [vmem:[#allocation4 + $0x20] sm:$0xff]
    %v192 = vld [vmem:[#allocation4 + $0x28] sm:$0xff]
    %v193 = vld [vmem:[#allocation4 + $0x30] sm:$0xff]
    %v194 = vld [vmem:[#allocation4 + $0x38] sm:$0xff]
    %v195 = vld [vmem:[#allocation4 + $0x40] sm:$0xff]
    %v196 = vld [vmem:[#allocation4 + $0x48] sm:$0xff]
    %v197 = vld [vmem:[#allocation4 + $0x50] sm:$0xff]
    %v198 = vld [vmem:[#allocation4 + $0x58] sm:$0xff]
    %v199 = vld [vmem:[#allocation4 + $0x60] sm:$0xff]
    %v200 = vld [vmem:[#allocation4 + $0x68] sm:$0xff]
    %v201 = vld [vmem:[#allocation4 + $0x70] sm:$0xff]
    %v202 = vld [vmem:[#allocation4 + $0x78] sm:$0xff]
    %203 = vmatpush.msra.mxu0 %v202
    %204 = vmatpush.msra.mxu0 %v201
    %205 = vmatpush.msra.mxu0 %v200
    %206 = vmatpush.msra.mxu0 %v199
    %207 = vmatpush.msra.mxu0 %v198
    %208 = vmatpush.msra.mxu0 %v197
    %209 = vmatpush.msra.mxu0 %v196
    %210 = vmatpush.msra.mxu0 %v195
    %211 = vmatpush.msra.mxu0 %v194
    %212 = vmatpush.msra.mxu0 %v193
    %213 = vmatpush.msra.mxu0 %v192
    %214 = vmatpush.msra.mxu0 %v191
    %215 = vmatpush.msra.mxu0 %v190
    %216 = vmatpush.msra.mxu0 %v189
    %217 = vmatpush.msra.mxu0 %v188
    %218 = vmatpush.msra.mxu0 %v187
    %219 = vmatmul.f32.gmra.mxu0 %v179
    %v220 = vpop.f32.mrf.mxu0
    %v221 = vadd.f32 0.0, %v220
    %222 = vmatmul.f32.gmra.mxu0 %v180
    %v223 = vpop.f32.mrf.mxu0
    %v224 = vadd.f32 0.0, %v223
    %225 = vmatmul.f32.gmra.mxu0 %v181
    %v226 = vpop.f32.mrf.mxu0
    %v227 = vadd.f32 0.0, %v226
    %228 = vmatmul.f32.gmra.mxu0 %v182
    %v229 = vpop.f32.mrf.mxu0
    %v230 = vadd.f32 0.0, %v229
    %231 = vmatmul.f32.gmra.mxu0 %v183
    %v232 = vpop.f32.mrf.mxu0
    %v233 = vadd.f32 0.0, %v232
    %234 = vmatmul.f32.gmra.mxu0 %v184
    %v235 = vpop.f32.mrf.mxu0
    %v236 = vadd.f32 0.0, %v235
    %237 = vmatmul.f32.gmra.mxu0 %v185
    %v238 = vpop.f32.mrf.mxu0
    %v239 = vadd.f32 0.0, %v238
    %240 = vmatmul.f32.gmra.mxu0 %v186
    %v241 = vpop.f32.mrf.mxu0
    %v242 = vadd.f32 0.0, %v241
    %243 = vdwg.mxu0
    %vm244 = vcmask 261120
    %245 = vst.msk [vmem:[#allocation2] sm:$0xff] %vm244, %v221
    %246 = vst.msk [vmem:[#allocation2 + $0x8] sm:$0xff] %vm244, %v224
    %247 = vst.msk [vmem:[#allocation2 + $0x10] sm:$0xff] %vm244, %v227
    %248 = vst.msk [vmem:[#allocation2 + $0x18] sm:$0xff] %vm244, %v230
    %249 = vst.msk [vmem:[#allocation2 + $0x20] sm:$0xff] %vm244, %v233
    %250 = vst.msk [vmem:[#allocation2 + $0x28] sm:$0xff] %vm244, %v236
    %251 = vst.msk [vmem:[#allocation2 + $0x30] sm:$0xff] %vm244, %v239
    %252 = vst.msk [vmem:[#allocation2 + $0x38] sm:$0xff] %vm244, %v242
    %vm253 = vcmp.ne.s32.totalorder %v129, 1
    %vm254 = vcmp.ne.s32.totalorder %v130, 1
    %vm255 = vcmp.ne.s32.totalorder %v131, 1
    %vm256 = vcmp.ne.s32.totalorder %v132, 1
    %vm257 = vcmp.ne.s32.totalorder %v133, 1
    %vm258 = vcmp.ne.s32.totalorder %v134, 1
    %vm259 = vcmp.ne.s32.totalorder %v135, 1
    %vm260 = vcmp.ne.s32.totalorder %v136, 1
    %v261 = vsel %vm253, 1, 0
    %v262 = vsel %vm254, 1, 0
    %v263 = vsel %vm255, 1, 0
    %v264 = vsel %vm256, 1, 0
    %v265 = vsel %vm257, 1, 0
    %v266 = vsel %vm258, 1, 0
    %v267 = vsel %vm259, 1, 0
    %v268 = vsel %vm260, 1, 0
    %vm269 = vcmask 7168
    %v270 = vsel %vm269, %v261, 0
    %v271 = vsel %vm269, %v262, 0
    %v272 = vsel %vm269, %v263, 0
    %v273 = vsel %vm269, %v264, 0
    %v274 = vsel %vm269, %v265, 0
    %v275 = vadd.s32 %v270, %v274
    %v276 = vsel %vm269, %v266, 0
    %v277 = vadd.s32 %v271, %v276
    %v278 = vsel %vm269, %v267, 0
    %v279 = vadd.s32 %v272, %v278
    %v280 = vsel %vm269, %v268, 0
    %v281 = vadd.s32 %v273, %v280
    %v282 = vadd.s32 %v275, %v277
    %v283 = vadd.s32 %v279, %v281
    %v284 = vadd.s32 %v282, %v283
    %v285 = vld [vmem:[#allocation10] sm:$0xff]
    %v286 = vld [vmem:[#allocation10 + $0x8] sm:$0xff]
    %v287 = vld [vmem:[#allocation10 + $0x10] sm:$0xff]
    %v288 = vld [vmem:[#allocation10 + $0x18] sm:$0xff]
    %v289 = vld [vmem:[%s7] sm:$0xff]
    %v290 = vld [vmem:[%s7 + $0x8] sm:$0xff]
    %v291 = vld [vmem:[%s7 + $0x10] sm:$0xff]
    %v292 = vld [vmem:[%s7 + $0x18] sm:$0xff]
    %v293 = vld [vmem:[%s8] sm:$0x1]
    %v294 = vld [vmem:[#allocation2] sm:$0xff]
    %v295 = vld [vmem:[#allocation2 + $0x8] sm:$0xff]
    %v296 = vld [vmem:[#allocation2 + $0x10] sm:$0xff]
    %v297 = vld [vmem:[#allocation2 + $0x18] sm:$0xff]
    %v298 = vld [vmem:[#allocation2 + $0x20] sm:$0xff]
    %v299 = vld [vmem:[#allocation2 + $0x28] sm:$0xff]
    %v300 = vld [vmem:[#allocation2 + $0x30] sm:$0xff]
    %v301 = vld [vmem:[#allocation2 + $0x38] sm:$0xff]
    %v303 = vperm.slane %v293, 0
    %v306 = vsel %vm244, %v294, 0
    %v309 = vsel %vm244, %v295, 0
    %v312 = vsel %vm244, %v296, 0
    %v315 = vsel %vm244, %v297, 0
    %v318 = vsel %vm244, %v298, 0
    %v321 = vsel %vm244, %v299, 0
    %v324 = vsel %vm244, %v300, 0
    %v327 = vsel %vm244, %v301, 0
    %329 = vmatpush.msra.mxu0 0.0
    %330 = vmatpush.msra.mxu0 0.0
    %331 = vmatpush.msra.mxu0 0.0
    %332 = vmatpush.msra.mxu0 0.0
    %333 = vmatpush.msra.mxu0 0.0
    %334 = vmatpush.msra.mxu0 0.0
    %335 = vmatpush.msra.mxu0 0.0
    %336 = vmatpush.msra.mxu0 0.0
    %337 = vmatpush.msra.mxu0 0.0
    %338 = vmatpush.msra.mxu0 0.0
    %339 = vmatpush.msra.mxu0 0.0
    %340 = vmatpush.msra.mxu0 0.0
    %341 = vmatpush.msra.mxu0 %v288
    %342 = vmatpush.msra.mxu0 %v287
    %343 = vmatpush.msra.mxu0 %v286
    %344 = vmatpush.msra.mxu0 %v285
    %345 = vmatmul.f32.gmra.mxu0 %v306
    %v346 = vpop.f32.mrf.mxu0
    %v347 = vadd.f32 %v303, %v346
    %348 = vmatmul.f32.gmra.mxu0 %v309
    %v349 = vpop.f32.mrf.mxu0
    %v350 = vadd.f32 %v303, %v349
    %351 = vmatmul.f32.gmra.mxu0 %v312
    %v352 = vpop.f32.mrf.mxu0
    %v353 = vadd.f32 %v303, %v352
    %354 = vmatmul.f32.gmra.mxu0 %v315
    %v355 = vpop.f32.mrf.mxu0
    %v356 = vadd.f32 %v303, %v355
    %357 = vmatmul.f32.gmra.mxu0 %v318
    %v358 = vpop.f32.mrf.mxu0
    %v359 = vadd.f32 %v303, %v358
    %360 = vmatmul.f32.gmra.mxu0 %v321
    %v361 = vpop.f32.mrf.mxu0
    %v362 = vadd.f32 %v303, %v361
    %363 = vmatmul.f32.gmra.mxu0 %v324
    %v364 = vpop.f32.mrf.mxu0
    %v365 = vadd.f32 %v303, %v364
    %366 = vmatmul.f32.gmra.mxu0 %v327
    %v367 = vpop.f32.mrf.mxu0
    %v368 = vadd.f32 %v303, %v367
    %369 = vdwg.mxu0
    %370 = vst [vmem:[#allocation3] sm:$0xff] %v347
    %371 = vst [vmem:[#allocation3 + $0x8] sm:$0xff] %v350
    %372 = vst [vmem:[#allocation3 + $0x10] sm:$0xff] %v353
    %373 = vst [vmem:[#allocation3 + $0x18] sm:$0xff] %v356
    %374 = vst [vmem:[#allocation3 + $0x20] sm:$0xff] %v359
    %375 = vst [vmem:[#allocation3 + $0x28] sm:$0xff] %v362
    %376 = vst [vmem:[#allocation3 + $0x30] sm:$0xff] %v365
    %377 = vst [vmem:[#allocation3 + $0x38] sm:$0xff] %v368
    %v378 = vld [vmem:[#allocation7] sm:$0xff]
    %v379 = vld [vmem:[#allocation9] sm:$0xff]
    %v380 = vld [vmem:[#allocation3] sm:$0xff]
    %v382 = vsel %vm244, %v378, 0
    %384 = vmatpush.msra.mxu0 0.0
    %385 = vmatpush.msra.mxu0 0.0
    %386 = vmatpush.msra.mxu0 0.0
    %387 = vmatpush.msra.mxu0 0.0
    %388 = vmatpush.msra.mxu0 0.0
    %389 = vmatpush.msra.mxu0 0.0
    %390 = vmatpush.msra.mxu0 0.0
    %391 = vmatpush.msra.mxu0 0.0
    %392 = vmatpush.msra.mxu0 0.0
    %393 = vmatpush.msra.mxu0 0.0
    %394 = vmatpush.msra.mxu0 0.0
    %395 = vmatpush.msra.mxu0 0.0
    %396 = vmatpush.msra.mxu0 %v292
    %397 = vmatpush.msra.mxu0 %v291
    %398 = vmatpush.msra.mxu0 %v290
    %399 = vmatpush.msra.mxu0 %v289
    %400 = vmatmul.f32.gmra.mxu0 %v382
    %v401 = vpop.f32.mrf.mxu0
    %v402 = vadd.f32 0.0, %v401
    %403 = vdwg.mxu0
    %v404 = vadd.f32 %v380, %v402
    %v405 = vxor.u32 %v404, 2147483648
    %v406 = vmul.f32 %v405, 1.442695
    %v407 = vpow.pop %v406
    %v408 = vadd.f32 %v407, 1.0
    %v409 = vrcp.pop %v408
    %v410 = vmul.f32 %v408, %v409
    %v411 = vsub.f32 1.0, %v410
    %v412 = vmul.f32 %v409, %v411
    %v413 = vadd.f32 %v409, %v412
    %vm414 = vweird.f32 %v408
    %vm415 = vweird.f32 %v409
    %vm416 = vmor %vm414, %vm415
    %v417 = vsel %vm416, %v409, %v413
    %v418 = vand.u32 2147483647, %v408
    %vm419 = vcmp.eq.f32.partialorder %v418, 8.507059e+37
    %v420 = vand.u32 %v408, 2147483648
    %v421 = vor.u32 1.1754944e-38, %v420
    %v422 = vsel %vm419, %v421, %v417
    %v423 = vmul.f32 1.0, %v422
    %v424 = vmul.f32 %v423, 2.0
    %v425 = vsub.f32 %v424, 1.0
    %427 = vrot.lane.b32.xlu0 %v379, 32
    %v428 = vpop.permute.xlu0 %427
    %v430 = vmul.f32 %v423, %v428
    %432 = vrot.lane.b32.xlu0 %v425, 64
    %v433 = vpop.permute.xlu0 %432
    %v435 = vmul.f32 %v423, %v433
    %437 = vrot.lane.b32.xlu0 %v435, 32
    %v438 = vpop.permute.xlu0 %437
    %v440 = vadd.f32 %v430, %v438
    %v441 = vtanh.pop %v440
    %443 = vrot.lane.b32.xlu0 %v441, 64
    %v444 = vpop.permute.xlu0 %443
    %v446 = vmul.f32 %v423, %v444
    %vm447 = vcmp.gt.s32.totalorder %v284, 0
    %v448 = vsel %vm447, 1, 0
    %449 = vset.pattern.permute.xlu0 0
    %450 = vperm.xlu0 %449, %v448
    %v451 = vpop.permute.xlu0 %450
    %vm452 = vcmp.eq.s32.totalorder %v451, 1
    %453 = vrot.lane.b32.xlu0 %v378, 96
    %v454 = vpop.permute.xlu0 %453
    %v456 = vsel %vm452, %v446, %v454
    %v457 = vsel %vm452, %v440, %v428
    %459 = vrot.lane.b32.xlu0 %v446, 32
    %v460 = vpop.permute.xlu0 %459
    %462 = vst.msk [vmem:[#allocation2] sm:$0xff] %vm244, %v460
    %s463 = scalar_lea.vmem [#allocation3], 8
    %v464 = vld [vmem:[%s463] sm:$0xff]
    %466 = vrot.lane.b32.xlu0 %v456, 32
    %v467 = vpop.permute.xlu0 %466
    %v468 = vsel %vm244, %v467, 0
    %470 = vmatpush.msra.mxu0 0.0
    %471 = vmatpush.msra.mxu0 0.0
    %472 = vmatpush.msra.mxu0 0.0
    %473 = vmatpush.msra.mxu0 0.0
    %474 = vmatpush.msra.mxu0 0.0
    %475 = vmatpush.msra.mxu0 0.0
    %476 = vmatpush.msra.mxu0 0.0
    %477 = vmatpush.msra.mxu0 0.0
    %478 = vmatpush.msra.mxu0 0.0
    %479 = vmatpush.msra.mxu0 0.0
    %480 = vmatpush.msra.mxu0 0.0
    %481 = vmatpush.msra.mxu0 0.0
    %482 = vmatpush.msra.mxu0 %v292
    %483 = vmatpush.msra.mxu0 %v291
    %484 = vmatpush.msra.mxu0 %v290
    %485 = vmatpush.msra.mxu0 %v289
    %486 = vmatmul.f32.gmra.mxu0 %v468
    %v487 = vpop.f32.mrf.mxu0
    %v488 = vadd.f32 0.0, %v487
    %489 = vdwg.mxu0
    %v490 = vadd.f32 %v464, %v488
    %v491 = vxor.u32 %v490, 2147483648
    %v492 = vmul.f32 %v491, 1.442695
    %v493 = vpow.pop %v492
    %v494 = vadd.f32 %v493, 1.0
    %v495 = vrcp.pop %v494
    %v496 = vmul.f32 %v494, %v495
    %v497 = vsub.f32 1.0, %v496
    %v498 = vmul.f32 %v495, %v497
    %v499 = vadd.f32 %v495, %v498
    %vm500 = vweird.f32 %v494
    %vm501 = vweird.f32 %v495
    %vm502 = vmor %vm500, %vm501
    %v503 = vsel %vm502, %v495, %v499
    %v504 = vand.u32 2147483647, %v494
    %vm505 = vcmp.eq.f32.partialorder %v504, 8.507059e+37
    %v506 = vand.u32 %v494, 2147483648
    %v507 = vor.u32 1.1754944e-38, %v506
    %v508 = vsel %vm505, %v507, %v503
    %v509 = vmul.f32 1.0, %v508
    %v510 = vmul.f32 %v509, 2.0
    %v511 = vsub.f32 %v510, 1.0
    %v512 = vmul.f32 %v509, %v457
    %514 = vrot.lane.b32.xlu0 %v511, 64
    %v515 = vpop.permute.xlu0 %514
    %v517 = vmul.f32 %v509, %v515
    %519 = vrot.lane.b32.xlu0 %v517, 32
    %v520 = vpop.permute.xlu0 %519
    %v522 = vadd.f32 %v512, %v520
    %v523 = vtanh.pop %v522
    %525 = vrot.lane.b32.xlu0 %v523, 64
    %v526 = vpop.permute.xlu0 %525
    %v528 = vmul.f32 %v509, %v526
    %vm529 = vcmp.gt.s32.totalorder %v284, 1
    %v530 = vsel %vm529, 1, 0
    %531 = vset.pattern.permute.xlu0 0
    %532 = vperm.xlu0 %531, %v530
    %v533 = vpop.permute.xlu0 %532
    %vm534 = vcmp.eq.s32.totalorder %v533, 1
    %v535 = vsel %vm534, %v528, %v456
    %v536 = vsel %vm534, %v522, %v457
    %538 = vrot.lane.b32.xlu0 %v528, 32
    %v539 = vpop.permute.xlu0 %538
    %s541 = scalar_lea.vmem [#allocation2], 8
    %542 = vst.msk [vmem:[%s541] sm:$0xff] %vm244, %v539
    %s543 = scalar_lea.vmem [#allocation3], 16
    %v544 = vld [vmem:[%s543] sm:$0xff]
    %546 = vrot.lane.b32.xlu0 %v535, 32
    %v547 = vpop.permute.xlu0 %546
    %v548 = vsel %vm244, %v547, 0
    %550 = vmatpush.msra.mxu0 0.0
    %551 = vmatpush.msra.mxu0 0.0
    %552 = vmatpush.msra.mxu0 0.0
    %553 = vmatpush.msra.mxu0 0.0
    %554 = vmatpush.msra.mxu0 0.0
    %555 = vmatpush.msra.mxu0 0.0
    %556 = vmatpush.msra.mxu0 0.0
    %557 = vmatpush.msra.mxu0 0.0
    %558 = vmatpush.msra.mxu0 0.0
    %559 = vmatpush.msra.mxu0 0.0
    %560 = vmatpush.msra.mxu0 0.0
    %561 = vmatpush.msra.mxu0 0.0
    %562 = vmatpush.msra.mxu0 %v292
    %563 = vmatpush.msra.mxu0 %v291
    %564 = vmatpush.msra.mxu0 %v290
    %565 = vmatpush.msra.mxu0 %v289
    %566 = vmatmul.f32.gmra.mxu0 %v548
    %v567 = vpop.f32.mrf.mxu0
    %v568 = vadd.f32 0.0, %v567
    %569 = vdwg.mxu0
    %v570 = vadd.f32 %v544, %v568
    %v571 = vxor.u32 %v570, 2147483648
    %v572 = vmul.f32 %v571, 1.442695
    %v573 = vpow.pop %v572
    %v574 = vadd.f32 %v573, 1.0
    %v575 = vrcp.pop %v574
    %v576 = vmul.f32 %v574, %v575
    %v577 = vsub.f32 1.0, %v576
    %v578 = vmul.f32 %v575, %v577
    %v579 = vadd.f32 %v575, %v578
    %vm580 = vweird.f32 %v574
    %vm581 = vweird.f32 %v575
    %vm582 = vmor %vm580, %vm581
    %v583 = vsel %vm582, %v575, %v579
    %v584 = vand.u32 2147483647, %v574
    %vm585 = vcmp.eq.f32.partialorder %v584, 8.507059e+37
    %v586 = vand.u32 %v574, 2147483648
    %v587 = vor.u32 1.1754944e-38, %v586
    %v588 = vsel %vm585, %v587, %v583
    %v589 = vmul.f32 1.0, %v588
    %v590 = vmul.f32 %v589, 2.0
    %v591 = vsub.f32 %v590, 1.0
    %v592 = vmul.f32 %v589, %v536
    %594 = vrot.lane.b32.xlu0 %v591, 64
    %v595 = vpop.permute.xlu0 %594
    %v597 = vmul.f32 %v589, %v595
    %599 = vrot.lane.b32.xlu0 %v597, 32
    %v600 = vpop.permute.xlu0 %599
    %v602 = vadd.f32 %v592, %v600
    %v603 = vtanh.pop %v602
    %605 = vrot.lane.b32.xlu0 %v603, 64
    %v606 = vpop.permute.xlu0 %605
    %v608 = vmul.f32 %v589, %v606
    %vm609 = vcmp.gt.s32.totalorder %v284, 2
    %v610 = vsel %vm609, 1, 0
    %611 = vset.pattern.permute.xlu0 0
    %612 = vperm.xlu0 %611, %v610
    %v613 = vpop.permute.xlu0 %612
    %vm614 = vcmp.eq.s32.totalorder %v613, 1
    %v615 = vsel %vm614, %v608, %v535
    %v616 = vsel %vm614, %v602, %v536
    %618 = vrot.lane.b32.xlu0 %v608, 32
    %v619 = vpop.permute.xlu0 %618
    %s621 = scalar_lea.vmem [#allocation2], 16
    %622 = vst.msk [vmem:[%s621] sm:$0xff] %vm244, %v619
    %s623 = scalar_lea.vmem [#allocation3], 24
    %v624 = vld [vmem:[%s623] sm:$0xff]
    %626 = vrot.lane.b32.xlu0 %v615, 32
    %v627 = vpop.permute.xlu0 %626
    %v628 = vsel %vm244, %v627, 0
    %630 = vmatpush.msra.mxu0 0.0
    %631 = vmatpush.msra.mxu0 0.0
    %632 = vmatpush.msra.mxu0 0.0
    %633 = vmatpush.msra.mxu0 0.0
    %634 = vmatpush.msra.mxu0 0.0
    %635 = vmatpush.msra.mxu0 0.0
    %636 = vmatpush.msra.mxu0 0.0
    %637 = vmatpush.msra.mxu0 0.0
    %638 = vmatpush.msra.mxu0 0.0
    %639 = vmatpush.msra.mxu0 0.0
    %640 = vmatpush.msra.mxu0 0.0
    %641 = vmatpush.msra.mxu0 0.0
    %642 = vmatpush.msra.mxu0 %v292
    %643 = vmatpush.msra.mxu0 %v291
    %644 = vmatpush.msra.mxu0 %v290
    %645 = vmatpush.msra.mxu0 %v289
    %646 = vmatmul.f32.gmra.mxu0 %v628
    %v647 = vpop.f32.mrf.mxu0
    %v648 = vadd.f32 0.0, %v647
    %649 = vdwg.mxu0
    %v650 = vadd.f32 %v624, %v648
    %v651 = vxor.u32 %v650, 2147483648
    %v652 = vmul.f32 %v651, 1.442695
    %v653 = vpow.pop %v652
    %v654 = vadd.f32 %v653, 1.0
    %v655 = vrcp.pop %v654
    %v656 = vmul.f32 %v654, %v655
    %v657 = vsub.f32 1.0, %v656
    %v658 = vmul.f32 %v655, %v657
    %v659 = vadd.f32 %v655, %v658
    %vm660 = vweird.f32 %v654
    %vm661 = vweird.f32 %v655
    %vm662 = vmor %vm660, %vm661
    %v663 = vsel %vm662, %v655, %v659
    %v664 = vand.u32 2147483647, %v654
    %vm665 = vcmp.eq.f32.partialorder %v664, 8.507059e+37
    %v666 = vand.u32 %v654, 2147483648
    %v667 = vor.u32 1.1754944e-38, %v666
    %v668 = vsel %vm665, %v667, %v663
    %v669 = vmul.f32 1.0, %v668
    %v670 = vmul.f32 %v669, 2.0
    %v671 = vsub.f32 %v670, 1.0
    %v672 = vmul.f32 %v669, %v616
    %674 = vrot.lane.b32.xlu0 %v671, 64
    %v675 = vpop.permute.xlu0 %674
    %v677 = vmul.f32 %v669, %v675
    %679 = vrot.lane.b32.xlu0 %v677, 32
    %v680 = vpop.permute.xlu0 %679
    %v682 = vadd.f32 %v672, %v680
    %v683 = vtanh.pop %v682
    %685 = vrot.lane.b32.xlu0 %v683, 64
    %v686 = vpop.permute.xlu0 %685
    %v688 = vmul.f32 %v669, %v686
    %vm689 = vcmp.gt.s32.totalorder %v284, 3
    %v690 = vsel %vm689, 1, 0
    %691 = vset.pattern.permute.xlu0 0
    %692 = vperm.xlu0 %691, %v690
    %v693 = vpop.permute.xlu0 %692
    %vm694 = vcmp.eq.s32.totalorder %v693, 1
    %v695 = vsel %vm694, %v688, %v615
    %v696 = vsel %vm694, %v682, %v616
    %698 = vrot.lane.b32.xlu0 %v688, 32
    %v699 = vpop.permute.xlu0 %698
    %s701 = scalar_lea.vmem [#allocation2], 24
    %702 = vst.msk [vmem:[%s701] sm:$0xff] %vm244, %v699
    %s703 = scalar_lea.vmem [#allocation3], 32
    %v704 = vld [vmem:[%s703] sm:$0xff]
    %706 = vrot.lane.b32.xlu0 %v695, 32
    %v707 = vpop.permute.xlu0 %706
    %v708 = vsel %vm244, %v707, 0
    %710 = vmatpush.msra.mxu0 0.0
    %711 = vmatpush.msra.mxu0 0.0
    %712 = vmatpush.msra.mxu0 0.0
    %713 = vmatpush.msra.mxu0 0.0
    %714 = vmatpush.msra.mxu0 0.0
    %715 = vmatpush.msra.mxu0 0.0
    %716 = vmatpush.msra.mxu0 0.0
    %717 = vmatpush.msra.mxu0 0.0
    %718 = vmatpush.msra.mxu0 0.0
    %719 = vmatpush.msra.mxu0 0.0
    %720 = vmatpush.msra.mxu0 0.0
    %721 = vmatpush.msra.mxu0 0.0
    %722 = vmatpush.msra.mxu0 %v292
    %723 = vmatpush.msra.mxu0 %v291
    %724 = vmatpush.msra.mxu0 %v290
    %725 = vmatpush.msra.mxu0 %v289
    %726 = vmatmul.f32.gmra.mxu0 %v708
    %v727 = vpop.f32.mrf.mxu0
    %v728 = vadd.f32 0.0, %v727
    %729 = vdwg.mxu0
    %v730 = vadd.f32 %v704, %v728
    %v731 = vxor.u32 %v730, 2147483648
    %v732 = vmul.f32 %v731, 1.442695
    %v733 = vpow.pop %v732
    %v734 = vadd.f32 %v733, 1.0
    %v735 = vrcp.pop %v734
    %v736 = vmul.f32 %v734, %v735
    %v737 = vsub.f32 1.0, %v736
    %v738 = vmul.f32 %v735, %v737
    %v739 = vadd.f32 %v735, %v738
    %vm740 = vweird.f32 %v734
    %vm741 = vweird.f32 %v735
    %vm742 = vmor %vm740, %vm741
    %v743 = vsel %vm742, %v735, %v739
    %v744 = vand.u32 2147483647, %v734
    %vm745 = vcmp.eq.f32.partialorder %v744, 8.507059e+37
    %v746 = vand.u32 %v734, 2147483648
    %v747 = vor.u32 1.1754944e-38, %v746
    %v748 = vsel %vm745, %v747, %v743
    %v749 = vmul.f32 1.0, %v748
    %v750 = vmul.f32 %v749, 2.0
    %v751 = vsub.f32 %v750, 1.0
    %v752 = vmul.f32 %v749, %v696
    %754 = vrot.lane.b32.xlu0 %v751, 64
    %v755 = vpop.permute.xlu0 %754
    %v757 = vmul.f32 %v749, %v755
    %759 = vrot.lane.b32.xlu0 %v757, 32
    %v760 = vpop.permute.xlu0 %759
    %v762 = vadd.f32 %v752, %v760
    %v763 = vtanh.pop %v762
    %765 = vrot.lane.b32.xlu0 %v763, 64
    %v766 = vpop.permute.xlu0 %765
    %v768 = vmul.f32 %v749, %v766
    %vm769 = vcmp.gt.s32.totalorder %v284, 4
    %v770 = vsel %vm769, 1, 0
    %771 = vset.pattern.permute.xlu0 0
    %772 = vperm.xlu0 %771, %v770
    %v773 = vpop.permute.xlu0 %772
    %vm774 = vcmp.eq.s32.totalorder %v773, 1
    %v775 = vsel %vm774, %v768, %v695
    %v776 = vsel %vm774, %v762, %v696
    %778 = vrot.lane.b32.xlu0 %v768, 32
    %v779 = vpop.permute.xlu0 %778
    %s781 = scalar_lea.vmem [#allocation2], 32
    %782 = vst.msk [vmem:[%s781] sm:$0xff] %vm244, %v779
    %s783 = scalar_lea.vmem [#allocation3], 40
    %v784 = vld [vmem:[%s783] sm:$0xff]
    %786 = vrot.lane.b32.xlu0 %v775, 32
    %v787 = vpop.permute.xlu0 %786
    %v788 = vsel %vm244, %v787, 0
    %790 = vmatpush.msra.mxu0 0.0
    %791 = vmatpush.msra.mxu0 0.0
    %792 = vmatpush.msra.mxu0 0.0
    %793 = vmatpush.msra.mxu0 0.0
    %794 = vmatpush.msra.mxu0 0.0
    %795 = vmatpush.msra.mxu0 0.0
    %796 = vmatpush.msra.mxu0 0.0
    %797 = vmatpush.msra.mxu0 0.0
    %798 = vmatpush.msra.mxu0 0.0
    %799 = vmatpush.msra.mxu0 0.0
    %800 = vmatpush.msra.mxu0 0.0
    %801 = vmatpush.msra.mxu0 0.0
    %802 = vmatpush.msra.mxu0 %v292
    %803 = vmatpush.msra.mxu0 %v291
    %804 = vmatpush.msra.mxu0 %v290
    %805 = vmatpush.msra.mxu0 %v289
    %806 = vmatmul.f32.gmra.mxu0 %v788
    %v807 = vpop.f32.mrf.mxu0
    %v808 = vadd.f32 0.0, %v807
    %809 = vdwg.mxu0
    %v810 = vadd.f32 %v784, %v808
    %v811 = vxor.u32 %v810, 2147483648
    %v812 = vmul.f32 %v811, 1.442695
    %v813 = vpow.pop %v812
    %v814 = vadd.f32 %v813, 1.0
    %v815 = vrcp.pop %v814
    %v816 = vmul.f32 %v814, %v815
    %v817 = vsub.f32 1.0, %v816
    %v818 = vmul.f32 %v815, %v817
    %v819 = vadd.f32 %v815, %v818
    %vm820 = vweird.f32 %v814
    %vm821 = vweird.f32 %v815
    %vm822 = vmor %vm820, %vm821
    %v823 = vsel %vm822, %v815, %v819
    %v824 = vand.u32 2147483647, %v814
    %vm825 = vcmp.eq.f32.partialorder %v824, 8.507059e+37
    %v826 = vand.u32 %v814, 2147483648
    %v827 = vor.u32 1.1754944e-38, %v826
    %v828 = vsel %vm825, %v827, %v823
    %v829 = vmul.f32 1.0, %v828
    %v830 = vmul.f32 %v829, 2.0
    %v831 = vsub.f32 %v830, 1.0
    %v832 = vmul.f32 %v829, %v776
    %834 = vrot.lane.b32.xlu0 %v831, 64
    %v835 = vpop.permute.xlu0 %834
    %v837 = vmul.f32 %v829, %v835
    %839 = vrot.lane.b32.xlu0 %v837, 32
    %v840 = vpop.permute.xlu0 %839
    %v842 = vadd.f32 %v832, %v840
    %v843 = vtanh.pop %v842
    %845 = vrot.lane.b32.xlu0 %v843, 64
    %v846 = vpop.permute.xlu0 %845
    %v848 = vmul.f32 %v829, %v846
    %vm849 = vcmp.gt.s32.totalorder %v284, 5
    %v850 = vsel %vm849, 1, 0
    %851 = vset.pattern.permute.xlu0 0
    %852 = vperm.xlu0 %851, %v850
    %v853 = vpop.permute.xlu0 %852
    %vm854 = vcmp.eq.s32.totalorder %v853, 1
    %v855 = vsel %vm854, %v848, %v775
    %v856 = vsel %vm854, %v842, %v776
    %858 = vrot.lane.b32.xlu0 %v848, 32
    %v859 = vpop.permute.xlu0 %858
    %s861 = scalar_lea.vmem [#allocation2], 40
    %862 = vst.msk [vmem:[%s861] sm:$0xff] %vm244, %v859
    %s863 = scalar_lea.vmem [#allocation3], 48
    %v864 = vld [vmem:[%s863] sm:$0xff]
    %866 = vrot.lane.b32.xlu0 %v855, 32
    %v867 = vpop.permute.xlu0 %866
    %v868 = vsel %vm244, %v867, 0
    %870 = vmatpush.msra.mxu0 0.0
    %871 = vmatpush.msra.mxu0 0.0
    %872 = vmatpush.msra.mxu0 0.0
    %873 = vmatpush.msra.mxu0 0.0
    %874 = vmatpush.msra.mxu0 0.0
    %875 = vmatpush.msra.mxu0 0.0
    %876 = vmatpush.msra.mxu0 0.0
    %877 = vmatpush.msra.mxu0 0.0
    %878 = vmatpush.msra.mxu0 0.0
    %879 = vmatpush.msra.mxu0 0.0
    %880 = vmatpush.msra.mxu0 0.0
    %881 = vmatpush.msra.mxu0 0.0
    %882 = vmatpush.msra.mxu0 %v292
    %883 = vmatpush.msra.mxu0 %v291
    %884 = vmatpush.msra.mxu0 %v290
    %885 = vmatpush.msra.mxu0 %v289
    %886 = vmatmul.f32.gmra.mxu0 %v868
    %v887 = vpop.f32.mrf.mxu0
    %v888 = vadd.f32 0.0, %v887
    %889 = vdwg.mxu0
    %v890 = vadd.f32 %v864, %v888
    %v891 = vxor.u32 %v890, 2147483648
    %v892 = vmul.f32 %v891, 1.442695
    %v893 = vpow.pop %v892
    %v894 = vadd.f32 %v893, 1.0
    %v895 = vrcp.pop %v894
    %v896 = vmul.f32 %v894, %v895
    %v897 = vsub.f32 1.0, %v896
    %v898 = vmul.f32 %v895, %v897
    %v899 = vadd.f32 %v895, %v898
    %vm900 = vweird.f32 %v894
    %vm901 = vweird.f32 %v895
    %vm902 = vmor %vm900, %vm901
    %v903 = vsel %vm902, %v895, %v899
    %v904 = vand.u32 2147483647, %v894
    %vm905 = vcmp.eq.f32.partialorder %v904, 8.507059e+37
    %v906 = vand.u32 %v894, 2147483648
    %v907 = vor.u32 1.1754944e-38, %v906
    %v908 = vsel %vm905, %v907, %v903
    %v909 = vmul.f32 1.0, %v908
    %v910 = vmul.f32 %v909, 2.0
    %v911 = vsub.f32 %v910, 1.0
    %v912 = vmul.f32 %v909, %v856
    %914 = vrot.lane.b32.xlu0 %v911, 64
    %v915 = vpop.permute.xlu0 %914
    %v917 = vmul.f32 %v909, %v915
    %919 = vrot.lane.b32.xlu0 %v917, 32
    %v920 = vpop.permute.xlu0 %919
    %v922 = vadd.f32 %v912, %v920
    %v923 = vtanh.pop %v922
    %925 = vrot.lane.b32.xlu0 %v923, 64
    %v926 = vpop.permute.xlu0 %925
    %v928 = vmul.f32 %v909, %v926
    %vm929 = vcmp.gt.s32.totalorder %v284, 6
    %v930 = vsel %vm929, 1, 0
    %931 = vset.pattern.permute.xlu0 0
    %932 = vperm.xlu0 %931, %v930
    %v933 = vpop.permute.xlu0 %932
    %vm934 = vcmp.eq.s32.totalorder %v933, 1
    %v935 = vsel %vm934, %v928, %v855
    %v936 = vsel %vm934, %v922, %v856
    %938 = vrot.lane.b32.xlu0 %v928, 32
    %v939 = vpop.permute.xlu0 %938
    %s941 = scalar_lea.vmem [#allocation2], 48
    %942 = vst.msk [vmem:[%s941] sm:$0xff] %vm244, %v939
    %s943 = scalar_lea.vmem [#allocation3], 56
    %v944 = vld [vmem:[%s943] sm:$0xff]
    %946 = vrot.lane.b32.xlu0 %v935, 32
    %v947 = vpop.permute.xlu0 %946
    %v948 = vsel %vm244, %v947, 0
    %950 = vmatpush.msra.mxu0 0.0
    %951 = vmatpush.msra.mxu0 0.0
    %952 = vmatpush.msra.mxu0 0.0
    %953 = vmatpush.msra.mxu0 0.0
    %954 = vmatpush.msra.mxu0 0.0
    %955 = vmatpush.msra.mxu0 0.0
    %956 = vmatpush.msra.mxu0 0.0
    %957 = vmatpush.msra.mxu0 0.0
    %958 = vmatpush.msra.mxu0 0.0
    %959 = vmatpush.msra.mxu0 0.0
    %960 = vmatpush.msra.mxu0 0.0
    %961 = vmatpush.msra.mxu0 0.0
    %962 = vmatpush.msra.mxu0 %v292
    %963 = vmatpush.msra.mxu0 %v291
    %964 = vmatpush.msra.mxu0 %v290
    %965 = vmatpush.msra.mxu0 %v289
    %966 = vmatmul.f32.gmra.mxu0 %v948
    %v967 = vpop.f32.mrf.mxu0
    %v968 = vadd.f32 0.0, %v967
    %969 = vdwg.mxu0
    %v970 = vadd.f32 %v944, %v968
    %v971 = vxor.u32 %v970, 2147483648
    %v972 = vmul.f32 %v971, 1.442695
    %v973 = vpow.pop %v972
    %v974 = vadd.f32 %v973, 1.0
    %v975 = vrcp.pop %v974
    %v976 = vmul.f32 %v974, %v975
    %v977 = vsub.f32 1.0, %v976
    %v978 = vmul.f32 %v975, %v977
    %v979 = vadd.f32 %v975, %v978
    %vm980 = vweird.f32 %v974
    %vm981 = vweird.f32 %v975
    %vm982 = vmor %vm980, %vm981
    %v983 = vsel %vm982, %v975, %v979
    %v984 = vand.u32 2147483647, %v974
    %vm985 = vcmp.eq.f32.partialorder %v984, 8.507059e+37
    %v986 = vand.u32 %v974, 2147483648
    %v987 = vor.u32 1.1754944e-38, %v986
    %v988 = vsel %vm985, %v987, %v983
    %v989 = vmul.f32 1.0, %v988
    %v990 = vmul.f32 %v989, 2.0
    %v991 = vsub.f32 %v990, 1.0
    %v992 = vmul.f32 %v989, %v936
    %994 = vrot.lane.b32.xlu0 %v991, 64
    %v995 = vpop.permute.xlu0 %994
    %v997 = vmul.f32 %v989, %v995
    %999 = vrot.lane.b32.xlu0 %v997, 32
    %v1000 = vpop.permute.xlu0 %999
    %v1002 = vadd.f32 %v992, %v1000
    %v1003 = vtanh.pop %v1002
    %1005 = vrot.lane.b32.xlu0 %v1003, 64
    %v1006 = vpop.permute.xlu0 %1005
    %v1008 = vmul.f32 %v989, %v1006
    %vm1009 = vcmp.gt.s32.totalorder %v284, 7
    %v1010 = vsel %vm1009, 1, 0
    %1011 = vset.pattern.permute.xlu0 0
    %1012 = vperm.xlu0 %1011, %v1010
    %v1013 = vpop.permute.xlu0 %1012
    %vm1014 = vcmp.eq.s32.totalorder %v1013, 1
    %v1015 = vsel %vm1014, %v1008, %v935
    %v1016 = vsel %vm1014, %v1002, %v936
    %1018 = vrot.lane.b32.xlu0 %v1008, 32
    %v1019 = vpop.permute.xlu0 %1018
    %s1021 = scalar_lea.vmem [#allocation2], 56
    %1022 = vst.msk [vmem:[%s1021] sm:$0xff] %vm244, %v1019
    %1024 = vrot.lane.b32.xlu0 %v1015, 32
    %v1025 = vpop.permute.xlu0 %1024
    %1027 = vst.msk [vmem:[#allocation16] sm:$0xff] %vm244, %v1025
    %1029 = vrot.lane.b32.xlu0 %v1016, 96
    %v1030 = vpop.permute.xlu0 %1029
    %1032 = vst.msk [vmem:[#allocation17] sm:$0xff] %vm244, %v1030
    %s1033 = scalar_lea.vmem [#allocation10], 32
    %v1034 = vld [vmem:[%s1033] sm:$0xff]
    %v1035 = vld [vmem:[%s1033 + $0x8] sm:$0xff]
    %v1036 = vld [vmem:[%s1033 + $0x10] sm:$0xff]
    %v1037 = vld [vmem:[%s1033 + $0x18] sm:$0xff]
    %s1038 = scalar_lea.vmem %s7, 32
    %v1039 = vld [vmem:[%s1038] sm:$0xff]
    %v1040 = vld [vmem:[%s1038 + $0x8] sm:$0xff]
    %v1041 = vld [vmem:[%s1038 + $0x10] sm:$0xff]
    %v1042 = vld [vmem:[%s1038 + $0x18] sm:$0xff]
    %s1043 = scalar_lea.vmem %s8, 1
    %v1044 = vld [vmem:[%s1043] sm:$0x1]
    %v1045 = vld [vmem:[#allocation2] sm:$0xff]
    %v1046 = vld [vmem:[#allocation2 + $0x8] sm:$0xff]
    %v1047 = vld [vmem:[#allocation2 + $0x10] sm:$0xff]
    %v1048 = vld [vmem:[#allocation2 + $0x18] sm:$0xff]
    %v1049 = vld [vmem:[#allocation2 + $0x20] sm:$0xff]
    %v1050 = vld [vmem:[#allocation2 + $0x28] sm:$0xff]
    %v1051 = vld [vmem:[#allocation2 + $0x30] sm:$0xff]
    %v1052 = vld [vmem:[#allocation2 + $0x38] sm:$0xff]
    %v1054 = vperm.slane %v1044, 0
    %v1057 = vsel %vm244, %v1045, 0
    %v1060 = vsel %vm244, %v1046, 0
    %v1063 = vsel %vm244, %v1047, 0
    %v1066 = vsel %vm244, %v1048, 0
    %v1069 = vsel %vm244, %v1049, 0
    %v1072 = vsel %vm244, %v1050, 0
    %v1075 = vsel %vm244, %v1051, 0
    %v1078 = vsel %vm244, %v1052, 0
    %1080 = vmatpush.msra.mxu0 0.0
    %1081 = vmatpush.msra.mxu0 0.0
    %1082 = vmatpush.msra.mxu0 0.0
    %1083 = vmatpush.msra.mxu0 0.0
    %1084 = vmatpush.msra.mxu0 0.0
    %1085 = vmatpush.msra.mxu0 0.0
    %1086 = vmatpush.msra.mxu0 0.0
    %1087 = vmatpush.msra.mxu0 0.0
    %1088 = vmatpush.msra.mxu0 0.0
    %1089 = vmatpush.msra.mxu0 0.0
    %1090 = vmatpush.msra.mxu0 0.0
    %1091 = vmatpush.msra.mxu0 0.0
    %1092 = vmatpush.msra.mxu0 %v1037
    %1093 = vmatpush.msra.mxu0 %v1036
    %1094 = vmatpush.msra.mxu0 %v1035
    %1095 = vmatpush.msra.mxu0 %v1034
    %1096 = vmatmul.f32.gmra.mxu0 %v1057
    %v1097 = vpop.f32.mrf.mxu0
    %v1098 = vadd.f32 %v1054, %v1097
    %1099 = vmatmul.f32.gmra.mxu0 %v1060
    %v1100 = vpop.f32.mrf.mxu0
    %v1101 = vadd.f32 %v1054, %v1100
    %1102 = vmatmul.f32.gmra.mxu0 %v1063
    %v1103 = vpop.f32.mrf.mxu0
    %v1104 = vadd.f32 %v1054, %v1103
    %1105 = vmatmul.f32.gmra.mxu0 %v1066
    %v1106 = vpop.f32.mrf.mxu0
    %v1107 = vadd.f32 %v1054, %v1106
    %1108 = vmatmul.f32.gmra.mxu0 %v1069
    %v1109 = vpop.f32.mrf.mxu0
    %v1110 = vadd.f32 %v1054, %v1109
    %1111 = vmatmul.f32.gmra.mxu0 %v1072
    %v1112 = vpop.f32.mrf.mxu0
    %v1113 = vadd.f32 %v1054, %v1112
    %1114 = vmatmul.f32.gmra.mxu0 %v1075
    %v1115 = vpop.f32.mrf.mxu0
    %v1116 = vadd.f32 %v1054, %v1115
    %1117 = vmatmul.f32.gmra.mxu0 %v1078
    %v1118 = vpop.f32.mrf.mxu0
    %v1119 = vadd.f32 %v1054, %v1118
    %1120 = vdwg.mxu0
    %1121 = vst [vmem:[#allocation3] sm:$0xff] %v1098
    %1122 = vst [vmem:[#allocation3 + $0x8] sm:$0xff] %v1101
    %1123 = vst [vmem:[#allocation3 + $0x10] sm:$0xff] %v1104
    %1124 = vst [vmem:[#allocation3 + $0x18] sm:$0xff] %v1107
    %1125 = vst [vmem:[#allocation3 + $0x20] sm:$0xff] %v1110
    %1126 = vst [vmem:[#allocation3 + $0x28] sm:$0xff] %v1113
    %1127 = vst [vmem:[#allocation3 + $0x30] sm:$0xff] %v1116
    %1128 = vst [vmem:[#allocation3 + $0x38] sm:$0xff] %v1119
    %s1129 = scalar_lea.vmem [#allocation7], 8
    %v1130 = vld [vmem:[%s1129] sm:$0xff]
    %s1131 = scalar_lea.vmem [#allocation9], 8
    %v1132 = vld [vmem:[%s1131] sm:$0xff]
    %v1133 = vld [vmem:[#allocation3] sm:$0xff]
    %v1135 = vsel %vm244, %v1130, 0
    %1137 = vmatpush.msra.mxu0 0.0
    %1138 = vmatpush.msra.mxu0 0.0
    %1139 = vmatpush.msra.mxu0 0.0
    %1140 = vmatpush.msra.mxu0 0.0
    %1141 = vmatpush.msra.mxu0 0.0
    %1142 = vmatpush.msra.mxu0 0.0
    %1143 = vmatpush.msra.mxu0 0.0
    %1144 = vmatpush.msra.mxu0 0.0
    %1145 = vmatpush.msra.mxu0 0.0
    %1146 = vmatpush.msra.mxu0 0.0
    %1147 = vmatpush.msra.mxu0 0.0
    %1148 = vmatpush.msra.mxu0 0.0
    %1149 = vmatpush.msra.mxu0 %v1042
    %1150 = vmatpush.msra.mxu0 %v1041
    %1151 = vmatpush.msra.mxu0 %v1040
    %1152 = vmatpush.msra.mxu0 %v1039
    %1153 = vmatmul.f32.gmra.mxu0 %v1135
    %v1154 = vpop.f32.mrf.mxu0
    %v1155 = vadd.f32 0.0, %v1154
    %1156 = vdwg.mxu0
    %v1157 = vadd.f32 %v1133, %v1155
    %v1158 = vxor.u32 %v1157, 2147483648
    %v1159 = vmul.f32 %v1158, 1.442695
    %v1160 = vpow.pop %v1159
    %v1161 = vadd.f32 %v1160, 1.0
    %v1162 = vrcp.pop %v1161
    %v1163 = vmul.f32 %v1161, %v1162
    %v1164 = vsub.f32 1.0, %v1163
    %v1165 = vmul.f32 %v1162, %v1164
    %v1166 = vadd.f32 %v1162, %v1165
    %vm1167 = vweird.f32 %v1161
    %vm1168 = vweird.f32 %v1162
    %vm1169 = vmor %vm1167, %vm1168
    %v1170 = vsel %vm1169, %v1162, %v1166
    %v1171 = vand.u32 2147483647, %v1161
    %vm1172 = vcmp.eq.f32.partialorder %v1171, 8.507059e+37
    %v1173 = vand.u32 %v1161, 2147483648
    %v1174 = vor.u32 1.1754944e-38, %v1173
    %v1175 = vsel %vm1172, %v1174, %v1170
    %v1176 = vmul.f32 1.0, %v1175
    %v1177 = vmul.f32 %v1176, 2.0
    %v1178 = vsub.f32 %v1177, 1.0
    %1180 = vrot.lane.b32.xlu0 %v1132, 32
    %v1181 = vpop.permute.xlu0 %1180
    %v1183 = vmul.f32 %v1176, %v1181
    %1185 = vrot.lane.b32.xlu0 %v1178, 64
    %v1186 = vpop.permute.xlu0 %1185
    %v1188 = vmul.f32 %v1176, %v1186
    %1190 = vrot.lane.b32.xlu0 %v1188, 32
    %v1191 = vpop.permute.xlu0 %1190
    %v1193 = vadd.f32 %v1183, %v1191
    %v1194 = vtanh.pop %v1193
    %1196 = vrot.lane.b32.xlu0 %v1194, 64
    %v1197 = vpop.permute.xlu0 %1196
    %v1199 = vmul.f32 %v1176, %v1197
    %1200 = vrot.lane.b32.xlu0 %v1130, 96
    %v1201 = vpop.permute.xlu0 %1200
    %v1203 = vsel %vm452, %v1199, %v1201
    %v1204 = vsel %vm452, %v1193, %v1181
    %1206 = vrot.lane.b32.xlu0 %v1199, 32
    %v1207 = vpop.permute.xlu0 %1206
    %1209 = vst.msk [vmem:[#allocation2] sm:$0xff] %vm244, %v1207
    %v1210 = vld [vmem:[%s463] sm:$0xff]
    %1212 = vrot.lane.b32.xlu0 %v1203, 32
    %v1213 = vpop.permute.xlu0 %1212
    %v1214 = vsel %vm244, %v1213, 0
    %1216 = vmatpush.msra.mxu0 0.0
    %1217 = vmatpush.msra.mxu0 0.0
    %1218 = vmatpush.msra.mxu0 0.0
    %1219 = vmatpush.msra.mxu0 0.0
    %1220 = vmatpush.msra.mxu0 0.0
    %1221 = vmatpush.msra.mxu0 0.0
    %1222 = vmatpush.msra.mxu0 0.0
    %1223 = vmatpush.msra.mxu0 0.0
    %1224 = vmatpush.msra.mxu0 0.0
    %1225 = vmatpush.msra.mxu0 0.0
    %1226 = vmatpush.msra.mxu0 0.0
    %1227 = vmatpush.msra.mxu0 0.0
    %1228 = vmatpush.msra.mxu0 %v1042
    %1229 = vmatpush.msra.mxu0 %v1041
    %1230 = vmatpush.msra.mxu0 %v1040
    %1231 = vmatpush.msra.mxu0 %v1039
    %1232 = vmatmul.f32.gmra.mxu0 %v1214
    %v1233 = vpop.f32.mrf.mxu0
    %v1234 = vadd.f32 0.0, %v1233
    %1235 = vdwg.mxu0
    %v1236 = vadd.f32 %v1210, %v1234
    %v1237 = vxor.u32 %v1236, 2147483648
    %v1238 = vmul.f32 %v1237, 1.442695
    %v1239 = vpow.pop %v1238
    %v1240 = vadd.f32 %v1239, 1.0
    %v1241 = vrcp.pop %v1240
    %v1242 = vmul.f32 %v1240, %v1241
    %v1243 = vsub.f32 1.0, %v1242
    %v1244 = vmul.f32 %v1241, %v1243
    %v1245 = vadd.f32 %v1241, %v1244
    %vm1246 = vweird.f32 %v1240
    %vm1247 = vweird.f32 %v1241
    %vm1248 = vmor %vm1246, %vm1247
    %v1249 = vsel %vm1248, %v1241, %v1245
    %v1250 = vand.u32 2147483647, %v1240
    %vm1251 = vcmp.eq.f32.partialorder %v1250, 8.507059e+37
    %v1252 = vand.u32 %v1240, 2147483648
    %v1253 = vor.u32 1.1754944e-38, %v1252
    %v1254 = vsel %vm1251, %v1253, %v1249
    %v1255 = vmul.f32 1.0, %v1254
    %v1256 = vmul.f32 %v1255, 2.0
    %v1257 = vsub.f32 %v1256, 1.0
    %v1258 = vmul.f32 %v1255, %v1204
    %1260 = vrot.lane.b32.xlu0 %v1257, 64
    %v1261 = vpop.permute.xlu0 %1260
    %v1263 = vmul.f32 %v1255, %v1261
    %1265 = vrot.lane.b32.xlu0 %v1263, 32
    %v1266 = vpop.permute.xlu0 %1265
    %v1268 = vadd.f32 %v1258, %v1266
    %v1269 = vtanh.pop %v1268
    %1271 = vrot.lane.b32.xlu0 %v1269, 64
    %v1272 = vpop.permute.xlu0 %1271
    %v1274 = vmul.f32 %v1255, %v1272
    %v1275 = vsel %vm534, %v1274, %v1203
    %v1276 = vsel %vm534, %v1268, %v1204
    %1278 = vrot.lane.b32.xlu0 %v1274, 32
    %v1279 = vpop.permute.xlu0 %1278
    %1281 = vst.msk [vmem:[%s541] sm:$0xff] %vm244, %v1279
    %v1282 = vld [vmem:[%s543] sm:$0xff]
    %1284 = vrot.lane.b32.xlu0 %v1275, 32
    %v1285 = vpop.permute.xlu0 %1284
    %v1286 = vsel %vm244, %v1285, 0
    %1288 = vmatpush.msra.mxu0 0.0
    %1289 = vmatpush.msra.mxu0 0.0
    %1290 = vmatpush.msra.mxu0 0.0
    %1291 = vmatpush.msra.mxu0 0.0
    %1292 = vmatpush.msra.mxu0 0.0
    %1293 = vmatpush.msra.mxu0 0.0
    %1294 = vmatpush.msra.mxu0 0.0
    %1295 = vmatpush.msra.mxu0 0.0
    %1296 = vmatpush.msra.mxu0 0.0
    %1297 = vmatpush.msra.mxu0 0.0
    %1298 = vmatpush.msra.mxu0 0.0
    %1299 = vmatpush.msra.mxu0 0.0
    %1300 = vmatpush.msra.mxu0 %v1042
    %1301 = vmatpush.msra.mxu0 %v1041
    %1302 = vmatpush.msra.mxu0 %v1040
    %1303 = vmatpush.msra.mxu0 %v1039
    %1304 = vmatmul.f32.gmra.mxu0 %v1286
    %v1305 = vpop.f32.mrf.mxu0
    %v1306 = vadd.f32 0.0, %v1305
    %1307 = vdwg.mxu0
    %v1308 = vadd.f32 %v1282, %v1306
    %v1309 = vxor.u32 %v1308, 2147483648
    %v1310 = vmul.f32 %v1309, 1.442695
    %v1311 = vpow.pop %v1310
    %v1312 = vadd.f32 %v1311, 1.0
    %v1313 = vrcp.pop %v1312
    %v1314 = vmul.f32 %v1312, %v1313
    %v1315 = vsub.f32 1.0, %v1314
    %v1316 = vmul.f32 %v1313, %v1315
    %v1317 = vadd.f32 %v1313, %v1316
    %vm1318 = vweird.f32 %v1312
    %vm1319 = vweird.f32 %v1313
    %vm1320 = vmor %vm1318, %vm1319
    %v1321 = vsel %vm1320, %v1313, %v1317
    %v1322 = vand.u32 2147483647, %v1312
    %vm1323 = vcmp.eq.f32.partialorder %v1322, 8.507059e+37
    %v1324 = vand.u32 %v1312, 2147483648
    %v1325 = vor.u32 1.1754944e-38, %v1324
    %v1326 = vsel %vm1323, %v1325, %v1321
    %v1327 = vmul.f32 1.0, %v1326
    %v1328 = vmul.f32 %v1327, 2.0
    %v1329 = vsub.f32 %v1328, 1.0
    %v1330 = vmul.f32 %v1327, %v1276
    %1332 = vrot.lane.b32.xlu0 %v1329, 64
    %v1333 = vpop.permute.xlu0 %1332
    %v1335 = vmul.f32 %v1327, %v1333
    %1337 = vrot.lane.b32.xlu0 %v1335, 32
    %v1338 = vpop.permute.xlu0 %1337
    %v1340 = vadd.f32 %v1330, %v1338
    %v1341 = vtanh.pop %v1340
    %1343 = vrot.lane.b32.xlu0 %v1341, 64
    %v1344 = vpop.permute.xlu0 %1343
    %v1346 = vmul.f32 %v1327, %v1344
    %v1347 = vsel %vm614, %v1346, %v1275
    %v1348 = vsel %vm614, %v1340, %v1276
    %1350 = vrot.lane.b32.xlu0 %v1346, 32
    %v1351 = vpop.permute.xlu0 %1350
    %1353 = vst.msk [vmem:[%s621] sm:$0xff] %vm244, %v1351
    %v1354 = vld [vmem:[%s623] sm:$0xff]
    %1356 = vrot.lane.b32.xlu0 %v1347, 32
    %v1357 = vpop.permute.xlu0 %1356
    %v1358 = vsel %vm244, %v1357, 0
    %1360 = vmatpush.msra.mxu0 0.0
    %1361 = vmatpush.msra.mxu0 0.0
    %1362 = vmatpush.msra.mxu0 0.0
    %1363 = vmatpush.msra.mxu0 0.0
    %1364 = vmatpush.msra.mxu0 0.0
    %1365 = vmatpush.msra.mxu0 0.0
    %1366 = vmatpush.msra.mxu0 0.0
    %1367 = vmatpush.msra.mxu0 0.0
    %1368 = vmatpush.msra.mxu0 0.0
    %1369 = vmatpush.msra.mxu0 0.0
    %1370 = vmatpush.msra.mxu0 0.0
    %1371 = vmatpush.msra.mxu0 0.0
    %1372 = vmatpush.msra.mxu0 %v1042
    %1373 = vmatpush.msra.mxu0 %v1041
    %1374 = vmatpush.msra.mxu0 %v1040
    %1375 = vmatpush.msra.mxu0 %v1039
    %1376 = vmatmul.f32.gmra.mxu0 %v1358
    %v1377 = vpop.f32.mrf.mxu0
    %v1378 = vadd.f32 0.0, %v1377
    %1379 = vdwg.mxu0
    %v1380 = vadd.f32 %v1354, %v1378
    %v1381 = vxor.u32 %v1380, 2147483648
    %v1382 = vmul.f32 %v1381, 1.442695
    %v1383 = vpow.pop %v1382
    %v1384 = vadd.f32 %v1383, 1.0
    %v1385 = vrcp.pop %v1384
    %v1386 = vmul.f32 %v1384, %v1385
    %v1387 = vsub.f32 1.0, %v1386
    %v1388 = vmul.f32 %v1385, %v1387
    %v1389 = vadd.f32 %v1385, %v1388
    %vm1390 = vweird.f32 %v1384
    %vm1391 = vweird.f32 %v1385
    %vm1392 = vmor %vm1390, %vm1391
    %v1393 = vsel %vm1392, %v1385, %v1389
    %v1394 = vand.u32 2147483647, %v1384
    %vm1395 = vcmp.eq.f32.partialorder %v1394, 8.507059e+37
    %v1396 = vand.u32 %v1384, 2147483648
    %v1397 = vor.u32 1.1754944e-38, %v1396
    %v1398 = vsel %vm1395, %v1397, %v1393
    %v1399 = vmul.f32 1.0, %v1398
    %v1400 = vmul.f32 %v1399, 2.0
    %v1401 = vsub.f32 %v1400, 1.0
    %v1402 = vmul.f32 %v1399, %v1348
    %1404 = vrot.lane.b32.xlu0 %v1401, 64
    %v1405 = vpop.permute.xlu0 %1404
    %v1407 = vmul.f32 %v1399, %v1405
    %1409 = vrot.lane.b32.xlu0 %v1407, 32
    %v1410 = vpop.permute.xlu0 %1409
    %v1412 = vadd.f32 %v1402, %v1410
    %v1413 = vtanh.pop %v1412
    %1415 = vrot.lane.b32.xlu0 %v1413, 64
    %v1416 = vpop.permute.xlu0 %1415
    %v1418 = vmul.f32 %v1399, %v1416
    %v1419 = vsel %vm694, %v1418, %v1347
    %v1420 = vsel %vm694, %v1412, %v1348
    %1422 = vrot.lane.b32.xlu0 %v1418, 32
    %v1423 = vpop.permute.xlu0 %1422
    %1425 = vst.msk [vmem:[%s701] sm:$0xff] %vm244, %v1423
    %v1426 = vld [vmem:[%s703] sm:$0xff]
    %1428 = vrot.lane.b32.xlu0 %v1419, 32
    %v1429 = vpop.permute.xlu0 %1428
    %v1430 = vsel %vm244, %v1429, 0
    %1432 = vmatpush.msra.mxu0 0.0
    %1433 = vmatpush.msra.mxu0 0.0
    %1434 = vmatpush.msra.mxu0 0.0
    %1435 = vmatpush.msra.mxu0 0.0
    %1436 = vmatpush.msra.mxu0 0.0
    %1437 = vmatpush.msra.mxu0 0.0
    %1438 = vmatpush.msra.mxu0 0.0
    %1439 = vmatpush.msra.mxu0 0.0
    %1440 = vmatpush.msra.mxu0 0.0
    %1441 = vmatpush.msra.mxu0 0.0
    %1442 = vmatpush.msra.mxu0 0.0
    %1443 = vmatpush.msra.mxu0 0.0
    %1444 = vmatpush.msra.mxu0 %v1042
    %1445 = vmatpush.msra.mxu0 %v1041
    %1446 = vmatpush.msra.mxu0 %v1040
    %1447 = vmatpush.msra.mxu0 %v1039
    %1448 = vmatmul.f32.gmra.mxu0 %v1430
    %v1449 = vpop.f32.mrf.mxu0
    %v1450 = vadd.f32 0.0, %v1449
    %1451 = vdwg.mxu0
    %v1452 = vadd.f32 %v1426, %v1450
    %v1453 = vxor.u32 %v1452, 2147483648
    %v1454 = vmul.f32 %v1453, 1.442695
    %v1455 = vpow.pop %v1454
    %v1456 = vadd.f32 %v1455, 1.0
    %v1457 = vrcp.pop %v1456
    %v1458 = vmul.f32 %v1456, %v1457
    %v1459 = vsub.f32 1.0, %v1458
    %v1460 = vmul.f32 %v1457, %v1459
    %v1461 = vadd.f32 %v1457, %v1460
    %vm1462 = vweird.f32 %v1456
    %vm1463 = vweird.f32 %v1457
    %vm1464 = vmor %vm1462, %vm1463
    %v1465 = vsel %vm1464, %v1457, %v1461
    %v1466 = vand.u32 2147483647, %v1456
    %vm1467 = vcmp.eq.f32.partialorder %v1466, 8.507059e+37
    %v1468 = vand.u32 %v1456, 2147483648
    %v1469 = vor.u32 1.1754944e-38, %v1468
    %v1470 = vsel %vm1467, %v1469, %v1465
    %v1471 = vmul.f32 1.0, %v1470
    %v1472 = vmul.f32 %v1471, 2.0
    %v1473 = vsub.f32 %v1472, 1.0
    %v1474 = vmul.f32 %v1471, %v1420
    %1476 = vrot.lane.b32.xlu0 %v1473, 64
    %v1477 = vpop.permute.xlu0 %1476
    %v1479 = vmul.f32 %v1471, %v1477
    %1481 = vrot.lane.b32.xlu0 %v1479, 32
    %v1482 = vpop.permute.xlu0 %1481
    %v1484 = vadd.f32 %v1474, %v1482
    %v1485 = vtanh.pop %v1484
    %1487 = vrot.lane.b32.xlu0 %v1485, 64
    %v1488 = vpop.permute.xlu0 %1487
    %v1490 = vmul.f32 %v1471, %v1488
    %v1491 = vsel %vm774, %v1490, %v1419
    %v1492 = vsel %vm774, %v1484, %v1420
    %1494 = vrot.lane.b32.xlu0 %v1490, 32
    %v1495 = vpop.permute.xlu0 %1494
    %1497 = vst.msk [vmem:[%s781] sm:$0xff] %vm244, %v1495
    %v1498 = vld [vmem:[%s783] sm:$0xff]
    %1500 = vrot.lane.b32.xlu0 %v1491, 32
    %v1501 = vpop.permute.xlu0 %1500
    %v1502 = vsel %vm244, %v1501, 0
    %1504 = vmatpush.msra.mxu0 0.0
    %1505 = vmatpush.msra.mxu0 0.0
    %1506 = vmatpush.msra.mxu0 0.0
    %1507 = vmatpush.msra.mxu0 0.0
    %1508 = vmatpush.msra.mxu0 0.0
    %1509 = vmatpush.msra.mxu0 0.0
    %1510 = vmatpush.msra.mxu0 0.0
    %1511 = vmatpush.msra.mxu0 0.0
    %1512 = vmatpush.msra.mxu0 0.0
    %1513 = vmatpush.msra.mxu0 0.0
    %1514 = vmatpush.msra.mxu0 0.0
    %1515 = vmatpush.msra.mxu0 0.0
    %1516 = vmatpush.msra.mxu0 %v1042
    %1517 = vmatpush.msra.mxu0 %v1041
    %1518 = vmatpush.msra.mxu0 %v1040
    %1519 = vmatpush.msra.mxu0 %v1039
    %1520 = vmatmul.f32.gmra.mxu0 %v1502
    %v1521 = vpop.f32.mrf.mxu0
    %v1522 = vadd.f32 0.0, %v1521
    %1523 = vdwg.mxu0
    %v1524 = vadd.f32 %v1498, %v1522
    %v1525 = vxor.u32 %v1524, 2147483648
    %v1526 = vmul.f32 %v1525, 1.442695
    %v1527 = vpow.pop %v1526
    %v1528 = vadd.f32 %v1527, 1.0
    %v1529 = vrcp.pop %v1528
    %v1530 = vmul.f32 %v1528, %v1529
    %v1531 = vsub.f32 1.0, %v1530
    %v1532 = vmul.f32 %v1529, %v1531
    %v1533 = vadd.f32 %v1529, %v1532
    %vm1534 = vweird.f32 %v1528
    %vm1535 = vweird.f32 %v1529
    %vm1536 = vmor %vm1534, %vm1535
    %v1537 = vsel %vm1536, %v1529, %v1533
    %v1538 = vand.u32 2147483647, %v1528
    %vm1539 = vcmp.eq.f32.partialorder %v1538, 8.507059e+37
    %v1540 = vand.u32 %v1528, 2147483648
    %v1541 = vor.u32 1.1754944e-38, %v1540
    %v1542 = vsel %vm1539, %v1541, %v1537
    %v1543 = vmul.f32 1.0, %v1542
    %v1544 = vmul.f32 %v1543, 2.0
    %v1545 = vsub.f32 %v1544, 1.0
    %v1546 = vmul.f32 %v1543, %v1492
    %1548 = vrot.lane.b32.xlu0 %v1545, 64
    %v1549 = vpop.permute.xlu0 %1548
    %v1551 = vmul.f32 %v1543, %v1549
    %1553 = vrot.lane.b32.xlu0 %v1551, 32
    %v1554 = vpop.permute.xlu0 %1553
    %v1556 = vadd.f32 %v1546, %v1554
    %v1557 = vtanh.pop %v1556
    %1559 = vrot.lane.b32.xlu0 %v1557, 64
    %v1560 = vpop.permute.xlu0 %1559
    %v1562 = vmul.f32 %v1543, %v1560
    %v1563 = vsel %vm854, %v1562, %v1491
    %v1564 = vsel %vm854, %v1556, %v1492
    %1566 = vrot.lane.b32.xlu0 %v1562, 32
    %v1567 = vpop.permute.xlu0 %1566
    %1569 = vst.msk [vmem:[%s861] sm:$0xff] %vm244, %v1567
    %v1570 = vld [vmem:[%s863] sm:$0xff]
    %1572 = vrot.lane.b32.xlu0 %v1563, 32
    %v1573 = vpop.permute.xlu0 %1572
    %v1574 = vsel %vm244, %v1573, 0
    %1576 = vmatpush.msra.mxu0 0.0
    %1577 = vmatpush.msra.mxu0 0.0
    %1578 = vmatpush.msra.mxu0 0.0
    %1579 = vmatpush.msra.mxu0 0.0
    %1580 = vmatpush.msra.mxu0 0.0
    %1581 = vmatpush.msra.mxu0 0.0
    %1582 = vmatpush.msra.mxu0 0.0
    %1583 = vmatpush.msra.mxu0 0.0
    %1584 = vmatpush.msra.mxu0 0.0
    %1585 = vmatpush.msra.mxu0 0.0
    %1586 = vmatpush.msra.mxu0 0.0
    %1587 = vmatpush.msra.mxu0 0.0
    %1588 = vmatpush.msra.mxu0 %v1042
    %1589 = vmatpush.msra.mxu0 %v1041
    %1590 = vmatpush.msra.mxu0 %v1040
    %1591 = vmatpush.msra.mxu0 %v1039
    %1592 = vmatmul.f32.gmra.mxu0 %v1574
    %v1593 = vpop.f32.mrf.mxu0
    %v1594 = vadd.f32 0.0, %v1593
    %1595 = vdwg.mxu0
    %v1596 = vadd.f32 %v1570, %v1594
    %v1597 = vxor.u32 %v1596, 2147483648
    %v1598 = vmul.f32 %v1597, 1.442695
    %v1599 = vpow.pop %v1598
    %v1600 = vadd.f32 %v1599, 1.0
    %v1601 = vrcp.pop %v1600
    %v1602 = vmul.f32 %v1600, %v1601
    %v1603 = vsub.f32 1.0, %v1602
    %v1604 = vmul.f32 %v1601, %v1603
    %v1605 = vadd.f32 %v1601, %v1604
    %vm1606 = vweird.f32 %v1600
    %vm1607 = vweird.f32 %v1601
    %vm1608 = vmor %vm1606, %vm1607
    %v1609 = vsel %vm1608, %v1601, %v1605
    %v1610 = vand.u32 2147483647, %v1600
    %vm1611 = vcmp.eq.f32.partialorder %v1610, 8.507059e+37
    %v1612 = vand.u32 %v1600, 2147483648
    %v1613 = vor.u32 1.1754944e-38, %v1612
    %v1614 = vsel %vm1611, %v1613, %v1609
    %v1615 = vmul.f32 1.0, %v1614
    %v1616 = vmul.f32 %v1615, 2.0
    %v1617 = vsub.f32 %v1616, 1.0
    %v1618 = vmul.f32 %v1615, %v1564
    %1620 = vrot.lane.b32.xlu0 %v1617, 64
    %v1621 = vpop.permute.xlu0 %1620
    %v1623 = vmul.f32 %v1615, %v1621
    %1625 = vrot.lane.b32.xlu0 %v1623, 32
    %v1626 = vpop.permute.xlu0 %1625
    %v1628 = vadd.f32 %v1618, %v1626
    %v1629 = vtanh.pop %v1628
    %1631 = vrot.lane.b32.xlu0 %v1629, 64
    %v1632 = vpop.permute.xlu0 %1631
    %v1634 = vmul.f32 %v1615, %v1632
    %v1635 = vsel %vm934, %v1634, %v1563
    %v1636 = vsel %vm934, %v1628, %v1564
    %1638 = vrot.lane.b32.xlu0 %v1634, 32
    %v1639 = vpop.permute.xlu0 %1638
    %1641 = vst.msk [vmem:[%s941] sm:$0xff] %vm244, %v1639
    %v1642 = vld [vmem:[%s943] sm:$0xff]
    %1644 = vrot.lane.b32.xlu0 %v1635, 32
    %v1645 = vpop.permute.xlu0 %1644
    %v1646 = vsel %vm244, %v1645, 0
    %1648 = vmatpush.msra.mxu0 0.0
    %1649 = vmatpush.msra.mxu0 0.0
    %1650 = vmatpush.msra.mxu0 0.0
    %1651 = vmatpush.msra.mxu0 0.0
    %1652 = vmatpush.msra.mxu0 0.0
    %1653 = vmatpush.msra.mxu0 0.0
    %1654 = vmatpush.msra.mxu0 0.0
    %1655 = vmatpush.msra.mxu0 0.0
    %1656 = vmatpush.msra.mxu0 0.0
    %1657 = vmatpush.msra.mxu0 0.0
    %1658 = vmatpush.msra.mxu0 0.0
    %1659 = vmatpush.msra.mxu0 0.0
    %1660 = vmatpush.msra.mxu0 %v1042
    %1661 = vmatpush.msra.mxu0 %v1041
    %1662 = vmatpush.msra.mxu0 %v1040
    %1663 = vmatpush.msra.mxu0 %v1039
    %1664 = vmatmul.f32.gmra.mxu0 %v1646
    %v1665 = vpop.f32.mrf.mxu0
    %v1666 = vadd.f32 0.0, %v1665
    %1667 = vdwg.mxu0
    %v1668 = vadd.f32 %v1642, %v1666
    %v1669 = vxor.u32 %v1668, 2147483648
    %v1670 = vmul.f32 %v1669, 1.442695
    %v1671 = vpow.pop %v1670
    %v1672 = vadd.f32 %v1671, 1.0
    %v1673 = vrcp.pop %v1672
    %v1674 = vmul.f32 %v1672, %v1673
    %v1675 = vsub.f32 1.0, %v1674
    %v1676 = vmul.f32 %v1673, %v1675
    %v1677 = vadd.f32 %v1673, %v1676
    %vm1678 = vweird.f32 %v1672
    %vm1679 = vweird.f32 %v1673
    %vm1680 = vmor %vm1678, %vm1679
    %v1681 = vsel %vm1680, %v1673, %v1677
    %v1682 = vand.u32 2147483647, %v1672
    %vm1683 = vcmp.eq.f32.partialorder %v1682, 8.507059e+37
    %v1684 = vand.u32 %v1672, 2147483648
    %v1685 = vor.u32 1.1754944e-38, %v1684
    %v1686 = vsel %vm1683, %v1685, %v1681
    %v1687 = vmul.f32 1.0, %v1686
    %v1688 = vmul.f32 %v1687, 2.0
    %v1689 = vsub.f32 %v1688, 1.0
    %v1690 = vmul.f32 %v1687, %v1636
    %1692 = vrot.lane.b32.xlu0 %v1689, 64
    %v1693 = vpop.permute.xlu0 %1692
    %v1695 = vmul.f32 %v1687, %v1693
    %1697 = vrot.lane.b32.xlu0 %v1695, 32
    %v1698 = vpop.permute.xlu0 %1697
    %v1700 = vadd.f32 %v1690, %v1698
    %v1701 = vtanh.pop %v1700
    %1703 = vrot.lane.b32.xlu0 %v1701, 64
    %v1704 = vpop.permute.xlu0 %1703
    %v1706 = vmul.f32 %v1687, %v1704
    %v1707 = vsel %vm1014, %v1706, %v1635
    %v1708 = vsel %vm1014, %v1700, %v1636
    %1710 = vrot.lane.b32.xlu0 %v1706, 32
    %v1711 = vpop.permute.xlu0 %1710
    %1713 = vst.msk [vmem:[%s1021] sm:$0xff] %vm244, %v1711
    %1715 = vrot.lane.b32.xlu0 %v1707, 32
    %v1716 = vpop.permute.xlu0 %1715
    %s1718 = scalar_lea.vmem [#allocation16], 8
    %1719 = vst.msk [vmem:[%s1718] sm:$0xff] %vm244, %v1716
    %1721 = vrot.lane.b32.xlu0 %v1708, 96
    %v1722 = vpop.permute.xlu0 %1721
    %s1724 = scalar_lea.vmem [#allocation17], 8
    %1725 = vst.msk [vmem:[%s1724] sm:$0xff] %vm244, %v1722
    %s1726 = scalar_lea.vmem [#allocation10], 64
    %v1727 = vld [vmem:[%s1726] sm:$0xff]
    %v1728 = vld [vmem:[%s1726 + $0x8] sm:$0xff]
    %v1729 = vld [vmem:[%s1726 + $0x10] sm:$0xff]
    %v1730 = vld [vmem:[%s1726 + $0x18] sm:$0xff]
    %s1731 = scalar_lea.vmem %s7, 64
    %v1732 = vld [vmem:[%s1731] sm:$0xff]
    %v1733 = vld [vmem:[%s1731 + $0x8] sm:$0xff]
    %v1734 = vld [vmem:[%s1731 + $0x10] sm:$0xff]
    %v1735 = vld [vmem:[%s1731 + $0x18] sm:$0xff]
    %s1736 = scalar_lea.vmem %s8, 2
    %v1737 = vld [vmem:[%s1736] sm:$0x1]
    %v1738 = vld [vmem:[#allocation2] sm:$0xff]
    %v1739 = vld [vmem:[#allocation2 + $0x8] sm:$0xff]
    %v1740 = vld [vmem:[#allocation2 + $0x10] sm:$0xff]
    %v1741 = vld [vmem:[#allocation2 + $0x18] sm:$0xff]
    %v1742 = vld [vmem:[#allocation2 + $0x20] sm:$0xff]
    %v1743 = vld [vmem:[#allocation2 + $0x28] sm:$0xff]
    %v1744 = vld [vmem:[#allocation2 + $0x30] sm:$0xff]
    %v1745 = vld [vmem:[#allocation2 + $0x38] sm:$0xff]
    %v1747 = vperm.slane %v1737, 0
    %v1750 = vsel %vm244, %v1738, 0
    %v1753 = vsel %vm244, %v1739, 0
    %v1756 = vsel %vm244, %v1740, 0
    %v1759 = vsel %vm244, %v1741, 0
    %v1762 = vsel %vm244, %v1742, 0
    %v1765 = vsel %vm244, %v1743, 0
    %v1768 = vsel %vm244, %v1744, 0
    %v1771 = vsel %vm244, %v1745, 0
    %1773 = vmatpush.msra.mxu0 0.0
    %1774 = vmatpush.msra.mxu0 0.0
    %1775 = vmatpush.msra.mxu0 0.0
    %1776 = vmatpush.msra.mxu0 0.0
    %1777 = vmatpush.msra.mxu0 0.0
    %1778 = vmatpush.msra.mxu0 0.0
    %1779 = vmatpush.msra.mxu0 0.0
    %1780 = vmatpush.msra.mxu0 0.0
    %1781 = vmatpush.msra.mxu0 0.0
    %1782 = vmatpush.msra.mxu0 0.0
    %1783 = vmatpush.msra.mxu0 0.0
    %1784 = vmatpush.msra.mxu0 0.0
    %1785 = vmatpush.msra.mxu0 %v1730
    %1786 = vmatpush.msra.mxu0 %v1729
    %1787 = vmatpush.msra.mxu0 %v1728
    %1788 = vmatpush.msra.mxu0 %v1727
    %1789 = vmatmul.f32.gmra.mxu0 %v1750
    %v1790 = vpop.f32.mrf.mxu0
    %v1791 = vadd.f32 %v1747, %v1790
    %1792 = vmatmul.f32.gmra.mxu0 %v1753
    %v1793 = vpop.f32.mrf.mxu0
    %v1794 = vadd.f32 %v1747, %v1793
    %1795 = vmatmul.f32.gmra.mxu0 %v1756
    %v1796 = vpop.f32.mrf.mxu0
    %v1797 = vadd.f32 %v1747, %v1796
    %1798 = vmatmul.f32.gmra.mxu0 %v1759
    %v1799 = vpop.f32.mrf.mxu0
    %v1800 = vadd.f32 %v1747, %v1799
    %1801 = vmatmul.f32.gmra.mxu0 %v1762
    %v1802 = vpop.f32.mrf.mxu0
    %v1803 = vadd.f32 %v1747, %v1802
    %1804 = vmatmul.f32.gmra.mxu0 %v1765
    %v1805 = vpop.f32.mrf.mxu0
    %v1806 = vadd.f32 %v1747, %v1805
    %1807 = vmatmul.f32.gmra.mxu0 %v1768
    %v1808 = vpop.f32.mrf.mxu0
    %v1809 = vadd.f32 %v1747, %v1808
    %1810 = vmatmul.f32.gmra.mxu0 %v1771
    %v1811 = vpop.f32.mrf.mxu0
    %v1812 = vadd.f32 %v1747, %v1811
    %1813 = vdwg.mxu0
    %1814 = vst [vmem:[#allocation3] sm:$0xff] %v1791
    %1815 = vst [vmem:[#allocation3 + $0x8] sm:$0xff] %v1794
    %1816 = vst [vmem:[#allocation3 + $0x10] sm:$0xff] %v1797
    %1817 = vst [vmem:[#allocation3 + $0x18] sm:$0xff] %v1800
    %1818 = vst [vmem:[#allocation3 + $0x20] sm:$0xff] %v1803
    %1819 = vst [vmem:[#allocation3 + $0x28] sm:$0xff] %v1806
    %1820 = vst [vmem:[#allocation3 + $0x30] sm:$0xff] %v1809
    %1821 = vst [vmem:[#allocation3 + $0x38] sm:$0xff] %v1812
    %s1822 = scalar_lea.vmem [#allocation7], 16
    %v1823 = vld [vmem:[%s1822] sm:$0xff]
    %s1824 = scalar_lea.vmem [#allocation9], 16
    %v1825 = vld [vmem:[%s1824] sm:$0xff]
    %v1826 = vld [vmem:[#allocation3] sm:$0xff]
    %v1828 = vsel %vm244, %v1823, 0
    %1830 = vmatpush.msra.mxu0 0.0
    %1831 = vmatpush.msra.mxu0 0.0
    %1832 = vmatpush.msra.mxu0 0.0
    %1833 = vmatpush.msra.mxu0 0.0
    %1834 = vmatpush.msra.mxu0 0.0
    %1835 = vmatpush.msra.mxu0 0.0
    %1836 = vmatpush.msra.mxu0 0.0
    %1837 = vmatpush.msra.mxu0 0.0
    %1838 = vmatpush.msra.mxu0 0.0
    %1839 = vmatpush.msra.mxu0 0.0
    %1840 = vmatpush.msra.mxu0 0.0
    %1841 = vmatpush.msra.mxu0 0.0
    %1842 = vmatpush.msra.mxu0 %v1735
    %1843 = vmatpush.msra.mxu0 %v1734
    %1844 = vmatpush.msra.mxu0 %v1733
    %1845 = vmatpush.msra.mxu0 %v1732
    %1846 = vmatmul.f32.gmra.mxu0 %v1828
    %v1847 = vpop.f32.mrf.mxu0
    %v1848 = vadd.f32 0.0, %v1847
    %1849 = vdwg.mxu0
    %v1850 = vadd.f32 %v1826, %v1848
    %v1851 = vxor.u32 %v1850, 2147483648
    %v1852 = vmul.f32 %v1851, 1.442695
    %v1853 = vpow.pop %v1852
    %v1854 = vadd.f32 %v1853, 1.0
    %v1855 = vrcp.pop %v1854
    %v1856 = vmul.f32 %v1854, %v1855
    %v1857 = vsub.f32 1.0, %v1856
    %v1858 = vmul.f32 %v1855, %v1857
    %v1859 = vadd.f32 %v1855, %v1858
    %vm1860 = vweird.f32 %v1854
    %vm1861 = vweird.f32 %v1855
    %vm1862 = vmor %vm1860, %vm1861
    %v1863 = vsel %vm1862, %v1855, %v1859
    %v1864 = vand.u32 2147483647, %v1854
    %vm1865 = vcmp.eq.f32.partialorder %v1864, 8.507059e+37
    %v1866 = vand.u32 %v1854, 2147483648
    %v1867 = vor.u32 1.1754944e-38, %v1866
    %v1868 = vsel %vm1865, %v1867, %v1863
    %v1869 = vmul.f32 1.0, %v1868
    %v1870 = vmul.f32 %v1869, 2.0
    %v1871 = vsub.f32 %v1870, 1.0
    %1873 = vrot.lane.b32.xlu0 %v1825, 32
    %v1874 = vpop.permute.xlu0 %1873
    %v1876 = vmul.f32 %v1869, %v1874
    %1878 = vrot.lane.b32.xlu0 %v1871, 64
    %v1879 = vpop.permute.xlu0 %1878
    %v1881 = vmul.f32 %v1869, %v1879
    %1883 = vrot.lane.b32.xlu0 %v1881, 32
    %v1884 = vpop.permute.xlu0 %1883
    %v1886 = vadd.f32 %v1876, %v1884
    %v1887 = vtanh.pop %v1886
    %1889 = vrot.lane.b32.xlu0 %v1887, 64
    %v1890 = vpop.permute.xlu0 %1889
    %v1892 = vmul.f32 %v1869, %v1890
    %1893 = vrot.lane.b32.xlu0 %v1823, 96
    %v1894 = vpop.permute.xlu0 %1893
    %v1896 = vsel %vm452, %v1892, %v1894
    %v1897 = vsel %vm452, %v1886, %v1874
    %1899 = vrot.lane.b32.xlu0 %v1892, 32
    %v1900 = vpop.permute.xlu0 %1899
    %1902 = vst.msk [vmem:[#allocation2] sm:$0xff] %vm244, %v1900
    %v1903 = vld [vmem:[%s463] sm:$0xff]
    %1905 = vrot.lane.b32.xlu0 %v1896, 32
    %v1906 = vpop.permute.xlu0 %1905
    %v1907 = vsel %vm244, %v1906, 0
    %1909 = vmatpush.msra.mxu0 0.0
    %1910 = vmatpush.msra.mxu0 0.0
    %1911 = vmatpush.msra.mxu0 0.0
    %1912 = vmatpush.msra.mxu0 0.0
    %1913 = vmatpush.msra.mxu0 0.0
    %1914 = vmatpush.msra.mxu0 0.0
    %1915 = vmatpush.msra.mxu0 0.0
    %1916 = vmatpush.msra.mxu0 0.0
    %1917 = vmatpush.msra.mxu0 0.0
    %1918 = vmatpush.msra.mxu0 0.0
    %1919 = vmatpush.msra.mxu0 0.0
    %1920 = vmatpush.msra.mxu0 0.0
    %1921 = vmatpush.msra.mxu0 %v1735
    %1922 = vmatpush.msra.mxu0 %v1734
    %1923 = vmatpush.msra.mxu0 %v1733
    %1924 = vmatpush.msra.mxu0 %v1732
    %1925 = vmatmul.f32.gmra.mxu0 %v1907
    %v1926 = vpop.f32.mrf.mxu0
    %v1927 = vadd.f32 0.0, %v1926
    %1928 = vdwg.mxu0
    %v1929 = vadd.f32 %v1903, %v1927
    %v1930 = vxor.u32 %v1929, 2147483648
    %v1931 = vmul.f32 %v1930, 1.442695
    %v1932 = vpow.pop %v1931
    %v1933 = vadd.f32 %v1932, 1.0
    %v1934 = vrcp.pop %v1933
    %v1935 = vmul.f32 %v1933, %v1934
    %v1936 = vsub.f32 1.0, %v1935
    %v1937 = vmul.f32 %v1934, %v1936
    %v1938 = vadd.f32 %v1934, %v1937
    %vm1939 = vweird.f32 %v1933
    %vm1940 = vweird.f32 %v1934
    %vm1941 = vmor %vm1939, %vm1940
    %v1942 = vsel %vm1941, %v1934, %v1938
    %v1943 = vand.u32 2147483647, %v1933
    %vm1944 = vcmp.eq.f32.partialorder %v1943, 8.507059e+37
    %v1945 = vand.u32 %v1933, 2147483648
    %v1946 = vor.u32 1.1754944e-38, %v1945
    %v1947 = vsel %vm1944, %v1946, %v1942
    %v1948 = vmul.f32 1.0, %v1947
    %v1949 = vmul.f32 %v1948, 2.0
    %v1950 = vsub.f32 %v1949, 1.0
    %v1951 = vmul.f32 %v1948, %v1897
    %1953 = vrot.lane.b32.xlu0 %v1950, 64
    %v1954 = vpop.permute.xlu0 %1953
    %v1956 = vmul.f32 %v1948, %v1954
    %1958 = vrot.lane.b32.xlu0 %v1956, 32
    %v1959 = vpop.permute.xlu0 %1958
    %v1961 = vadd.f32 %v1951, %v1959
    %v1962 = vtanh.pop %v1961
    %1964 = vrot.lane.b32.xlu0 %v1962, 64
    %v1965 = vpop.permute.xlu0 %1964
    %v1967 = vmul.f32 %v1948, %v1965
    %v1968 = vsel %vm534, %v1967, %v1896
    %v1969 = vsel %vm534, %v1961, %v1897
    %1971 = vrot.lane.b32.xlu0 %v1967, 32
    %v1972 = vpop.permute.xlu0 %1971
    %1974 = vst.msk [vmem:[%s541] sm:$0xff] %vm244, %v1972
    %v1975 = vld [vmem:[%s543] sm:$0xff]
    %1977 = vrot.lane.b32.xlu0 %v1968, 32
    %v1978 = vpop.permute.xlu0 %1977
    %v1979 = vsel %vm244, %v1978, 0
    %1981 = vmatpush.msra.mxu0 0.0
    %1982 = vmatpush.msra.mxu0 0.0
    %1983 = vmatpush.msra.mxu0 0.0
    %1984 = vmatpush.msra.mxu0 0.0
    %1985 = vmatpush.msra.mxu0 0.0
    %1986 = vmatpush.msra.mxu0 0.0
    %1987 = vmatpush.msra.mxu0 0.0
    %1988 = vmatpush.msra.mxu0 0.0
    %1989 = vmatpush.msra.mxu0 0.0
    %1990 = vmatpush.msra.mxu0 0.0
    %1991 = vmatpush.msra.mxu0 0.0
    %1992 = vmatpush.msra.mxu0 0.0
    %1993 = vmatpush.msra.mxu0 %v1735
    %1994 = vmatpush.msra.mxu0 %v1734
    %1995 = vmatpush.msra.mxu0 %v1733
    %1996 = vmatpush.msra.mxu0 %v1732
    %1997 = vmatmul.f32.gmra.mxu0 %v1979
    %v1998 = vpop.f32.mrf.mxu0
    %v1999 = vadd.f32 0.0, %v1998
    %2000 = vdwg.mxu0
    %v2001 = vadd.f32 %v1975, %v1999
    %v2002 = vxor.u32 %v2001, 2147483648
    %v2003 = vmul.f32 %v2002, 1.442695
    %v2004 = vpow.pop %v2003
    %v2005 = vadd.f32 %v2004, 1.0
    %v2006 = vrcp.pop %v2005
    %v2007 = vmul.f32 %v2005, %v2006
    %v2008 = vsub.f32 1.0, %v2007
    %v2009 = vmul.f32 %v2006, %v2008
    %v2010 = vadd.f32 %v2006, %v2009
    %vm2011 = vweird.f32 %v2005
    %vm2012 = vweird.f32 %v2006
    %vm2013 = vmor %vm2011, %vm2012
    %v2014 = vsel %vm2013, %v2006, %v2010
    %v2015 = vand.u32 2147483647, %v2005
    %vm2016 = vcmp.eq.f32.partialorder %v2015, 8.507059e+37
    %v2017 = vand.u32 %v2005, 2147483648
    %v2018 = vor.u32 1.1754944e-38, %v2017
    %v2019 = vsel %vm2016, %v2018, %v2014
    %v2020 = vmul.f32 1.0, %v2019
    %v2021 = vmul.f32 %v2020, 2.0
    %v2022 = vsub.f32 %v2021, 1.0
    %v2023 = vmul.f32 %v2020, %v1969
    %2025 = vrot.lane.b32.xlu0 %v2022, 64
    %v2026 = vpop.permute.xlu0 %2025
    %v2028 = vmul.f32 %v2020, %v2026
    %2030 = vrot.lane.b32.xlu0 %v2028, 32
    %v2031 = vpop.permute.xlu0 %2030
    %v2033 = vadd.f32 %v2023, %v2031
    %v2034 = vtanh.pop %v2033
    %2036 = vrot.lane.b32.xlu0 %v2034, 64
    %v2037 = vpop.permute.xlu0 %2036
    %v2039 = vmul.f32 %v2020, %v2037
    %v2040 = vsel %vm614, %v2039, %v1968
    %v2041 = vsel %vm614, %v2033, %v1969
    %2043 = vrot.lane.b32.xlu0 %v2039, 32
    %v2044 = vpop.permute.xlu0 %2043
    %2046 = vst.msk [vmem:[%s621] sm:$0xff] %vm244, %v2044
    %v2047 = vld [vmem:[%s623] sm:$0xff]
    %2049 = vrot.lane.b32.xlu0 %v2040, 32
    %v2050 = vpop.permute.xlu0 %2049
    %v2051 = vsel %vm244, %v2050, 0
    %2053 = vmatpush.msra.mxu0 0.0
    %2054 = vmatpush.msra.mxu0 0.0
    %2055 = vmatpush.msra.mxu0 0.0
    %2056 = vmatpush.msra.mxu0 0.0
    %2057 = vmatpush.msra.mxu0 0.0
    %2058 = vmatpush.msra.mxu0 0.0
    %2059 = vmatpush.msra.mxu0 0.0
    %2060 = vmatpush.msra.mxu0 0.0
    %2061 = vmatpush.msra.mxu0 0.0
    %2062 = vmatpush.msra.mxu0 0.0
    %2063 = vmatpush.msra.mxu0 0.0
    %2064 = vmatpush.msra.mxu0 0.0
    %2065 = vmatpush.msra.mxu0 %v1735
    %2066 = vmatpush.msra.mxu0 %v1734
    %2067 = vmatpush.msra.mxu0 %v1733
    %2068 = vmatpush.msra.mxu0 %v1732
    %2069 = vmatmul.f32.gmra.mxu0 %v2051
    %v2070 = vpop.f32.mrf.mxu0
    %v2071 = vadd.f32 0.0, %v2070
    %2072 = vdwg.mxu0
    %v2073 = vadd.f32 %v2047, %v2071
    %v2074 = vxor.u32 %v2073, 2147483648
    %v2075 = vmul.f32 %v2074, 1.442695
    %v2076 = vpow.pop %v2075
    %v2077 = vadd.f32 %v2076, 1.0
    %v2078 = vrcp.pop %v2077
    %v2079 = vmul.f32 %v2077, %v2078
    %v2080 = vsub.f32 1.0, %v2079
    %v2081 = vmul.f32 %v2078, %v2080
    %v2082 = vadd.f32 %v2078, %v2081
    %vm2083 = vweird.f32 %v2077
    %vm2084 = vweird.f32 %v2078
    %vm2085 = vmor %vm2083, %vm2084
    %v2086 = vsel %vm2085, %v2078, %v2082
    %v2087 = vand.u32 2147483647, %v2077
    %vm2088 = vcmp.eq.f32.partialorder %v2087, 8.507059e+37
    %v2089 = vand.u32 %v2077, 2147483648
    %v2090 = vor.u32 1.1754944e-38, %v2089
    %v2091 = vsel %vm2088, %v2090, %v2086
    %v2092 = vmul.f32 1.0, %v2091
    %v2093 = vmul.f32 %v2092, 2.0
    %v2094 = vsub.f32 %v2093, 1.0
    %v2095 = vmul.f32 %v2092, %v2041
    %2097 = vrot.lane.b32.xlu0 %v2094, 64
    %v2098 = vpop.permute.xlu0 %2097
    %v2100 = vmul.f32 %v2092, %v2098
    %2102 = vrot.lane.b32.xlu0 %v2100, 32
    %v2103 = vpop.permute.xlu0 %2102
    %v2105 = vadd.f32 %v2095, %v2103
    %v2106 = vtanh.pop %v2105
    %2108 = vrot.lane.b32.xlu0 %v2106, 64
    %v2109 = vpop.permute.xlu0 %2108
    %v2111 = vmul.f32 %v2092, %v2109
    %v2112 = vsel %vm694, %v2111, %v2040
    %v2113 = vsel %vm694, %v2105, %v2041
    %2115 = vrot.lane.b32.xlu0 %v2111, 32
    %v2116 = vpop.permute.xlu0 %2115
    %2118 = vst.msk [vmem:[%s701] sm:$0xff] %vm244, %v2116
    %v2119 = vld [vmem:[%s703] sm:$0xff]
    %2121 = vrot.lane.b32.xlu0 %v2112, 32
    %v2122 = vpop.permute.xlu0 %2121
    %v2123 = vsel %vm244, %v2122, 0
    %2125 = vmatpush.msra.mxu0 0.0
    %2126 = vmatpush.msra.mxu0 0.0
    %2127 = vmatpush.msra.mxu0 0.0
    %2128 = vmatpush.msra.mxu0 0.0
    %2129 = vmatpush.msra.mxu0 0.0
    %2130 = vmatpush.msra.mxu0 0.0
    %2131 = vmatpush.msra.mxu0 0.0
    %2132 = vmatpush.msra.mxu0 0.0
    %2133 = vmatpush.msra.mxu0 0.0
    %2134 = vmatpush.msra.mxu0 0.0
    %2135 = vmatpush.msra.mxu0 0.0
    %2136 = vmatpush.msra.mxu0 0.0
    %2137 = vmatpush.msra.mxu0 %v1735
    %2138 = vmatpush.msra.mxu0 %v1734
    %2139 = vmatpush.msra.mxu0 %v1733
    %2140 = vmatpush.msra.mxu0 %v1732
    %2141 = vmatmul.f32.gmra.mxu0 %v2123
    %v2142 = vpop.f32.mrf.mxu0
    %v2143 = vadd.f32 0.0, %v2142
    %2144 = vdwg.mxu0
    %v2145 = vadd.f32 %v2119, %v2143
    %v2146 = vxor.u32 %v2145, 2147483648
    %v2147 = vmul.f32 %v2146, 1.442695
    %v2148 = vpow.pop %v2147
    %v2149 = vadd.f32 %v2148, 1.0
    %v2150 = vrcp.pop %v2149
    %v2151 = vmul.f32 %v2149, %v2150
    %v2152 = vsub.f32 1.0, %v2151
    %v2153 = vmul.f32 %v2150, %v2152
    %v2154 = vadd.f32 %v2150, %v2153
    %vm2155 = vweird.f32 %v2149
    %vm2156 = vweird.f32 %v2150
    %vm2157 = vmor %vm2155, %vm2156
    %v2158 = vsel %vm2157, %v2150, %v2154
    %v2159 = vand.u32 2147483647, %v2149
    %vm2160 = vcmp.eq.f32.partialorder %v2159, 8.507059e+37
    %v2161 = vand.u32 %v2149, 2147483648
    %v2162 = vor.u32 1.1754944e-38, %v2161
    %v2163 = vsel %vm2160, %v2162, %v2158
    %v2164 = vmul.f32 1.0, %v2163
    %v2165 = vmul.f32 %v2164, 2.0
    %v2166 = vsub.f32 %v2165, 1.0
    %v2167 = vmul.f32 %v2164, %v2113
    %2169 = vrot.lane.b32.xlu0 %v2166, 64
    %v2170 = vpop.permute.xlu0 %2169
    %v2172 = vmul.f32 %v2164, %v2170
    %2174 = vrot.lane.b32.xlu0 %v2172, 32
    %v2175 = vpop.permute.xlu0 %2174
    %v2177 = vadd.f32 %v2167, %v2175
    %v2178 = vtanh.pop %v2177
    %2180 = vrot.lane.b32.xlu0 %v2178, 64
    %v2181 = vpop.permute.xlu0 %2180
    %v2183 = vmul.f32 %v2164, %v2181
    %v2184 = vsel %vm774, %v2183, %v2112
    %v2185 = vsel %vm774, %v2177, %v2113
    %2187 = vrot.lane.b32.xlu0 %v2183, 32
    %v2188 = vpop.permute.xlu0 %2187
    %2190 = vst.msk [vmem:[%s781] sm:$0xff] %vm244, %v2188
    %v2191 = vld [vmem:[%s783] sm:$0xff]
    %2193 = vrot.lane.b32.xlu0 %v2184, 32
    %v2194 = vpop.permute.xlu0 %2193
    %v2195 = vsel %vm244, %v2194, 0
    %2197 = vmatpush.msra.mxu0 0.0
    %2198 = vmatpush.msra.mxu0 0.0
    %2199 = vmatpush.msra.mxu0 0.0
    %2200 = vmatpush.msra.mxu0 0.0
    %2201 = vmatpush.msra.mxu0 0.0
    %2202 = vmatpush.msra.mxu0 0.0
    %2203 = vmatpush.msra.mxu0 0.0
    %2204 = vmatpush.msra.mxu0 0.0
    %2205 = vmatpush.msra.mxu0 0.0
    %2206 = vmatpush.msra.mxu0 0.0
    %2207 = vmatpush.msra.mxu0 0.0
    %2208 = vmatpush.msra.mxu0 0.0
    %2209 = vmatpush.msra.mxu0 %v1735
    %2210 = vmatpush.msra.mxu0 %v1734
    %2211 = vmatpush.msra.mxu0 %v1733
    %2212 = vmatpush.msra.mxu0 %v1732
    %2213 = vmatmul.f32.gmra.mxu0 %v2195
    %v2214 = vpop.f32.mrf.mxu0
    %v2215 = vadd.f32 0.0, %v2214
    %2216 = vdwg.mxu0
    %v2217 = vadd.f32 %v2191, %v2215
    %v2218 = vxor.u32 %v2217, 2147483648
    %v2219 = vmul.f32 %v2218, 1.442695
    %v2220 = vpow.pop %v2219
    %v2221 = vadd.f32 %v2220, 1.0
    %v2222 = vrcp.pop %v2221
    %v2223 = vmul.f32 %v2221, %v2222
    %v2224 = vsub.f32 1.0, %v2223
    %v2225 = vmul.f32 %v2222, %v2224
    %v2226 = vadd.f32 %v2222, %v2225
    %vm2227 = vweird.f32 %v2221
    %vm2228 = vweird.f32 %v2222
    %vm2229 = vmor %vm2227, %vm2228
    %v2230 = vsel %vm2229, %v2222, %v2226
    %v2231 = vand.u32 2147483647, %v2221
    %vm2232 = vcmp.eq.f32.partialorder %v2231, 8.507059e+37
    %v2233 = vand.u32 %v2221, 2147483648
    %v2234 = vor.u32 1.1754944e-38, %v2233
    %v2235 = vsel %vm2232, %v2234, %v2230
    %v2236 = vmul.f32 1.0, %v2235
    %v2237 = vmul.f32 %v2236, 2.0
    %v2238 = vsub.f32 %v2237, 1.0
    %v2239 = vmul.f32 %v2236, %v2185
    %2241 = vrot.lane.b32.xlu0 %v2238, 64
    %v2242 = vpop.permute.xlu0 %2241
    %v2244 = vmul.f32 %v2236, %v2242
    %2246 = vrot.lane.b32.xlu0 %v2244, 32
    %v2247 = vpop.permute.xlu0 %2246
    %v2249 = vadd.f32 %v2239, %v2247
    %v2250 = vtanh.pop %v2249
    %2252 = vrot.lane.b32.xlu0 %v2250, 64
    %v2253 = vpop.permute.xlu0 %2252
    %v2255 = vmul.f32 %v2236, %v2253
    %v2256 = vsel %vm854, %v2255, %v2184
    %v2257 = vsel %vm854, %v2249, %v2185
    %2259 = vrot.lane.b32.xlu0 %v2255, 32
    %v2260 = vpop.permute.xlu0 %2259
    %2262 = vst.msk [vmem:[%s861] sm:$0xff] %vm244, %v2260
    %v2263 = vld [vmem:[%s863] sm:$0xff]
    %2265 = vrot.lane.b32.xlu0 %v2256, 32
    %v2266 = vpop.permute.xlu0 %2265
    %v2267 = vsel %vm244, %v2266, 0
    %2269 = vmatpush.msra.mxu0 0.0
    %2270 = vmatpush.msra.mxu0 0.0
    %2271 = vmatpush.msra.mxu0 0.0
    %2272 = vmatpush.msra.mxu0 0.0
    %2273 = vmatpush.msra.mxu0 0.0
    %2274 = vmatpush.msra.mxu0 0.0
    %2275 = vmatpush.msra.mxu0 0.0
    %2276 = vmatpush.msra.mxu0 0.0
    %2277 = vmatpush.msra.mxu0 0.0
    %2278 = vmatpush.msra.mxu0 0.0
    %2279 = vmatpush.msra.mxu0 0.0
    %2280 = vmatpush.msra.mxu0 0.0
    %2281 = vmatpush.msra.mxu0 %v1735
    %2282 = vmatpush.msra.mxu0 %v1734
    %2283 = vmatpush.msra.mxu0 %v1733
    %2284 = vmatpush.msra.mxu0 %v1732
    %2285 = vmatmul.f32.gmra.mxu0 %v2267
    %v2286 = vpop.f32.mrf.mxu0
    %v2287 = vadd.f32 0.0, %v2286
    %2288 = vdwg.mxu0
    %v2289 = vadd.f32 %v2263, %v2287
    %v2290 = vxor.u32 %v2289, 2147483648
    %v2291 = vmul.f32 %v2290, 1.442695
    %v2292 = vpow.pop %v2291
    %v2293 = vadd.f32 %v2292, 1.0
    %v2294 = vrcp.pop %v2293
    %v2295 = vmul.f32 %v2293, %v2294
    %v2296 = vsub.f32 1.0, %v2295
    %v2297 = vmul.f32 %v2294, %v2296
    %v2298 = vadd.f32 %v2294, %v2297
    %vm2299 = vweird.f32 %v2293
    %vm2300 = vweird.f32 %v2294
    %vm2301 = vmor %vm2299, %vm2300
    %v2302 = vsel %vm2301, %v2294, %v2298
    %v2303 = vand.u32 2147483647, %v2293
    %vm2304 = vcmp.eq.f32.partialorder %v2303, 8.507059e+37
    %v2305 = vand.u32 %v2293, 2147483648
    %v2306 = vor.u32 1.1754944e-38, %v2305
    %v2307 = vsel %vm2304, %v2306, %v2302
    %v2308 = vmul.f32 1.0, %v2307
    %v2309 = vmul.f32 %v2308, 2.0
    %v2310 = vsub.f32 %v2309, 1.0
    %v2311 = vmul.f32 %v2308, %v2257
    %2313 = vrot.lane.b32.xlu0 %v2310, 64
    %v2314 = vpop.permute.xlu0 %2313
    %v2316 = vmul.f32 %v2308, %v2314
    %2318 = vrot.lane.b32.xlu0 %v2316, 32
    %v2319 = vpop.permute.xlu0 %2318
    %v2321 = vadd.f32 %v2311, %v2319
    %v2322 = vtanh.pop %v2321
    %2324 = vrot.lane.b32.xlu0 %v2322, 64
    %v2325 = vpop.permute.xlu0 %2324
    %v2327 = vmul.f32 %v2308, %v2325
    %v2328 = vsel %vm934, %v2327, %v2256
    %v2329 = vsel %vm934, %v2321, %v2257
    %2331 = vrot.lane.b32.xlu0 %v2327, 32
    %v2332 = vpop.permute.xlu0 %2331
    %2334 = vst.msk [vmem:[%s941] sm:$0xff] %vm244, %v2332
    %v2335 = vld [vmem:[%s943] sm:$0xff]
    %2337 = vrot.lane.b32.xlu0 %v2328, 32
    %v2338 = vpop.permute.xlu0 %2337
    %v2339 = vsel %vm244, %v2338, 0
    %2341 = vmatpush.msra.mxu0 0.0
    %2342 = vmatpush.msra.mxu0 0.0
    %2343 = vmatpush.msra.mxu0 0.0
    %2344 = vmatpush.msra.mxu0 0.0
    %2345 = vmatpush.msra.mxu0 0.0
    %2346 = vmatpush.msra.mxu0 0.0
    %2347 = vmatpush.msra.mxu0 0.0
    %2348 = vmatpush.msra.mxu0 0.0
    %2349 = vmatpush.msra.mxu0 0.0
    %2350 = vmatpush.msra.mxu0 0.0
    %2351 = vmatpush.msra.mxu0 0.0
    %2352 = vmatpush.msra.mxu0 0.0
    %2353 = vmatpush.msra.mxu0 %v1735
    %2354 = vmatpush.msra.mxu0 %v1734
    %2355 = vmatpush.msra.mxu0 %v1733
    %2356 = vmatpush.msra.mxu0 %v1732
    %2357 = vmatmul.f32.gmra.mxu0 %v2339
    %v2358 = vpop.f32.mrf.mxu0
    %v2359 = vadd.f32 0.0, %v2358
    %2360 = vdwg.mxu0
    %v2361 = vadd.f32 %v2335, %v2359
    %v2362 = vxor.u32 %v2361, 2147483648
    %v2363 = vmul.f32 %v2362, 1.442695
    %v2364 = vpow.pop %v2363
    %v2365 = vadd.f32 %v2364, 1.0
    %v2366 = vrcp.pop %v2365
    %v2367 = vmul.f32 %v2365, %v2366
    %v2368 = vsub.f32 1.0, %v2367
    %v2369 = vmul.f32 %v2366, %v2368
    %v2370 = vadd.f32 %v2366, %v2369
    %vm2371 = vweird.f32 %v2365
    %vm2372 = vweird.f32 %v2366
    %vm2373 = vmor %vm2371, %vm2372
    %v2374 = vsel %vm2373, %v2366, %v2370
    %v2375 = vand.u32 2147483647, %v2365
    %vm2376 = vcmp.eq.f32.partialorder %v2375, 8.507059e+37
    %v2377 = vand.u32 %v2365, 2147483648
    %v2378 = vor.u32 1.1754944e-38, %v2377
    %v2379 = vsel %vm2376, %v2378, %v2374
    %v2380 = vmul.f32 1.0, %v2379
    %v2381 = vmul.f32 %v2380, 2.0
    %v2382 = vsub.f32 %v2381, 1.0
    %v2383 = vmul.f32 %v2380, %v2329
    %2385 = vrot.lane.b32.xlu0 %v2382, 64
    %v2386 = vpop.permute.xlu0 %2385
    %v2388 = vmul.f32 %v2380, %v2386
    %2390 = vrot.lane.b32.xlu0 %v2388, 32
    %v2391 = vpop.permute.xlu0 %2390
    %v2393 = vadd.f32 %v2383, %v2391
    %v2394 = vtanh.pop %v2393
    %2396 = vrot.lane.b32.xlu0 %v2394, 64
    %v2397 = vpop.permute.xlu0 %2396
    %v2399 = vmul.f32 %v2380, %v2397
    %v2400 = vsel %vm1014, %v2399, %v2328
    %v2401 = vsel %vm1014, %v2393, %v2329
    %2403 = vrot.lane.b32.xlu0 %v2399, 32
    %v2404 = vpop.permute.xlu0 %2403
    %2406 = vst.msk [vmem:[%s1021] sm:$0xff] %vm244, %v2404
    %2408 = vrot.lane.b32.xlu0 %v2400, 32
    %v2409 = vpop.permute.xlu0 %2408
    %s2411 = scalar_lea.vmem [#allocation16], 16
    %2412 = vst.msk [vmem:[%s2411] sm:$0xff] %vm244, %v2409
    %2414 = vrot.lane.b32.xlu0 %v2401, 96
    %v2415 = vpop.permute.xlu0 %2414
    %s2417 = scalar_lea.vmem [#allocation17], 16
    %2418 = vst.msk [vmem:[%s2417] sm:$0xff] %vm244, %v2415
    %s2419 = scalar_lea.vmem [#allocation10], 96
    %v2420 = vld [vmem:[%s2419] sm:$0xff]
    %v2421 = vld [vmem:[%s2419 + $0x8] sm:$0xff]
    %v2422 = vld [vmem:[%s2419 + $0x10] sm:$0xff]
    %v2423 = vld [vmem:[%s2419 + $0x18] sm:$0xff]
    %s2424 = scalar_lea.vmem %s7, 96
    %v2425 = vld [vmem:[%s2424] sm:$0xff]
    %v2426 = vld [vmem:[%s2424 + $0x8] sm:$0xff]
    %v2427 = vld [vmem:[%s2424 + $0x10] sm:$0xff]
    %v2428 = vld [vmem:[%s2424 + $0x18] sm:$0xff]
    %s2429 = scalar_lea.vmem %s8, 3
    %v2430 = vld [vmem:[%s2429] sm:$0x1]
    %v2431 = vld [vmem:[#allocation2] sm:$0xff]
    %v2432 = vld [vmem:[#allocation2 + $0x8] sm:$0xff]
    %v2433 = vld [vmem:[#allocation2 + $0x10] sm:$0xff]
    %v2434 = vld [vmem:[#allocation2 + $0x18] sm:$0xff]
    %v2435 = vld [vmem:[#allocation2 + $0x20] sm:$0xff]
    %v2436 = vld [vmem:[#allocation2 + $0x28] sm:$0xff]
    %v2437 = vld [vmem:[#allocation2 + $0x30] sm:$0xff]
    %v2438 = vld [vmem:[#allocation2 + $0x38] sm:$0xff]
    %v2440 = vperm.slane %v2430, 0
    %v2443 = vsel %vm244, %v2431, 0
    %v2446 = vsel %vm244, %v2432, 0
    %v2449 = vsel %vm244, %v2433, 0
    %v2452 = vsel %vm244, %v2434, 0
    %v2455 = vsel %vm244, %v2435, 0
    %v2458 = vsel %vm244, %v2436, 0
    %v2461 = vsel %vm244, %v2437, 0
    %v2464 = vsel %vm244, %v2438, 0
    %2466 = vmatpush.msra.mxu0 0.0
    %2467 = vmatpush.msra.mxu0 0.0
    %2468 = vmatpush.msra.mxu0 0.0
    %2469 = vmatpush.msra.mxu0 0.0
    %2470 = vmatpush.msra.mxu0 0.0
    %2471 = vmatpush.msra.mxu0 0.0
    %2472 = vmatpush.msra.mxu0 0.0
    %2473 = vmatpush.msra.mxu0 0.0
    %2474 = vmatpush.msra.mxu0 0.0
    %2475 = vmatpush.msra.mxu0 0.0
    %2476 = vmatpush.msra.mxu0 0.0
    %2477 = vmatpush.msra.mxu0 0.0
    %2478 = vmatpush.msra.mxu0 %v2423
    %2479 = vmatpush.msra.mxu0 %v2422
    %2480 = vmatpush.msra.mxu0 %v2421
    %2481 = vmatpush.msra.mxu0 %v2420
    %2482 = vmatmul.f32.gmra.mxu0 %v2443
    %v2483 = vpop.f32.mrf.mxu0
    %v2484 = vadd.f32 %v2440, %v2483
    %2485 = vmatmul.f32.gmra.mxu0 %v2446
    %v2486 = vpop.f32.mrf.mxu0
    %v2487 = vadd.f32 %v2440, %v2486
    %2488 = vmatmul.f32.gmra.mxu0 %v2449
    %v2489 = vpop.f32.mrf.mxu0
    %v2490 = vadd.f32 %v2440, %v2489
    %2491 = vmatmul.f32.gmra.mxu0 %v2452
    %v2492 = vpop.f32.mrf.mxu0
    %v2493 = vadd.f32 %v2440, %v2492
    %2494 = vmatmul.f32.gmra.mxu0 %v2455
    %v2495 = vpop.f32.mrf.mxu0
    %v2496 = vadd.f32 %v2440, %v2495
    %2497 = vmatmul.f32.gmra.mxu0 %v2458
    %v2498 = vpop.f32.mrf.mxu0
    %v2499 = vadd.f32 %v2440, %v2498
    %2500 = vmatmul.f32.gmra.mxu0 %v2461
    %v2501 = vpop.f32.mrf.mxu0
    %v2502 = vadd.f32 %v2440, %v2501
    %2503 = vmatmul.f32.gmra.mxu0 %v2464
    %v2504 = vpop.f32.mrf.mxu0
    %v2505 = vadd.f32 %v2440, %v2504
    %2506 = vdwg.mxu0
    %2507 = vst [vmem:[#allocation3] sm:$0xff] %v2484
    %2508 = vst [vmem:[#allocation3 + $0x8] sm:$0xff] %v2487
    %2509 = vst [vmem:[#allocation3 + $0x10] sm:$0xff] %v2490
    %2510 = vst [vmem:[#allocation3 + $0x18] sm:$0xff] %v2493
    %2511 = vst [vmem:[#allocation3 + $0x20] sm:$0xff] %v2496
    %2512 = vst [vmem:[#allocation3 + $0x28] sm:$0xff] %v2499
    %2513 = vst [vmem:[#allocation3 + $0x30] sm:$0xff] %v2502
    %2514 = vst [vmem:[#allocation3 + $0x38] sm:$0xff] %v2505
    %s2515 = scalar_lea.vmem [#allocation7], 24
    %v2516 = vld [vmem:[%s2515] sm:$0xff]
    %s2517 = scalar_lea.vmem [#allocation9], 24
    %v2518 = vld [vmem:[%s2517] sm:$0xff]
    %v2519 = vld [vmem:[#allocation3] sm:$0xff]
    %v2521 = vsel %vm244, %v2516, 0
    %2523 = vmatpush.msra.mxu0 0.0
    %2524 = vmatpush.msra.mxu0 0.0
    %2525 = vmatpush.msra.mxu0 0.0
    %2526 = vmatpush.msra.mxu0 0.0
    %2527 = vmatpush.msra.mxu0 0.0
    %2528 = vmatpush.msra.mxu0 0.0
    %2529 = vmatpush.msra.mxu0 0.0
    %2530 = vmatpush.msra.mxu0 0.0
    %2531 = vmatpush.msra.mxu0 0.0
    %2532 = vmatpush.msra.mxu0 0.0
    %2533 = vmatpush.msra.mxu0 0.0
    %2534 = vmatpush.msra.mxu0 0.0
    %2535 = vmatpush.msra.mxu0 %v2428
    %2536 = vmatpush.msra.mxu0 %v2427
    %2537 = vmatpush.msra.mxu0 %v2426
    %2538 = vmatpush.msra.mxu0 %v2425
    %2539 = vmatmul.f32.gmra.mxu0 %v2521
    %v2540 = vpop.f32.mrf.mxu0
    %v2541 = vadd.f32 0.0, %v2540
    %2542 = vdwg.mxu0
    %v2543 = vadd.f32 %v2519, %v2541
    %v2544 = vxor.u32 %v2543, 2147483648
    %v2545 = vmul.f32 %v2544, 1.442695
    %v2546 = vpow.pop %v2545
    %v2547 = vadd.f32 %v2546, 1.0
    %v2548 = vrcp.pop %v2547
    %v2549 = vmul.f32 %v2547, %v2548
    %v2550 = vsub.f32 1.0, %v2549
    %v2551 = vmul.f32 %v2548, %v2550
    %v2552 = vadd.f32 %v2548, %v2551
    %vm2553 = vweird.f32 %v2547
    %vm2554 = vweird.f32 %v2548
    %vm2555 = vmor %vm2553, %vm2554
    %v2556 = vsel %vm2555, %v2548, %v2552
    %v2557 = vand.u32 2147483647, %v2547
    %vm2558 = vcmp.eq.f32.partialorder %v2557, 8.507059e+37
    %v2559 = vand.u32 %v2547, 2147483648
    %v2560 = vor.u32 1.1754944e-38, %v2559
    %v2561 = vsel %vm2558, %v2560, %v2556
    %v2562 = vmul.f32 1.0, %v2561
    %v2563 = vmul.f32 %v2562, 2.0
    %v2564 = vsub.f32 %v2563, 1.0
    %2566 = vrot.lane.b32.xlu0 %v2518, 32
    %v2567 = vpop.permute.xlu0 %2566
    %v2569 = vmul.f32 %v2562, %v2567
    %2571 = vrot.lane.b32.xlu0 %v2564, 64
    %v2572 = vpop.permute.xlu0 %2571
    %v2574 = vmul.f32 %v2562, %v2572
    %2576 = vrot.lane.b32.xlu0 %v2574, 32
    %v2577 = vpop.permute.xlu0 %2576
    %v2579 = vadd.f32 %v2569, %v2577
    %v2580 = vtanh.pop %v2579
    %2582 = vrot.lane.b32.xlu0 %v2580, 64
    %v2583 = vpop.permute.xlu0 %2582
    %v2585 = vmul.f32 %v2562, %v2583
    %2586 = vrot.lane.b32.xlu0 %v2516, 96
    %v2587 = vpop.permute.xlu0 %2586
    %v2589 = vsel %vm452, %v2585, %v2587
    %v2590 = vsel %vm452, %v2579, %v2567
    %v2591 = vsel %vm452, %v2585, 0.0
    %2593 = vrot.lane.b32.xlu0 %v2591, 32
    %v2594 = vpop.permute.xlu0 %2593
    %2596 = vst.msk [vmem:[#allocation2] sm:$0xff] %vm244, %v2594
    %v2597 = vld [vmem:[%s463] sm:$0xff]
    %2599 = vrot.lane.b32.xlu0 %v2589, 32
    %v2600 = vpop.permute.xlu0 %2599
    %v2601 = vsel %vm244, %v2600, 0
    %2603 = vmatpush.msra.mxu0 0.0
    %2604 = vmatpush.msra.mxu0 0.0
    %2605 = vmatpush.msra.mxu0 0.0
    %2606 = vmatpush.msra.mxu0 0.0
    %2607 = vmatpush.msra.mxu0 0.0
    %2608 = vmatpush.msra.mxu0 0.0
    %2609 = vmatpush.msra.mxu0 0.0
    %2610 = vmatpush.msra.mxu0 0.0
    %2611 = vmatpush.msra.mxu0 0.0
    %2612 = vmatpush.msra.mxu0 0.0
    %2613 = vmatpush.msra.mxu0 0.0
    %2614 = vmatpush.msra.mxu0 0.0
    %2615 = vmatpush.msra.mxu0 %v2428
    %2616 = vmatpush.msra.mxu0 %v2427
    %2617 = vmatpush.msra.mxu0 %v2426
    %2618 = vmatpush.msra.mxu0 %v2425
    %2619 = vmatmul.f32.gmra.mxu0 %v2601
    %v2620 = vpop.f32.mrf.mxu0
    %v2621 = vadd.f32 0.0, %v2620
    %2622 = vdwg.mxu0
    %v2623 = vadd.f32 %v2597, %v2621
    %v2624 = vxor.u32 %v2623, 2147483648
    %v2625 = vmul.f32 %v2624, 1.442695
    %v2626 = vpow.pop %v2625
    %v2627 = vadd.f32 %v2626, 1.0
    %v2628 = vrcp.pop %v2627
    %v2629 = vmul.f32 %v2627, %v2628
    %v2630 = vsub.f32 1.0, %v2629
    %v2631 = vmul.f32 %v2628, %v2630
    %v2632 = vadd.f32 %v2628, %v2631
    %vm2633 = vweird.f32 %v2627
    %vm2634 = vweird.f32 %v2628
    %vm2635 = vmor %vm2633, %vm2634
    %v2636 = vsel %vm2635, %v2628, %v2632
    %v2637 = vand.u32 2147483647, %v2627
    %vm2638 = vcmp.eq.f32.partialorder %v2637, 8.507059e+37
    %v2639 = vand.u32 %v2627, 2147483648
    %v2640 = vor.u32 1.1754944e-38, %v2639
    %v2641 = vsel %vm2638, %v2640, %v2636
    %v2642 = vmul.f32 1.0, %v2641
    %v2643 = vmul.f32 %v2642, 2.0
    %v2644 = vsub.f32 %v2643, 1.0
    %v2645 = vmul.f32 %v2642, %v2590
    %2647 = vrot.lane.b32.xlu0 %v2644, 64
    %v2648 = vpop.permute.xlu0 %2647
    %v2650 = vmul.f32 %v2642, %v2648
    %2652 = vrot.lane.b32.xlu0 %v2650, 32
    %v2653 = vpop.permute.xlu0 %2652
    %v2655 = vadd.f32 %v2645, %v2653
    %v2656 = vtanh.pop %v2655
    %2658 = vrot.lane.b32.xlu0 %v2656, 64
    %v2659 = vpop.permute.xlu0 %2658
    %v2661 = vmul.f32 %v2642, %v2659
    %v2662 = vsel %vm534, %v2661, %v2589
    %v2663 = vsel %vm534, %v2655, %v2590
    %v2664 = vsel %vm534, %v2661, 0.0
    %2666 = vrot.lane.b32.xlu0 %v2664, 32
    %v2667 = vpop.permute.xlu0 %2666
    %2669 = vst.msk [vmem:[%s541] sm:$0xff] %vm244, %v2667
    %v2670 = vld [vmem:[%s543] sm:$0xff]
    %2672 = vrot.lane.b32.xlu0 %v2662, 32
    %v2673 = vpop.permute.xlu0 %2672
    %v2674 = vsel %vm244, %v2673, 0
    %2676 = vmatpush.msra.mxu0 0.0
    %2677 = vmatpush.msra.mxu0 0.0
    %2678 = vmatpush.msra.mxu0 0.0
    %2679 = vmatpush.msra.mxu0 0.0
    %2680 = vmatpush.msra.mxu0 0.0
    %2681 = vmatpush.msra.mxu0 0.0
    %2682 = vmatpush.msra.mxu0 0.0
    %2683 = vmatpush.msra.mxu0 0.0
    %2684 = vmatpush.msra.mxu0 0.0
    %2685 = vmatpush.msra.mxu0 0.0
    %2686 = vmatpush.msra.mxu0 0.0
    %2687 = vmatpush.msra.mxu0 0.0
    %2688 = vmatpush.msra.mxu0 %v2428
    %2689 = vmatpush.msra.mxu0 %v2427
    %2690 = vmatpush.msra.mxu0 %v2426
    %2691 = vmatpush.msra.mxu0 %v2425
    %2692 = vmatmul.f32.gmra.mxu0 %v2674
    %v2693 = vpop.f32.mrf.mxu0
    %v2694 = vadd.f32 0.0, %v2693
    %2695 = vdwg.mxu0
    %v2696 = vadd.f32 %v2670, %v2694
    %v2697 = vxor.u32 %v2696, 2147483648
    %v2698 = vmul.f32 %v2697, 1.442695
    %v2699 = vpow.pop %v2698
    %v2700 = vadd.f32 %v2699, 1.0
    %v2701 = vrcp.pop %v2700
    %v2702 = vmul.f32 %v2700, %v2701
    %v2703 = vsub.f32 1.0, %v2702
    %v2704 = vmul.f32 %v2701, %v2703
    %v2705 = vadd.f32 %v2701, %v2704
    %vm2706 = vweird.f32 %v2700
    %vm2707 = vweird.f32 %v2701
    %vm2708 = vmor %vm2706, %vm2707
    %v2709 = vsel %vm2708, %v2701, %v2705
    %v2710 = vand.u32 2147483647, %v2700
    %vm2711 = vcmp.eq.f32.partialorder %v2710, 8.507059e+37
    %v2712 = vand.u32 %v2700, 2147483648
    %v2713 = vor.u32 1.1754944e-38, %v2712
    %v2714 = vsel %vm2711, %v2713, %v2709
    %v2715 = vmul.f32 1.0, %v2714
    %v2716 = vmul.f32 %v2715, 2.0
    %v2717 = vsub.f32 %v2716, 1.0
    %v2718 = vmul.f32 %v2715, %v2663
    %2720 = vrot.lane.b32.xlu0 %v2717, 64
    %v2721 = vpop.permute.xlu0 %2720
    %v2723 = vmul.f32 %v2715, %v2721
    %2725 = vrot.lane.b32.xlu0 %v2723, 32
    %v2726 = vpop.permute.xlu0 %2725
    %v2728 = vadd.f32 %v2718, %v2726
    %v2729 = vtanh.pop %v2728
    %2731 = vrot.lane.b32.xlu0 %v2729, 64
    %v2732 = vpop.permute.xlu0 %2731
    %v2734 = vmul.f32 %v2715, %v2732
    %v2735 = vsel %vm614, %v2734, %v2662
    %v2736 = vsel %vm614, %v2728, %v2663
    %v2737 = vsel %vm614, %v2734, 0.0
    %2739 = vrot.lane.b32.xlu0 %v2737, 32
    %v2740 = vpop.permute.xlu0 %2739
    %2742 = vst.msk [vmem:[%s621] sm:$0xff] %vm244, %v2740
    %v2743 = vld [vmem:[%s623] sm:$0xff]
    %2745 = vrot.lane.b32.xlu0 %v2735, 32
    %v2746 = vpop.permute.xlu0 %2745
    %v2747 = vsel %vm244, %v2746, 0
    %2749 = vmatpush.msra.mxu0 0.0
    %2750 = vmatpush.msra.mxu0 0.0
    %2751 = vmatpush.msra.mxu0 0.0
    %2752 = vmatpush.msra.mxu0 0.0
    %2753 = vmatpush.msra.mxu0 0.0
    %2754 = vmatpush.msra.mxu0 0.0
    %2755 = vmatpush.msra.mxu0 0.0
    %2756 = vmatpush.msra.mxu0 0.0
    %2757 = vmatpush.msra.mxu0 0.0
    %2758 = vmatpush.msra.mxu0 0.0
    %2759 = vmatpush.msra.mxu0 0.0
    %2760 = vmatpush.msra.mxu0 0.0
    %2761 = vmatpush.msra.mxu0 %v2428
    %2762 = vmatpush.msra.mxu0 %v2427
    %2763 = vmatpush.msra.mxu0 %v2426
    %2764 = vmatpush.msra.mxu0 %v2425
    %2765 = vmatmul.f32.gmra.mxu0 %v2747
    %v2766 = vpop.f32.mrf.mxu0
    %v2767 = vadd.f32 0.0, %v2766
    %2768 = vdwg.mxu0
    %v2769 = vadd.f32 %v2743, %v2767
    %v2770 = vxor.u32 %v2769, 2147483648
    %v2771 = vmul.f32 %v2770, 1.442695
    %v2772 = vpow.pop %v2771
    %v2773 = vadd.f32 %v2772, 1.0
    %v2774 = vrcp.pop %v2773
    %v2775 = vmul.f32 %v2773, %v2774
    %v2776 = vsub.f32 1.0, %v2775
    %v2777 = vmul.f32 %v2774, %v2776
    %v2778 = vadd.f32 %v2774, %v2777
    %vm2779 = vweird.f32 %v2773
    %vm2780 = vweird.f32 %v2774
    %vm2781 = vmor %vm2779, %vm2780
    %v2782 = vsel %vm2781, %v2774, %v2778
    %v2783 = vand.u32 2147483647, %v2773
    %vm2784 = vcmp.eq.f32.partialorder %v2783, 8.507059e+37
    %v2785 = vand.u32 %v2773, 2147483648
    %v2786 = vor.u32 1.1754944e-38, %v2785
    %v2787 = vsel %vm2784, %v2786, %v2782
    %v2788 = vmul.f32 1.0, %v2787
    %v2789 = vmul.f32 %v2788, 2.0
    %v2790 = vsub.f32 %v2789, 1.0
    %v2791 = vmul.f32 %v2788, %v2736
    %2793 = vrot.lane.b32.xlu0 %v2790, 64
    %v2794 = vpop.permute.xlu0 %2793
    %v2796 = vmul.f32 %v2788, %v2794
    %2798 = vrot.lane.b32.xlu0 %v2796, 32
    %v2799 = vpop.permute.xlu0 %2798
    %v2801 = vadd.f32 %v2791, %v2799
    %v2802 = vtanh.pop %v2801
    %2804 = vrot.lane.b32.xlu0 %v2802, 64
    %v2805 = vpop.permute.xlu0 %2804
    %v2807 = vmul.f32 %v2788, %v2805
    %v2808 = vsel %vm694, %v2807, %v2735
    %v2809 = vsel %vm694, %v2801, %v2736
    %v2810 = vsel %vm694, %v2807, 0.0
    %2812 = vrot.lane.b32.xlu0 %v2810, 32
    %v2813 = vpop.permute.xlu0 %2812
    %2815 = vst.msk [vmem:[%s701] sm:$0xff] %vm244, %v2813
    %v2816 = vld [vmem:[%s703] sm:$0xff]
    %2818 = vrot.lane.b32.xlu0 %v2808, 32
    %v2819 = vpop.permute.xlu0 %2818
    %v2820 = vsel %vm244, %v2819, 0
    %2822 = vmatpush.msra.mxu0 0.0
    %2823 = vmatpush.msra.mxu0 0.0
    %2824 = vmatpush.msra.mxu0 0.0
    %2825 = vmatpush.msra.mxu0 0.0
    %2826 = vmatpush.msra.mxu0 0.0
    %2827 = vmatpush.msra.mxu0 0.0
    %2828 = vmatpush.msra.mxu0 0.0
    %2829 = vmatpush.msra.mxu0 0.0
    %2830 = vmatpush.msra.mxu0 0.0
    %2831 = vmatpush.msra.mxu0 0.0
    %2832 = vmatpush.msra.mxu0 0.0
    %2833 = vmatpush.msra.mxu0 0.0
    %2834 = vmatpush.msra.mxu0 %v2428
    %2835 = vmatpush.msra.mxu0 %v2427
    %2836 = vmatpush.msra.mxu0 %v2426
    %2837 = vmatpush.msra.mxu0 %v2425
    %2838 = vmatmul.f32.gmra.mxu0 %v2820
    %v2839 = vpop.f32.mrf.mxu0
    %v2840 = vadd.f32 0.0, %v2839
    %2841 = vdwg.mxu0
    %v2842 = vadd.f32 %v2816, %v2840
    %v2843 = vxor.u32 %v2842, 2147483648
    %v2844 = vmul.f32 %v2843, 1.442695
    %v2845 = vpow.pop %v2844
    %v2846 = vadd.f32 %v2845, 1.0
    %v2847 = vrcp.pop %v2846
    %v2848 = vmul.f32 %v2846, %v2847
    %v2849 = vsub.f32 1.0, %v2848
    %v2850 = vmul.f32 %v2847, %v2849
    %v2851 = vadd.f32 %v2847, %v2850
    %vm2852 = vweird.f32 %v2846
    %vm2853 = vweird.f32 %v2847
    %vm2854 = vmor %vm2852, %vm2853
    %v2855 = vsel %vm2854, %v2847, %v2851
    %v2856 = vand.u32 2147483647, %v2846
    %vm2857 = vcmp.eq.f32.partialorder %v2856, 8.507059e+37
    %v2858 = vand.u32 %v2846, 2147483648
    %v2859 = vor.u32 1.1754944e-38, %v2858
    %v2860 = vsel %vm2857, %v2859, %v2855
    %v2861 = vmul.f32 1.0, %v2860
    %v2862 = vmul.f32 %v2861, 2.0
    %v2863 = vsub.f32 %v2862, 1.0
    %v2864 = vmul.f32 %v2861, %v2809
    %2866 = vrot.lane.b32.xlu0 %v2863, 64
    %v2867 = vpop.permute.xlu0 %2866
    %v2869 = vmul.f32 %v2861, %v2867
    %2871 = vrot.lane.b32.xlu0 %v2869, 32
    %v2872 = vpop.permute.xlu0 %2871
    %v2874 = vadd.f32 %v2864, %v2872
    %v2875 = vtanh.pop %v2874
    %2877 = vrot.lane.b32.xlu0 %v2875, 64
    %v2878 = vpop.permute.xlu0 %2877
    %v2880 = vmul.f32 %v2861, %v2878
    %v2881 = vsel %vm774, %v2880, %v2808
    %v2882 = vsel %vm774, %v2874, %v2809
    %v2883 = vsel %vm774, %v2880, 0.0
    %2885 = vrot.lane.b32.xlu0 %v2883, 32
    %v2886 = vpop.permute.xlu0 %2885
    %2888 = vst.msk [vmem:[%s781] sm:$0xff] %vm244, %v2886
    %v2889 = vld [vmem:[%s783] sm:$0xff]
    %2891 = vrot.lane.b32.xlu0 %v2881, 32
    %v2892 = vpop.permute.xlu0 %2891
    %v2893 = vsel %vm244, %v2892, 0
    %2895 = vmatpush.msra.mxu0 0.0
    %2896 = vmatpush.msra.mxu0 0.0
    %2897 = vmatpush.msra.mxu0 0.0
    %2898 = vmatpush.msra.mxu0 0.0
    %2899 = vmatpush.msra.mxu0 0.0
    %2900 = vmatpush.msra.mxu0 0.0
    %2901 = vmatpush.msra.mxu0 0.0
    %2902 = vmatpush.msra.mxu0 0.0
    %2903 = vmatpush.msra.mxu0 0.0
    %2904 = vmatpush.msra.mxu0 0.0
    %2905 = vmatpush.msra.mxu0 0.0
    %2906 = vmatpush.msra.mxu0 0.0
    %2907 = vmatpush.msra.mxu0 %v2428
    %2908 = vmatpush.msra.mxu0 %v2427
    %2909 = vmatpush.msra.mxu0 %v2426
    %2910 = vmatpush.msra.mxu0 %v2425
    %2911 = vmatmul.f32.gmra.mxu0 %v2893
    %v2912 = vpop.f32.mrf.mxu0
    %v2913 = vadd.f32 0.0, %v2912
    %2914 = vdwg.mxu0
    %v2915 = vadd.f32 %v2889, %v2913
    %v2916 = vxor.u32 %v2915, 2147483648
    %v2917 = vmul.f32 %v2916, 1.442695
    %v2918 = vpow.pop %v2917
    %v2919 = vadd.f32 %v2918, 1.0
    %v2920 = vrcp.pop %v2919
    %v2921 = vmul.f32 %v2919, %v2920
    %v2922 = vsub.f32 1.0, %v2921
    %v2923 = vmul.f32 %v2920, %v2922
    %v2924 = vadd.f32 %v2920, %v2923
    %vm2925 = vweird.f32 %v2919
    %vm2926 = vweird.f32 %v2920
    %vm2927 = vmor %vm2925, %vm2926
    %v2928 = vsel %vm2927, %v2920, %v2924
    %v2929 = vand.u32 2147483647, %v2919
    %vm2930 = vcmp.eq.f32.partialorder %v2929, 8.507059e+37
    %v2931 = vand.u32 %v2919, 2147483648
    %v2932 = vor.u32 1.1754944e-38, %v2931
    %v2933 = vsel %vm2930, %v2932, %v2928
    %v2934 = vmul.f32 1.0, %v2933
    %v2935 = vmul.f32 %v2934, 2.0
    %v2936 = vsub.f32 %v2935, 1.0
    %v2937 = vmul.f32 %v2934, %v2882
    %2939 = vrot.lane.b32.xlu0 %v2936, 64
    %v2940 = vpop.permute.xlu0 %2939
    %v2942 = vmul.f32 %v2934, %v2940
    %2944 = vrot.lane.b32.xlu0 %v2942, 32
    %v2945 = vpop.permute.xlu0 %2944
    %v2947 = vadd.f32 %v2937, %v2945
    %v2948 = vtanh.pop %v2947
    %2950 = vrot.lane.b32.xlu0 %v2948, 64
    %v2951 = vpop.permute.xlu0 %2950
    %v2953 = vmul.f32 %v2934, %v2951
    %v2954 = vsel %vm854, %v2953, %v2881
    %v2955 = vsel %vm854, %v2947, %v2882
    %v2956 = vsel %vm854, %v2953, 0.0
    %2958 = vrot.lane.b32.xlu0 %v2956, 32
    %v2959 = vpop.permute.xlu0 %2958
    %2961 = vst.msk [vmem:[%s861] sm:$0xff] %vm244, %v2959
    %v2962 = vld [vmem:[%s863] sm:$0xff]
    %2964 = vrot.lane.b32.xlu0 %v2954, 32
    %v2965 = vpop.permute.xlu0 %2964
    %v2966 = vsel %vm244, %v2965, 0
    %2968 = vmatpush.msra.mxu0 0.0
    %2969 = vmatpush.msra.mxu0 0.0
    %2970 = vmatpush.msra.mxu0 0.0
    %2971 = vmatpush.msra.mxu0 0.0
    %2972 = vmatpush.msra.mxu0 0.0
    %2973 = vmatpush.msra.mxu0 0.0
    %2974 = vmatpush.msra.mxu0 0.0
    %2975 = vmatpush.msra.mxu0 0.0
    %2976 = vmatpush.msra.mxu0 0.0
    %2977 = vmatpush.msra.mxu0 0.0
    %2978 = vmatpush.msra.mxu0 0.0
    %2979 = vmatpush.msra.mxu0 0.0
    %2980 = vmatpush.msra.mxu0 %v2428
    %2981 = vmatpush.msra.mxu0 %v2427
    %2982 = vmatpush.msra.mxu0 %v2426
    %2983 = vmatpush.msra.mxu0 %v2425
    %2984 = vmatmul.f32.gmra.mxu0 %v2966
    %v2985 = vpop.f32.mrf.mxu0
    %v2986 = vadd.f32 0.0, %v2985
    %2987 = vdwg.mxu0
    %v2988 = vadd.f32 %v2962, %v2986
    %v2989 = vxor.u32 %v2988, 2147483648
    %v2990 = vmul.f32 %v2989, 1.442695
    %v2991 = vpow.pop %v2990
    %v2992 = vadd.f32 %v2991, 1.0
    %v2993 = vrcp.pop %v2992
    %v2994 = vmul.f32 %v2992, %v2993
    %v2995 = vsub.f32 1.0, %v2994
    %v2996 = vmul.f32 %v2993, %v2995
    %v2997 = vadd.f32 %v2993, %v2996
    %vm2998 = vweird.f32 %v2992
    %vm2999 = vweird.f32 %v2993
    %vm3000 = vmor %vm2998, %vm2999
    %v3001 = vsel %vm3000, %v2993, %v2997
    %v3002 = vand.u32 2147483647, %v2992
    %vm3003 = vcmp.eq.f32.partialorder %v3002, 8.507059e+37
    %v3004 = vand.u32 %v2992, 2147483648
    %v3005 = vor.u32 1.1754944e-38, %v3004
    %v3006 = vsel %vm3003, %v3005, %v3001
    %v3007 = vmul.f32 1.0, %v3006
    %v3008 = vmul.f32 %v3007, 2.0
    %v3009 = vsub.f32 %v3008, 1.0
    %v3010 = vmul.f32 %v3007, %v2955
    %3012 = vrot.lane.b32.xlu0 %v3009, 64
    %v3013 = vpop.permute.xlu0 %3012
    %v3015 = vmul.f32 %v3007, %v3013
    %3017 = vrot.lane.b32.xlu0 %v3015, 32
    %v3018 = vpop.permute.xlu0 %3017
    %v3020 = vadd.f32 %v3010, %v3018
    %v3021 = vtanh.pop %v3020
    %3023 = vrot.lane.b32.xlu0 %v3021, 64
    %v3024 = vpop.permute.xlu0 %3023
    %v3026 = vmul.f32 %v3007, %v3024
    %v3027 = vsel %vm934, %v3026, %v2954
    %v3028 = vsel %vm934, %v3020, %v2955
    %v3029 = vsel %vm934, %v3026, 0.0
    %3031 = vrot.lane.b32.xlu0 %v3029, 32
    %v3032 = vpop.permute.xlu0 %3031
    %3034 = vst.msk [vmem:[%s941] sm:$0xff] %vm244, %v3032
    %v3035 = vld [vmem:[%s943] sm:$0xff]
    %3037 = vrot.lane.b32.xlu0 %v3027, 32
    %v3038 = vpop.permute.xlu0 %3037
    %v3039 = vsel %vm244, %v3038, 0
    %3041 = vmatpush.msra.mxu0 0.0
    %3042 = vmatpush.msra.mxu0 0.0
    %3043 = vmatpush.msra.mxu0 0.0
    %3044 = vmatpush.msra.mxu0 0.0
    %3045 = vmatpush.msra.mxu0 0.0
    %3046 = vmatpush.msra.mxu0 0.0
    %3047 = vmatpush.msra.mxu0 0.0
    %3048 = vmatpush.msra.mxu0 0.0
    %3049 = vmatpush.msra.mxu0 0.0
    %3050 = vmatpush.msra.mxu0 0.0
    %3051 = vmatpush.msra.mxu0 0.0
    %3052 = vmatpush.msra.mxu0 0.0
    %3053 = vmatpush.msra.mxu0 %v2428
    %3054 = vmatpush.msra.mxu0 %v2427
    %3055 = vmatpush.msra.mxu0 %v2426
    %3056 = vmatpush.msra.mxu0 %v2425
    %3057 = vmatmul.f32.gmra.mxu0 %v3039
    %v3058 = vpop.f32.mrf.mxu0
    %v3059 = vadd.f32 0.0, %v3058
    %3060 = vdwg.mxu0
    %v3061 = vadd.f32 %v3035, %v3059
    %v3062 = vxor.u32 %v3061, 2147483648
    %v3063 = vmul.f32 %v3062, 1.442695
    %v3064 = vpow.pop %v3063
    %v3065 = vadd.f32 %v3064, 1.0
    %v3066 = vrcp.pop %v3065
    %v3067 = vmul.f32 %v3065, %v3066
    %v3068 = vsub.f32 1.0, %v3067
    %v3069 = vmul.f32 %v3066, %v3068
    %v3070 = vadd.f32 %v3066, %v3069
    %vm3071 = vweird.f32 %v3065
    %vm3072 = vweird.f32 %v3066
    %vm3073 = vmor %vm3071, %vm3072
    %v3074 = vsel %vm3073, %v3066, %v3070
    %v3075 = vand.u32 2147483647, %v3065
    %vm3076 = vcmp.eq.f32.partialorder %v3075, 8.507059e+37
    %v3077 = vand.u32 %v3065, 2147483648
    %v3078 = vor.u32 1.1754944e-38, %v3077
    %v3079 = vsel %vm3076, %v3078, %v3074
    %v3080 = vmul.f32 1.0, %v3079
    %v3081 = vmul.f32 %v3080, 2.0
    %v3082 = vsub.f32 %v3081, 1.0
    %v3083 = vmul.f32 %v3080, %v3028
    %3085 = vrot.lane.b32.xlu0 %v3082, 64
    %v3086 = vpop.permute.xlu0 %3085
    %v3088 = vmul.f32 %v3080, %v3086
    %3090 = vrot.lane.b32.xlu0 %v3088, 32
    %v3091 = vpop.permute.xlu0 %3090
    %v3093 = vadd.f32 %v3083, %v3091
    %v3094 = vtanh.pop %v3093
    %3096 = vrot.lane.b32.xlu0 %v3094, 64
    %v3097 = vpop.permute.xlu0 %3096
    %v3099 = vmul.f32 %v3080, %v3097
    %v3100 = vsel %vm1014, %v3099, %v3027
    %v3101 = vsel %vm1014, %v3093, %v3028
    %v3102 = vsel %vm1014, %v3099, 0.0
    %3104 = vrot.lane.b32.xlu0 %v3102, 32
    %v3105 = vpop.permute.xlu0 %3104
    %3107 = vst.msk [vmem:[%s1021] sm:$0xff] %vm244, %v3105
    %3109 = vrot.lane.b32.xlu0 %v3100, 32
    %v3110 = vpop.permute.xlu0 %3109
    %s3112 = scalar_lea.vmem [#allocation16], 24
    %3113 = vst.msk [vmem:[%s3112] sm:$0xff] %vm244, %v3110
    %3115 = vrot.lane.b32.xlu0 %v3101, 96
    %v3116 = vpop.permute.xlu0 %3115
    %s3118 = scalar_lea.vmem [#allocation17], 24
    %3119 = vst.msk [vmem:[%s3118] sm:$0xff] %vm244, %v3116
    %v3120 = vld [vmem:[#allocation2] sm:$0xff]
    %v3121 = vld [vmem:[#allocation2 + $0x8] sm:$0xff]
    %v3122 = vld [vmem:[#allocation2 + $0x10] sm:$0xff]
    %v3123 = vld [vmem:[#allocation2 + $0x18] sm:$0xff]
    %v3124 = vld [vmem:[#allocation2 + $0x20] sm:$0xff]
    %v3125 = vld [vmem:[#allocation2 + $0x28] sm:$0xff]
    %v3126 = vld [vmem:[#allocation2 + $0x30] sm:$0xff]
    %v3127 = vld [vmem:[#allocation2 + $0x38] sm:$0xff]
    %v3128 = vld [vmem:[%s4] sm:$0xff]
    %v3129 = vld [vmem:[%s4 + $0x8] sm:$0xff]
    %v3130 = vld [vmem:[%s4 + $0x10] sm:$0xff]
    %v3131 = vld [vmem:[%s4 + $0x18] sm:$0xff]
    %v3132 = vld [vmem:[%s4 + $0x20] sm:$0xff]
    %v3133 = vld [vmem:[%s4 + $0x28] sm:$0xff]
    %v3134 = vld [vmem:[%s4 + $0x30] sm:$0xff]
    %v3135 = vld [vmem:[%s4 + $0x38] sm:$0xff]
    %v3136 = vld [vmem:[%s5] sm:$0xff]
    %v3137 = vld [vmem:[%s5 + $0x8] sm:$0xff]
    %v3138 = vld [vmem:[%s5 + $0x10] sm:$0xff]
    %v3139 = vld [vmem:[%s5 + $0x18] sm:$0xff]
    %v3140 = vld [vmem:[%s5 + $0x20] sm:$0xff]
    %v3141 = vld [vmem:[%s5 + $0x28] sm:$0xff]
    %v3142 = vld [vmem:[%s5 + $0x30] sm:$0xff]
    %v3143 = vld [vmem:[%s5 + $0x38] sm:$0xff]
    %v3145 = vrot.slane %v3120, 1
    %v3146 = vrot.slane %v3120, 2
    %v3147 = vrot.slane %v3120, 3
    %v3148 = vrot.slane %v3120, 4
    %v3149 = vrot.slane %v3120, 5
    %v3150 = vrot.slane %v3120, 6
    %v3151 = vrot.slane %v3120, 7
    %v3152 = vperm.slane %v3120, 0
    %v3153 = vperm.slane %v3145, 0
    %v3154 = vperm.slane %v3146, 0
    %v3155 = vperm.slane %v3147, 0
    %v3156 = vperm.slane %v3148, 0
    %v3157 = vperm.slane %v3149, 0
    %v3158 = vperm.slane %v3150, 0
    %v3159 = vperm.slane %v3151, 0
    %v3168 = vmul.f32 %v3128, %v3152
    %v3169 = vmul.f32 %v3129, %v3153
    %v3170 = vmul.f32 %v3130, %v3154
    %v3171 = vmul.f32 %v3131, %v3155
    %v3172 = vmul.f32 %v3132, %v3156
    %v3173 = vmul.f32 %v3133, %v3157
    %v3174 = vmul.f32 %v3134, %v3158
    %v3175 = vmul.f32 %v3135, %v3159
    %v3176 = vsel %vm244, %v3168, 0.0
    %3177 = vadd.xlane.f32.xlu0 %v3176
    %v3178 = vpop.xlane.xlu0 %3177
    %v3179 = vsel %vm244, %v3169, 0.0
    %3180 = vadd.xlane.f32.xlu0 %v3179
    %v3181 = vpop.xlane.xlu0 %3180
    %v3182 = vsel %vm244, %v3170, 0.0
    %3183 = vadd.xlane.f32.xlu0 %v3182
    %v3184 = vpop.xlane.xlu0 %3183
    %v3185 = vsel %vm244, %v3171, 0.0
    %3186 = vadd.xlane.f32.xlu0 %v3185
    %v3187 = vpop.xlane.xlu0 %3186
    %v3188 = vsel %vm244, %v3172, 0.0
    %3189 = vadd.xlane.f32.xlu0 %v3188
    %v3190 = vpop.xlane.xlu0 %3189
    %v3191 = vsel %vm244, %v3173, 0.0
    %3192 = vadd.xlane.f32.xlu0 %v3191
    %v3193 = vpop.xlane.xlu0 %3192
    %v3194 = vsel %vm244, %v3174, 0.0
    %3195 = vadd.xlane.f32.xlu0 %v3194
    %v3196 = vpop.xlane.xlu0 %3195
    %v3197 = vsel %vm244, %v3175, 0.0
    %3198 = vadd.xlane.f32.xlu0 %v3197
    %v3199 = vpop.xlane.xlu0 %3198
    %v3201 = vrot.slane %v3121, 1
    %v3202 = vrot.slane %v3121, 2
    %v3203 = vrot.slane %v3121, 3
    %v3204 = vrot.slane %v3121, 4
    %v3205 = vrot.slane %v3121, 5
    %v3206 = vrot.slane %v3121, 6
    %v3207 = vrot.slane %v3121, 7
    %v3208 = vperm.slane %v3121, 0
    %v3209 = vperm.slane %v3201, 0
    %v3210 = vperm.slane %v3202, 0
    %v3211 = vperm.slane %v3203, 0
    %v3212 = vperm.slane %v3204, 0
    %v3213 = vperm.slane %v3205, 0
    %v3214 = vperm.slane %v3206, 0
    %v3215 = vperm.slane %v3207, 0
    %v3224 = vmul.f32 %v3128, %v3208
    %v3225 = vmul.f32 %v3129, %v3209
    %v3226 = vmul.f32 %v3130, %v3210
    %v3227 = vmul.f32 %v3131, %v3211
    %v3228 = vmul.f32 %v3132, %v3212
    %v3229 = vmul.f32 %v3133, %v3213
    %v3230 = vmul.f32 %v3134, %v3214
    %v3231 = vmul.f32 %v3135, %v3215
    %v3232 = vsel %vm244, %v3224, 0.0
    %3233 = vadd.xlane.f32.xlu0 %v3232
    %v3234 = vpop.xlane.xlu0 %3233
    %v3235 = vsel %vm244, %v3225, 0.0
    %3236 = vadd.xlane.f32.xlu0 %v3235
    %v3237 = vpop.xlane.xlu0 %3236
    %v3238 = vsel %vm244, %v3226, 0.0
    %3239 = vadd.xlane.f32.xlu0 %v3238
    %v3240 = vpop.xlane.xlu0 %3239
    %v3241 = vsel %vm244, %v3227, 0.0
    %3242 = vadd.xlane.f32.xlu0 %v3241
    %v3243 = vpop.xlane.xlu0 %3242
    %v3244 = vsel %vm244, %v3228, 0.0
    %3245 = vadd.xlane.f32.xlu0 %v3244
    %v3246 = vpop.xlane.xlu0 %3245
    %v3247 = vsel %vm244, %v3229, 0.0
    %3248 = vadd.xlane.f32.xlu0 %v3247
    %v3249 = vpop.xlane.xlu0 %3248
    %v3250 = vsel %vm244, %v3230, 0.0
    %3251 = vadd.xlane.f32.xlu0 %v3250
    %v3252 = vpop.xlane.xlu0 %3251
    %v3253 = vsel %vm244, %v3231, 0.0
    %3254 = vadd.xlane.f32.xlu0 %v3253
    %v3255 = vpop.xlane.xlu0 %3254
    %v3257 = vrot.slane %v3122, 1
    %v3258 = vrot.slane %v3122, 2
    %v3259 = vrot.slane %v3122, 3
    %v3260 = vrot.slane %v3122, 4
    %v3261 = vrot.slane %v3122, 5
    %v3262 = vrot.slane %v3122, 6
    %v3263 = vrot.slane %v3122, 7
    %v3264 = vperm.slane %v3122, 0
    %v3265 = vperm.slane %v3257, 0
    %v3266 = vperm.slane %v3258, 0
    %v3267 = vperm.slane %v3259, 0
    %v3268 = vperm.slane %v3260, 0
    %v3269 = vperm.slane %v3261, 0
    %v3270 = vperm.slane %v3262, 0
    %v3271 = vperm.slane %v3263, 0
    %v3280 = vmul.f32 %v3128, %v3264
    %v3281 = vmul.f32 %v3129, %v3265
    %v3282 = vmul.f32 %v3130, %v3266
    %v3283 = vmul.f32 %v3131, %v3267
    %v3284 = vmul.f32 %v3132, %v3268
    %v3285 = vmul.f32 %v3133, %v3269
    %v3286 = vmul.f32 %v3134, %v3270
    %v3287 = vmul.f32 %v3135, %v3271
    %v3288 = vsel %vm244, %v3280, 0.0
    %3289 = vadd.xlane.f32.xlu0 %v3288
    %v3290 = vpop.xlane.xlu0 %3289
    %v3291 = vsel %vm244, %v3281, 0.0
    %3292 = vadd.xlane.f32.xlu0 %v3291
    %v3293 = vpop.xlane.xlu0 %3292
    %v3294 = vsel %vm244, %v3282, 0.0
    %3295 = vadd.xlane.f32.xlu0 %v3294
    %v3296 = vpop.xlane.xlu0 %3295
    %v3297 = vsel %vm244, %v3283, 0.0
    %3298 = vadd.xlane.f32.xlu0 %v3297
    %v3299 = vpop.xlane.xlu0 %3298
    %v3300 = vsel %vm244, %v3284, 0.0
    %3301 = vadd.xlane.f32.xlu0 %v3300
    %v3302 = vpop.xlane.xlu0 %3301
    %v3303 = vsel %vm244, %v3285, 0.0
    %3304 = vadd.xlane.f32.xlu0 %v3303
    %v3305 = vpop.xlane.xlu0 %3304
    %v3306 = vsel %vm244, %v3286, 0.0
    %3307 = vadd.xlane.f32.xlu0 %v3306
    %v3308 = vpop.xlane.xlu0 %3307
    %v3309 = vsel %vm244, %v3287, 0.0
    %3310 = vadd.xlane.f32.xlu0 %v3309
    %v3311 = vpop.xlane.xlu0 %3310
    %v3313 = vrot.slane %v3123, 1
    %v3314 = vrot.slane %v3123, 2
    %v3315 = vrot.slane %v3123, 3
    %v3316 = vrot.slane %v3123, 4
    %v3317 = vrot.slane %v3123, 5
    %v3318 = vrot.slane %v3123, 6
    %v3319 = vrot.slane %v3123, 7
    %v3320 = vperm.slane %v3123, 0
    %v3321 = vperm.slane %v3313, 0
    %v3322 = vperm.slane %v3314, 0
    %v3323 = vperm.slane %v3315, 0
    %v3324 = vperm.slane %v3316, 0
    %v3325 = vperm.slane %v3317, 0
    %v3326 = vperm.slane %v3318, 0
    %v3327 = vperm.slane %v3319, 0
    %v3336 = vmul.f32 %v3128, %v3320
    %v3337 = vmul.f32 %v3129, %v3321
    %v3338 = vmul.f32 %v3130, %v3322
    %v3339 = vmul.f32 %v3131, %v3323
    %v3340 = vmul.f32 %v3132, %v3324
    %v3341 = vmul.f32 %v3133, %v3325
    %v3342 = vmul.f32 %v3134, %v3326
    %v3343 = vmul.f32 %v3135, %v3327
    %v3344 = vsel %vm244, %v3336, 0.0
    %3345 = vadd.xlane.f32.xlu0 %v3344
    %v3346 = vpop.xlane.xlu0 %3345
    %v3347 = vsel %vm244, %v3337, 0.0
    %3348 = vadd.xlane.f32.xlu0 %v3347
    %v3349 = vpop.xlane.xlu0 %3348
    %v3350 = vsel %vm244, %v3338, 0.0
    %3351 = vadd.xlane.f32.xlu0 %v3350
    %v3352 = vpop.xlane.xlu0 %3351
    %v3353 = vsel %vm244, %v3339, 0.0
    %3354 = vadd.xlane.f32.xlu0 %v3353
    %v3355 = vpop.xlane.xlu0 %3354
    %v3356 = vsel %vm244, %v3340, 0.0
    %3357 = vadd.xlane.f32.xlu0 %v3356
    %v3358 = vpop.xlane.xlu0 %3357
    %v3359 = vsel %vm244, %v3341, 0.0
    %3360 = vadd.xlane.f32.xlu0 %v3359
    %v3361 = vpop.xlane.xlu0 %3360
    %v3362 = vsel %vm244, %v3342, 0.0
    %3363 = vadd.xlane.f32.xlu0 %v3362
    %v3364 = vpop.xlane.xlu0 %3363
    %v3365 = vsel %vm244, %v3343, 0.0
    %3366 = vadd.xlane.f32.xlu0 %v3365
    %v3367 = vpop.xlane.xlu0 %3366
    %v3369 = vrot.slane %v3124, 1
    %v3370 = vrot.slane %v3124, 2
    %v3371 = vrot.slane %v3124, 3
    %v3372 = vrot.slane %v3124, 4
    %v3373 = vrot.slane %v3124, 5
    %v3374 = vrot.slane %v3124, 6
    %v3375 = vrot.slane %v3124, 7
    %v3376 = vperm.slane %v3124, 0
    %v3377 = vperm.slane %v3369, 0
    %v3378 = vperm.slane %v3370, 0
    %v3379 = vperm.slane %v3371, 0
    %v3380 = vperm.slane %v3372, 0
    %v3381 = vperm.slane %v3373, 0
    %v3382 = vperm.slane %v3374, 0
    %v3383 = vperm.slane %v3375, 0
    %v3392 = vmul.f32 %v3128, %v3376
    %v3393 = vmul.f32 %v3129, %v3377
    %v3394 = vmul.f32 %v3130, %v3378
    %v3395 = vmul.f32 %v3131, %v3379
    %v3396 = vmul.f32 %v3132, %v3380
    %v3397 = vmul.f32 %v3133, %v3381
    %v3398 = vmul.f32 %v3134, %v3382
    %v3399 = vmul.f32 %v3135, %v3383
    %v3400 = vsel %vm244, %v3392, 0.0
    %3401 = vadd.xlane.f32.xlu0 %v3400
    %v3402 = vpop.xlane.xlu0 %3401
    %v3403 = vsel %vm244, %v3393, 0.0
    %3404 = vadd.xlane.f32.xlu0 %v3403
    %v3405 = vpop.xlane.xlu0 %3404
    %v3406 = vsel %vm244, %v3394, 0.0
    %3407 = vadd.xlane.f32.xlu0 %v3406
    %v3408 = vpop.xlane.xlu0 %3407
    %v3409 = vsel %vm244, %v3395, 0.0
    %3410 = vadd.xlane.f32.xlu0 %v3409
    %v3411 = vpop.xlane.xlu0 %3410
    %v3412 = vsel %vm244, %v3396, 0.0
    %3413 = vadd.xlane.f32.xlu0 %v3412
    %v3414 = vpop.xlane.xlu0 %3413
    %v3415 = vsel %vm244, %v3397, 0.0
    %3416 = vadd.xlane.f32.xlu0 %v3415
    %v3417 = vpop.xlane.xlu0 %3416
    %v3418 = vsel %vm244, %v3398, 0.0
    %3419 = vadd.xlane.f32.xlu0 %v3418
    %v3420 = vpop.xlane.xlu0 %3419
    %v3421 = vsel %vm244, %v3399, 0.0
    %3422 = vadd.xlane.f32.xlu0 %v3421
    %v3423 = vpop.xlane.xlu0 %3422
    %v3425 = vrot.slane %v3125, 1
    %v3426 = vrot.slane %v3125, 2
    %v3427 = vrot.slane %v3125, 3
    %v3428 = vrot.slane %v3125, 4
    %v3429 = vrot.slane %v3125, 5
    %v3430 = vrot.slane %v3125, 6
    %v3431 = vrot.slane %v3125, 7
    %v3432 = vperm.slane %v3125, 0
    %v3433 = vperm.slane %v3425, 0
    %v3434 = vperm.slane %v3426, 0
    %v3435 = vperm.slane %v3427, 0
    %v3436 = vperm.slane %v3428, 0
    %v3437 = vperm.slane %v3429, 0
    %v3438 = vperm.slane %v3430, 0
    %v3439 = vperm.slane %v3431, 0
    %v3448 = vmul.f32 %v3128, %v3432
    %v3449 = vmul.f32 %v3129, %v3433
    %v3450 = vmul.f32 %v3130, %v3434
    %v3451 = vmul.f32 %v3131, %v3435
    %v3452 = vmul.f32 %v3132, %v3436
    %v3453 = vmul.f32 %v3133, %v3437
    %v3454 = vmul.f32 %v3134, %v3438
    %v3455 = vmul.f32 %v3135, %v3439
    %v3456 = vsel %vm244, %v3448, 0.0
    %3457 = vadd.xlane.f32.xlu0 %v3456
    %v3458 = vpop.xlane.xlu0 %3457
    %v3459 = vsel %vm244, %v3449, 0.0
    %3460 = vadd.xlane.f32.xlu0 %v3459
    %v3461 = vpop.xlane.xlu0 %3460
    %v3462 = vsel %vm244, %v3450, 0.0
    %3463 = vadd.xlane.f32.xlu0 %v3462
    %v3464 = vpop.xlane.xlu0 %3463
    %v3465 = vsel %vm244, %v3451, 0.0
    %3466 = vadd.xlane.f32.xlu0 %v3465
    %v3467 = vpop.xlane.xlu0 %3466
    %v3468 = vsel %vm244, %v3452, 0.0
    %3469 = vadd.xlane.f32.xlu0 %v3468
    %v3470 = vpop.xlane.xlu0 %3469
    %v3471 = vsel %vm244, %v3453, 0.0
    %3472 = vadd.xlane.f32.xlu0 %v3471
    %v3473 = vpop.xlane.xlu0 %3472
    %v3474 = vsel %vm244, %v3454, 0.0
    %3475 = vadd.xlane.f32.xlu0 %v3474
    %v3476 = vpop.xlane.xlu0 %3475
    %v3477 = vsel %vm244, %v3455, 0.0
    %3478 = vadd.xlane.f32.xlu0 %v3477
    %v3479 = vpop.xlane.xlu0 %3478
    %v3481 = vrot.slane %v3126, 1
    %v3482 = vrot.slane %v3126, 2
    %v3483 = vrot.slane %v3126, 3
    %v3484 = vrot.slane %v3126, 4
    %v3485 = vrot.slane %v3126, 5
    %v3486 = vrot.slane %v3126, 6
    %v3487 = vrot.slane %v3126, 7
    %v3488 = vperm.slane %v3126, 0
    %v3489 = vperm.slane %v3481, 0
    %v3490 = vperm.slane %v3482, 0
    %v3491 = vperm.slane %v3483, 0
    %v3492 = vperm.slane %v3484, 0
    %v3493 = vperm.slane %v3485, 0
    %v3494 = vperm.slane %v3486, 0
    %v3495 = vperm.slane %v3487, 0
    %v3504 = vmul.f32 %v3128, %v3488
    %v3505 = vmul.f32 %v3129, %v3489
    %v3506 = vmul.f32 %v3130, %v3490
    %v3507 = vmul.f32 %v3131, %v3491
    %v3508 = vmul.f32 %v3132, %v3492
    %v3509 = vmul.f32 %v3133, %v3493
    %v3510 = vmul.f32 %v3134, %v3494
    %v3511 = vmul.f32 %v3135, %v3495
    %v3512 = vsel %vm244, %v3504, 0.0
    %3513 = vadd.xlane.f32.xlu0 %v3512
    %v3514 = vpop.xlane.xlu0 %3513
    %v3515 = vsel %vm244, %v3505, 0.0
    %3516 = vadd.xlane.f32.xlu0 %v3515
    %v3517 = vpop.xlane.xlu0 %3516
    %v3518 = vsel %vm244, %v3506, 0.0
    %3519 = vadd.xlane.f32.xlu0 %v3518
    %v3520 = vpop.xlane.xlu0 %3519
    %v3521 = vsel %vm244, %v3507, 0.0
    %3522 = vadd.xlane.f32.xlu0 %v3521
    %v3523 = vpop.xlane.xlu0 %3522
    %v3524 = vsel %vm244, %v3508, 0.0
    %3525 = vadd.xlane.f32.xlu0 %v3524
    %v3526 = vpop.xlane.xlu0 %3525
    %v3527 = vsel %vm244, %v3509, 0.0
    %3528 = vadd.xlane.f32.xlu0 %v3527
    %v3529 = vpop.xlane.xlu0 %3528
    %v3530 = vsel %vm244, %v3510, 0.0
    %3531 = vadd.xlane.f32.xlu0 %v3530
    %v3532 = vpop.xlane.xlu0 %3531
    %v3533 = vsel %vm244, %v3511, 0.0
    %3534 = vadd.xlane.f32.xlu0 %v3533
    %v3535 = vpop.xlane.xlu0 %3534
    %v3537 = vrot.slane %v3127, 1
    %v3538 = vrot.slane %v3127, 2
    %v3539 = vrot.slane %v3127, 3
    %v3540 = vrot.slane %v3127, 4
    %v3541 = vrot.slane %v3127, 5
    %v3542 = vrot.slane %v3127, 6
    %v3543 = vrot.slane %v3127, 7
    %v3544 = vperm.slane %v3127, 0
    %v3545 = vperm.slane %v3537, 0
    %v3546 = vperm.slane %v3538, 0
    %v3547 = vperm.slane %v3539, 0
    %v3548 = vperm.slane %v3540, 0
    %v3549 = vperm.slane %v3541, 0
    %v3550 = vperm.slane %v3542, 0
    %v3551 = vperm.slane %v3543, 0
    %v3560 = vmul.f32 %v3128, %v3544
    %v3561 = vmul.f32 %v3129, %v3545
    %v3562 = vmul.f32 %v3130, %v3546
    %v3563 = vmul.f32 %v3131, %v3547
    %v3564 = vmul.f32 %v3132, %v3548
    %v3565 = vmul.f32 %v3133, %v3549
    %v3566 = vmul.f32 %v3134, %v3550
    %v3567 = vmul.f32 %v3135, %v3551
    %v3568 = vsel %vm244, %v3560, 0.0
    %3569 = vadd.xlane.f32.xlu0 %v3568
    %v3570 = vpop.xlane.xlu0 %3569
    %v3571 = vsel %vm244, %v3561, 0.0
    %3572 = vadd.xlane.f32.xlu0 %v3571
    %v3573 = vpop.xlane.xlu0 %3572
    %v3574 = vsel %vm244, %v3562, 0.0
    %3575 = vadd.xlane.f32.xlu0 %v3574
    %v3576 = vpop.xlane.xlu0 %3575
    %v3577 = vsel %vm244, %v3563, 0.0
    %3578 = vadd.xlane.f32.xlu0 %v3577
    %v3579 = vpop.xlane.xlu0 %3578
    %v3580 = vsel %vm244, %v3564, 0.0
    %3581 = vadd.xlane.f32.xlu0 %v3580
    %v3582 = vpop.xlane.xlu0 %3581
    %v3583 = vsel %vm244, %v3565, 0.0
    %3584 = vadd.xlane.f32.xlu0 %v3583
    %v3585 = vpop.xlane.xlu0 %3584
    %v3586 = vsel %vm244, %v3566, 0.0
    %3587 = vadd.xlane.f32.xlu0 %v3586
    %v3588 = vpop.xlane.xlu0 %3587
    %v3589 = vsel %vm244, %v3567, 0.0
    %3590 = vadd.xlane.f32.xlu0 %v3589
    %v3591 = vpop.xlane.xlu0 %3590
    %v3592 = vsel %vm269, %v3178, %v3234
    %v3593 = vsel %vm269, %v3181, %v3237
    %v3594 = vsel %vm269, %v3184, %v3240
    %v3595 = vsel %vm269, %v3187, %v3243
    %v3596 = vsel %vm269, %v3190, %v3246
    %v3597 = vsel %vm269, %v3193, %v3249
    %v3598 = vsel %vm269, %v3196, %v3252
    %v3599 = vsel %vm269, %v3199, %v3255
    %vm3600 = vcmask 15360
    %v3601 = vsel %vm3600, %v3592, %v3290
    %v3602 = vsel %vm3600, %v3593, %v3293
    %v3603 = vsel %vm3600, %v3594, %v3296
    %v3604 = vsel %vm3600, %v3595, %v3299
    %v3605 = vsel %vm3600, %v3596, %v3302
    %v3606 = vsel %vm3600, %v3597, %v3305
    %v3607 = vsel %vm3600, %v3598, %v3308
    %v3608 = vsel %vm3600, %v3599, %v3311
    %vm3609 = vcmask 23552
    %v3610 = vsel %vm3609, %v3601, %v3346
    %v3611 = vsel %vm3609, %v3602, %v3349
    %v3612 = vsel %vm3609, %v3603, %v3352
    %v3613 = vsel %vm3609, %v3604, %v3355
    %v3614 = vsel %vm3609, %v3605, %v3358
    %v3615 = vsel %vm3609, %v3606, %v3361
    %v3616 = vsel %vm3609, %v3607, %v3364
    %v3617 = vsel %vm3609, %v3608, %v3367
    %vm3618 = vcmask 31744
    %v3619 = vsel %vm3618, %v3610, %v3402
    %v3620 = vsel %vm3618, %v3611, %v3405
    %v3621 = vsel %vm3618, %v3612, %v3408
    %v3622 = vsel %vm3618, %v3613, %v3411
    %v3623 = vsel %vm3618, %v3614, %v3414
    %v3624 = vsel %vm3618, %v3615, %v3417
    %v3625 = vsel %vm3618, %v3616, %v3420
    %v3626 = vsel %vm3618, %v3617, %v3423
    %vm3627 = vcmask 39936
    %v3628 = vsel %vm3627, %v3619, %v3458
    %v3629 = vsel %vm3627, %v3620, %v3461
    %v3630 = vsel %vm3627, %v3621, %v3464
    %v3631 = vsel %vm3627, %v3622, %v3467
    %v3632 = vsel %vm3627, %v3623, %v3470
    %v3633 = vsel %vm3627, %v3624, %v3473
    %v3634 = vsel %vm3627, %v3625, %v3476
    %v3635 = vsel %vm3627, %v3626, %v3479
    %vm3636 = vcmask 48128
    %v3637 = vsel %vm3636, %v3628, %v3514
    %v3638 = vsel %vm3636, %v3629, %v3517
    %v3639 = vsel %vm3636, %v3630, %v3520
    %v3640 = vsel %vm3636, %v3631, %v3523
    %v3641 = vsel %vm3636, %v3632, %v3526
    %v3642 = vsel %vm3636, %v3633, %v3529
    %v3643 = vsel %vm3636, %v3634, %v3532
    %v3644 = vsel %vm3636, %v3635, %v3535
    %vm3645 = vcmask 56320
    %v3646 = vsel %vm3645, %v3637, %v3570
    %v3647 = vsel %vm3645, %v3638, %v3573
    %v3648 = vsel %vm3645, %v3639, %v3576
    %v3649 = vsel %vm3645, %v3640, %v3579
    %v3650 = vsel %vm3645, %v3641, %v3582
    %v3651 = vsel %vm3645, %v3642, %v3585
    %v3652 = vsel %vm3645, %v3643, %v3588
    %v3653 = vsel %vm3645, %v3644, %v3591
    %vm3654 = vcmp.gt.f32.partialorder %v3136, 0.5
    %vm3655 = vcmp.gt.f32.partialorder %v3137, 0.5
    %vm3656 = vcmp.gt.f32.partialorder %v3138, 0.5
    %vm3657 = vcmp.gt.f32.partialorder %v3139, 0.5
    %vm3658 = vcmp.gt.f32.partialorder %v3140, 0.5
    %vm3659 = vcmp.gt.f32.partialorder %v3141, 0.5
    %vm3660 = vcmp.gt.f32.partialorder %v3142, 0.5
    %vm3661 = vcmp.gt.f32.partialorder %v3143, 0.5
    %v3662 = vsel %vm3654, 1, 0
    %v3663 = vsel %vm3655, 1, 0
    %v3664 = vsel %vm3656, 1, 0
    %v3665 = vsel %vm3657, 1, 0
    %v3666 = vsel %vm3658, 1, 0
    %v3667 = vsel %vm3659, 1, 0
    %v3668 = vsel %vm3660, 1, 0
    %v3669 = vsel %vm3661, 1, 0
    %3670 = vset.pattern.permute.xlu0 0
    %3671 = vperm.xlu0 %3670, %v3662
    %v3672 = vpop.permute.xlu0 %3671
    %3673 = vset.pattern.permute.xlu0 0
    %3674 = vperm.xlu0 %3673, %v3663
    %v3675 = vpop.permute.xlu0 %3674
    %3676 = vset.pattern.permute.xlu0 0
    %3677 = vperm.xlu0 %3676, %v3664
    %v3678 = vpop.permute.xlu0 %3677
    %3679 = vset.pattern.permute.xlu0 0
    %3680 = vperm.xlu0 %3679, %v3665
    %v3681 = vpop.permute.xlu0 %3680
    %3682 = vset.pattern.permute.xlu0 0
    %3683 = vperm.xlu0 %3682, %v3666
    %v3684 = vpop.permute.xlu0 %3683
    %3685 = vset.pattern.permute.xlu0 0
    %3686 = vperm.xlu0 %3685, %v3667
    %v3687 = vpop.permute.xlu0 %3686
    %3688 = vset.pattern.permute.xlu0 0
    %3689 = vperm.xlu0 %3688, %v3668
    %v3690 = vpop.permute.xlu0 %3689
    %3691 = vset.pattern.permute.xlu0 0
    %3692 = vperm.xlu0 %3691, %v3669
    %v3693 = vpop.permute.xlu0 %3692
    %vm3694 = vcmp.eq.s32.totalorder %v3672, 1
    %vm3695 = vcmp.eq.s32.totalorder %v3675, 1
    %vm3696 = vcmp.eq.s32.totalorder %v3678, 1
    %vm3697 = vcmp.eq.s32.totalorder %v3681, 1
    %vm3698 = vcmp.eq.s32.totalorder %v3684, 1
    %vm3699 = vcmp.eq.s32.totalorder %v3687, 1
    %vm3700 = vcmp.eq.s32.totalorder %v3690, 1
    %vm3701 = vcmp.eq.s32.totalorder %v3693, 1
    %v3702 = vsel %vm3694, 1e-10, %v3646
    %v3703 = vsel %vm3695, 1e-10, %v3647
    %v3704 = vsel %vm3696, 1e-10, %v3648
    %v3705 = vsel %vm3697, 1e-10, %v3649
    %v3706 = vsel %vm3698, 1e-10, %v3650
    %v3707 = vsel %vm3699, 1e-10, %v3651
    %v3708 = vsel %vm3700, 1e-10, %v3652
    %v3709 = vsel %vm3701, 1e-10, %v3653
    %vm3710 = vcmask 64512
    %3711 = vst.msk [vmem:[#allocation14] sm:$0xff] %vm3710, %v3702
    %3712 = vst.msk [vmem:[#allocation14 + $0x8] sm:$0xff] %vm3710, %v3703
    %3713 = vst.msk [vmem:[#allocation14 + $0x10] sm:$0xff] %vm3710, %v3704
    %3714 = vst.msk [vmem:[#allocation14 + $0x18] sm:$0xff] %vm3710, %v3705
    %3715 = vst.msk [vmem:[#allocation14 + $0x20] sm:$0xff] %vm3710, %v3706
    %3716 = vst.msk [vmem:[#allocation14 + $0x28] sm:$0xff] %vm3710, %v3707
    %3717 = vst.msk [vmem:[#allocation14 + $0x30] sm:$0xff] %vm3710, %v3708
    %3718 = vst.msk [vmem:[#allocation14 + $0x38] sm:$0xff] %vm3710, %v3709
    %v3719 = vsel %vm3710, %v3702, -inf
    %v3720 = vrot.slane %v3719, 4
    %v3721 = vmax.f32 %v3719, %v3720
    %v3722 = vrot.slane %v3721, 2
    %v3723 = vmax.f32 %v3721, %v3722
    %v3724 = vrot.slane %v3723, 1
    %v3725 = vmax.f32 %v3723, %v3724
    %v3726 = vsel %vm3710, %v3703, -inf
    %v3727 = vrot.slane %v3726, 4
    %v3728 = vmax.f32 %v3726, %v3727
    %v3729 = vrot.slane %v3728, 2
    %v3730 = vmax.f32 %v3728, %v3729
    %v3731 = vrot.slane %v3730, 1
    %v3732 = vmax.f32 %v3730, %v3731
    %v3733 = vsel %vm3710, %v3704, -inf
    %v3734 = vrot.slane %v3733, 4
    %v3735 = vmax.f32 %v3733, %v3734
    %v3736 = vrot.slane %v3735, 2
    %v3737 = vmax.f32 %v3735, %v3736
    %v3738 = vrot.slane %v3737, 1
    %v3739 = vmax.f32 %v3737, %v3738
    %v3740 = vsel %vm3710, %v3705, -inf
    %v3741 = vrot.slane %v3740, 4
    %v3742 = vmax.f32 %v3740, %v3741
    %v3743 = vrot.slane %v3742, 2
    %v3744 = vmax.f32 %v3742, %v3743
    %v3745 = vrot.slane %v3744, 1
    %v3746 = vmax.f32 %v3744, %v3745
    %v3747 = vsel %vm3710, %v3706, -inf
    %v3748 = vrot.slane %v3747, 4
    %v3749 = vmax.f32 %v3747, %v3748
    %v3750 = vrot.slane %v3749, 2
    %v3751 = vmax.f32 %v3749, %v3750
    %v3752 = vrot.slane %v3751, 1
    %v3753 = vmax.f32 %v3751, %v3752
    %v3754 = vsel %vm3710, %v3707, -inf
    %v3755 = vrot.slane %v3754, 4
    %v3756 = vmax.f32 %v3754, %v3755
    %v3757 = vrot.slane %v3756, 2
    %v3758 = vmax.f32 %v3756, %v3757
    %v3759 = vrot.slane %v3758, 1
    %v3760 = vmax.f32 %v3758, %v3759
    %v3761 = vsel %vm3710, %v3708, -inf
    %v3762 = vrot.slane %v3761, 4
    %v3763 = vmax.f32 %v3761, %v3762
    %v3764 = vrot.slane %v3763, 2
    %v3765 = vmax.f32 %v3763, %v3764
    %v3766 = vrot.slane %v3765, 1
    %v3767 = vmax.f32 %v3765, %v3766
    %v3768 = vsel %vm3710, %v3709, -inf
    %v3769 = vrot.slane %v3768, 4
    %v3770 = vmax.f32 %v3768, %v3769
    %v3771 = vrot.slane %v3770, 2
    %v3772 = vmax.f32 %v3770, %v3771
    %v3773 = vrot.slane %v3772, 1
    %v3774 = vmax.f32 %v3772, %v3773
    %v3775 = vsub.f32 %v3702, %v3725
    %v3776 = vsub.f32 %v3703, %v3732
    %v3777 = vsub.f32 %v3704, %v3739
    %v3778 = vsub.f32 %v3705, %v3746
    %v3779 = vsub.f32 %v3706, %v3753
    %v3780 = vsub.f32 %v3707, %v3760
    %v3781 = vsub.f32 %v3708, %v3767
    %v3782 = vsub.f32 %v3709, %v3774
    %v3783 = vmul.f32 %v3775, 1.442695
    %v3784 = vpow.pop %v3783
    %v3785 = vmul.f32 %v3776, 1.442695
    %v3786 = vpow.pop %v3785
    %v3787 = vmul.f32 %v3777, 1.442695
    %v3788 = vpow.pop %v3787
    %v3789 = vmul.f32 %v3778, 1.442695
    %v3790 = vpow.pop %v3789
    %v3791 = vmul.f32 %v3779, 1.442695
    %v3792 = vpow.pop %v3791
    %v3793 = vmul.f32 %v3780, 1.442695
    %v3794 = vpow.pop %v3793
    %v3795 = vmul.f32 %v3781, 1.442695
    %v3796 = vpow.pop %v3795
    %v3797 = vmul.f32 %v3782, 1.442695
    %v3798 = vpow.pop %v3797
    %v3799 = vsel %vm3710, %v3784, 0.0
    %v3800 = vrot.slane %v3799, 4
    %v3801 = vadd.f32 %v3799, %v3800
    %v3802 = vrot.slane %v3801, 2
    %v3803 = vadd.f32 %v3801, %v3802
    %v3804 = vrot.slane %v3803, 1
    %v3805 = vadd.f32 %v3803, %v3804
    %v3806 = vsel %vm3710, %v3786, 0.0
    %v3807 = vrot.slane %v3806, 4
    %v3808 = vadd.f32 %v3806, %v3807
    %v3809 = vrot.slane %v3808, 2
    %v3810 = vadd.f32 %v3808, %v3809
    %v3811 = vrot.slane %v3810, 1
    %v3812 = vadd.f32 %v3810, %v3811
    %v3813 = vsel %vm3710, %v3788, 0.0
    %v3814 = vrot.slane %v3813, 4
    %v3815 = vadd.f32 %v3813, %v3814
    %v3816 = vrot.slane %v3815, 2
    %v3817 = vadd.f32 %v3815, %v3816
    %v3818 = vrot.slane %v3817, 1
    %v3819 = vadd.f32 %v3817, %v3818
    %v3820 = vsel %vm3710, %v3790, 0.0
    %v3821 = vrot.slane %v3820, 4
    %v3822 = vadd.f32 %v3820, %v3821
    %v3823 = vrot.slane %v3822, 2
    %v3824 = vadd.f32 %v3822, %v3823
    %v3825 = vrot.slane %v3824, 1
    %v3826 = vadd.f32 %v3824, %v3825
    %v3827 = vsel %vm3710, %v3792, 0.0
    %v3828 = vrot.slane %v3827, 4
    %v3829 = vadd.f32 %v3827, %v3828
    %v3830 = vrot.slane %v3829, 2
    %v3831 = vadd.f32 %v3829, %v3830
    %v3832 = vrot.slane %v3831, 1
    %v3833 = vadd.f32 %v3831, %v3832
    %v3834 = vsel %vm3710, %v3794, 0.0
    %v3835 = vrot.slane %v3834, 4
    %v3836 = vadd.f32 %v3834, %v3835
    %v3837 = vrot.slane %v3836, 2
    %v3838 = vadd.f32 %v3836, %v3837
    %v3839 = vrot.slane %v3838, 1
    %v3840 = vadd.f32 %v3838, %v3839
    %v3841 = vsel %vm3710, %v3796, 0.0
    %v3842 = vrot.slane %v3841, 4
    %v3843 = vadd.f32 %v3841, %v3842
    %v3844 = vrot.slane %v3843, 2
    %v3845 = vadd.f32 %v3843, %v3844
    %v3846 = vrot.slane %v3845, 1
    %v3847 = vadd.f32 %v3845, %v3846
    %v3848 = vsel %vm3710, %v3798, 0.0
    %v3849 = vrot.slane %v3848, 4
    %v3850 = vadd.f32 %v3848, %v3849
    %v3851 = vrot.slane %v3850, 2
    %v3852 = vadd.f32 %v3850, %v3851
    %v3853 = vrot.slane %v3852, 1
    %v3854 = vadd.f32 %v3852, %v3853
    %v3855 = vrcp.pop %v3805
    %v3856 = vmul.f32 %v3805, %v3855
    %v3857 = vsub.f32 1.0, %v3856
    %v3858 = vmul.f32 %v3855, %v3857
    %v3859 = vadd.f32 %v3855, %v3858
    %vm3860 = vweird.f32 %v3805
    %vm3861 = vweird.f32 %v3855
    %vm3862 = vmor %vm3860, %vm3861
    %v3863 = vsel %vm3862, %v3855, %v3859
    %v3864 = vand.u32 2147483647, %v3805
    %vm3865 = vcmp.eq.f32.partialorder %v3864, 8.507059e+37
    %v3866 = vand.u32 %v3805, 2147483648
    %v3867 = vor.u32 1.1754944e-38, %v3866
    %v3868 = vsel %vm3865, %v3867, %v3863
    %v3869 = vmul.f32 %v3784, %v3868
    %v3870 = vrcp.pop %v3812
    %v3871 = vmul.f32 %v3812, %v3870
    %v3872 = vsub.f32 1.0, %v3871
    %v3873 = vmul.f32 %v3870, %v3872
    %v3874 = vadd.f32 %v3870, %v3873
    %vm3875 = vweird.f32 %v3812
    %vm3876 = vweird.f32 %v3870
    %vm3877 = vmor %vm3875, %vm3876
    %v3878 = vsel %vm3877, %v3870, %v3874
    %v3879 = vand.u32 2147483647, %v3812
    %vm3880 = vcmp.eq.f32.partialorder %v3879, 8.507059e+37
    %v3881 = vand.u32 %v3812, 2147483648
    %v3882 = vor.u32 1.1754944e-38, %v3881
    %v3883 = vsel %vm3880, %v3882, %v3878
    %v3884 = vmul.f32 %v3786, %v3883
    %v3885 = vrcp.pop %v3819
    %v3886 = vmul.f32 %v3819, %v3885
    %v3887 = vsub.f32 1.0, %v3886
    %v3888 = vmul.f32 %v3885, %v3887
    %v3889 = vadd.f32 %v3885, %v3888
    %vm3890 = vweird.f32 %v3819
    %vm3891 = vweird.f32 %v3885
    %vm3892 = vmor %vm3890, %vm3891
    %v3893 = vsel %vm3892, %v3885, %v3889
    %v3894 = vand.u32 2147483647, %v3819
    %vm3895 = vcmp.eq.f32.partialorder %v3894, 8.507059e+37
    %v3896 = vand.u32 %v3819, 2147483648
    %v3897 = vor.u32 1.1754944e-38, %v3896
    %v3898 = vsel %vm3895, %v3897, %v3893
    %v3899 = vmul.f32 %v3788, %v3898
    %v3900 = vrcp.pop %v3826
    %v3901 = vmul.f32 %v3826, %v3900
    %v3902 = vsub.f32 1.0, %v3901
    %v3903 = vmul.f32 %v3900, %v3902
    %v3904 = vadd.f32 %v3900, %v3903
    %vm3905 = vweird.f32 %v3826
    %vm3906 = vweird.f32 %v3900
    %vm3907 = vmor %vm3905, %vm3906
    %v3908 = vsel %vm3907, %v3900, %v3904
    %v3909 = vand.u32 2147483647, %v3826
    %vm3910 = vcmp.eq.f32.partialorder %v3909, 8.507059e+37
    %v3911 = vand.u32 %v3826, 2147483648
    %v3912 = vor.u32 1.1754944e-38, %v3911
    %v3913 = vsel %vm3910, %v3912, %v3908
    %v3914 = vmul.f32 %v3790, %v3913
    %v3915 = vrcp.pop %v3833
    %v3916 = vmul.f32 %v3833, %v3915
    %v3917 = vsub.f32 1.0, %v3916
    %v3918 = vmul.f32 %v3915, %v3917
    %v3919 = vadd.f32 %v3915, %v3918
    %vm3920 = vweird.f32 %v3833
    %vm3921 = vweird.f32 %v3915
    %vm3922 = vmor %vm3920, %vm3921
    %v3923 = vsel %vm3922, %v3915, %v3919
    %v3924 = vand.u32 2147483647, %v3833
    %vm3925 = vcmp.eq.f32.partialorder %v3924, 8.507059e+37
    %v3926 = vand.u32 %v3833, 2147483648
    %v3927 = vor.u32 1.1754944e-38, %v3926
    %v3928 = vsel %vm3925, %v3927, %v3923
    %v3929 = vmul.f32 %v3792, %v3928
    %v3930 = vrcp.pop %v3840
    %v3931 = vmul.f32 %v3840, %v3930
    %v3932 = vsub.f32 1.0, %v3931
    %v3933 = vmul.f32 %v3930, %v3932
    %v3934 = vadd.f32 %v3930, %v3933
    %vm3935 = vweird.f32 %v3840
    %vm3936 = vweird.f32 %v3930
    %vm3937 = vmor %vm3935, %vm3936
    %v3938 = vsel %vm3937, %v3930, %v3934
    %v3939 = vand.u32 2147483647, %v3840
    %vm3940 = vcmp.eq.f32.partialorder %v3939, 8.507059e+37
    %v3941 = vand.u32 %v3840, 2147483648
    %v3942 = vor.u32 1.1754944e-38, %v3941
    %v3943 = vsel %vm3940, %v3942, %v3938
    %v3944 = vmul.f32 %v3794, %v3943
    %v3945 = vrcp.pop %v3847
    %v3946 = vmul.f32 %v3847, %v3945
    %v3947 = vsub.f32 1.0, %v3946
    %v3948 = vmul.f32 %v3945, %v3947
    %v3949 = vadd.f32 %v3945, %v3948
    %vm3950 = vweird.f32 %v3847
    %vm3951 = vweird.f32 %v3945
    %vm3952 = vmor %vm3950, %vm3951
    %v3953 = vsel %vm3952, %v3945, %v3949
    %v3954 = vand.u32 2147483647, %v3847
    %vm3955 = vcmp.eq.f32.partialorder %v3954, 8.507059e+37
    %v3956 = vand.u32 %v3847, 2147483648
    %v3957 = vor.u32 1.1754944e-38, %v3956
    %v3958 = vsel %vm3955, %v3957, %v3953
    %v3959 = vmul.f32 %v3796, %v3958
    %v3960 = vrcp.pop %v3854
    %v3961 = vmul.f32 %v3854, %v3960
    %v3962 = vsub.f32 1.0, %v3961
    %v3963 = vmul.f32 %v3960, %v3962
    %v3964 = vadd.f32 %v3960, %v3963
    %vm3965 = vweird.f32 %v3854
    %vm3966 = vweird.f32 %v3960
    %vm3967 = vmor %vm3965, %vm3966
    %v3968 = vsel %vm3967, %v3960, %v3964
    %v3969 = vand.u32 2147483647, %v3854
    %vm3970 = vcmp.eq.f32.partialorder %v3969, 8.507059e+37
    %v3971 = vand.u32 %v3854, 2147483648
    %v3972 = vor.u32 1.1754944e-38, %v3971
    %v3973 = vsel %vm3970, %v3972, %v3968
    %v3974 = vmul.f32 %v3798, %v3973
    %3976 = vset.pattern.permute.xlu0 0
    %3977 = vperm.xlu0 %3976, %v3869
    %v3978 = vpop.permute.xlu0 %3977
    %3981 = vset.pattern.permute.xlu0 0
    %3982 = vperm.xlu0 %3981, %v3884
    %v3983 = vpop.permute.xlu0 %3982
    %3986 = vset.pattern.permute.xlu0 0
    %3987 = vperm.xlu0 %3986, %v3899
    %v3988 = vpop.permute.xlu0 %3987
    %3991 = vset.pattern.permute.xlu0 0
    %3992 = vperm.xlu0 %3991, %v3914
    %v3993 = vpop.permute.xlu0 %3992
    %3996 = vset.pattern.permute.xlu0 0
    %3997 = vperm.xlu0 %3996, %v3929
    %v3998 = vpop.permute.xlu0 %3997
    %4001 = vset.pattern.permute.xlu0 0
    %4002 = vperm.xlu0 %4001, %v3944
    %v4003 = vpop.permute.xlu0 %4002
    %4006 = vset.pattern.permute.xlu0 0
    %4007 = vperm.xlu0 %4006, %v3959
    %v4008 = vpop.permute.xlu0 %4007
    %4011 = vset.pattern.permute.xlu0 0
    %4012 = vperm.xlu0 %4011, %v3974
    %v4013 = vpop.permute.xlu0 %4012
    %v4015 = vmul.f32 %v3978, %v3128
    %v4016 = vmul.f32 %v3983, %v3129
    %v4017 = vmul.f32 %v3988, %v3130
    %v4018 = vmul.f32 %v3993, %v3131
    %v4019 = vmul.f32 %v3998, %v3132
    %v4020 = vmul.f32 %v4003, %v3133
    %v4021 = vmul.f32 %v4008, %v3134
    %v4022 = vmul.f32 %v4013, %v3135
    %v4023 = vsel %vm244, %v4015, 0.0
    %v4024 = vrot.slane %v4023, 4
    %v4025 = vadd.f32 %v4023, %v4024
    %v4026 = vrot.slane %v4025, 2
    %v4027 = vadd.f32 %v4025, %v4026
    %v4028 = vrot.slane %v4027, 1
    %v4029 = vadd.f32 %v4027, %v4028
    %v4030 = vsel %vm244, %v4016, 0.0
    %v4031 = vrot.slane %v4030, 4
    %v4032 = vadd.f32 %v4030, %v4031
    %v4033 = vrot.slane %v4032, 2
    %v4034 = vadd.f32 %v4032, %v4033
    %v4035 = vrot.slane %v4034, 1
    %v4036 = vadd.f32 %v4034, %v4035
    %v4037 = vsel %vm244, %v4017, 0.0
    %v4038 = vrot.slane %v4037, 4
    %v4039 = vadd.f32 %v4037, %v4038
    %v4040 = vrot.slane %v4039, 2
    %v4041 = vadd.f32 %v4039, %v4040
    %v4042 = vrot.slane %v4041, 1
    %v4043 = vadd.f32 %v4041, %v4042
    %v4044 = vsel %vm244, %v4018, 0.0
    %v4045 = vrot.slane %v4044, 4
    %v4046 = vadd.f32 %v4044, %v4045
    %v4047 = vrot.slane %v4046, 2
    %v4048 = vadd.f32 %v4046, %v4047
    %v4049 = vrot.slane %v4048, 1
    %v4050 = vadd.f32 %v4048, %v4049
    %v4051 = vsel %vm244, %v4019, 0.0
    %v4052 = vrot.slane %v4051, 4
    %v4053 = vadd.f32 %v4051, %v4052
    %v4054 = vrot.slane %v4053, 2
    %v4055 = vadd.f32 %v4053, %v4054
    %v4056 = vrot.slane %v4055, 1
    %v4057 = vadd.f32 %v4055, %v4056
    %v4058 = vsel %vm244, %v4020, 0.0
    %v4059 = vrot.slane %v4058, 4
    %v4060 = vadd.f32 %v4058, %v4059
    %v4061 = vrot.slane %v4060, 2
    %v4062 = vadd.f32 %v4060, %v4061
    %v4063 = vrot.slane %v4062, 1
    %v4064 = vadd.f32 %v4062, %v4063
    %v4065 = vsel %vm244, %v4021, 0.0
    %v4066 = vrot.slane %v4065, 4
    %v4067 = vadd.f32 %v4065, %v4066
    %v4068 = vrot.slane %v4067, 2
    %v4069 = vadd.f32 %v4067, %v4068
    %v4070 = vrot.slane %v4069, 1
    %v4071 = vadd.f32 %v4069, %v4070
    %v4072 = vsel %vm244, %v4022, 0.0
    %v4073 = vrot.slane %v4072, 4
    %v4074 = vadd.f32 %v4072, %v4073
    %v4075 = vrot.slane %v4074, 2
    %v4076 = vadd.f32 %v4074, %v4075
    %v4077 = vrot.slane %v4076, 1
    %v4078 = vadd.f32 %v4076, %v4077
    %4079 = vset.pattern.permute.xlu0 1
    %4080 = vperm.xlu0 %4079, %v3869
    %v4081 = vpop.permute.xlu0 %4080
    %4083 = vset.pattern.permute.xlu0 1
    %4084 = vperm.xlu0 %4083, %v3884
    %v4085 = vpop.permute.xlu0 %4084
    %4087 = vset.pattern.permute.xlu0 1
    %4088 = vperm.xlu0 %4087, %v3899
    %v4089 = vpop.permute.xlu0 %4088
    %4091 = vset.pattern.permute.xlu0 1
    %4092 = vperm.xlu0 %4091, %v3914
    %v4093 = vpop.permute.xlu0 %4092
    %4095 = vset.pattern.permute.xlu0 1
    %4096 = vperm.xlu0 %4095, %v3929
    %v4097 = vpop.permute.xlu0 %4096
    %4099 = vset.pattern.permute.xlu0 1
    %4100 = vperm.xlu0 %4099, %v3944
    %v4101 = vpop.permute.xlu0 %4100
    %4103 = vset.pattern.permute.xlu0 1
    %4104 = vperm.xlu0 %4103, %v3959
    %v4105 = vpop.permute.xlu0 %4104
    %4107 = vset.pattern.permute.xlu0 1
    %4108 = vperm.xlu0 %4107, %v3974
    %v4109 = vpop.permute.xlu0 %4108
    %v4111 = vmul.f32 %v4081, %v3128
    %v4112 = vmul.f32 %v4085, %v3129
    %v4113 = vmul.f32 %v4089, %v3130
    %v4114 = vmul.f32 %v4093, %v3131
    %v4115 = vmul.f32 %v4097, %v3132
    %v4116 = vmul.f32 %v4101, %v3133
    %v4117 = vmul.f32 %v4105, %v3134
    %v4118 = vmul.f32 %v4109, %v3135
    %v4119 = vsel %vm244, %v4111, 0.0
    %v4120 = vrot.slane %v4119, 4
    %v4121 = vadd.f32 %v4119, %v4120
    %v4122 = vrot.slane %v4121, 2
    %v4123 = vadd.f32 %v4121, %v4122
    %v4124 = vrot.slane %v4123, 1
    %v4125 = vadd.f32 %v4123, %v4124
    %v4126 = vsel %vm244, %v4112, 0.0
    %v4127 = vrot.slane %v4126, 4
    %v4128 = vadd.f32 %v4126, %v4127
    %v4129 = vrot.slane %v4128, 2
    %v4130 = vadd.f32 %v4128, %v4129
    %v4131 = vrot.slane %v4130, 1
    %v4132 = vadd.f32 %v4130, %v4131
    %v4133 = vsel %vm244, %v4113, 0.0
    %v4134 = vrot.slane %v4133, 4
    %v4135 = vadd.f32 %v4133, %v4134
    %v4136 = vrot.slane %v4135, 2
    %v4137 = vadd.f32 %v4135, %v4136
    %v4138 = vrot.slane %v4137, 1
    %v4139 = vadd.f32 %v4137, %v4138
    %v4140 = vsel %vm244, %v4114, 0.0
    %v4141 = vrot.slane %v4140, 4
    %v4142 = vadd.f32 %v4140, %v4141
    %v4143 = vrot.slane %v4142, 2
    %v4144 = vadd.f32 %v4142, %v4143
    %v4145 = vrot.slane %v4144, 1
    %v4146 = vadd.f32 %v4144, %v4145
    %v4147 = vsel %vm244, %v4115, 0.0
    %v4148 = vrot.slane %v4147, 4
    %v4149 = vadd.f32 %v4147, %v4148
    %v4150 = vrot.slane %v4149, 2
    %v4151 = vadd.f32 %v4149, %v4150
    %v4152 = vrot.slane %v4151, 1
    %v4153 = vadd.f32 %v4151, %v4152
    %v4154 = vsel %vm244, %v4116, 0.0
    %v4155 = vrot.slane %v4154, 4
    %v4156 = vadd.f32 %v4154, %v4155
    %v4157 = vrot.slane %v4156, 2
    %v4158 = vadd.f32 %v4156, %v4157
    %v4159 = vrot.slane %v4158, 1
    %v4160 = vadd.f32 %v4158, %v4159
    %v4161 = vsel %vm244, %v4117, 0.0
    %v4162 = vrot.slane %v4161, 4
    %v4163 = vadd.f32 %v4161, %v4162
    %v4164 = vrot.slane %v4163, 2
    %v4165 = vadd.f32 %v4163, %v4164
    %v4166 = vrot.slane %v4165, 1
    %v4167 = vadd.f32 %v4165, %v4166
    %v4168 = vsel %vm244, %v4118, 0.0
    %v4169 = vrot.slane %v4168, 4
    %v4170 = vadd.f32 %v4168, %v4169
    %v4171 = vrot.slane %v4170, 2
    %v4172 = vadd.f32 %v4170, %v4171
    %v4173 = vrot.slane %v4172, 1
    %v4174 = vadd.f32 %v4172, %v4173
    %4175 = vset.pattern.permute.xlu0 2
    %4176 = vperm.xlu0 %4175, %v3869
    %v4177 = vpop.permute.xlu0 %4176
    %4179 = vset.pattern.permute.xlu0 2
    %4180 = vperm.xlu0 %4179, %v3884
    %v4181 = vpop.permute.xlu0 %4180
    %4183 = vset.pattern.permute.xlu0 2
    %4184 = vperm.xlu0 %4183, %v3899
    %v4185 = vpop.permute.xlu0 %4184
    %4187 = vset.pattern.permute.xlu0 2
    %4188 = vperm.xlu0 %4187, %v3914
    %v4189 = vpop.permute.xlu0 %4188
    %4191 = vset.pattern.permute.xlu0 2
    %4192 = vperm.xlu0 %4191, %v3929
    %v4193 = vpop.permute.xlu0 %4192
    %4195 = vset.pattern.permute.xlu0 2
    %4196 = vperm.xlu0 %4195, %v3944
    %v4197 = vpop.permute.xlu0 %4196
    %4199 = vset.pattern.permute.xlu0 2
    %4200 = vperm.xlu0 %4199, %v3959
    %v4201 = vpop.permute.xlu0 %4200
    %4203 = vset.pattern.permute.xlu0 2
    %4204 = vperm.xlu0 %4203, %v3974
    %v4205 = vpop.permute.xlu0 %4204
    %v4207 = vmul.f32 %v4177, %v3128
    %v4208 = vmul.f32 %v4181, %v3129
    %v4209 = vmul.f32 %v4185, %v3130
    %v4210 = vmul.f32 %v4189, %v3131
    %v4211 = vmul.f32 %v4193, %v3132
    %v4212 = vmul.f32 %v4197, %v3133
    %v4213 = vmul.f32 %v4201, %v3134
    %v4214 = vmul.f32 %v4205, %v3135
    %v4215 = vsel %vm244, %v4207, 0.0
    %v4216 = vrot.slane %v4215, 4
    %v4217 = vadd.f32 %v4215, %v4216
    %v4218 = vrot.slane %v4217, 2
    %v4219 = vadd.f32 %v4217, %v4218
    %v4220 = vrot.slane %v4219, 1
    %v4221 = vadd.f32 %v4219, %v4220
    %v4222 = vsel %vm244, %v4208, 0.0
    %v4223 = vrot.slane %v4222, 4
    %v4224 = vadd.f32 %v4222, %v4223
    %v4225 = vrot.slane %v4224, 2
    %v4226 = vadd.f32 %v4224, %v4225
    %v4227 = vrot.slane %v4226, 1
    %v4228 = vadd.f32 %v4226, %v4227
    %v4229 = vsel %vm244, %v4209, 0.0
    %v4230 = vrot.slane %v4229, 4
    %v4231 = vadd.f32 %v4229, %v4230
    %v4232 = vrot.slane %v4231, 2
    %v4233 = vadd.f32 %v4231, %v4232
    %v4234 = vrot.slane %v4233, 1
    %v4235 = vadd.f32 %v4233, %v4234
    %v4236 = vsel %vm244, %v4210, 0.0
    %v4237 = vrot.slane %v4236, 4
    %v4238 = vadd.f32 %v4236, %v4237
    %v4239 = vrot.slane %v4238, 2
    %v4240 = vadd.f32 %v4238, %v4239
    %v4241 = vrot.slane %v4240, 1
    %v4242 = vadd.f32 %v4240, %v4241
    %v4243 = vsel %vm244, %v4211, 0.0
    %v4244 = vrot.slane %v4243, 4
    %v4245 = vadd.f32 %v4243, %v4244
    %v4246 = vrot.slane %v4245, 2
    %v4247 = vadd.f32 %v4245, %v4246
    %v4248 = vrot.slane %v4247, 1
    %v4249 = vadd.f32 %v4247, %v4248
    %v4250 = vsel %vm244, %v4212, 0.0
    %v4251 = vrot.slane %v4250, 4
    %v4252 = vadd.f32 %v4250, %v4251
    %v4253 = vrot.slane %v4252, 2
    %v4254 = vadd.f32 %v4252, %v4253
    %v4255 = vrot.slane %v4254, 1
    %v4256 = vadd.f32 %v4254, %v4255
    %v4257 = vsel %vm244, %v4213, 0.0
    %v4258 = vrot.slane %v4257, 4
    %v4259 = vadd.f32 %v4257, %v4258
    %v4260 = vrot.slane %v4259, 2
    %v4261 = vadd.f32 %v4259, %v4260
    %v4262 = vrot.slane %v4261, 1
    %v4263 = vadd.f32 %v4261, %v4262
    %v4264 = vsel %vm244, %v4214, 0.0
    %v4265 = vrot.slane %v4264, 4
    %v4266 = vadd.f32 %v4264, %v4265
    %v4267 = vrot.slane %v4266, 2
    %v4268 = vadd.f32 %v4266, %v4267
    %v4269 = vrot.slane %v4268, 1
    %v4270 = vadd.f32 %v4268, %v4269
    %4271 = vset.pattern.permute.xlu0 3
    %4272 = vperm.xlu0 %4271, %v3869
    %v4273 = vpop.permute.xlu0 %4272
    %4275 = vset.pattern.permute.xlu0 3
    %4276 = vperm.xlu0 %4275, %v3884
    %v4277 = vpop.permute.xlu0 %4276
    %4279 = vset.pattern.permute.xlu0 3
    %4280 = vperm.xlu0 %4279, %v3899
    %v4281 = vpop.permute.xlu0 %4280
    %4283 = vset.pattern.permute.xlu0 3
    %4284 = vperm.xlu0 %4283, %v3914
    %v4285 = vpop.permute.xlu0 %4284
    %4287 = vset.pattern.permute.xlu0 3
    %4288 = vperm.xlu0 %4287, %v3929
    %v4289 = vpop.permute.xlu0 %4288
    %4291 = vset.pattern.permute.xlu0 3
    %4292 = vperm.xlu0 %4291, %v3944
    %v4293 = vpop.permute.xlu0 %4292
    %4295 = vset.pattern.permute.xlu0 3
    %4296 = vperm.xlu0 %4295, %v3959
    %v4297 = vpop.permute.xlu0 %4296
    %4299 = vset.pattern.permute.xlu0 3
    %4300 = vperm.xlu0 %4299, %v3974
    %v4301 = vpop.permute.xlu0 %4300
    %v4303 = vmul.f32 %v4273, %v3128
    %v4304 = vmul.f32 %v4277, %v3129
    %v4305 = vmul.f32 %v4281, %v3130
    %v4306 = vmul.f32 %v4285, %v3131
    %v4307 = vmul.f32 %v4289, %v3132
    %v4308 = vmul.f32 %v4293, %v3133
    %v4309 = vmul.f32 %v4297, %v3134
    %v4310 = vmul.f32 %v4301, %v3135
    %v4311 = vsel %vm244, %v4303, 0.0
    %v4312 = vrot.slane %v4311, 4
    %v4313 = vadd.f32 %v4311, %v4312
    %v4314 = vrot.slane %v4313, 2
    %v4315 = vadd.f32 %v4313, %v4314
    %v4316 = vrot.slane %v4315, 1
    %v4317 = vadd.f32 %v4315, %v4316
    %v4318 = vsel %vm244, %v4304, 0.0
    %v4319 = vrot.slane %v4318, 4
    %v4320 = vadd.f32 %v4318, %v4319
    %v4321 = vrot.slane %v4320, 2
    %v4322 = vadd.f32 %v4320, %v4321
    %v4323 = vrot.slane %v4322, 1
    %v4324 = vadd.f32 %v4322, %v4323
    %v4325 = vsel %vm244, %v4305, 0.0
    %v4326 = vrot.slane %v4325, 4
    %v4327 = vadd.f32 %v4325, %v4326
    %v4328 = vrot.slane %v4327, 2
    %v4329 = vadd.f32 %v4327, %v4328
    %v4330 = vrot.slane %v4329, 1
    %v4331 = vadd.f32 %v4329, %v4330
    %v4332 = vsel %vm244, %v4306, 0.0
    %v4333 = vrot.slane %v4332, 4
    %v4334 = vadd.f32 %v4332, %v4333
    %v4335 = vrot.slane %v4334, 2
    %v4336 = vadd.f32 %v4334, %v4335
    %v4337 = vrot.slane %v4336, 1
    %v4338 = vadd.f32 %v4336, %v4337
    %v4339 = vsel %vm244, %v4307, 0.0
    %v4340 = vrot.slane %v4339, 4
    %v4341 = vadd.f32 %v4339, %v4340
    %v4342 = vrot.slane %v4341, 2
    %v4343 = vadd.f32 %v4341, %v4342
    %v4344 = vrot.slane %v4343, 1
    %v4345 = vadd.f32 %v4343, %v4344
    %v4346 = vsel %vm244, %v4308, 0.0
    %v4347 = vrot.slane %v4346, 4
    %v4348 = vadd.f32 %v4346, %v4347
    %v4349 = vrot.slane %v4348, 2
    %v4350 = vadd.f32 %v4348, %v4349
    %v4351 = vrot.slane %v4350, 1
    %v4352 = vadd.f32 %v4350, %v4351
    %v4353 = vsel %vm244, %v4309, 0.0
    %v4354 = vrot.slane %v4353, 4
    %v4355 = vadd.f32 %v4353, %v4354
    %v4356 = vrot.slane %v4355, 2
    %v4357 = vadd.f32 %v4355, %v4356
    %v4358 = vrot.slane %v4357, 1
    %v4359 = vadd.f32 %v4357, %v4358
    %v4360 = vsel %vm244, %v4310, 0.0
    %v4361 = vrot.slane %v4360, 4
    %v4362 = vadd.f32 %v4360, %v4361
    %v4363 = vrot.slane %v4362, 2
    %v4364 = vadd.f32 %v4362, %v4363
    %v4365 = vrot.slane %v4364, 1
    %v4366 = vadd.f32 %v4364, %v4365
    %4367 = vset.pattern.permute.xlu0 4
    %4368 = vperm.xlu0 %4367, %v3869
    %v4369 = vpop.permute.xlu0 %4368
    %4371 = vset.pattern.permute.xlu0 4
    %4372 = vperm.xlu0 %4371, %v3884
    %v4373 = vpop.permute.xlu0 %4372
    %4375 = vset.pattern.permute.xlu0 4
    %4376 = vperm.xlu0 %4375, %v3899
    %v4377 = vpop.permute.xlu0 %4376
    %4379 = vset.pattern.permute.xlu0 4
    %4380 = vperm.xlu0 %4379, %v3914
    %v4381 = vpop.permute.xlu0 %4380
    %4383 = vset.pattern.permute.xlu0 4
    %4384 = vperm.xlu0 %4383, %v3929
    %v4385 = vpop.permute.xlu0 %4384
    %4387 = vset.pattern.permute.xlu0 4
    %4388 = vperm.xlu0 %4387, %v3944
    %v4389 = vpop.permute.xlu0 %4388
    %4391 = vset.pattern.permute.xlu0 4
    %4392 = vperm.xlu0 %4391, %v3959
    %v4393 = vpop.permute.xlu0 %4392
    %4395 = vset.pattern.permute.xlu0 4
    %4396 = vperm.xlu0 %4395, %v3974
    %v4397 = vpop.permute.xlu0 %4396
    %v4399 = vmul.f32 %v4369, %v3128
    %v4400 = vmul.f32 %v4373, %v3129
    %v4401 = vmul.f32 %v4377, %v3130
    %v4402 = vmul.f32 %v4381, %v3131
    %v4403 = vmul.f32 %v4385, %v3132
    %v4404 = vmul.f32 %v4389, %v3133
    %v4405 = vmul.f32 %v4393, %v3134
    %v4406 = vmul.f32 %v4397, %v3135
    %v4407 = vsel %vm244, %v4399, 0.0
    %v4408 = vrot.slane %v4407, 4
    %v4409 = vadd.f32 %v4407, %v4408
    %v4410 = vrot.slane %v4409, 2
    %v4411 = vadd.f32 %v4409, %v4410
    %v4412 = vrot.slane %v4411, 1
    %v4413 = vadd.f32 %v4411, %v4412
    %v4414 = vsel %vm244, %v4400, 0.0
    %v4415 = vrot.slane %v4414, 4
    %v4416 = vadd.f32 %v4414, %v4415
    %v4417 = vrot.slane %v4416, 2
    %v4418 = vadd.f32 %v4416, %v4417
    %v4419 = vrot.slane %v4418, 1
    %v4420 = vadd.f32 %v4418, %v4419
    %v4421 = vsel %vm244, %v4401, 0.0
    %v4422 = vrot.slane %v4421, 4
    %v4423 = vadd.f32 %v4421, %v4422
    %v4424 = vrot.slane %v4423, 2
    %v4425 = vadd.f32 %v4423, %v4424
    %v4426 = vrot.slane %v4425, 1
    %v4427 = vadd.f32 %v4425, %v4426
    %v4428 = vsel %vm244, %v4402, 0.0
    %v4429 = vrot.slane %v4428, 4
    %v4430 = vadd.f32 %v4428, %v4429
    %v4431 = vrot.slane %v4430, 2
    %v4432 = vadd.f32 %v4430, %v4431
    %v4433 = vrot.slane %v4432, 1
    %v4434 = vadd.f32 %v4432, %v4433
    %v4435 = vsel %vm244, %v4403, 0.0
    %v4436 = vrot.slane %v4435, 4
    %v4437 = vadd.f32 %v4435, %v4436
    %v4438 = vrot.slane %v4437, 2
    %v4439 = vadd.f32 %v4437, %v4438
    %v4440 = vrot.slane %v4439, 1
    %v4441 = vadd.f32 %v4439, %v4440
    %v4442 = vsel %vm244, %v4404, 0.0
    %v4443 = vrot.slane %v4442, 4
    %v4444 = vadd.f32 %v4442, %v4443
    %v4445 = vrot.slane %v4444, 2
    %v4446 = vadd.f32 %v4444, %v4445
    %v4447 = vrot.slane %v4446, 1
    %v4448 = vadd.f32 %v4446, %v4447
    %v4449 = vsel %vm244, %v4405, 0.0
    %v4450 = vrot.slane %v4449, 4
    %v4451 = vadd.f32 %v4449, %v4450
    %v4452 = vrot.slane %v4451, 2
    %v4453 = vadd.f32 %v4451, %v4452
    %v4454 = vrot.slane %v4453, 1
    %v4455 = vadd.f32 %v4453, %v4454
    %v4456 = vsel %vm244, %v4406, 0.0
    %v4457 = vrot.slane %v4456, 4
    %v4458 = vadd.f32 %v4456, %v4457
    %v4459 = vrot.slane %v4458, 2
    %v4460 = vadd.f32 %v4458, %v4459
    %v4461 = vrot.slane %v4460, 1
    %v4462 = vadd.f32 %v4460, %v4461
    %4463 = vset.pattern.permute.xlu0 5
    %4464 = vperm.xlu0 %4463, %v3869
    %v4465 = vpop.permute.xlu0 %4464
    %4467 = vset.pattern.permute.xlu0 5
    %4468 = vperm.xlu0 %4467, %v3884
    %v4469 = vpop.permute.xlu0 %4468
    %4471 = vset.pattern.permute.xlu0 5
    %4472 = vperm.xlu0 %4471, %v3899
    %v4473 = vpop.permute.xlu0 %4472
    %4475 = vset.pattern.permute.xlu0 5
    %4476 = vperm.xlu0 %4475, %v3914
    %v4477 = vpop.permute.xlu0 %4476
    %4479 = vset.pattern.permute.xlu0 5
    %4480 = vperm.xlu0 %4479, %v3929
    %v4481 = vpop.permute.xlu0 %4480
    %4483 = vset.pattern.permute.xlu0 5
    %4484 = vperm.xlu0 %4483, %v3944
    %v4485 = vpop.permute.xlu0 %4484
    %4487 = vset.pattern.permute.xlu0 5
    %4488 = vperm.xlu0 %4487, %v3959
    %v4489 = vpop.permute.xlu0 %4488
    %4491 = vset.pattern.permute.xlu0 5
    %4492 = vperm.xlu0 %4491, %v3974
    %v4493 = vpop.permute.xlu0 %4492
    %v4495 = vmul.f32 %v4465, %v3128
    %v4496 = vmul.f32 %v4469, %v3129
    %v4497 = vmul.f32 %v4473, %v3130
    %v4498 = vmul.f32 %v4477, %v3131
    %v4499 = vmul.f32 %v4481, %v3132
    %v4500 = vmul.f32 %v4485, %v3133
    %v4501 = vmul.f32 %v4489, %v3134
    %v4502 = vmul.f32 %v4493, %v3135
    %v4503 = vsel %vm244, %v4495, 0.0
    %v4504 = vrot.slane %v4503, 4
    %v4505 = vadd.f32 %v4503, %v4504
    %v4506 = vrot.slane %v4505, 2
    %v4507 = vadd.f32 %v4505, %v4506
    %v4508 = vrot.slane %v4507, 1
    %v4509 = vadd.f32 %v4507, %v4508
    %v4510 = vsel %vm244, %v4496, 0.0
    %v4511 = vrot.slane %v4510, 4
    %v4512 = vadd.f32 %v4510, %v4511
    %v4513 = vrot.slane %v4512, 2
    %v4514 = vadd.f32 %v4512, %v4513
    %v4515 = vrot.slane %v4514, 1
    %v4516 = vadd.f32 %v4514, %v4515
    %v4517 = vsel %vm244, %v4497, 0.0
    %v4518 = vrot.slane %v4517, 4
    %v4519 = vadd.f32 %v4517, %v4518
    %v4520 = vrot.slane %v4519, 2
    %v4521 = vadd.f32 %v4519, %v4520
    %v4522 = vrot.slane %v4521, 1
    %v4523 = vadd.f32 %v4521, %v4522
    %v4524 = vsel %vm244, %v4498, 0.0
    %v4525 = vrot.slane %v4524, 4
    %v4526 = vadd.f32 %v4524, %v4525
    %v4527 = vrot.slane %v4526, 2
    %v4528 = vadd.f32 %v4526, %v4527
    %v4529 = vrot.slane %v4528, 1
    %v4530 = vadd.f32 %v4528, %v4529
    %v4531 = vsel %vm244, %v4499, 0.0
    %v4532 = vrot.slane %v4531, 4
    %v4533 = vadd.f32 %v4531, %v4532
    %v4534 = vrot.slane %v4533, 2
    %v4535 = vadd.f32 %v4533, %v4534
    %v4536 = vrot.slane %v4535, 1
    %v4537 = vadd.f32 %v4535, %v4536
    %v4538 = vsel %vm244, %v4500, 0.0
    %v4539 = vrot.slane %v4538, 4
    %v4540 = vadd.f32 %v4538, %v4539
    %v4541 = vrot.slane %v4540, 2
    %v4542 = vadd.f32 %v4540, %v4541
    %v4543 = vrot.slane %v4542, 1
    %v4544 = vadd.f32 %v4542, %v4543
    %v4545 = vsel %vm244, %v4501, 0.0
    %v4546 = vrot.slane %v4545, 4
    %v4547 = vadd.f32 %v4545, %v4546
    %v4548 = vrot.slane %v4547, 2
    %v4549 = vadd.f32 %v4547, %v4548
    %v4550 = vrot.slane %v4549, 1
    %v4551 = vadd.f32 %v4549, %v4550
    %v4552 = vsel %vm244, %v4502, 0.0
    %v4553 = vrot.slane %v4552, 4
    %v4554 = vadd.f32 %v4552, %v4553
    %v4555 = vrot.slane %v4554, 2
    %v4556 = vadd.f32 %v4554, %v4555
    %v4557 = vrot.slane %v4556, 1
    %v4558 = vadd.f32 %v4556, %v4557
    %4559 = vset.pattern.permute.xlu0 6
    %4560 = vperm.xlu0 %4559, %v3869
    %v4561 = vpop.permute.xlu0 %4560
    %4563 = vset.pattern.permute.xlu0 6
    %4564 = vperm.xlu0 %4563, %v3884
    %v4565 = vpop.permute.xlu0 %4564
    %4567 = vset.pattern.permute.xlu0 6
    %4568 = vperm.xlu0 %4567, %v3899
    %v4569 = vpop.permute.xlu0 %4568
    %4571 = vset.pattern.permute.xlu0 6
    %4572 = vperm.xlu0 %4571, %v3914
    %v4573 = vpop.permute.xlu0 %4572
    %4575 = vset.pattern.permute.xlu0 6
    %4576 = vperm.xlu0 %4575, %v3929
    %v4577 = vpop.permute.xlu0 %4576
    %4579 = vset.pattern.permute.xlu0 6
    %4580 = vperm.xlu0 %4579, %v3944
    %v4581 = vpop.permute.xlu0 %4580
    %4583 = vset.pattern.permute.xlu0 6
    %4584 = vperm.xlu0 %4583, %v3959
    %v4585 = vpop.permute.xlu0 %4584
    %4587 = vset.pattern.permute.xlu0 6
    %4588 = vperm.xlu0 %4587, %v3974
    %v4589 = vpop.permute.xlu0 %4588
    %v4591 = vmul.f32 %v4561, %v3128
    %v4592 = vmul.f32 %v4565, %v3129
    %v4593 = vmul.f32 %v4569, %v3130
    %v4594 = vmul.f32 %v4573, %v3131
    %v4595 = vmul.f32 %v4577, %v3132
    %v4596 = vmul.f32 %v4581, %v3133
    %v4597 = vmul.f32 %v4585, %v3134
    %v4598 = vmul.f32 %v4589, %v3135
    %v4599 = vsel %vm244, %v4591, 0.0
    %v4600 = vrot.slane %v4599, 4
    %v4601 = vadd.f32 %v4599, %v4600
    %v4602 = vrot.slane %v4601, 2
    %v4603 = vadd.f32 %v4601, %v4602
    %v4604 = vrot.slane %v4603, 1
    %v4605 = vadd.f32 %v4603, %v4604
    %v4606 = vsel %vm244, %v4592, 0.0
    %v4607 = vrot.slane %v4606, 4
    %v4608 = vadd.f32 %v4606, %v4607
    %v4609 = vrot.slane %v4608, 2
    %v4610 = vadd.f32 %v4608, %v4609
    %v4611 = vrot.slane %v4610, 1
    %v4612 = vadd.f32 %v4610, %v4611
    %v4613 = vsel %vm244, %v4593, 0.0
    %v4614 = vrot.slane %v4613, 4
    %v4615 = vadd.f32 %v4613, %v4614
    %v4616 = vrot.slane %v4615, 2
    %v4617 = vadd.f32 %v4615, %v4616
    %v4618 = vrot.slane %v4617, 1
    %v4619 = vadd.f32 %v4617, %v4618
    %v4620 = vsel %vm244, %v4594, 0.0
    %v4621 = vrot.slane %v4620, 4
    %v4622 = vadd.f32 %v4620, %v4621
    %v4623 = vrot.slane %v4622, 2
    %v4624 = vadd.f32 %v4622, %v4623
    %v4625 = vrot.slane %v4624, 1
    %v4626 = vadd.f32 %v4624, %v4625
    %v4627 = vsel %vm244, %v4595, 0.0
    %v4628 = vrot.slane %v4627, 4
    %v4629 = vadd.f32 %v4627, %v4628
    %v4630 = vrot.slane %v4629, 2
    %v4631 = vadd.f32 %v4629, %v4630
    %v4632 = vrot.slane %v4631, 1
    %v4633 = vadd.f32 %v4631, %v4632
    %v4634 = vsel %vm244, %v4596, 0.0
    %v4635 = vrot.slane %v4634, 4
    %v4636 = vadd.f32 %v4634, %v4635
    %v4637 = vrot.slane %v4636, 2
    %v4638 = vadd.f32 %v4636, %v4637
    %v4639 = vrot.slane %v4638, 1
    %v4640 = vadd.f32 %v4638, %v4639
    %v4641 = vsel %vm244, %v4597, 0.0
    %v4642 = vrot.slane %v4641, 4
    %v4643 = vadd.f32 %v4641, %v4642
    %v4644 = vrot.slane %v4643, 2
    %v4645 = vadd.f32 %v4643, %v4644
    %v4646 = vrot.slane %v4645, 1
    %v4647 = vadd.f32 %v4645, %v4646
    %v4648 = vsel %vm244, %v4598, 0.0
    %v4649 = vrot.slane %v4648, 4
    %v4650 = vadd.f32 %v4648, %v4649
    %v4651 = vrot.slane %v4650, 2
    %v4652 = vadd.f32 %v4650, %v4651
    %v4653 = vrot.slane %v4652, 1
    %v4654 = vadd.f32 %v4652, %v4653
    %4655 = vset.pattern.permute.xlu0 7
    %4656 = vperm.xlu0 %4655, %v3869
    %v4657 = vpop.permute.xlu0 %4656
    %4659 = vset.pattern.permute.xlu0 7
    %4660 = vperm.xlu0 %4659, %v3884
    %v4661 = vpop.permute.xlu0 %4660
    %4663 = vset.pattern.permute.xlu0 7
    %4664 = vperm.xlu0 %4663, %v3899
    %v4665 = vpop.permute.xlu0 %4664
    %4667 = vset.pattern.permute.xlu0 7
    %4668 = vperm.xlu0 %4667, %v3914
    %v4669 = vpop.permute.xlu0 %4668
    %4671 = vset.pattern.permute.xlu0 7
    %4672 = vperm.xlu0 %4671, %v3929
    %v4673 = vpop.permute.xlu0 %4672
    %4675 = vset.pattern.permute.xlu0 7
    %4676 = vperm.xlu0 %4675, %v3944
    %v4677 = vpop.permute.xlu0 %4676
    %4679 = vset.pattern.permute.xlu0 7
    %4680 = vperm.xlu0 %4679, %v3959
    %v4681 = vpop.permute.xlu0 %4680
    %4683 = vset.pattern.permute.xlu0 7
    %4684 = vperm.xlu0 %4683, %v3974
    %v4685 = vpop.permute.xlu0 %4684
    %v4687 = vmul.f32 %v4657, %v3128
    %v4688 = vmul.f32 %v4661, %v3129
    %v4689 = vmul.f32 %v4665, %v3130
    %v4690 = vmul.f32 %v4669, %v3131
    %v4691 = vmul.f32 %v4673, %v3132
    %v4692 = vmul.f32 %v4677, %v3133
    %v4693 = vmul.f32 %v4681, %v3134
    %v4694 = vmul.f32 %v4685, %v3135
    %v4695 = vsel %vm244, %v4687, 0.0
    %v4696 = vrot.slane %v4695, 4
    %v4697 = vadd.f32 %v4695, %v4696
    %v4698 = vrot.slane %v4697, 2
    %v4699 = vadd.f32 %v4697, %v4698
    %v4700 = vrot.slane %v4699, 1
    %v4701 = vadd.f32 %v4699, %v4700
    %v4702 = vsel %vm244, %v4688, 0.0
    %v4703 = vrot.slane %v4702, 4
    %v4704 = vadd.f32 %v4702, %v4703
    %v4705 = vrot.slane %v4704, 2
    %v4706 = vadd.f32 %v4704, %v4705
    %v4707 = vrot.slane %v4706, 1
    %v4708 = vadd.f32 %v4706, %v4707
    %v4709 = vsel %vm244, %v4689, 0.0
    %v4710 = vrot.slane %v4709, 4
    %v4711 = vadd.f32 %v4709, %v4710
    %v4712 = vrot.slane %v4711, 2
    %v4713 = vadd.f32 %v4711, %v4712
    %v4714 = vrot.slane %v4713, 1
    %v4715 = vadd.f32 %v4713, %v4714
    %v4716 = vsel %vm244, %v4690, 0.0
    %v4717 = vrot.slane %v4716, 4
    %v4718 = vadd.f32 %v4716, %v4717
    %v4719 = vrot.slane %v4718, 2
    %v4720 = vadd.f32 %v4718, %v4719
    %v4721 = vrot.slane %v4720, 1
    %v4722 = vadd.f32 %v4720, %v4721
    %v4723 = vsel %vm244, %v4691, 0.0
    %v4724 = vrot.slane %v4723, 4
    %v4725 = vadd.f32 %v4723, %v4724
    %v4726 = vrot.slane %v4725, 2
    %v4727 = vadd.f32 %v4725, %v4726
    %v4728 = vrot.slane %v4727, 1
    %v4729 = vadd.f32 %v4727, %v4728
    %v4730 = vsel %vm244, %v4692, 0.0
    %v4731 = vrot.slane %v4730, 4
    %v4732 = vadd.f32 %v4730, %v4731
    %v4733 = vrot.slane %v4732, 2
    %v4734 = vadd.f32 %v4732, %v4733
    %v4735 = vrot.slane %v4734, 1
    %v4736 = vadd.f32 %v4734, %v4735
    %v4737 = vsel %vm244, %v4693, 0.0
    %v4738 = vrot.slane %v4737, 4
    %v4739 = vadd.f32 %v4737, %v4738
    %v4740 = vrot.slane %v4739, 2
    %v4741 = vadd.f32 %v4739, %v4740
    %v4742 = vrot.slane %v4741, 1
    %v4743 = vadd.f32 %v4741, %v4742
    %v4744 = vsel %vm244, %v4694, 0.0
    %v4745 = vrot.slane %v4744, 4
    %v4746 = vadd.f32 %v4744, %v4745
    %v4747 = vrot.slane %v4746, 2
    %v4748 = vadd.f32 %v4746, %v4747
    %v4749 = vrot.slane %v4748, 1
    %v4750 = vadd.f32 %v4748, %v4749
    %v4815 = vrot.slane %v4036, 7
    %vm4816 = vcmask 1041409
    %v4817 = vsel %vm4816, %v4815, %v4029
    %v4818 = vrot.slane %v4043, 6
    %vm4819 = vcmask 1042434
    %v4820 = vsel %vm4819, %v4818, %v4817
    %v4821 = vrot.slane %v4050, 5
    %vm4822 = vcmask 1043459
    %v4823 = vsel %vm4822, %v4821, %v4820
    %v4824 = vrot.slane %v4057, 4
    %vm4825 = vcmask 1044484
    %v4826 = vsel %vm4825, %v4824, %v4823
    %v4827 = vrot.slane %v4064, 3
    %vm4828 = vcmask 1045509
    %v4829 = vsel %vm4828, %v4827, %v4826
    %v4830 = vrot.slane %v4071, 2
    %vm4831 = vcmask 1046534
    %v4832 = vsel %vm4831, %v4830, %v4829
    %v4833 = vrot.slane %v4078, 1
    %vm4834 = vcmask 1047559
    %v4835 = vsel %vm4834, %v4833, %v4832
    %v4836 = vrot.slane %v4132, 7
    %v4837 = vsel %vm4816, %v4836, %v4125
    %v4838 = vrot.slane %v4139, 6
    %v4839 = vsel %vm4819, %v4838, %v4837
    %v4840 = vrot.slane %v4146, 5
    %v4841 = vsel %vm4822, %v4840, %v4839
    %v4842 = vrot.slane %v4153, 4
    %v4843 = vsel %vm4825, %v4842, %v4841
    %v4844 = vrot.slane %v4160, 3
    %v4845 = vsel %vm4828, %v4844, %v4843
    %v4846 = vrot.slane %v4167, 2
    %v4847 = vsel %vm4831, %v4846, %v4845
    %v4848 = vrot.slane %v4174, 1
    %v4849 = vsel %vm4834, %v4848, %v4847
    %v4850 = vrot.slane %v4228, 7
    %v4851 = vsel %vm4816, %v4850, %v4221
    %v4852 = vrot.slane %v4235, 6
    %v4853 = vsel %vm4819, %v4852, %v4851
    %v4854 = vrot.slane %v4242, 5
    %v4855 = vsel %vm4822, %v4854, %v4853
    %v4856 = vrot.slane %v4249, 4
    %v4857 = vsel %vm4825, %v4856, %v4855
    %v4858 = vrot.slane %v4256, 3
    %v4859 = vsel %vm4828, %v4858, %v4857
    %v4860 = vrot.slane %v4263, 2
    %v4861 = vsel %vm4831, %v4860, %v4859
    %v4862 = vrot.slane %v4270, 1
    %v4863 = vsel %vm4834, %v4862, %v4861
    %v4864 = vrot.slane %v4324, 7
    %v4865 = vsel %vm4816, %v4864, %v4317
    %v4866 = vrot.slane %v4331, 6
    %v4867 = vsel %vm4819, %v4866, %v4865
    %v4868 = vrot.slane %v4338, 5
    %v4869 = vsel %vm4822, %v4868, %v4867
    %v4870 = vrot.slane %v4345, 4
    %v4871 = vsel %vm4825, %v4870, %v4869
    %v4872 = vrot.slane %v4352, 3
    %v4873 = vsel %vm4828, %v4872, %v4871
    %v4874 = vrot.slane %v4359, 2
    %v4875 = vsel %vm4831, %v4874, %v4873
    %v4876 = vrot.slane %v4366, 1
    %v4877 = vsel %vm4834, %v4876, %v4875
    %v4878 = vrot.slane %v4420, 7
    %v4879 = vsel %vm4816, %v4878, %v4413
    %v4880 = vrot.slane %v4427, 6
    %v4881 = vsel %vm4819, %v4880, %v4879
    %v4882 = vrot.slane %v4434, 5
    %v4883 = vsel %vm4822, %v4882, %v4881
    %v4884 = vrot.slane %v4441, 4
    %v4885 = vsel %vm4825, %v4884, %v4883
    %v4886 = vrot.slane %v4448, 3
    %v4887 = vsel %vm4828, %v4886, %v4885
    %v4888 = vrot.slane %v4455, 2
    %v4889 = vsel %vm4831, %v4888, %v4887
    %v4890 = vrot.slane %v4462, 1
    %v4891 = vsel %vm4834, %v4890, %v4889
    %v4892 = vrot.slane %v4516, 7
    %v4893 = vsel %vm4816, %v4892, %v4509
    %v4894 = vrot.slane %v4523, 6
    %v4895 = vsel %vm4819, %v4894, %v4893
    %v4896 = vrot.slane %v4530, 5
    %v4897 = vsel %vm4822, %v4896, %v4895
    %v4898 = vrot.slane %v4537, 4
    %v4899 = vsel %vm4825, %v4898, %v4897
    %v4900 = vrot.slane %v4544, 3
    %v4901 = vsel %vm4828, %v4900, %v4899
    %v4902 = vrot.slane %v4551, 2
    %v4903 = vsel %vm4831, %v4902, %v4901
    %v4904 = vrot.slane %v4558, 1
    %v4905 = vsel %vm4834, %v4904, %v4903
    %v4906 = vrot.slane %v4612, 7
    %v4907 = vsel %vm4816, %v4906, %v4605
    %v4908 = vrot.slane %v4619, 6
    %v4909 = vsel %vm4819, %v4908, %v4907
    %v4910 = vrot.slane %v4626, 5
    %v4911 = vsel %vm4822, %v4910, %v4909
    %v4912 = vrot.slane %v4633, 4
    %v4913 = vsel %vm4825, %v4912, %v4911
    %v4914 = vrot.slane %v4640, 3
    %v4915 = vsel %vm4828, %v4914, %v4913
    %v4916 = vrot.slane %v4647, 2
    %v4917 = vsel %vm4831, %v4916, %v4915
    %v4918 = vrot.slane %v4654, 1
    %v4919 = vsel %vm4834, %v4918, %v4917
    %v4920 = vrot.slane %v4708, 7
    %v4921 = vsel %vm4816, %v4920, %v4701
    %v4922 = vrot.slane %v4715, 6
    %v4923 = vsel %vm4819, %v4922, %v4921
    %v4924 = vrot.slane %v4722, 5
    %v4925 = vsel %vm4822, %v4924, %v4923
    %v4926 = vrot.slane %v4729, 4
    %v4927 = vsel %vm4825, %v4926, %v4925
    %v4928 = vrot.slane %v4736, 3
    %v4929 = vsel %vm4828, %v4928, %v4927
    %v4930 = vrot.slane %v4743, 2
    %v4931 = vsel %vm4831, %v4930, %v4929
    %v4932 = vrot.slane %v4750, 1
    %v4933 = vsel %vm4834, %v4932, %v4931
    %4934 = vrot.lane.b32.xlu0 %v4835, 32
    %v4935 = vpop.permute.xlu0 %4934
    %4936 = vrot.lane.b32.xlu0 %v4849, 32
    %v4937 = vpop.permute.xlu0 %4936
    %4938 = vrot.lane.b32.xlu0 %v4863, 32
    %v4939 = vpop.permute.xlu0 %4938
    %4940 = vrot.lane.b32.xlu0 %v4877, 32
    %v4941 = vpop.permute.xlu0 %4940
    %4942 = vrot.lane.b32.xlu0 %v4891, 32
    %v4943 = vpop.permute.xlu0 %4942
    %4944 = vrot.lane.b32.xlu0 %v4905, 32
    %v4945 = vpop.permute.xlu0 %4944
    %4946 = vrot.lane.b32.xlu0 %v4919, 32
    %v4947 = vpop.permute.xlu0 %4946
    %4948 = vrot.lane.b32.xlu0 %v4933, 32
    %v4949 = vpop.permute.xlu0 %4948
    %v4958 = vsel %vm244, %v3120, %v4935
    %v4959 = vsel %vm244, %v3121, %v4937
    %v4960 = vsel %vm244, %v3122, %v4939
    %v4961 = vsel %vm244, %v3123, %v4941
    %v4962 = vsel %vm244, %v3124, %v4943
    %v4963 = vsel %vm244, %v3125, %v4945
    %v4964 = vsel %vm244, %v3126, %v4947
    %v4965 = vsel %vm244, %v3127, %v4949
    %v4966 = vld [vmem:[%s9] sm:$0xff]
    %v4967 = vld [vmem:[%s9 + $0x8] sm:$0xff]
    %v4968 = vld [vmem:[%s9 + $0x10] sm:$0xff]
    %v4969 = vld [vmem:[%s9 + $0x18] sm:$0xff]
    %v4970 = vld [vmem:[%s9 + $0x20] sm:$0xff]
    %v4971 = vld [vmem:[%s9 + $0x28] sm:$0xff]
    %v4972 = vld [vmem:[%s9 + $0x30] sm:$0xff]
    %v4973 = vld [vmem:[%s9 + $0x38] sm:$0xff]
    %v4974 = vld [vmem:[%s10] sm:$0x1]
    %v4976 = vperm.slane %v4974, 0
    %vm4978 = vcmask 523264
    %v4980 = vsel %vm4978, %v4958, 0
    %v4983 = vsel %vm4978, %v4959, 0
    %v4986 = vsel %vm4978, %v4960, 0
    %v4989 = vsel %vm4978, %v4961, 0
    %v4992 = vsel %vm4978, %v4962, 0
    %v4995 = vsel %vm4978, %v4963, 0
    %v4998 = vsel %vm4978, %v4964, 0
    %v5001 = vsel %vm4978, %v4965, 0
    %5003 = vmatpush.msra.mxu0 0.0
    %5004 = vmatpush.msra.mxu0 0.0
    %5005 = vmatpush.msra.mxu0 0.0
    %5006 = vmatpush.msra.mxu0 0.0
    %5007 = vmatpush.msra.mxu0 0.0
    %5008 = vmatpush.msra.mxu0 0.0
    %5009 = vmatpush.msra.mxu0 0.0
    %5010 = vmatpush.msra.mxu0 0.0
    %5011 = vmatpush.msra.mxu0 %v4973
    %5012 = vmatpush.msra.mxu0 %v4972
    %5013 = vmatpush.msra.mxu0 %v4971
    %5014 = vmatpush.msra.mxu0 %v4970
    %5015 = vmatpush.msra.mxu0 %v4969
    %5016 = vmatpush.msra.mxu0 %v4968
    %5017 = vmatpush.msra.mxu0 %v4967
    %5018 = vmatpush.msra.mxu0 %v4966
    %5019 = vmatmul.f32.gmra.mxu0 %v4980
    %v5020 = vpop.f32.mrf.mxu0
    %v5021 = vadd.f32 %v4976, %v5020
    %5022 = vmatmul.f32.gmra.mxu0 %v4983
    %v5023 = vpop.f32.mrf.mxu0
    %v5024 = vadd.f32 %v4976, %v5023
    %5025 = vmatmul.f32.gmra.mxu0 %v4986
    %v5026 = vpop.f32.mrf.mxu0
    %v5027 = vadd.f32 %v4976, %v5026
    %5028 = vmatmul.f32.gmra.mxu0 %v4989
    %v5029 = vpop.f32.mrf.mxu0
    %v5030 = vadd.f32 %v4976, %v5029
    %5031 = vmatmul.f32.gmra.mxu0 %v4992
    %v5032 = vpop.f32.mrf.mxu0
    %v5033 = vadd.f32 %v4976, %v5032
    %5034 = vmatmul.f32.gmra.mxu0 %v4995
    %v5035 = vpop.f32.mrf.mxu0
    %v5036 = vadd.f32 %v4976, %v5035
    %5037 = vmatmul.f32.gmra.mxu0 %v4998
    %v5038 = vpop.f32.mrf.mxu0
    %v5039 = vadd.f32 %v4976, %v5038
    %5040 = vmatmul.f32.gmra.mxu0 %v5001
    %v5041 = vpop.f32.mrf.mxu0
    %v5042 = vadd.f32 %v4976, %v5041
    %5043 = vdwg.mxu0
    %v5044 = vtanh.pop %v5021
    %v5045 = vtanh.pop %v5024
    %v5046 = vtanh.pop %v5027
    %v5047 = vtanh.pop %v5030
    %v5048 = vtanh.pop %v5033
    %v5049 = vtanh.pop %v5036
    %v5050 = vtanh.pop %v5039
    %v5051 = vtanh.pop %v5042
    %v5052 = vld [vmem:[#allocation12] sm:$0xff]
    %v5053 = vld [vmem:[#allocation12 + $0x8] sm:$0xff]
    %v5054 = vld [vmem:[#allocation12 + $0x10] sm:$0xff]
    %v5055 = vld [vmem:[#allocation12 + $0x18] sm:$0xff]
    %v5056 = vld [vmem:[%s12] sm:$0x1]
    %v5058 = vperm.slane %v5056, 0
    %v5061 = vsel %vm244, %v5044, 0
    %v5064 = vsel %vm244, %v5045, 0
    %v5067 = vsel %vm244, %v5046, 0
    %v5070 = vsel %vm244, %v5047, 0
    %v5073 = vsel %vm244, %v5048, 0
    %v5076 = vsel %vm244, %v5049, 0
    %v5079 = vsel %vm244, %v5050, 0
    %v5082 = vsel %vm244, %v5051, 0
    %5084 = vmatpush.msra.mxu0 0.0
    %5085 = vmatpush.msra.mxu0 0.0
    %5086 = vmatpush.msra.mxu0 0.0
    %5087 = vmatpush.msra.mxu0 0.0
    %5088 = vmatpush.msra.mxu0 0.0
    %5089 = vmatpush.msra.mxu0 0.0
    %5090 = vmatpush.msra.mxu0 0.0
    %5091 = vmatpush.msra.mxu0 0.0
    %5092 = vmatpush.msra.mxu0 0.0
    %5093 = vmatpush.msra.mxu0 0.0
    %5094 = vmatpush.msra.mxu0 0.0
    %5095 = vmatpush.msra.mxu0 0.0
    %5096 = vmatpush.msra.mxu0 %v5055
    %5097 = vmatpush.msra.mxu0 %v5054
    %5098 = vmatpush.msra.mxu0 %v5053
    %5099 = vmatpush.msra.mxu0 %v5052
    %5100 = vmatmul.f32.gmra.mxu0 %v5061
    %v5101 = vpop.f32.mrf.mxu0
    %v5102 = vadd.f32 %v5058, %v5101
    %5103 = vmatmul.f32.gmra.mxu0 %v5064
    %v5104 = vpop.f32.mrf.mxu0
    %v5105 = vadd.f32 %v5058, %v5104
    %5106 = vmatmul.f32.gmra.mxu0 %v5067
    %v5107 = vpop.f32.mrf.mxu0
    %v5108 = vadd.f32 %v5058, %v5107
    %5109 = vmatmul.f32.gmra.mxu0 %v5070
    %v5110 = vpop.f32.mrf.mxu0
    %v5111 = vadd.f32 %v5058, %v5110
    %5112 = vmatmul.f32.gmra.mxu0 %v5073
    %v5113 = vpop.f32.mrf.mxu0
    %v5114 = vadd.f32 %v5058, %v5113
    %5115 = vmatmul.f32.gmra.mxu0 %v5076
    %v5116 = vpop.f32.mrf.mxu0
    %v5117 = vadd.f32 %v5058, %v5116
    %5118 = vmatmul.f32.gmra.mxu0 %v5079
    %v5119 = vpop.f32.mrf.mxu0
    %v5120 = vadd.f32 %v5058, %v5119
    %5121 = vmatmul.f32.gmra.mxu0 %v5082
    %v5122 = vpop.f32.mrf.mxu0
    %v5123 = vadd.f32 %v5058, %v5122
    %5124 = vdwg.mxu0
    %5125 = vst [vmem:[#allocation13] sm:$0xff] %v5102
    %5126 = vst [vmem:[#allocation13 + $0x8] sm:$0xff] %v5105
    %5127 = vst [vmem:[#allocation13 + $0x10] sm:$0xff] %v5108
    %5128 = vst [vmem:[#allocation13 + $0x18] sm:$0xff] %v5111
    %5129 = vst [vmem:[#allocation13 + $0x20] sm:$0xff] %v5114
    %5130 = vst [vmem:[#allocation13 + $0x28] sm:$0xff] %v5117
    %5131 = vst [vmem:[#allocation13 + $0x30] sm:$0xff] %v5120
    %5132 = vst [vmem:[#allocation13 + $0x38] sm:$0xff] %v5123
    // Predicated region
    $region74: #{decoder_forward.1} parent=1 // pred_check
      _
    $region75: #{decoder_forward.1} parent=1 // pred_check_branch
      %5134 = sbr.rel (0) target = $region77
    $region76: #{decoder_forward.1} parent=1 // pred_region
      %5136 = vsyncadd [#allocation6], 0
      %s5137 = sshll.u32 [#allocation13], 4
      %s5138 = int_to_ptr.vmem [resolvable:$true] %s5137
      %s5139 = sshll.u32 %s13, 4
      %s5140 = int_to_ptr.hbm [resolvable:$true] %s5139
      %5145 = dma.vmem_to_hbm [thread:$0]  %s5138, 1024, %s5140, [#allocation6], 128, 128, 8
    $region77: #{decoder_forward.1} parent=1 // pred_fallthru
      _
    // Predicated region
    $region78: #{decoder_forward.1} parent=1 // pred_check
      _
    $region79: #{decoder_forward.1} parent=1 // pred_check_branch
      %5147 = sbr.rel (0) target = $region81
    $region80: #{decoder_forward.1} parent=1 // pred_region
      %5149 = vsyncadd [#allocation15], 0
      %s5150 = sshll.u32 [#allocation14], 4
      %s5151 = int_to_ptr.vmem [resolvable:$true] %s5150
      %s5152 = sshll.u32 %s14, 4
      %s5153 = int_to_ptr.hbm [resolvable:$true] %s5152
      %5158 = dma.vmem_to_hbm [thread:$0]  %s5151, 1024, %s5153, [#allocation15], 128, 128, 8
    $region81: #{decoder_forward.1} parent=1 // pred_fallthru
      _
    // Predicated region
    $region82: #{decoder_forward.1} parent=1 // pred_check
      _
    $region83: #{decoder_forward.1} parent=1 // pred_check_branch
      %5160 = sbr.rel (0) target = $region85
    $region84: #{decoder_forward.1} parent=1 // pred_region
      %5162 = vsyncadd [#allocation15], 0
      %s5163 = sshll.u32 [#allocation16], 4
      %s5164 = int_to_ptr.vmem [resolvable:$true] %s5163
      %s5165 = sshll.u32 %s15, 4
      %s5166 = int_to_ptr.hbm [resolvable:$true] %s5165
      %5171 = dma.vmem_to_hbm [thread:$0]  %s5164, 512, %s5166, [#allocation15], 128, 128, 8
    $region85: #{decoder_forward.1} parent=1 // pred_fallthru
      _
    // Predicated region
    $region86: #{decoder_forward.1} parent=1 // pred_check
      _
    $region87: #{decoder_forward.1} parent=1 // pred_check_branch
      %5173 = sbr.rel (0) target = $region89
    $region88: #{decoder_forward.1} parent=1 // pred_region
      %5175 = vsyncadd [#allocation18], 0
      %s5176 = sshll.u32 [#allocation17], 4
      %s5177 = int_to_ptr.vmem [resolvable:$true] %s5176
      %s5178 = sshll.u32 %s16, 4
      %s5179 = int_to_ptr.hbm [resolvable:$true] %s5178
      %5184 = dma.vmem_to_hbm [thread:$0]  %s5177, 512, %s5179, [#allocation18], 128, 128, 8
    $region89: #{decoder_forward.1} parent=1 // pred_fallthru
      _
    // Predicated region
    $region90: #{decoder_forward.1} parent=1 // pred_check
      _
    $region91: #{decoder_forward.1} parent=1 // pred_check_branch
      %5186 = sbr.rel (0) target = $region93
    $region92: #{decoder_forward.1} parent=1 // pred_region
      %5188 = dma.done [#allocation6], 1024
    $region93: #{decoder_forward.1} parent=1 // pred_fallthru
      _
    // Predicated region
    $region94: #{decoder_forward.1} parent=1 // pred_check
      _
    $region95: #{decoder_forward.1} parent=1 // pred_check_branch
      %5190 = sbr.rel (0) target = $region97
    $region96: #{decoder_forward.1} parent=1 // pred_region
      %5192 = dma.done [#allocation15], 1024
    $region97: #{decoder_forward.1} parent=1 // pred_fallthru
      _
    // Predicated region
    $region98: #{decoder_forward.1} parent=1 // pred_check
      _
    $region99: #{decoder_forward.1} parent=1 // pred_check_branch
      %5194 = sbr.rel (0) target = $region101
    $region100: #{decoder_forward.1} parent=1 // pred_region
      %5196 = dma.done [#allocation15], 512
    $region101: #{decoder_forward.1} parent=1 // pred_fallthru
      _
    // Predicated region
    $region102: #{decoder_forward.1} parent=1 // pred_check
      _
    $region103: #{decoder_forward.1} parent=1 // pred_check_branch
      %5198 = sbr.rel (0) target = $region105
    $region104: #{decoder_forward.1} parent=1 // pred_region
      %5200 = dma.done [#allocation18], 512
    $region105: #{decoder_forward.1} parent=1 // pred_fallthru
      _
    %5201 = vsyncpa [#allocation5], 1
    %5202 = vsyncpa [#allocation8], 1
    %5203 = vsyncpa [#allocation11], 1
    %5204 = vsyncpa [#allocation6], 1
    %5205 = vsyncpa [#allocation15], 1
    %5206 = vsyncpa [#allocation18], 1

</llo_original>
